<compile_context>
chip_gen: v5e
topology: v5e:2x2
jax: 0.10.0
libtpu: 0.0.40
codegen_flags: <defaults>
</compile_context>

<pallas_src>
import jax
import jax.numpy as jnp
from jax import lax
from jax.experimental import pallas as pl
from jax.experimental.pallas import tpu as pltpu

_BN_EPS = 1e-5


def _round_up(x, m):
    return (x + m - 1) // m * m


# ----------------------------------------------------------------------------
# Fused Pallas kernel: down-conv + (conv1/BN1/ReLU, conv2/BN2/ReLU, conv3/BN3)
# + residual add, for one batch element per grid step.
# ----------------------------------------------------------------------------
def _make_fused_kernel(Cp, Kp, NL, Hp, Wp):
    HpWp = Hp * Wp
    K = 27 * Cp
    taps = [(kd, kh, kw) for kd in range(3) for kh in range(3) for kw in range(3)]

    def kernel(mask_ref, scale_ref, shift_ref, w01_ref, w2_ref, w3_ref,
               x_ref, o_ref, p_ref):
        mask = mask_ref[...]          # (1, NL)  1 inside the volume, 0 on halo/tail
        sc = scale_ref[...]           # (Cp, 4)  fused BN scale per conv
        sh = shift_ref[...]           # (Cp, 4)  fused (BN shift + conv bias) per conv

        if Kp > K:                    # zero the K-padding rows once per grid step
            p_ref[K:Kp, :] = jnp.zeros((Kp - K, NL), jnp.float32)

        def build_patches(src):
            # src: (Cp, NL) zero-padded volume (data at interior positions).
            # patches[t*Cp + c, p] = src[c, p + off(t)]  -> realized as lane rolls.
            for t, (kd, kh, kw) in enumerate(taps):
                off = (kd - 1) * HpWp + (kh - 1) * Wp + (kw - 1)
                piece = src if off == 0 else pltpu.roll(src, (-off) % NL, axis=1)
                p_ref[t * Cp:(t + 1) * Cp, :] = piece

        # --- conv_block_down and up-conv1 share one im2col of x (weights concat) --
        build_patches(x_ref[0])
        y01 = jnp.dot(w01_ref[...], p_ref[...],
                      preferred_element_type=jnp.float32)          # (2*Cp, NL)
        down = y01[:Cp] + sh[:, 0:1]                                # down conv (+bias)
        h = jnp.maximum(y01[Cp:] * sc[:, 1:2] + sh[:, 1:2], 0.0)    # conv1+BN1+ReLU

        # --- up-conv2 + BN2 + ReLU --------------------------------------------
        build_patches(h * mask)
        y2 = jnp.dot(w2_ref[...], p_ref[...], preferred_element_type=jnp.float32)
        h = jnp.maximum(y2 * sc[:, 2:3] + sh[:, 2:3], 0.0)

        # --- up-conv3 + BN3 + residual ------------------------------------------
        build_patches(h * mask)
        y3 = jnp.dot(w3_ref[...], p_ref[...], preferred_element_type=jnp.float32)
        o_ref[0] = y3 * sc[:, 3:4] + sh[:, 3:4] + down

    return kernel


# ----------------------------------------------------------------------------
# Host-side packing helpers
# ----------------------------------------------------------------------------
def _pack_weight(w_oidhw, Cp, Kp):
    """(Cout, Cin, 3,3,3) torch layout -> lane-dense (Cp, Kp) slab.

    Column layout: tap-major, channel-minor:  col = (kd*9 + kh*3 + kw)*Cp + cin.
    """
    co, ci = w_oidhw.shape[:2]
    w = jnp.transpose(w_oidhw.astype(jnp.float32), (0, 2, 3, 4, 1))  # (Co,kd,kh,kw,Ci)
    w = jnp.pad(w, ((0, Cp - co), (0, 0), (0, 0), (0, 0), (0, Cp - ci)))
    w = w.reshape(Cp, 27 * Cp)
    return jnp.pad(w, ((0, 0), (0, Kp - 27 * Cp)))


# ----------------------------------------------------------------------------
# Full forward (dense=False):  conv_block_down(x) + conv_block_up(x)
# ----------------------------------------------------------------------------
def feature_extract_forward(x_ncdhw, p):
    B, Cin, D, H, W = x_ncdhw.shape
    Cout = p["wd"].shape[0]
    Cp = _round_up(max(Cin, Cout), 8)
    Dp, Hp, Wp = D + 2, H + 2, W + 2
    Np = Dp * Hp * Wp
    NL = _round_up(Np, 128)
    Kp = _round_up(27 * Cp, 128)

    # Weights: down-conv and up-conv1 concatenated along Cout (share one im2col).
    w01 = jnp.concatenate([_pack_weight(p["wd"], Cp, Kp),
                           _pack_weight(p["wu1"], Cp, Kp)], axis=0)   # (2*Cp, Kp)
    w2 = _pack_weight(p["wu2"], Cp, Kp)                               # (Cp, Kp)
    w3 = _pack_weight(p["wu3"], Cp, Kp)                               # (Cp, Kp)

    def padc(v):
        return jnp.pad(v.astype(jnp.float32), (0, Cp - v.shape[0]))

    # Per-conv fused scale/shift (conv bias folded into the shift).
    scales = jnp.stack([padc(jnp.ones((Cout,), jnp.float32)),        # down conv
                        padc(p["bn1_scale"]),
                        padc(p["bn2_scale"]),
                        padc(p["bn3_scale"])], axis=1)               # (Cp, 4)
    shifts = jnp.stack([padc(p["bd"]),
                        padc(p["bn1_scale"] * p["bu1"] + p["bn1_shift"]),
                        padc(p["bn2_scale"] * p["bu2"] + p["bn2_shift"]),
                        padc(p["bn3_scale"] * p["bu3"] + p["bn3_shift"])], axis=1)

    # Channel-pad, add the 1-voxel zero halo, flatten spatial, pad lane dim.
    xp = jnp.pad(x_ncdhw.astype(jnp.float32),
                 ((0, 0), (0, Cp - Cin), (1, 1), (1, 1), (1, 1)))
    xp = xp.reshape(B, Cp, Np)
    xp = jnp.pad(xp, ((0, 0), (0, 0), (0, NL - Np)))                 # (B, Cp, NL)

    # Interior mask in flat padded coordinates (re-zeroes the halo between convs).
    idx = jnp.arange(NL)
    d_ = idx // (Hp * Wp)
    r_ = idx % (Hp * Wp)
    h_ = r_ // Wp
    w_ = r_ % Wp
    mask = ((idx < Np) & (d_ >= 1) & (d_ <= D) & (h_ >= 1) & (h_ <= H)
            & (w_ >= 1) & (w_ <= W)).astype(jnp.float32).reshape(1, NL)

    kernel = _make_fused_kernel(Cp, Kp, NL, Hp, Wp)

    flops = 2 * B * NL * Kp * (4 * Cp)
    bytes_accessed = 4 * (2 * B * Cp * NL + 4 * Cp * Kp + NL + 8 * Cp)

    out_flat = pl.pallas_call(
        kernel,
        out_shape=jax.ShapeDtypeStruct((B, Cp, NL), jnp.float32),
        grid=(B,),
        in_specs=[
            pl.BlockSpec((1, NL), lambda b: (0, 0)),          # interior mask
            pl.BlockSpec((Cp, 4), lambda b: (0, 0)),          # scales
            pl.BlockSpec((Cp, 4), lambda b: (0, 0)),          # shifts
            pl.BlockSpec((2 * Cp, Kp), lambda b: (0, 0)),     # w01 (down ++ up1)
            pl.BlockSpec((Cp, Kp), lambda b: (0, 0)),         # w2
            pl.BlockSpec((Cp, Kp), lambda b: (0, 0)),         # w3
            pl.BlockSpec((1, Cp, NL), lambda b: (b, 0, 0)),   # padded input
        ],
        out_specs=pl.BlockSpec((1, Cp, NL), lambda b: (b, 0, 0)),
        scratch_shapes=[pltpu.VMEM((Kp, NL), jnp.float32)],   # im2col patch matrix
        compiler_params=pltpu.CompilerParams(
            dimension_semantics=("parallel",)),
        cost_estimate=pl.CostEstimate(flops=flops, transcendentals=0,
                                      bytes_accessed=bytes_accessed),
    )(mask, scales, shifts, w01, w2, w3, xp)

    # (B, Cp, NL) flat padded grid -> NCDHW interior; no transpose needed.
    out = out_flat[:, :Cout, :Np].reshape(B, Cout, Dp, Hp, Wp)
    return out[:, :, 1:D + 1, 1:H + 1, 1:W + 1]


# ----------------------------------------------------------------------------
# Parameter setup (deterministic, mirrors the PyTorch __init__ shapes)
# ----------------------------------------------------------------------------
def spectral_normalize(w, n_iter=30):
    """w: (Cout, Cin, 3, 3, 3) -> w / sigma_max(w.reshape(Cout, -1))."""
    cout = w.shape[0]
    wm = w.reshape(cout, -1)
    u = jnp.ones((cout,), jnp.float32) / jnp.sqrt(cout)
    v = None
    for _ in range(n_iter):
        v = wm.T @ u
        v = v / (jnp.linalg.norm(v) + 1e-12)
        u = wm @ v
        u = u / (jnp.linalg.norm(u) + 1e-12)
    sigma = u @ (wm @ v)
    return w / sigma


def init_params(key, cin, cout):
    ks = jax.random.split(key, 11)
    params = {}

    def conv_w(k, ci, co):
        w = 0.1 * jax.random.normal(k, (co, ci, 3, 3, 3), jnp.float32)
        return spectral_normalize(w)          # kept in PyTorch OIDHW layout

    params["wd"] = conv_w(ks[0], cin, cout)
    params["bd"] = 0.05 * jax.random.normal(ks[1], (cout,), jnp.float32)
    params["wu1"] = conv_w(ks[2], cin, cout)
    params["bu1"] = 0.05 * jax.random.normal(ks[3], (cout,), jnp.float32)
    params["wu2"] = conv_w(ks[4], cout, cout)
    params["bu2"] = 0.05 * jax.random.normal(ks[5], (cout,), jnp.float32)
    params["wu3"] = conv_w(ks[6], cout, cout)
    params["bu3"] = 0.05 * jax.random.normal(ks[7], (cout,), jnp.float32)
    # BN affine params (running_mean=0, running_var=1, eval mode)
    for i, kk in zip((1, 2, 3), (ks[8], ks[9], ks[10])):
        g = 1.0 + 0.1 * jax.random.normal(kk, (cout,), jnp.float32)
        be = 0.1 * jax.random.normal(jax.random.fold_in(kk, 7), (cout,), jnp.float32)
        params[f"bn{i}_scale"] = g / jnp.sqrt(1.0 + _BN_EPS)
        params[f"bn{i}_shift"] = be
    return params


# ----------------------------------------------------------------------------
# Pure-JAX reference (XLA conv) for correctness checking
# ----------------------------------------------------------------------------
def _conv3d_ref(x_ndhwc, w_oidhw, b):
    w = jnp.transpose(w_oidhw, (2, 3, 4, 1, 0))   # -> DHWIO
    out = lax.conv_general_dilated(
        x_ndhwc, w, window_strides=(1, 1, 1), padding="SAME",
        dimension_numbers=("NDHWC", "DHWIO", "NDHWC"),
        precision=lax.Precision.HIGHEST)
    return out + b


def reference_forward(x_ncdhw, p):
    x = jnp.transpose(x_ncdhw, (0, 2, 3, 4, 1)).astype(jnp.float32)
    down = _conv3d_ref(x, p["wd"], p["bd"])
    h = _conv3d_ref(x, p["wu1"], p["bu1"])
    h = jnp.maximum(h * p["bn1_scale"] + p["bn1_shift"], 0.0)
    h = _conv3d_ref(h, p["wu2"], p["bu2"])
    h = jnp.maximum(h * p["bn2_scale"] + p["bn2_shift"], 0.0)
    h = _conv3d_ref(h, p["wu3"], p["bu3"])
    h = h * p["bn3_scale"] + p["bn3_shift"]
    out = down + h
    return jnp.transpose(out, (0, 4, 1, 2, 3))


if __name__ == "__main__":
    B, Cin, D, H, W = 2, 4, 8, 8, 8
    Cout = 8

    root = jax.random.PRNGKey(0)
    k_param, k_x = jax.random.split(root)
    params = init_params(k_param, Cin, Cout)
    x = jax.random.normal(k_x, (B, Cin, D, H, W), jnp.float32)   # NCDHW

    out = jax.block_until_ready(feature_extract_forward(x, params))
    assert out.shape == (B, Cout, D, H, W), out.shape

    ref = jax.block_until_ready(reference_forward(x, params))
    max_err = float(jnp.max(jnp.abs(out - ref)))
    assert max_err < 1e-3, f"max abs error {max_err}"

    print("KERNEL_OK")
</pallas_src>

<mosaic_0001>
module attributes {stable_mosaic.version = 11 : i64} {
  func.func @kernel(%arg0: i32, %arg1: memref<1x1024xf32, #tpu.memory_space<vmem>>, %arg2: memref<8x4xf32, #tpu.memory_space<vmem>>, %arg3: memref<8x4xf32, #tpu.memory_space<vmem>>, %arg4: memref<16x256xf32, #tpu.memory_space<vmem>>, %arg5: memref<8x256xf32, #tpu.memory_space<vmem>>, %arg6: memref<8x256xf32, #tpu.memory_space<vmem>>, %arg7: memref<1x8x1024xf32, #tpu.memory_space<vmem>>, %arg8: memref<1x8x1024xf32, #tpu.memory_space<vmem>>, %arg9: memref<256x1024xf32, #tpu.memory_space<vmem>>) attributes {dimension_semantics = [#tpu.dimension_semantics<parallel>], iteration_bounds = array<i64: 2>, scalar_prefetch = 0 : i64, scratch_operands = 1 : i64, tpu.core_type = #tpu.core_type<tc>, window_params = [{pipeline_mode = #tpu.pipeline_mode<synchronous>, transform_indices = @transform_0, window_bounds = array<i64: 1, 1024>}, {pipeline_mode = #tpu.pipeline_mode<synchronous>, transform_indices = @transform_1, window_bounds = array<i64: 8, 4>}, {pipeline_mode = #tpu.pipeline_mode<synchronous>, transform_indices = @transform_2, window_bounds = array<i64: 8, 4>}, {pipeline_mode = #tpu.pipeline_mode<synchronous>, transform_indices = @transform_3, window_bounds = array<i64: 16, 256>}, {pipeline_mode = #tpu.pipeline_mode<synchronous>, transform_indices = @transform_4, window_bounds = array<i64: 8, 256>}, {pipeline_mode = #tpu.pipeline_mode<synchronous>, transform_indices = @transform_5, window_bounds = array<i64: 8, 256>}, {transform_indices = @transform_6, window_bounds = array<i64: 1, 8, 1024>}, {transform_indices = @transform_7, window_bounds = array<i64: 1, 8, 1024>}]} {
    %c0 = arith.constant 0 : index
    %c0_0 = arith.constant 0 : index
    %0 = vector.load %arg1[%c0, %c0_0] : memref<1x1024xf32, #tpu.memory_space<vmem>>, vector<1x1024xf32>
    %c0_1 = arith.constant 0 : index
    %c0_2 = arith.constant 0 : index
    %1 = vector.load %arg2[%c0_1, %c0_2] : memref<8x4xf32, #tpu.memory_space<vmem>>, vector<8x4xf32>
    %c0_3 = arith.constant 0 : index
    %c0_4 = arith.constant 0 : index
    %2 = vector.load %arg3[%c0_3, %c0_4] : memref<8x4xf32, #tpu.memory_space<vmem>>, vector<8x4xf32>
    %cst = arith.constant 0.000000e+00 : f32
    %3 = vector.broadcast %cst : f32 to vector<40x1024xf32>
    %c216 = arith.constant 216 : index
    %c0_5 = arith.constant 0 : index
    %4 = vector.load %arg9[%c216, %c0_5] : memref<256x1024xf32, #tpu.memory_space<vmem>>, vector<40x1024xf32>
    tpu.vector_store %arg9[%c216, %c0_5], %3 {strides = array<i32>} : memref<256x1024xf32, #tpu.memory_space<vmem>>, vector<40x1024xf32>,
    %c0_6 = arith.constant 0 : index
    %c0_7 = arith.constant 0 : index
    %c0_8 = arith.constant 0 : index
    %5 = vector.load %arg7[%c0_6, %c0_7, %c0_8] : memref<1x8x1024xf32, #tpu.memory_space<vmem>>, vector<1x8x1024xf32>
    %6 = vector.shape_cast %5 : vector<1x8x1024xf32> to vector<8x1024xf32>
    %c111_i32 = arith.constant 111 : i32
    %7 = tpu.dynamic_rotate %6 by %c111_i32 dim 1 : vector<8x1024xf32>, i32 -> vector<8x1024xf32>
    %c0_9 = arith.constant 0 : index
    %c0_10 = arith.constant 0 : index
    %8 = vector.load %arg9[%c0_9, %c0_10] : memref<256x1024xf32, #tpu.memory_space<vmem>>, vector<8x1024xf32>
    tpu.vector_store %arg9[%c0_9, %c0_10], %7 {strides = array<i32>} : memref<256x1024xf32, #tpu.memory_space<vmem>>, vector<8x1024xf32>,
    %c110_i32 = arith.constant 110 : i32
    %9 = tpu.dynamic_rotate %6 by %c110_i32 dim 1 : vector<8x1024xf32>, i32 -> vector<8x1024xf32>
    %c8 = arith.constant 8 : index
    %c0_11 = arith.constant 0 : index
    %10 = vector.load %arg9[%c8, %c0_11] : memref<256x1024xf32, #tpu.memory_space<vmem>>, vector<8x1024xf32>
    tpu.vector_store %arg9[%c8, %c0_11], %9 {strides = array<i32>} : memref<256x1024xf32, #tpu.memory_space<vmem>>, vector<8x1024xf32>,
    %c109_i32 = arith.constant 109 : i32
    %11 = tpu.dynamic_rotate %6 by %c109_i32 dim 1 : vector<8x1024xf32>, i32 -> vector<8x1024xf32>
    %c16 = arith.constant 16 : index
    %c0_12 = arith.constant 0 : index
    %12 = vector.load %arg9[%c16, %c0_12] : memref<256x1024xf32, #tpu.memory_space<vmem>>, vector<8x1024xf32>
    tpu.vector_store %arg9[%c16, %c0_12], %11 {strides = array<i32>} : memref<256x1024xf32, #tpu.memory_space<vmem>>, vector<8x1024xf32>,
    %c101_i32 = arith.constant 101 : i32
    %13 = tpu.dynamic_rotate %6 by %c101_i32 dim 1 : vector<8x1024xf32>, i32 -> vector<8x1024xf32>
    %c24 = arith.constant 24 : index
    %c0_13 = arith.constant 0 : index
    %14 = vector.load %arg9[%c24, %c0_13] : memref<256x1024xf32, #tpu.memory_space<vmem>>, vector<8x1024xf32>
    tpu.vector_store %arg9[%c24, %c0_13], %13 {strides = array<i32>} : memref<256x1024xf32, #tpu.memory_space<vmem>>, vector<8x1024xf32>,
    %c100_i32 = arith.constant 100 : i32
    %15 = tpu.dynamic_rotate %6 by %c100_i32 dim 1 : vector<8x1024xf32>, i32 -> vector<8x1024xf32>
    %c32 = arith.constant 32 : index
    %c0_14 = arith.constant 0 : index
    %16 = vector.load %arg9[%c32, %c0_14] : memref<256x1024xf32, #tpu.memory_space<vmem>>, vector<8x1024xf32>
    tpu.vector_store %arg9[%c32, %c0_14], %15 {strides = array<i32>} : memref<256x1024xf32, #tpu.memory_space<vmem>>, vector<8x1024xf32>,
    %c99_i32 = arith.constant 99 : i32
    %17 = tpu.dynamic_rotate %6 by %c99_i32 dim 1 : vector<8x1024xf32>, i32 -> vector<8x1024xf32>
    %c40 = arith.constant 40 : index
    %c0_15 = arith.constant 0 : index
    %18 = vector.load %arg9[%c40, %c0_15] : memref<256x1024xf32, #tpu.memory_space<vmem>>, vector<8x1024xf32>
    tpu.vector_store %arg9[%c40, %c0_15], %17 {strides = array<i32>} : memref<256x1024xf32, #tpu.memory_space<vmem>>, vector<8x1024xf32>,
    %c91_i32 = arith.constant 91 : i32
    %19 = tpu.dynamic_rotate %6 by %c91_i32 dim 1 : vector<8x1024xf32>, i32 -> vector<8x1024xf32>
    %c48 = arith.constant 48 : index
    %c0_16 = arith.constant 0 : index
    %20 = vector.load %arg9[%c48, %c0_16] : memref<256x1024xf32, #tpu.memory_space<vmem>>, vector<8x1024xf32>
    tpu.vector_store %arg9[%c48, %c0_16], %19 {strides = array<i32>} : memref<256x1024xf32, #tpu.memory_space<vmem>>, vector<8x1024xf32>,
    %c90_i32 = arith.constant 90 : i32
    %21 = tpu.dynamic_rotate %6 by %c90_i32 dim 1 : vector<8x1024xf32>, i32 -> vector<8x1024xf32>
    %c56 = arith.constant 56 : index
    %c0_17 = arith.constant 0 : index
    %22 = vector.load %arg9[%c56, %c0_17] : memref<256x1024xf32, #tpu.memory_space<vmem>>, vector<8x1024xf32>
    tpu.vector_store %arg9[%c56, %c0_17], %21 {strides = array<i32>} : memref<256x1024xf32, #tpu.memory_space<vmem>>, vector<8x1024xf32>,
    %c89_i32 = arith.constant 89 : i32
    %23 = tpu.dynamic_rotate %6 by %c89_i32 dim 1 : vector<8x1024xf32>, i32 -> vector<8x1024xf32>
    %c64 = arith.constant 64 : index
    %c0_18 = arith.constant 0 : index
    %24 = vector.load %arg9[%c64, %c0_18] : memref<256x1024xf32, #tpu.memory_space<vmem>>, vector<8x1024xf32>
    tpu.vector_store %arg9[%c64, %c0_18], %23 {strides = array<i32>} : memref<256x1024xf32, #tpu.memory_space<vmem>>, vector<8x1024xf32>,
    %c11_i32 = arith.constant 11 : i32
    %25 = tpu.dynamic_rotate %6 by %c11_i32 dim 1 : vector<8x1024xf32>, i32 -> vector<8x1024xf32>
    %c72 = arith.constant 72 : index
    %c0_19 = arith.constant 0 : index
    %26 = vector.load %arg9[%c72, %c0_19] : memref<256x1024xf32, #tpu.memory_space<vmem>>, vector<8x1024xf32>
    tpu.vector_store %arg9[%c72, %c0_19], %25 {strides = array<i32>} : memref<256x1024xf32, #tpu.memory_space<vmem>>, vector<8x1024xf32>,
    %c10_i32 = arith.constant 10 : i32
    %27 = tpu.dynamic_rotate %6 by %c10_i32 dim 1 : vector<8x1024xf32>, i32 -> vector<8x1024xf32>
    %c80 = arith.constant 80 : index
    %c0_20 = arith.constant 0 : index
    %28 = vector.load %arg9[%c80, %c0_20] : memref<256x1024xf32, #tpu.memory_space<vmem>>, vector<8x1024xf32>
    tpu.vector_store %arg9[%c80, %c0_20], %27 {strides = array<i32>} : memref<256x1024xf32, #tpu.memory_space<vmem>>, vector<8x1024xf32>,
    %c9_i32 = arith.constant 9 : i32
    %29 = tpu.dynamic_rotate %6 by %c9_i32 dim 1 : vector<8x1024xf32>, i32 -> vector<8x1024xf32>
    %c88 = arith.constant 88 : index
    %c0_21 = arith.constant 0 : index
    %30 = vector.load %arg9[%c88, %c0_21] : memref<256x1024xf32, #tpu.memory_space<vmem>>, vector<8x1024xf32>
    tpu.vector_store %arg9[%c88, %c0_21], %29 {strides = array<i32>} : memref<256x1024xf32, #tpu.memory_space<vmem>>, vector<8x1024xf32>,
    %c1_i32 = arith.constant 1 : i32
    %31 = tpu.dynamic_rotate %6 by %c1_i32 dim 1 : vector<8x1024xf32>, i32 -> vector<8x1024xf32>
    %c96 = arith.constant 96 : index
    %c0_22 = arith.constant 0 : index
    %32 = vector.load %arg9[%c96, %c0_22] : memref<256x1024xf32, #tpu.memory_space<vmem>>, vector<8x1024xf32>
    tpu.vector_store %arg9[%c96, %c0_22], %31 {strides = array<i32>} : memref<256x1024xf32, #tpu.memory_space<vmem>>, vector<8x1024xf32>,
    %c104 = arith.constant 104 : index
    %c0_23 = arith.constant 0 : index
    %33 = vector.load %arg9[%c104, %c0_23] : memref<256x1024xf32, #tpu.memory_space<vmem>>, vector<8x1024xf32>
    tpu.vector_store %arg9[%c104, %c0_23], %6 {strides = array<i32>} : memref<256x1024xf32, #tpu.memory_space<vmem>>, vector<8x1024xf32>,
    %c1023_i32 = arith.constant 1023 : i32
    %34 = tpu.dynamic_rotate %6 by %c1023_i32 dim 1 : vector<8x1024xf32>, i32 -> vector<8x1024xf32>
    %c112 = arith.constant 112 : index
    %c0_24 = arith.constant 0 : index
    %35 = vector.load %arg9[%c112, %c0_24] : memref<256x1024xf32, #tpu.memory_space<vmem>>, vector<8x1024xf32>
    tpu.vector_store %arg9[%c112, %c0_24], %34 {strides = array<i32>} : memref<256x1024xf32, #tpu.memory_space<vmem>>, vector<8x1024xf32>,
    %c1015_i32 = arith.constant 1015 : i32
    %36 = tpu.dynamic_rotate %6 by %c1015_i32 dim 1 : vector<8x1024xf32>, i32 -> vector<8x1024xf32>
    %c120 = arith.constant 120 : index
    %c0_25 = arith.constant 0 : index
    %37 = vector.load %arg9[%c120, %c0_25] : memref<256x1024xf32, #tpu.memory_space<vmem>>, vector<8x1024xf32>
    tpu.vector_store %arg9[%c120, %c0_25], %36 {strides = array<i32>} : memref<256x1024xf32, #tpu.memory_space<vmem>>, vector<8x1024xf32>,
    %c1014_i32 = arith.constant 1014 : i32
    %38 = tpu.dynamic_rotate %6 by %c1014_i32 dim 1 : vector<8x1024xf32>, i32 -> vector<8x1024xf32>
    %c128 = arith.constant 128 : index
    %c0_26 = arith.constant 0 : index
    %39 = vector.load %arg9[%c128, %c0_26] : memref<256x1024xf32, #tpu.memory_space<vmem>>, vector<8x1024xf32>
    tpu.vector_store %arg9[%c128, %c0_26], %38 {strides = array<i32>} : memref<256x1024xf32, #tpu.memory_space<vmem>>, vector<8x1024xf32>,
    %c1013_i32 = arith.constant 1013 : i32
    %40 = tpu.dynamic_rotate %6 by %c1013_i32 dim 1 : vector<8x1024xf32>, i32 -> vector<8x1024xf32>
    %c136 = arith.constant 136 : index
    %c0_27 = arith.constant 0 : index
    %41 = vector.load %arg9[%c136, %c0_27] : memref<256x1024xf32, #tpu.memory_space<vmem>>, vector<8x1024xf32>
    tpu.vector_store %arg9[%c136, %c0_27], %40 {strides = array<i32>} : memref<256x1024xf32, #tpu.memory_space<vmem>>, vector<8x1024xf32>,
    %c935_i32 = arith.constant 935 : i32
    %42 = tpu.dynamic_rotate %6 by %c935_i32 dim 1 : vector<8x1024xf32>, i32 -> vector<8x1024xf32>
    %c144 = arith.constant 144 : index
    %c0_28 = arith.constant 0 : index
    %43 = vector.load %arg9[%c144, %c0_28] : memref<256x1024xf32, #tpu.memory_space<vmem>>, vector<8x1024xf32>
    tpu.vector_store %arg9[%c144, %c0_28], %42 {strides = array<i32>} : memref<256x1024xf32, #tpu.memory_space<vmem>>, vector<8x1024xf32>,
    %c934_i32 = arith.constant 934 : i32
    %44 = tpu.dynamic_rotate %6 by %c934_i32 dim 1 : vector<8x1024xf32>, i32 -> vector<8x1024xf32>
    %c152 = arith.constant 152 : index
    %c0_29 = arith.constant 0 : index
    %45 = vector.load %arg9[%c152, %c0_29] : memref<256x1024xf32, #tpu.memory_space<vmem>>, vector<8x1024xf32>
    tpu.vector_store %arg9[%c152, %c0_29], %44 {strides = array<i32>} : memref<256x1024xf32, #tpu.memory_space<vmem>>, vector<8x1024xf32>,
    %c933_i32 = arith.constant 933 : i32
    %46 = tpu.dynamic_rotate %6 by %c933_i32 dim 1 : vector<8x1024xf32>, i32 -> vector<8x1024xf32>
    %c160 = arith.constant 160 : index
    %c0_30 = arith.constant 0 : index
    %47 = vector.load %arg9[%c160, %c0_30] : memref<256x1024xf32, #tpu.memory_space<vmem>>, vector<8x1024xf32>
    tpu.vector_store %arg9[%c160, %c0_30], %46 {strides = array<i32>} : memref<256x1024xf32, #tpu.memory_space<vmem>>, vector<8x1024xf32>,
    %c925_i32 = arith.constant 925 : i32
    %48 = tpu.dynamic_rotate %6 by %c925_i32 dim 1 : vector<8x1024xf32>, i32 -> vector<8x1024xf32>
    %c168 = arith.constant 168 : index
    %c0_31 = arith.constant 0 : index
    %49 = vector.load %arg9[%c168, %c0_31] : memref<256x1024xf32, #tpu.memory_space<vmem>>, vector<8x1024xf32>
    tpu.vector_store %arg9[%c168, %c0_31], %48 {strides = array<i32>} : memref<256x1024xf32, #tpu.memory_space<vmem>>, vector<8x1024xf32>,
    %c924_i32 = arith.constant 924 : i32
    %50 = tpu.dynamic_rotate %6 by %c924_i32 dim 1 : vector<8x1024xf32>, i32 -> vector<8x1024xf32>
    %c176 = arith.constant 176 : index
    %c0_32 = arith.constant 0 : index
    %51 = vector.load %arg9[%c176, %c0_32] : memref<256x1024xf32, #tpu.memory_space<vmem>>, vector<8x1024xf32>
    tpu.vector_store %arg9[%c176, %c0_32], %50 {strides = array<i32>} : memref<256x1024xf32, #tpu.memory_space<vmem>>, vector<8x1024xf32>,
    %c923_i32 = arith.constant 923 : i32
    %52 = tpu.dynamic_rotate %6 by %c923_i32 dim 1 : vector<8x1024xf32>, i32 -> vector<8x1024xf32>
    %c184 = arith.constant 184 : index
    %c0_33 = arith.constant 0 : index
    %53 = vector.load %arg9[%c184, %c0_33] : memref<256x1024xf32, #tpu.memory_space<vmem>>, vector<8x1024xf32>
    tpu.vector_store %arg9[%c184, %c0_33], %52 {strides = array<i32>} : memref<256x1024xf32, #tpu.memory_space<vmem>>, vector<8x1024xf32>,
    %c915_i32 = arith.constant 915 : i32
    %54 = tpu.dynamic_rotate %6 by %c915_i32 dim 1 : vector<8x1024xf32>, i32 -> vector<8x1024xf32>
    %c192 = arith.constant 192 : index
    %c0_34 = arith.constant 0 : index
    %55 = vector.load %arg9[%c192, %c0_34] : memref<256x1024xf32, #tpu.memory_space<vmem>>, vector<8x1024xf32>
    tpu.vector_store %arg9[%c192, %c0_34], %54 {strides = array<i32>} : memref<256x1024xf32, #tpu.memory_space<vmem>>, vector<8x1024xf32>,
    %c914_i32 = arith.constant 914 : i32
    %56 = tpu.dynamic_rotate %6 by %c914_i32 dim 1 : vector<8x1024xf32>, i32 -> vector<8x1024xf32>
    %c200 = arith.constant 200 : index
    %c0_35 = arith.constant 0 : index
    %57 = vector.load %arg9[%c200, %c0_35] : memref<256x1024xf32, #tpu.memory_space<vmem>>, vector<8x1024xf32>
    tpu.vector_store %arg9[%c200, %c0_35], %56 {strides = array<i32>} : memref<256x1024xf32, #tpu.memory_space<vmem>>, vector<8x1024xf32>,
    %c913_i32 = arith.constant 913 : i32
    %58 = tpu.dynamic_rotate %6 by %c913_i32 dim 1 : vector<8x1024xf32>, i32 -> vector<8x1024xf32>
    %c208 = arith.constant 208 : index
    %c0_36 = arith.constant 0 : index
    %59 = vector.load %arg9[%c208, %c0_36] : memref<256x1024xf32, #tpu.memory_space<vmem>>, vector<8x1024xf32>
    tpu.vector_store %arg9[%c208, %c0_36], %58 {strides = array<i32>} : memref<256x1024xf32, #tpu.memory_space<vmem>>, vector<8x1024xf32>,
    %c0_37 = arith.constant 0 : index
    %c0_38 = arith.constant 0 : index
    %60 = vector.load %arg4[%c0_37, %c0_38] : memref<16x256xf32, #tpu.memory_space<vmem>>, vector<16x256xf32>
    %c0_39 = arith.constant 0 : index
    %c0_40 = arith.constant 0 : index
    %61 = vector.load %arg9[%c0_39, %c0_40] : memref<256x1024xf32, #tpu.memory_space<vmem>>, vector<256x1024xf32>
    %cst_41 = arith.constant dense<0.000000e+00> : vector<16x1024xf32>
    %62 = tpu.matmul %60, %61, %cst_41 {dimension_numbers = #tpu.dot_dimension_numbers<[1], [0], [0], [1], [0, 0, 1, 1], [], []>} : vector<16x256xf32>, vector<256x1024xf32>, vector<16x1024xf32> -> vector<16x1024xf32>
    %63 = vector.extract_strided_slice %62 {offsets = [0, 0], sizes = [8, 1024], strides = [1, 1]} : vector<16x1024xf32> to vector<8x1024xf32>
    %64 = vector.extract_strided_slice %2 {offsets = [0, 0], sizes = [8, 1], strides = [1, 1]} : vector<8x4xf32> to vector<8x1xf32>
    %65 = vector.broadcast %64 : vector<8x1xf32> to vector<8x1024xf32>
    %66 = arith.addf %63, %65 : vector<8x1024xf32>
    %67 = vector.extract_strided_slice %62 {offsets = [8, 0], sizes = [8, 1024], strides = [1, 1]} : vector<16x1024xf32> to vector<8x1024xf32>
    %68 = vector.extract_strided_slice %1 {offsets = [0, 1], sizes = [8, 1], strides = [1, 1]} : vector<8x4xf32> to vector<8x1xf32>
    %69 = vector.broadcast %68 : vector<8x1xf32> to vector<8x1024xf32>
    %70 = arith.mulf %67, %69 : vector<8x1024xf32>
    %71 = vector.extract_strided_slice %2 {offsets = [0, 1], sizes = [8, 1], strides = [1, 1]} : vector<8x4xf32> to vector<8x1xf32>
    %72 = vector.broadcast %71 : vector<8x1xf32> to vector<8x1024xf32>
    %73 = arith.addf %70, %72 : vector<8x1024xf32>
    %cst_42 = arith.constant 0.000000e+00 : f32
    %74 = vector.broadcast %cst_42 : f32 to vector<8x1024xf32>
    %75 = arith.maximumf %73, %74 : vector<8x1024xf32>
    %76 = vector.broadcast %0 : vector<1x1024xf32> to vector<8x1024xf32>
    %77 = arith.mulf %75, %76 : vector<8x1024xf32>
    %c111_i32_43 = arith.constant 111 : i32
    %78 = tpu.dynamic_rotate %77 by %c111_i32_43 dim 1 : vector<8x1024xf32>, i32 -> vector<8x1024xf32>
    %c0_44 = arith.constant 0 : index
    %c0_45 = arith.constant 0 : index
    %79 = vector.load %arg9[%c0_44, %c0_45] : memref<256x1024xf32, #tpu.memory_space<vmem>>, vector<8x1024xf32>
    tpu.vector_store %arg9[%c0_44, %c0_45], %78 {strides = array<i32>} : memref<256x1024xf32, #tpu.memory_space<vmem>>, vector<8x1024xf32>,
    %c110_i32_46 = arith.constant 110 : i32
    %80 = tpu.dynamic_rotate %77 by %c110_i32_46 dim 1 : vector<8x1024xf32>, i32 -> vector<8x1024xf32>
    %c8_47 = arith.constant 8 : index
    %c0_48 = arith.constant 0 : index
    %81 = vector.load %arg9[%c8_47, %c0_48] : memref<256x1024xf32, #tpu.memory_space<vmem>>, vector<8x1024xf32>
    tpu.vector_store %arg9[%c8_47, %c0_48], %80 {strides = array<i32>} : memref<256x1024xf32, #tpu.memory_space<vmem>>, vector<8x1024xf32>,
    %c109_i32_49 = arith.constant 109 : i32
    %82 = tpu.dynamic_rotate %77 by %c109_i32_49 dim 1 : vector<8x1024xf32>, i32 -> vector<8x1024xf32>
    %c16_50 = arith.constant 16 : index
    %c0_51 = arith.constant 0 : index
    %83 = vector.load %arg9[%c16_50, %c0_51] : memref<256x1024xf32, #tpu.memory_space<vmem>>, vector<8x1024xf32>
    tpu.vector_store %arg9[%c16_50, %c0_51], %82 {strides = array<i32>} : memref<256x1024xf32, #tpu.memory_space<vmem>>, vector<8x1024xf32>,
    %c101_i32_52 = arith.constant 101 : i32
    %84 = tpu.dynamic_rotate %77 by %c101_i32_52 dim 1 : vector<8x1024xf32>, i32 -> vector<8x1024xf32>
    %c24_53 = arith.constant 24 : index
    %c0_54 = arith.constant 0 : index
    %85 = vector.load %arg9[%c24_53, %c0_54] : memref<256x1024xf32, #tpu.memory_space<vmem>>, vector<8x1024xf32>
    tpu.vector_store %arg9[%c24_53, %c0_54], %84 {strides = array<i32>} : memref<256x1024xf32, #tpu.memory_space<vmem>>, vector<8x1024xf32>,
    %c100_i32_55 = arith.constant 100 : i32
    %86 = tpu.dynamic_rotate %77 by %c100_i32_55 dim 1 : vector<8x1024xf32>, i32 -> vector<8x1024xf32>
    %c32_56 = arith.constant 32 : index
    %c0_57 = arith.constant 0 : index
    %87 = vector.load %arg9[%c32_56, %c0_57] : memref<256x1024xf32, #tpu.memory_space<vmem>>, vector<8x1024xf32>
    tpu.vector_store %arg9[%c32_56, %c0_57], %86 {strides = array<i32>} : memref<256x1024xf32, #tpu.memory_space<vmem>>, vector<8x1024xf32>,
    %c99_i32_58 = arith.constant 99 : i32
    %88 = tpu.dynamic_rotate %77 by %c99_i32_58 dim 1 : vector<8x1024xf32>, i32 -> vector<8x1024xf32>
    %c40_59 = arith.constant 40 : index
    %c0_60 = arith.constant 0 : index
    %89 = vector.load %arg9[%c40_59, %c0_60] : memref<256x1024xf32, #tpu.memory_space<vmem>>, vector<8x1024xf32>
    tpu.vector_store %arg9[%c40_59, %c0_60], %88 {strides = array<i32>} : memref<256x1024xf32, #tpu.memory_space<vmem>>, vector<8x1024xf32>,
    %c91_i32_61 = arith.constant 91 : i32
    %90 = tpu.dynamic_rotate %77 by %c91_i32_61 dim 1 : vector<8x1024xf32>, i32 -> vector<8x1024xf32>
    %c48_62 = arith.constant 48 : index
    %c0_63 = arith.constant 0 : index
    %91 = vector.load %arg9[%c48_62, %c0_63] : memref<256x1024xf32, #tpu.memory_space<vmem>>, vector<8x1024xf32>
    tpu.vector_store %arg9[%c48_62, %c0_63], %90 {strides = array<i32>} : memref<256x1024xf32, #tpu.memory_space<vmem>>, vector<8x1024xf32>,
    %c90_i32_64 = arith.constant 90 : i32
    %92 = tpu.dynamic_rotate %77 by %c90_i32_64 dim 1 : vector<8x1024xf32>, i32 -> vector<8x1024xf32>
    %c56_65 = arith.constant 56 : index
    %c0_66 = arith.constant 0 : index
    %93 = vector.load %arg9[%c56_65, %c0_66] : memref<256x1024xf32, #tpu.memory_space<vmem>>, vector<8x1024xf32>
    tpu.vector_store %arg9[%c56_65, %c0_66], %92 {strides = array<i32>} : memref<256x1024xf32, #tpu.memory_space<vmem>>, vector<8x1024xf32>,
    %c89_i32_67 = arith.constant 89 : i32
    %94 = tpu.dynamic_rotate %77 by %c89_i32_67 dim 1 : vector<8x1024xf32>, i32 -> vector<8x1024xf32>
    %c64_68 = arith.constant 64 : index
    %c0_69 = arith.constant 0 : index
    %95 = vector.load %arg9[%c64_68, %c0_69] : memref<256x1024xf32, #tpu.memory_space<vmem>>, vector<8x1024xf32>
    tpu.vector_store %arg9[%c64_68, %c0_69], %94 {strides = array<i32>} : memref<256x1024xf32, #tpu.memory_space<vmem>>, vector<8x1024xf32>,
    %c11_i32_70 = arith.constant 11 : i32
    %96 = tpu.dynamic_rotate %77 by %c11_i32_70 dim 1 : vector<8x1024xf32>, i32 -> vector<8x1024xf32>
    %c72_71 = arith.constant 72 : index
    %c0_72 = arith.constant 0 : index
    %97 = vector.load %arg9[%c72_71, %c0_72] : memref<256x1024xf32, #tpu.memory_space<vmem>>, vector<8x1024xf32>
    tpu.vector_store %arg9[%c72_71, %c0_72], %96 {strides = array<i32>} : memref<256x1024xf32, #tpu.memory_space<vmem>>, vector<8x1024xf32>,
    %c10_i32_73 = arith.constant 10 : i32
    %98 = tpu.dynamic_rotate %77 by %c10_i32_73 dim 1 : vector<8x1024xf32>, i32 -> vector<8x1024xf32>
    %c80_74 = arith.constant 80 : index
    %c0_75 = arith.constant 0 : index
    %99 = vector.load %arg9[%c80_74, %c0_75] : memref<256x1024xf32, #tpu.memory_space<vmem>>, vector<8x1024xf32>
    tpu.vector_store %arg9[%c80_74, %c0_75], %98 {strides = array<i32>} : memref<256x1024xf32, #tpu.memory_space<vmem>>, vector<8x1024xf32>,
    %c9_i32_76 = arith.constant 9 : i32
    %100 = tpu.dynamic_rotate %77 by %c9_i32_76 dim 1 : vector<8x1024xf32>, i32 -> vector<8x1024xf32>
    %c88_77 = arith.constant 88 : index
    %c0_78 = arith.constant 0 : index
    %101 = vector.load %arg9[%c88_77, %c0_78] : memref<256x1024xf32, #tpu.memory_space<vmem>>, vector<8x1024xf32>
    tpu.vector_store %arg9[%c88_77, %c0_78], %100 {strides = array<i32>} : memref<256x1024xf32, #tpu.memory_space<vmem>>, vector<8x1024xf32>,
    %c1_i32_79 = arith.constant 1 : i32
    %102 = tpu.dynamic_rotate %77 by %c1_i32_79 dim 1 : vector<8x1024xf32>, i32 -> vector<8x1024xf32>
    %c96_80 = arith.constant 96 : index
    %c0_81 = arith.constant 0 : index
    %103 = vector.load %arg9[%c96_80, %c0_81] : memref<256x1024xf32, #tpu.memory_space<vmem>>, vector<8x1024xf32>
    tpu.vector_store %arg9[%c96_80, %c0_81], %102 {strides = array<i32>} : memref<256x1024xf32, #tpu.memory_space<vmem>>, vector<8x1024xf32>,
    %c104_82 = arith.constant 104 : index
    %c0_83 = arith.constant 0 : index
    %104 = vector.load %arg9[%c104_82, %c0_83] : memref<256x1024xf32, #tpu.memory_space<vmem>>, vector<8x1024xf32>
    tpu.vector_store %arg9[%c104_82, %c0_83], %77 {strides = array<i32>} : memref<256x1024xf32, #tpu.memory_space<vmem>>, vector<8x1024xf32>,
    %c1023_i32_84 = arith.constant 1023 : i32
    %105 = tpu.dynamic_rotate %77 by %c1023_i32_84 dim 1 : vector<8x1024xf32>, i32 -> vector<8x1024xf32>
    %c112_85 = arith.constant 112 : index
    %c0_86 = arith.constant 0 : index
    %106 = vector.load %arg9[%c112_85, %c0_86] : memref<256x1024xf32, #tpu.memory_space<vmem>>, vector<8x1024xf32>
    tpu.vector_store %arg9[%c112_85, %c0_86], %105 {strides = array<i32>} : memref<256x1024xf32, #tpu.memory_space<vmem>>, vector<8x1024xf32>,
    %c1015_i32_87 = arith.constant 1015 : i32
    %107 = tpu.dynamic_rotate %77 by %c1015_i32_87 dim 1 : vector<8x1024xf32>, i32 -> vector<8x1024xf32>
    %c120_88 = arith.constant 120 : index
    %c0_89 = arith.constant 0 : index
    %108 = vector.load %arg9[%c120_88, %c0_89] : memref<256x1024xf32, #tpu.memory_space<vmem>>, vector<8x1024xf32>
    tpu.vector_store %arg9[%c120_88, %c0_89], %107 {strides = array<i32>} : memref<256x1024xf32, #tpu.memory_space<vmem>>, vector<8x1024xf32>,
    %c1014_i32_90 = arith.constant 1014 : i32
    %109 = tpu.dynamic_rotate %77 by %c1014_i32_90 dim 1 : vector<8x1024xf32>, i32 -> vector<8x1024xf32>
    %c128_91 = arith.constant 128 : index
    %c0_92 = arith.constant 0 : index
    %110 = vector.load %arg9[%c128_91, %c0_92] : memref<256x1024xf32, #tpu.memory_space<vmem>>, vector<8x1024xf32>
    tpu.vector_store %arg9[%c128_91, %c0_92], %109 {strides = array<i32>} : memref<256x1024xf32, #tpu.memory_space<vmem>>, vector<8x1024xf32>,
    %c1013_i32_93 = arith.constant 1013 : i32
    %111 = tpu.dynamic_rotate %77 by %c1013_i32_93 dim 1 : vector<8x1024xf32>, i32 -> vector<8x1024xf32>
    %c136_94 = arith.constant 136 : index
    %c0_95 = arith.constant 0 : index
    %112 = vector.load %arg9[%c136_94, %c0_95] : memref<256x1024xf32, #tpu.memory_space<vmem>>, vector<8x1024xf32>
    tpu.vector_store %arg9[%c136_94, %c0_95], %111 {strides = array<i32>} : memref<256x1024xf32, #tpu.memory_space<vmem>>, vector<8x1024xf32>,
    %c935_i32_96 = arith.constant 935 : i32
    %113 = tpu.dynamic_rotate %77 by %c935_i32_96 dim 1 : vector<8x1024xf32>, i32 -> vector<8x1024xf32>
    %c144_97 = arith.constant 144 : index
    %c0_98 = arith.constant 0 : index
    %114 = vector.load %arg9[%c144_97, %c0_98] : memref<256x1024xf32, #tpu.memory_space<vmem>>, vector<8x1024xf32>
    tpu.vector_store %arg9[%c144_97, %c0_98], %113 {strides = array<i32>} : memref<256x1024xf32, #tpu.memory_space<vmem>>, vector<8x1024xf32>,
    %c934_i32_99 = arith.constant 934 : i32
    %115 = tpu.dynamic_rotate %77 by %c934_i32_99 dim 1 : vector<8x1024xf32>, i32 -> vector<8x1024xf32>
    %c152_100 = arith.constant 152 : index
    %c0_101 = arith.constant 0 : index
    %116 = vector.load %arg9[%c152_100, %c0_101] : memref<256x1024xf32, #tpu.memory_space<vmem>>, vector<8x1024xf32>
    tpu.vector_store %arg9[%c152_100, %c0_101], %115 {strides = array<i32>} : memref<256x1024xf32, #tpu.memory_space<vmem>>, vector<8x1024xf32>,
    %c933_i32_102 = arith.constant 933 : i32
    %117 = tpu.dynamic_rotate %77 by %c933_i32_102 dim 1 : vector<8x1024xf32>, i32 -> vector<8x1024xf32>
    %c160_103 = arith.constant 160 : index
    %c0_104 = arith.constant 0 : index
    %118 = vector.load %arg9[%c160_103, %c0_104] : memref<256x1024xf32, #tpu.memory_space<vmem>>, vector<8x1024xf32>
    tpu.vector_store %arg9[%c160_103, %c0_104], %117 {strides = array<i32>} : memref<256x1024xf32, #tpu.memory_space<vmem>>, vector<8x1024xf32>,
    %c925_i32_105 = arith.constant 925 : i32
    %119 = tpu.dynamic_rotate %77 by %c925_i32_105 dim 1 : vector<8x1024xf32>, i32 -> vector<8x1024xf32>
    %c168_106 = arith.constant 168 : index
    %c0_107 = arith.constant 0 : index
    %120 = vector.load %arg9[%c168_106, %c0_107] : memref<256x1024xf32, #tpu.memory_space<vmem>>, vector<8x1024xf32>
    tpu.vector_store %arg9[%c168_106, %c0_107], %119 {strides = array<i32>} : memref<256x1024xf32, #tpu.memory_space<vmem>>, vector<8x1024xf32>,
    %c924_i32_108 = arith.constant 924 : i32
    %121 = tpu.dynamic_rotate %77 by %c924_i32_108 dim 1 : vector<8x1024xf32>, i32 -> vector<8x1024xf32>
    %c176_109 = arith.constant 176 : index
    %c0_110 = arith.constant 0 : index
    %122 = vector.load %arg9[%c176_109, %c0_110] : memref<256x1024xf32, #tpu.memory_space<vmem>>, vector<8x1024xf32>
    tpu.vector_store %arg9[%c176_109, %c0_110], %121 {strides = array<i32>} : memref<256x1024xf32, #tpu.memory_space<vmem>>, vector<8x1024xf32>,
    %c923_i32_111 = arith.constant 923 : i32
    %123 = tpu.dynamic_rotate %77 by %c923_i32_111 dim 1 : vector<8x1024xf32>, i32 -> vector<8x1024xf32>
    %c184_112 = arith.constant 184 : index
    %c0_113 = arith.constant 0 : index
    %124 = vector.load %arg9[%c184_112, %c0_113] : memref<256x1024xf32, #tpu.memory_space<vmem>>, vector<8x1024xf32>
    tpu.vector_store %arg9[%c184_112, %c0_113], %123 {strides = array<i32>} : memref<256x1024xf32, #tpu.memory_space<vmem>>, vector<8x1024xf32>,
    %c915_i32_114 = arith.constant 915 : i32
    %125 = tpu.dynamic_rotate %77 by %c915_i32_114 dim 1 : vector<8x1024xf32>, i32 -> vector<8x1024xf32>
    %c192_115 = arith.constant 192 : index
    %c0_116 = arith.constant 0 : index
    %126 = vector.load %arg9[%c192_115, %c0_116] : memref<256x1024xf32, #tpu.memory_space<vmem>>, vector<8x1024xf32>
    tpu.vector_store %arg9[%c192_115, %c0_116], %125 {strides = array<i32>} : memref<256x1024xf32, #tpu.memory_space<vmem>>, vector<8x1024xf32>,
    %c914_i32_117 = arith.constant 914 : i32
    %127 = tpu.dynamic_rotate %77 by %c914_i32_117 dim 1 : vector<8x1024xf32>, i32 -> vector<8x1024xf32>
    %c200_118 = arith.constant 200 : index
    %c0_119 = arith.constant 0 : index
    %128 = vector.load %arg9[%c200_118, %c0_119] : memref<256x1024xf32, #tpu.memory_space<vmem>>, vector<8x1024xf32>
    tpu.vector_store %arg9[%c200_118, %c0_119], %127 {strides = array<i32>} : memref<256x1024xf32, #tpu.memory_space<vmem>>, vector<8x1024xf32>,
    %c913_i32_120 = arith.constant 913 : i32
    %129 = tpu.dynamic_rotate %77 by %c913_i32_120 dim 1 : vector<8x1024xf32>, i32 -> vector<8x1024xf32>
    %c208_121 = arith.constant 208 : index
    %c0_122 = arith.constant 0 : index
    %130 = vector.load %arg9[%c208_121, %c0_122] : memref<256x1024xf32, #tpu.memory_space<vmem>>, vector<8x1024xf32>
    tpu.vector_store %arg9[%c208_121, %c0_122], %129 {strides = array<i32>} : memref<256x1024xf32, #tpu.memory_space<vmem>>, vector<8x1024xf32>,
    %c0_123 = arith.constant 0 : index
    %c0_124 = arith.constant 0 : index
    %131 = vector.load %arg5[%c0_123, %c0_124] : memref<8x256xf32, #tpu.memory_space<vmem>>, vector<8x256xf32>
    %c0_125 = arith.constant 0 : index
    %c0_126 = arith.constant 0 : index
    %132 = vector.load %arg9[%c0_125, %c0_126] : memref<256x1024xf32, #tpu.memory_space<vmem>>, vector<256x1024xf32>
    %cst_127 = arith.constant dense<0.000000e+00> : vector<8x1024xf32>
    %133 = tpu.matmul %131, %132, %cst_127 {dimension_numbers = #tpu.dot_dimension_numbers<[1], [0], [0], [1], [0, 0, 1, 1], [], []>} : vector<8x256xf32>, vector<256x1024xf32>, vector<8x1024xf32> -> vector<8x1024xf32>
    %134 = vector.extract_strided_slice %1 {offsets = [0, 2], sizes = [8, 1], strides = [1, 1]} : vector<8x4xf32> to vector<8x1xf32>
    %135 = vector.broadcast %134 : vector<8x1xf32> to vector<8x1024xf32>
    %136 = arith.mulf %133, %135 : vector<8x1024xf32>
    %137 = vector.extract_strided_slice %2 {offsets = [0, 2], sizes = [8, 1], strides = [1, 1]} : vector<8x4xf32> to vector<8x1xf32>
    %138 = vector.broadcast %137 : vector<8x1xf32> to vector<8x1024xf32>
    %139 = arith.addf %136, %138 : vector<8x1024xf32>
    %cst_128 = arith.constant 0.000000e+00 : f32
    %140 = vector.broadcast %cst_128 : f32 to vector<8x1024xf32>
    %141 = arith.maximumf %139, %140 : vector<8x1024xf32>
    %142 = vector.broadcast %0 : vector<1x1024xf32> to vector<8x1024xf32>
    %143 = arith.mulf %141, %142 : vector<8x1024xf32>
    %c111_i32_129 = arith.constant 111 : i32
    %144 = tpu.dynamic_rotate %143 by %c111_i32_129 dim 1 : vector<8x1024xf32>, i32 -> vector<8x1024xf32>
    %c0_130 = arith.constant 0 : index
    %c0_131 = arith.constant 0 : index
    %145 = vector.load %arg9[%c0_130, %c0_131] : memref<256x1024xf32, #tpu.memory_space<vmem>>, vector<8x1024xf32>
    tpu.vector_store %arg9[%c0_130, %c0_131], %144 {strides = array<i32>} : memref<256x1024xf32, #tpu.memory_space<vmem>>, vector<8x1024xf32>,
    %c110_i32_132 = arith.constant 110 : i32
    %146 = tpu.dynamic_rotate %143 by %c110_i32_132 dim 1 : vector<8x1024xf32>, i32 -> vector<8x1024xf32>
    %c8_133 = arith.constant 8 : index
    %c0_134 = arith.constant 0 : index
    %147 = vector.load %arg9[%c8_133, %c0_134] : memref<256x1024xf32, #tpu.memory_space<vmem>>, vector<8x1024xf32>
    tpu.vector_store %arg9[%c8_133, %c0_134], %146 {strides = array<i32>} : memref<256x1024xf32, #tpu.memory_space<vmem>>, vector<8x1024xf32>,
    %c109_i32_135 = arith.constant 109 : i32
    %148 = tpu.dynamic_rotate %143 by %c109_i32_135 dim 1 : vector<8x1024xf32>, i32 -> vector<8x1024xf32>
    %c16_136 = arith.constant 16 : index
    %c0_137 = arith.constant 0 : index
    %149 = vector.load %arg9[%c16_136, %c0_137] : memref<256x1024xf32, #tpu.memory_space<vmem>>, vector<8x1024xf32>
    tpu.vector_store %arg9[%c16_136, %c0_137], %148 {strides = array<i32>} : memref<256x1024xf32, #tpu.memory_space<vmem>>, vector<8x1024xf32>,
    %c101_i32_138 = arith.constant 101 : i32
    %150 = tpu.dynamic_rotate %143 by %c101_i32_138 dim 1 : vector<8x1024xf32>, i32 -> vector<8x1024xf32>
    %c24_139 = arith.constant 24 : index
    %c0_140 = arith.constant 0 : index
    %151 = vector.load %arg9[%c24_139, %c0_140] : memref<256x1024xf32, #tpu.memory_space<vmem>>, vector<8x1024xf32>
    tpu.vector_store %arg9[%c24_139, %c0_140], %150 {strides = array<i32>} : memref<256x1024xf32, #tpu.memory_space<vmem>>, vector<8x1024xf32>,
    %c100_i32_141 = arith.constant 100 : i32
    %152 = tpu.dynamic_rotate %143 by %c100_i32_141 dim 1 : vector<8x1024xf32>, i32 -> vector<8x1024xf32>
    %c32_142 = arith.constant 32 : index
    %c0_143 = arith.constant 0 : index
    %153 = vector.load %arg9[%c32_142, %c0_143] : memref<256x1024xf32, #tpu.memory_space<vmem>>, vector<8x1024xf32>
    tpu.vector_store %arg9[%c32_142, %c0_143], %152 {strides = array<i32>} : memref<256x1024xf32, #tpu.memory_space<vmem>>, vector<8x1024xf32>,
    %c99_i32_144 = arith.constant 99 : i32
    %154 = tpu.dynamic_rotate %143 by %c99_i32_144 dim 1 : vector<8x1024xf32>, i32 -> vector<8x1024xf32>
    %c40_145 = arith.constant 40 : index
    %c0_146 = arith.constant 0 : index
    %155 = vector.load %arg9[%c40_145, %c0_146] : memref<256x1024xf32, #tpu.memory_space<vmem>>, vector<8x1024xf32>
    tpu.vector_store %arg9[%c40_145, %c0_146], %154 {strides = array<i32>} : memref<256x1024xf32, #tpu.memory_space<vmem>>, vector<8x1024xf32>,
    %c91_i32_147 = arith.constant 91 : i32
    %156 = tpu.dynamic_rotate %143 by %c91_i32_147 dim 1 : vector<8x1024xf32>, i32 -> vector<8x1024xf32>
    %c48_148 = arith.constant 48 : index
    %c0_149 = arith.constant 0 : index
    %157 = vector.load %arg9[%c48_148, %c0_149] : memref<256x1024xf32, #tpu.memory_space<vmem>>, vector<8x1024xf32>
    tpu.vector_store %arg9[%c48_148, %c0_149], %156 {strides = array<i32>} : memref<256x1024xf32, #tpu.memory_space<vmem>>, vector<8x1024xf32>,
    %c90_i32_150 = arith.constant 90 : i32
    %158 = tpu.dynamic_rotate %143 by %c90_i32_150 dim 1 : vector<8x1024xf32>, i32 -> vector<8x1024xf32>
    %c56_151 = arith.constant 56 : index
    %c0_152 = arith.constant 0 : index
    %159 = vector.load %arg9[%c56_151, %c0_152] : memref<256x1024xf32, #tpu.memory_space<vmem>>, vector<8x1024xf32>
    tpu.vector_store %arg9[%c56_151, %c0_152], %158 {strides = array<i32>} : memref<256x1024xf32, #tpu.memory_space<vmem>>, vector<8x1024xf32>,
    %c89_i32_153 = arith.constant 89 : i32
    %160 = tpu.dynamic_rotate %143 by %c89_i32_153 dim 1 : vector<8x1024xf32>, i32 -> vector<8x1024xf32>
    %c64_154 = arith.constant 64 : index
    %c0_155 = arith.constant 0 : index
    %161 = vector.load %arg9[%c64_154, %c0_155] : memref<256x1024xf32, #tpu.memory_space<vmem>>, vector<8x1024xf32>
    tpu.vector_store %arg9[%c64_154, %c0_155], %160 {strides = array<i32>} : memref<256x1024xf32, #tpu.memory_space<vmem>>, vector<8x1024xf32>,
    %c11_i32_156 = arith.constant 11 : i32
    %162 = tpu.dynamic_rotate %143 by %c11_i32_156 dim 1 : vector<8x1024xf32>, i32 -> vector<8x1024xf32>
    %c72_157 = arith.constant 72 : index
    %c0_158 = arith.constant 0 : index
    %163 = vector.load %arg9[%c72_157, %c0_158] : memref<256x1024xf32, #tpu.memory_space<vmem>>, vector<8x1024xf32>
    tpu.vector_store %arg9[%c72_157, %c0_158], %162 {strides = array<i32>} : memref<256x1024xf32, #tpu.memory_space<vmem>>, vector<8x1024xf32>,
    %c10_i32_159 = arith.constant 10 : i32
    %164 = tpu.dynamic_rotate %143 by %c10_i32_159 dim 1 : vector<8x1024xf32>, i32 -> vector<8x1024xf32>
    %c80_160 = arith.constant 80 : index
    %c0_161 = arith.constant 0 : index
    %165 = vector.load %arg9[%c80_160, %c0_161] : memref<256x1024xf32, #tpu.memory_space<vmem>>, vector<8x1024xf32>
    tpu.vector_store %arg9[%c80_160, %c0_161], %164 {strides = array<i32>} : memref<256x1024xf32, #tpu.memory_space<vmem>>, vector<8x1024xf32>,
    %c9_i32_162 = arith.constant 9 : i32
    %166 = tpu.dynamic_rotate %143 by %c9_i32_162 dim 1 : vector<8x1024xf32>, i32 -> vector<8x1024xf32>
    %c88_163 = arith.constant 88 : index
    %c0_164 = arith.constant 0 : index
    %167 = vector.load %arg9[%c88_163, %c0_164] : memref<256x1024xf32, #tpu.memory_space<vmem>>, vector<8x1024xf32>
    tpu.vector_store %arg9[%c88_163, %c0_164], %166 {strides = array<i32>} : memref<256x1024xf32, #tpu.memory_space<vmem>>, vector<8x1024xf32>,
    %c1_i32_165 = arith.constant 1 : i32
    %168 = tpu.dynamic_rotate %143 by %c1_i32_165 dim 1 : vector<8x1024xf32>, i32 -> vector<8x1024xf32>
    %c96_166 = arith.constant 96 : index
    %c0_167 = arith.constant 0 : index
    %169 = vector.load %arg9[%c96_166, %c0_167] : memref<256x1024xf32, #tpu.memory_space<vmem>>, vector<8x1024xf32>
    tpu.vector_store %arg9[%c96_166, %c0_167], %168 {strides = array<i32>} : memref<256x1024xf32, #tpu.memory_space<vmem>>, vector<8x1024xf32>,
    %c104_168 = arith.constant 104 : index
    %c0_169 = arith.constant 0 : index
    %170 = vector.load %arg9[%c104_168, %c0_169] : memref<256x1024xf32, #tpu.memory_space<vmem>>, vector<8x1024xf32>
    tpu.vector_store %arg9[%c104_168, %c0_169], %143 {strides = array<i32>} : memref<256x1024xf32, #tpu.memory_space<vmem>>, vector<8x1024xf32>,
    %c1023_i32_170 = arith.constant 1023 : i32
    %171 = tpu.dynamic_rotate %143 by %c1023_i32_170 dim 1 : vector<8x1024xf32>, i32 -> vector<8x1024xf32>
    %c112_171 = arith.constant 112 : index
    %c0_172 = arith.constant 0 : index
    %172 = vector.load %arg9[%c112_171, %c0_172] : memref<256x1024xf32, #tpu.memory_space<vmem>>, vector<8x1024xf32>
    tpu.vector_store %arg9[%c112_171, %c0_172], %171 {strides = array<i32>} : memref<256x1024xf32, #tpu.memory_space<vmem>>, vector<8x1024xf32>,
    %c1015_i32_173 = arith.constant 1015 : i32
    %173 = tpu.dynamic_rotate %143 by %c1015_i32_173 dim 1 : vector<8x1024xf32>, i32 -> vector<8x1024xf32>
    %c120_174 = arith.constant 120 : index
    %c0_175 = arith.constant 0 : index
    %174 = vector.load %arg9[%c120_174, %c0_175] : memref<256x1024xf32, #tpu.memory_space<vmem>>, vector<8x1024xf32>
    tpu.vector_store %arg9[%c120_174, %c0_175], %173 {strides = array<i32>} : memref<256x1024xf32, #tpu.memory_space<vmem>>, vector<8x1024xf32>,
    %c1014_i32_176 = arith.constant 1014 : i32
    %175 = tpu.dynamic_rotate %143 by %c1014_i32_176 dim 1 : vector<8x1024xf32>, i32 -> vector<8x1024xf32>
    %c128_177 = arith.constant 128 : index
    %c0_178 = arith.constant 0 : index
    %176 = vector.load %arg9[%c128_177, %c0_178] : memref<256x1024xf32, #tpu.memory_space<vmem>>, vector<8x1024xf32>
    tpu.vector_store %arg9[%c128_177, %c0_178], %175 {strides = array<i32>} : memref<256x1024xf32, #tpu.memory_space<vmem>>, vector<8x1024xf32>,
    %c1013_i32_179 = arith.constant 1013 : i32
    %177 = tpu.dynamic_rotate %143 by %c1013_i32_179 dim 1 : vector<8x1024xf32>, i32 -> vector<8x1024xf32>
    %c136_180 = arith.constant 136 : index
    %c0_181 = arith.constant 0 : index
    %178 = vector.load %arg9[%c136_180, %c0_181] : memref<256x1024xf32, #tpu.memory_space<vmem>>, vector<8x1024xf32>
    tpu.vector_store %arg9[%c136_180, %c0_181], %177 {strides = array<i32>} : memref<256x1024xf32, #tpu.memory_space<vmem>>, vector<8x1024xf32>,
    %c935_i32_182 = arith.constant 935 : i32
    %179 = tpu.dynamic_rotate %143 by %c935_i32_182 dim 1 : vector<8x1024xf32>, i32 -> vector<8x1024xf32>
    %c144_183 = arith.constant 144 : index
    %c0_184 = arith.constant 0 : index
    %180 = vector.load %arg9[%c144_183, %c0_184] : memref<256x1024xf32, #tpu.memory_space<vmem>>, vector<8x1024xf32>
    tpu.vector_store %arg9[%c144_183, %c0_184], %179 {strides = array<i32>} : memref<256x1024xf32, #tpu.memory_space<vmem>>, vector<8x1024xf32>,
    %c934_i32_185 = arith.constant 934 : i32
    %181 = tpu.dynamic_rotate %143 by %c934_i32_185 dim 1 : vector<8x1024xf32>, i32 -> vector<8x1024xf32>
    %c152_186 = arith.constant 152 : index
    %c0_187 = arith.constant 0 : index
    %182 = vector.load %arg9[%c152_186, %c0_187] : memref<256x1024xf32, #tpu.memory_space<vmem>>, vector<8x1024xf32>
    tpu.vector_store %arg9[%c152_186, %c0_187], %181 {strides = array<i32>} : memref<256x1024xf32, #tpu.memory_space<vmem>>, vector<8x1024xf32>,
    %c933_i32_188 = arith.constant 933 : i32
    %183 = tpu.dynamic_rotate %143 by %c933_i32_188 dim 1 : vector<8x1024xf32>, i32 -> vector<8x1024xf32>
    %c160_189 = arith.constant 160 : index
    %c0_190 = arith.constant 0 : index
    %184 = vector.load %arg9[%c160_189, %c0_190] : memref<256x1024xf32, #tpu.memory_space<vmem>>, vector<8x1024xf32>
    tpu.vector_store %arg9[%c160_189, %c0_190], %183 {strides = array<i32>} : memref<256x1024xf32, #tpu.memory_space<vmem>>, vector<8x1024xf32>,
    %c925_i32_191 = arith.constant 925 : i32
    %185 = tpu.dynamic_rotate %143 by %c925_i32_191 dim 1 : vector<8x1024xf32>, i32 -> vector<8x1024xf32>
    %c168_192 = arith.constant 168 : index
    %c0_193 = arith.constant 0 : index
    %186 = vector.load %arg9[%c168_192, %c0_193] : memref<256x1024xf32, #tpu.memory_space<vmem>>, vector<8x1024xf32>
    tpu.vector_store %arg9[%c168_192, %c0_193], %185 {strides = array<i32>} : memref<256x1024xf32, #tpu.memory_space<vmem>>, vector<8x1024xf32>,
    %c924_i32_194 = arith.constant 924 : i32
    %187 = tpu.dynamic_rotate %143 by %c924_i32_194 dim 1 : vector<8x1024xf32>, i32 -> vector<8x1024xf32>
    %c176_195 = arith.constant 176 : index
    %c0_196 = arith.constant 0 : index
    %188 = vector.load %arg9[%c176_195, %c0_196] : memref<256x1024xf32, #tpu.memory_space<vmem>>, vector<8x1024xf32>
    tpu.vector_store %arg9[%c176_195, %c0_196], %187 {strides = array<i32>} : memref<256x1024xf32, #tpu.memory_space<vmem>>, vector<8x1024xf32>,
    %c923_i32_197 = arith.constant 923 : i32
    %189 = tpu.dynamic_rotate %143 by %c923_i32_197 dim 1 : vector<8x1024xf32>, i32 -> vector<8x1024xf32>
    %c184_198 = arith.constant 184 : index
    %c0_199 = arith.constant 0 : index
    %190 = vector.load %arg9[%c184_198, %c0_199] : memref<256x1024xf32, #tpu.memory_space<vmem>>, vector<8x1024xf32>
    tpu.vector_store %arg9[%c184_198, %c0_199], %189 {strides = array<i32>} : memref<256x1024xf32, #tpu.memory_space<vmem>>, vector<8x1024xf32>,
    %c915_i32_200 = arith.constant 915 : i32
    %191 = tpu.dynamic_rotate %143 by %c915_i32_200 dim 1 : vector<8x1024xf32>, i32 -> vector<8x1024xf32>
    %c192_201 = arith.constant 192 : index
    %c0_202 = arith.constant 0 : index
    %192 = vector.load %arg9[%c192_201, %c0_202] : memref<256x1024xf32, #tpu.memory_space<vmem>>, vector<8x1024xf32>
    tpu.vector_store %arg9[%c192_201, %c0_202], %191 {strides = array<i32>} : memref<256x1024xf32, #tpu.memory_space<vmem>>, vector<8x1024xf32>,
    %c914_i32_203 = arith.constant 914 : i32
    %193 = tpu.dynamic_rotate %143 by %c914_i32_203 dim 1 : vector<8x1024xf32>, i32 -> vector<8x1024xf32>
    %c200_204 = arith.constant 200 : index
    %c0_205 = arith.constant 0 : index
    %194 = vector.load %arg9[%c200_204, %c0_205] : memref<256x1024xf32, #tpu.memory_space<vmem>>, vector<8x1024xf32>
    tpu.vector_store %arg9[%c200_204, %c0_205], %193 {strides = array<i32>} : memref<256x1024xf32, #tpu.memory_space<vmem>>, vector<8x1024xf32>,
    %c913_i32_206 = arith.constant 913 : i32
    %195 = tpu.dynamic_rotate %143 by %c913_i32_206 dim 1 : vector<8x1024xf32>, i32 -> vector<8x1024xf32>
    %c208_207 = arith.constant 208 : index
    %c0_208 = arith.constant 0 : index
    %196 = vector.load %arg9[%c208_207, %c0_208] : memref<256x1024xf32, #tpu.memory_space<vmem>>, vector<8x1024xf32>
    tpu.vector_store %arg9[%c208_207, %c0_208], %195 {strides = array<i32>} : memref<256x1024xf32, #tpu.memory_space<vmem>>, vector<8x1024xf32>,
    %c0_209 = arith.constant 0 : index
    %c0_210 = arith.constant 0 : index
    %197 = vector.load %arg6[%c0_209, %c0_210] : memref<8x256xf32, #tpu.memory_space<vmem>>, vector<8x256xf32>
    %c0_211 = arith.constant 0 : index
    %c0_212 = arith.constant 0 : index
    %198 = vector.load %arg9[%c0_211, %c0_212] : memref<256x1024xf32, #tpu.memory_space<vmem>>, vector<256x1024xf32>
    %cst_213 = arith.constant dense<0.000000e+00> : vector<8x1024xf32>
    %199 = tpu.matmul %197, %198, %cst_213 {dimension_numbers = #tpu.dot_dimension_numbers<[1], [0], [0], [1], [0, 0, 1, 1], [], []>} : vector<8x256xf32>, vector<256x1024xf32>, vector<8x1024xf32> -> vector<8x1024xf32>
    %200 = vector.extract_strided_slice %1 {offsets = [0, 3], sizes = [8, 1], strides = [1, 1]} : vector<8x4xf32> to vector<8x1xf32>
    %201 = vector.broadcast %200 : vector<8x1xf32> to vector<8x1024xf32>
    %202 = arith.mulf %199, %201 : vector<8x1024xf32>
    %203 = vector.extract_strided_slice %2 {offsets = [0, 3], sizes = [8, 1], strides = [1, 1]} : vector<8x4xf32> to vector<8x1xf32>
    %204 = vector.broadcast %203 : vector<8x1xf32> to vector<8x1024xf32>
    %205 = arith.addf %202, %204 : vector<8x1024xf32>
    %206 = arith.addf %205, %66 : vector<8x1024xf32>
    %c0_214 = arith.constant 0 : index
    %c0_215 = arith.constant 0 : index
    %c0_216 = arith.constant 0 : index
    %207 = vector.load %arg8[%c0_214, %c0_215, %c0_216] : memref<1x8x1024xf32, #tpu.memory_space<vmem>>, vector<1x8x1024xf32>
    %208 = vector.shape_cast %207 : vector<1x8x1024xf32> to vector<8x1024xf32>
    %209 = vector.shape_cast %206 : vector<8x1024xf32> to vector<1x8x1024xf32>
    tpu.vector_store %arg8[%c0_214, %c0_215, %c0_216], %209 {strides = array<i32>} : memref<1x8x1024xf32, #tpu.memory_space<vmem>>, vector<1x8x1024xf32>,
    return
  }
  func.func @transform_0(%arg0: i32) -> (i32, i32) {
    %c0_i32 = arith.constant 0 : i32
    %c0_i32_0 = arith.constant 0 : i32
    %c0_i32_1 = arith.constant 0 : i32
    return %c0_i32, %c0_i32_0 : i32, i32
  }
  func.func @transform_1(%arg0: i32) -> (i32, i32) {
    %c0_i32 = arith.constant 0 : i32
    %c0_i32_0 = arith.constant 0 : i32
    %c0_i32_1 = arith.constant 0 : i32
    return %c0_i32, %c0_i32_0 : i32, i32
  }
  func.func @transform_2(%arg0: i32) -> (i32, i32) {
    %c0_i32 = arith.constant 0 : i32
    %c0_i32_0 = arith.constant 0 : i32
    %c0_i32_1 = arith.constant 0 : i32
    return %c0_i32, %c0_i32_0 : i32, i32
  }
  func.func @transform_3(%arg0: i32) -> (i32, i32) {
    %c0_i32 = arith.constant 0 : i32
    %c0_i32_0 = arith.constant 0 : i32
    %c0_i32_1 = arith.constant 0 : i32
    return %c0_i32, %c0_i32_0 : i32, i32
  }
  func.func @transform_4(%arg0: i32) -> (i32, i32) {
    %c0_i32 = arith.constant 0 : i32
    %c0_i32_0 = arith.constant 0 : i32
    %c0_i32_1 = arith.constant 0 : i32
    return %c0_i32, %c0_i32_0 : i32, i32
  }
  func.func @transform_5(%arg0: i32) -> (i32, i32) {
    %c0_i32 = arith.constant 0 : i32
    %c0_i32_0 = arith.constant 0 : i32
    %c0_i32_1 = arith.constant 0 : i32
    return %c0_i32, %c0_i32_0 : i32, i32
  }
  func.func @transform_6(%arg0: i32) -> (i32, i32, i32) {
    %c0_i32 = arith.constant 0 : i32
    %c0_i32_0 = arith.constant 0 : i32
    %c0_i32_1 = arith.constant 0 : i32
    return %arg0, %c0_i32, %c0_i32_0 : i32, i32, i32
  }
  func.func @transform_7(%arg0: i32) -> (i32, i32, i32) {
    %c0_i32 = arith.constant 0 : i32
    %c0_i32_0 = arith.constant 0 : i32
    %c0_i32_1 = arith.constant 0 : i32
    return %arg0, %c0_i32, %c0_i32_0 : i32, i32, i32
  }
}

</mosaic_0001>

<llo_original>
// kernel: tpu_custom_call.1
$region0: #{tpu_custom_call.1}
  #allocation0 [shape = 'u32[]', space=smem, size = 0x4, offset = 0x4, fixed_abs, tag = 'smem constant byte address 0x4 - core index']
  #allocation1 [shape = 'u32[72,128]{1,0:T(1,128)}', space=vmem, size = 0x9000, scoped, tag = 'internal scratch']
  #allocation2 [shape = 'f32[256,1024]{1,0:T(8,128)}', space=vmem, size = 0x100000, scoped, tag = 'scratch operand']
  %s0 = inlined_call_operand.vmem [shape: f32[1,1024], index: 0, kind: input, shape index: {}]
  %s1 = inlined_call_operand.vmem [shape: f32[8,4], index: 1, kind: input, shape index: {}]
  %s2 = inlined_call_operand.vmem [shape: f32[8,4], index: 2, kind: input, shape index: {}]
  %s3 = inlined_call_operand.hbm [shape: f32[16,256], index: 3, kind: input, shape index: {}]
  %s4 = inlined_call_operand.vmem [shape: f32[8,256], index: 4, kind: input, shape index: {}]
  %s5 = inlined_call_operand.hbm [shape: f32[8,256], index: 5, kind: input, shape index: {}]
  %s6 = inlined_call_operand.hbm [shape: f32[2,8,1024], index: 6, kind: input, shape index: {}]
  %s7 = inlined_call_operand.hbm [shape: f32[2,8,1024], index: 7, kind: output, shape index: {}]
  %s8 = sld [smem:[#allocation0]]
  $region73: #{tpu_custom_call.1} parent=0
    _
  %s10 = ssub.s32 1, %s8
  %s11 = scalar_select 0, %s10, %s8
  $region1: #{tpu_custom_call.1} parent=0
    #allocation3 [shape = 'u8[16384]{0}', space=vmem, size = 0x4000, scoped, tag = 'input window, operand 3, single buffered']
    #allocation4 [shape = 's32[2]{0}', space=sflag, size = 0x8, scoped, tag = 'scoped memory for tpu_custom_call.1']
    #allocation5 [shape = 's32[2]{0}', space=sflag, size = 0x8, scoped, tag = 'scoped memory for tpu_custom_call.1']
    #allocation6 [shape = 'u8[8192]{0}', space=vmem, size = 0x2000, scoped, tag = 'input window, operand 5, single buffered']
    #allocation7 [shape = 's32[1]{0}', space=sflag, size = 0x4, scoped, tag = 'scoped memory for tpu_custom_call.1']
    #allocation8 [shape = 'u8[65536]{0}', space=vmem, size = 0x10000, scoped, tag = 'input window, operand 6']
    #allocation9 [shape = 'u8[65536]{0}', space=vmem, size = 0x10000, scoped, tag = 'output window, operand 0']
    %12 = vsyncpa [#allocation4], 0
    %13 = vsyncpa [#allocation7], 0
    %14 = vsyncpa [#allocation5], 0
    %s15 = scalar_lea.sflag [#allocation5], 1
    %16 = vsyncpa %s15, 0
    loop: start=0, step=1, limit=4
    $region2: #{tpu_custom_call.1} parent=1 // loop_pre_header
      _
    $region3: #{tpu_custom_call.1} parent=1 // loop_header
      %s18 = sphi 0, %s22
      %p19 = scmp.ge.s32.totalorder %s18, 4
      %s26 = sphi 0, %s26
      %s28 = sphi 0, %s26
      %s29 = sphi 0, %s28
      %s43 = sphi 0, %s29
      %s47 = sphi 0, %s47
      %s49 = sphi 0, %s47
      %s50 = sphi 0, %s49
      %s64 = sphi 0, %s50
      %s68 = sphi 0, %s68
      %s70 = sphi 0, %s68
      %s71 = sphi 0, %s70
      %s85 = sphi 0, %s71
      %s89 = sphi 0, %s89
      %s91 = sphi 0, %s89
      %s92 = sphi 0, %s91
      %s106 = sphi 0, %s92
      %s110 = sphi 0, %s110
      %s112 = sphi 0, %s110
      %s113 = sphi 0, %s112
      %s127 = sphi 0, %s113
      %s131 = sphi 0, %s131
      %s133 = sphi 0, %s131
      %s134 = sphi 0, %s133
      %s148 = sphi 0, %s134
      %s154 = sphi 0, %s156
      %s157 = sphi 0, %s154
      %s158 = sphi 0, %s157
      %s174 = sphi 0, %s158
      %s180 = sphi 0, %s182
      %s183 = sphi 0, %s180
      %s184 = sphi 0, %s183
      %s200 = sphi 0, %s184
    $region4: #{tpu_custom_call.1} parent=1 // loop_header_branch
      %21 = sbr.rel (%p19) target = $region8
    $region5: #{tpu_custom_call.1} parent=1 // loop_body
      %s23 = ssub.s32 %s18, 1
      %s24 = ssub.s32 %s18, 2
      %s25 = sadd.s32 %s18, 1
      %s27 = sadd.s32 %s26, 1
      %p30 = scmp.eq.s32.totalorder %s18, 1
      %p31 = scmp.ne.s32.totalorder %s26, %s28
      %p32 = scmp.eq.s32.totalorder %s18, 0
      %p33 = por %p31, %p32
      %p34 = scmp.ne.s32.totalorder %s26, %s28
      %p35 = scmp.eq.s32.totalorder %s23, 1
      %p36 = por %p34, %p35
      %p37 = scmp.ne.s32.totalorder %s28, %s29
      %p38 = scmp.eq.s32.totalorder %s23, 0
      %p39 = por %p37, %p38
      %p40 = scmp.ne.s32.totalorder %s28, %s29
      %p41 = scmp.eq.s32.totalorder %s24, 1
      %p42 = por %p40, %p41
      %p44 = scmp.ne.s32.totalorder %s29, %s43
      %p45 = scmp.eq.s32.totalorder %s24, 0
      %p46 = por %p44, %p45
      %s48 = sadd.s32 %s47, 1
      %p51 = scmp.eq.s32.totalorder %s18, 1
      %p52 = scmp.ne.s32.totalorder %s47, %s49
      %p53 = scmp.eq.s32.totalorder %s18, 0
      %p54 = por %p52, %p53
      %p55 = scmp.ne.s32.totalorder %s47, %s49
      %p56 = scmp.eq.s32.totalorder %s23, 1
      %p57 = por %p55, %p56
      %p58 = scmp.ne.s32.totalorder %s49, %s50
      %p59 = scmp.eq.s32.totalorder %s23, 0
      %p60 = por %p58, %p59
      %p61 = scmp.ne.s32.totalorder %s49, %s50
      %p62 = scmp.eq.s32.totalorder %s24, 1
      %p63 = por %p61, %p62
      %p65 = scmp.ne.s32.totalorder %s50, %s64
      %p66 = scmp.eq.s32.totalorder %s24, 0
      %p67 = por %p65, %p66
      %s69 = sadd.s32 %s68, 1
      %p72 = scmp.eq.s32.totalorder %s18, 1
      %p73 = scmp.ne.s32.totalorder %s68, %s70
      %p74 = scmp.eq.s32.totalorder %s18, 0
      %p75 = por %p73, %p74
      %p76 = scmp.ne.s32.totalorder %s68, %s70
      %p77 = scmp.eq.s32.totalorder %s23, 1
      %p78 = por %p76, %p77
      %p79 = scmp.ne.s32.totalorder %s70, %s71
      %p80 = scmp.eq.s32.totalorder %s23, 0
      %p81 = por %p79, %p80
      %p82 = scmp.ne.s32.totalorder %s70, %s71
      %p83 = scmp.eq.s32.totalorder %s24, 1
      %p84 = por %p82, %p83
      %p86 = scmp.ne.s32.totalorder %s71, %s85
      %p87 = scmp.eq.s32.totalorder %s24, 0
      %p88 = por %p86, %p87
      %s90 = sadd.s32 %s89, 1
      %p93 = scmp.eq.s32.totalorder %s18, 1
      %p94 = scmp.ne.s32.totalorder %s89, %s91
      %p95 = scmp.eq.s32.totalorder %s18, 0
      %p96 = por %p94, %p95
      %p97 = scmp.ne.s32.totalorder %s89, %s91
      %p98 = scmp.eq.s32.totalorder %s23, 1
      %p99 = por %p97, %p98
      %p100 = scmp.ne.s32.totalorder %s91, %s92
      %p101 = scmp.eq.s32.totalorder %s23, 0
      %p102 = por %p100, %p101
      %p103 = scmp.ne.s32.totalorder %s91, %s92
      %p104 = scmp.eq.s32.totalorder %s24, 1
      %p105 = por %p103, %p104
      %p107 = scmp.ne.s32.totalorder %s92, %s106
      %p108 = scmp.eq.s32.totalorder %s24, 0
      %p109 = por %p107, %p108
      %s111 = sadd.s32 %s110, 1
      %p114 = scmp.eq.s32.totalorder %s18, 1
      %p115 = scmp.ne.s32.totalorder %s110, %s112
      %p116 = scmp.eq.s32.totalorder %s18, 0
      %p117 = por %p115, %p116
      %p118 = scmp.ne.s32.totalorder %s110, %s112
      %p119 = scmp.eq.s32.totalorder %s23, 1
      %p120 = por %p118, %p119
      %p121 = scmp.ne.s32.totalorder %s112, %s113
      %p122 = scmp.eq.s32.totalorder %s23, 0
      %p123 = por %p121, %p122
      %p124 = scmp.ne.s32.totalorder %s112, %s113
      %p125 = scmp.eq.s32.totalorder %s24, 1
      %p126 = por %p124, %p125
      %p128 = scmp.ne.s32.totalorder %s113, %s127
      %p129 = scmp.eq.s32.totalorder %s24, 0
      %p130 = por %p128, %p129
      %s132 = sadd.s32 %s131, 1
      %p135 = scmp.eq.s32.totalorder %s18, 1
      %p136 = scmp.ne.s32.totalorder %s131, %s133
      %p137 = scmp.eq.s32.totalorder %s18, 0
      %p138 = por %p136, %p137
      %p139 = scmp.ne.s32.totalorder %s131, %s133
      %p140 = scmp.eq.s32.totalorder %s23, 1
      %p141 = por %p139, %p140
      %p142 = scmp.ne.s32.totalorder %s133, %s134
      %p143 = scmp.eq.s32.totalorder %s23, 0
      %p144 = por %p142, %p143
      %p145 = scmp.ne.s32.totalorder %s133, %s134
      %p146 = scmp.eq.s32.totalorder %s24, 1
      %p147 = por %p145, %p146
      %p149 = scmp.ne.s32.totalorder %s134, %s148
      %p150 = scmp.eq.s32.totalorder %s24, 0
      %p151 = por %p149, %p150
      %s152 = ssub.s32 %s18, %s25
      %p153 = scmp.eq.s32.totalorder %s152, 0
      %s155 = sadd.s32 %s154, 1
      %s156 = scalar_select %p153, %s154, %s155
      %p159 = pneg %p153
      %p160 = scmp.eq.s32.totalorder %s18, 1
      %p161 = por %p159, %p160
      %p162 = scmp.ne.s32.totalorder %s154, %s157
      %p163 = scmp.eq.s32.totalorder %s18, 0
      %p164 = por %p162, %p163
      %p165 = scmp.ne.s32.totalorder %s154, %s157
      %p166 = scmp.eq.s32.totalorder %s23, 1
      %p167 = por %p165, %p166
      %p168 = scmp.ne.s32.totalorder %s157, %s158
      %p169 = scmp.eq.s32.totalorder %s23, 0
      %p170 = por %p168, %p169
      %p171 = scmp.ne.s32.totalorder %s157, %s158
      %p172 = scmp.eq.s32.totalorder %s24, 1
      %p173 = por %p171, %p172
      %p175 = scmp.ne.s32.totalorder %s158, %s174
      %p176 = scmp.eq.s32.totalorder %s24, 0
      %p177 = por %p175, %p176
      %s178 = ssub.s32 %s18, %s25
      %p179 = scmp.eq.s32.totalorder %s178, 0
      %s181 = sadd.s32 %s180, 1
      %s182 = scalar_select %p179, %s180, %s181
      %p185 = pneg %p179
      %p186 = scmp.eq.s32.totalorder %s18, 1
      %p187 = por %p185, %p186
      %p188 = scmp.ne.s32.totalorder %s180, %s183
      %p189 = scmp.eq.s32.totalorder %s18, 0
      %p190 = por %p188, %p189
      %p191 = scmp.ne.s32.totalorder %s180, %s183
      %p192 = scmp.eq.s32.totalorder %s23, 1
      %p193 = por %p191, %p192
      %p194 = scmp.ne.s32.totalorder %s183, %s184
      %p195 = scmp.eq.s32.totalorder %s23, 0
      %p196 = por %p194, %p195
      %p197 = scmp.ne.s32.totalorder %s183, %s184
      %p198 = scmp.eq.s32.totalorder %s24, 1
      %p199 = por %p197, %p198
      %p201 = scmp.ne.s32.totalorder %s184, %s200
      %p202 = scmp.eq.s32.totalorder %s24, 0
      %p203 = por %p201, %p202
      %p204 = scmp.le.s32.totalorder 1, %s18
      %p205 = scmp.lt.s32.totalorder %s18, 3
      %p206 = pnand %p204, %p205
      %p207 = pneg %p206
      // Predicated region
      $region9: #{tpu_custom_call.1} parent=5 // pred_check
        _
      $region10: #{tpu_custom_call.1} parent=5 // pred_check_branch
        %209 = sbr.rel (%p206) target = $region12
      $region11: #{tpu_custom_call.1} parent=5 // pred_region
        %s210 = ssub.s32 %s18, 1
        // Predicated region
        $region13: #{tpu_custom_call.1} parent=11 // pred_check
          %p211 = pneg %p39
        $region14: #{tpu_custom_call.1} parent=11 // pred_check_branch
          %213 = sbr.rel (%p211) target = $region16
        $region15: #{tpu_custom_call.1} parent=11 // pred_region
          _
        $region16: #{tpu_custom_call.1} parent=11 // pred_fallthru
          _
        // Predicated region
        $region17: #{tpu_custom_call.1} parent=11 // pred_check
          %p214 = pneg %p60
        $region18: #{tpu_custom_call.1} parent=11 // pred_check_branch
          %216 = sbr.rel (%p214) target = $region20
        $region19: #{tpu_custom_call.1} parent=11 // pred_region
          _
        $region20: #{tpu_custom_call.1} parent=11 // pred_fallthru
          _
        // Predicated region
        $region21: #{tpu_custom_call.1} parent=11 // pred_check
          %p217 = pneg %p81
        $region22: #{tpu_custom_call.1} parent=11 // pred_check_branch
          %219 = sbr.rel (%p217) target = $region24
        $region23: #{tpu_custom_call.1} parent=11 // pred_region
          _
        $region24: #{tpu_custom_call.1} parent=11 // pred_fallthru
          _
        // Predicated region
        $region25: #{tpu_custom_call.1} parent=11 // pred_check
          %p220 = pneg %p102
        $region26: #{tpu_custom_call.1} parent=11 // pred_check_branch
          %222 = sbr.rel (%p220) target = $region28
        $region27: #{tpu_custom_call.1} parent=11 // pred_region
          %224 = vsyncadd [#allocation4], 0
          %s225 = sshll.u32 %s3, 4
          %s226 = int_to_ptr.hbm [resolvable:$true] %s225
          %s227 = sshll.u32 [#allocation3], 4
          %s228 = int_to_ptr.vmem [resolvable:$true] %s227
          %233 = dma.hbm_to_vmem [thread:$0]  %s226, 512, %s228, [#allocation4], 256, 256, 16
        $region28: #{tpu_custom_call.1} parent=11 // pred_fallthru
          _
        // Predicated region
        $region29: #{tpu_custom_call.1} parent=11 // pred_check
          %p234 = pneg %p123
        $region30: #{tpu_custom_call.1} parent=11 // pred_check_branch
          %236 = sbr.rel (%p234) target = $region32
        $region31: #{tpu_custom_call.1} parent=11 // pred_region
          _
        $region32: #{tpu_custom_call.1} parent=11 // pred_fallthru
          _
        // Predicated region
        $region33: #{tpu_custom_call.1} parent=11 // pred_check
          %p237 = pneg %p144
        $region34: #{tpu_custom_call.1} parent=11 // pred_check_branch
          %239 = sbr.rel (%p237) target = $region36
        $region35: #{tpu_custom_call.1} parent=11 // pred_region
          %241 = vsyncadd [#allocation7], 0
          %s243 = sshll.u32 %s5, 4
          %s244 = int_to_ptr.hbm [resolvable:$true] %s243
          %s245 = sshll.u32 [#allocation6], 4
          %s246 = int_to_ptr.vmem [resolvable:$true] %s245
          %248 = dma.hbm_to_vmem [thread:$0]  %s244, 256, %s246, [#allocation7]
        $region36: #{tpu_custom_call.1} parent=11 // pred_fallthru
          _
      $region12: #{tpu_custom_call.1} parent=5 // pred_fallthru
        _
      %p249 = scmp.lt.s32.totalorder %s18, 2
      // Predicated region
      $region37: #{tpu_custom_call.1} parent=5 // pred_check
        %p250 = pneg %p249
      $region38: #{tpu_custom_call.1} parent=5 // pred_check_branch
        %252 = sbr.rel (%p250) target = $region40
      $region39: #{tpu_custom_call.1} parent=5 // pred_region
        // Predicated region
        $region41: #{tpu_custom_call.1} parent=39 // pred_check
          %p253 = pneg %p164
        $region42: #{tpu_custom_call.1} parent=39 // pred_check_branch
          %255 = sbr.rel (%p253) target = $region44
        $region43: #{tpu_custom_call.1} parent=39 // pred_region
          %s256 = sand.u32 %s18, 1
          %s257 = scalar_lea.sflag [#allocation4], %s256
          %s258 = sand.u32 %s154, 1
          %s259 = smul.addr %s258, 64
          %s260 = scalar_lea.vmem [#allocation8], %s259
          %262 = vsyncadd %s257, 0
          %s263 = smul.addr %s18, 8
          %s264 = smul.addr %s263, 8
          %s265 = scalar_lea.hbm %s6, %s264
          %s267 = sshll.u32 %s265, 4
          %s268 = int_to_ptr.hbm [resolvable:$true] %s267
          %s269 = sshll.u32 %s260, 4
          %s270 = int_to_ptr.vmem [resolvable:$true] %s269
          %272 = dma.hbm_to_vmem [thread:$0]  %s268, 1024, %s270, %s257
        $region44: #{tpu_custom_call.1} parent=39 // pred_fallthru
          _
      $region40: #{tpu_custom_call.1} parent=5 // pred_fallthru
        _
      %p273 = scmp.le.s32.totalorder 1, %s18
      %p274 = scmp.lt.s32.totalorder %s18, 3
      %p275 = pnand %p273, %p274
      %p276 = pneg %p275
      // Predicated region
      $region45: #{tpu_custom_call.1} parent=5 // pred_check
        _
      $region46: #{tpu_custom_call.1} parent=5 // pred_check_branch
        %278 = sbr.rel (%p275) target = $region48
      $region47: #{tpu_custom_call.1} parent=5 // pred_region
        %s279 = ssub.s32 %s18, 1
        // Predicated region
        $region49: #{tpu_custom_call.1} parent=47 // pred_check
          %p280 = pneg %p102
        $region50: #{tpu_custom_call.1} parent=47 // pred_check_branch
          %282 = sbr.rel (%p280) target = $region52
        $region51: #{tpu_custom_call.1} parent=47 // pred_region
          %284 = dma.done [#allocation4], 512
        $region52: #{tpu_custom_call.1} parent=47 // pred_fallthru
          _
        // Predicated region
        $region53: #{tpu_custom_call.1} parent=47 // pred_check
          %p285 = pneg %p144
        $region54: #{tpu_custom_call.1} parent=47 // pred_check_branch
          %287 = sbr.rel (%p285) target = $region56
        $region55: #{tpu_custom_call.1} parent=47 // pred_region
          %289 = dma.done [#allocation7], 256
        $region56: #{tpu_custom_call.1} parent=47 // pred_fallthru
          _
        %s290 = sand.u32 %s23, 1
        %s291 = scalar_lea.sflag [#allocation4], %s290
        %s292 = sand.u32 %s157, 1
        %s293 = smul.addr %s292, 64
        %s294 = scalar_lea.vmem [#allocation8], %s293
        // Predicated region
        $region57: #{tpu_custom_call.1} parent=47 // pred_check
          %p295 = pneg %p170
        $region58: #{tpu_custom_call.1} parent=47 // pred_check_branch
          %297 = sbr.rel (%p295) target = $region60
        $region59: #{tpu_custom_call.1} parent=47 // pred_region
          %299 = dma.done %s291, 1024
        $region60: #{tpu_custom_call.1} parent=47 // pred_fallthru
          _
        %p300 = pneg %p39
        %p301 = pneg %p36
        %p302 = pneg %p60
        %p303 = pneg %p57
        %p304 = pneg %p81
        %p305 = pneg %p78
        %p306 = pneg %p102
        %p307 = pneg %p99
        %p308 = pneg %p123
        %p309 = pneg %p120
        %p310 = pneg %p144
        %p311 = pneg %p141
        %s312 = sand.u32 %s23, 1
        %s313 = scalar_lea.sflag [#allocation4], %s312
        %s314 = sand.u32 %s157, 1
        %s315 = smul.addr %s314, 64
        %s316 = scalar_lea.vmem [#allocation8], %s315
        %p317 = pneg %p170
        %p318 = pneg %p167
        %p319 = pneg %p196
        %p320 = pneg %p193
        %s321 = sand.u32 %s183, 1
        %s322 = scalar_lea.sflag [#allocation5], %s321
        %s323 = sand.u32 %s183, 1
        %s324 = smul.addr %s323, 64
        %s325 = scalar_lea.vmem [#allocation9], %s324
        %v326 = vld [vmem:[%s0] sm:$0xff]
        %v327 = vld [vmem:[%s1] sm:$0xff]
        %v328 = vld [vmem:[%s2] sm:$0xff]
        %329 = vst [vmem:[#allocation2 + $0x6c0] sm:$0xff] 0.0
        %330 = vst [vmem:[#allocation2 + $0x6c8] sm:$0xff] 0.0
        %331 = vst [vmem:[#allocation2 + $0x6d0] sm:$0xff] 0.0
        %332 = vst [vmem:[#allocation2 + $0x6d8] sm:$0xff] 0.0
        %333 = vst [vmem:[#allocation2 + $0x6e0] sm:$0xff] 0.0
        %334 = vst [vmem:[#allocation2 + $0x6e8] sm:$0xff] 0.0
        %335 = vst [vmem:[#allocation2 + $0x6f0] sm:$0xff] 0.0
        %336 = vst [vmem:[#allocation2 + $0x6f8] sm:$0xff] 0.0
        %337 = vst [vmem:[#allocation2 + $0x700] sm:$0xff] 0.0
        %338 = vst [vmem:[#allocation2 + $0x708] sm:$0xff] 0.0
        %339 = vst [vmem:[#allocation2 + $0x710] sm:$0xff] 0.0
        %340 = vst [vmem:[#allocation2 + $0x718] sm:$0xff] 0.0
        %341 = vst [vmem:[#allocation2 + $0x720] sm:$0xff] 0.0
        %342 = vst [vmem:[#allocation2 + $0x728] sm:$0xff] 0.0
        %343 = vst [vmem:[#allocation2 + $0x730] sm:$0xff] 0.0
        %344 = vst [vmem:[#allocation2 + $0x738] sm:$0xff] 0.0
        %345 = vst [vmem:[#allocation2 + $0x740] sm:$0xff] 0.0
        %346 = vst [vmem:[#allocation2 + $0x748] sm:$0xff] 0.0
        %347 = vst [vmem:[#allocation2 + $0x750] sm:$0xff] 0.0
        %348 = vst [vmem:[#allocation2 + $0x758] sm:$0xff] 0.0
        %349 = vst [vmem:[#allocation2 + $0x760] sm:$0xff] 0.0
        %350 = vst [vmem:[#allocation2 + $0x768] sm:$0xff] 0.0
        %351 = vst [vmem:[#allocation2 + $0x770] sm:$0xff] 0.0
        %352 = vst [vmem:[#allocation2 + $0x778] sm:$0xff] 0.0
        %353 = vst [vmem:[#allocation2 + $0x780] sm:$0xff] 0.0
        %354 = vst [vmem:[#allocation2 + $0x788] sm:$0xff] 0.0
        %355 = vst [vmem:[#allocation2 + $0x790] sm:$0xff] 0.0
        %356 = vst [vmem:[#allocation2 + $0x798] sm:$0xff] 0.0
        %357 = vst [vmem:[#allocation2 + $0x7a0] sm:$0xff] 0.0
        %358 = vst [vmem:[#allocation2 + $0x7a8] sm:$0xff] 0.0
        %359 = vst [vmem:[#allocation2 + $0x7b0] sm:$0xff] 0.0
        %360 = vst [vmem:[#allocation2 + $0x7b8] sm:$0xff] 0.0
        %361 = vst [vmem:[#allocation2 + $0x7c0] sm:$0xff] 0.0
        %362 = vst [vmem:[#allocation2 + $0x7c8] sm:$0xff] 0.0
        %363 = vst [vmem:[#allocation2 + $0x7d0] sm:$0xff] 0.0
        %364 = vst [vmem:[#allocation2 + $0x7d8] sm:$0xff] 0.0
        %365 = vst [vmem:[#allocation2 + $0x7e0] sm:$0xff] 0.0
        %366 = vst [vmem:[#allocation2 + $0x7e8] sm:$0xff] 0.0
        %367 = vst [vmem:[#allocation2 + $0x7f0] sm:$0xff] 0.0
        %368 = vst [vmem:[#allocation2 + $0x7f8] sm:$0xff] 0.0
        %v369 = vld [vmem:[%s294] sm:$0xff]
        %v370 = vld [vmem:[%s294 + $0x8] sm:$0xff]
        %v371 = vld [vmem:[%s294 + $0x10] sm:$0xff]
        %v372 = vld [vmem:[%s294 + $0x18] sm:$0xff]
        %v373 = vld [vmem:[%s294 + $0x20] sm:$0xff]
        %v374 = vld [vmem:[%s294 + $0x28] sm:$0xff]
        %v375 = vld [vmem:[%s294 + $0x30] sm:$0xff]
        %v376 = vld [vmem:[%s294 + $0x38] sm:$0xff]
        %377 = vrot.lane.b32.xlu0 %v369, 111
        %v378 = vpop.permute.xlu0 %377
        %379 = vrot.lane.b32.xlu0 %v370, 111
        %v380 = vpop.permute.xlu0 %379
        %381 = vrot.lane.b32.xlu0 %v371, 111
        %v382 = vpop.permute.xlu0 %381
        %383 = vrot.lane.b32.xlu0 %v372, 111
        %v384 = vpop.permute.xlu0 %383
        %385 = vrot.lane.b32.xlu0 %v373, 111
        %v386 = vpop.permute.xlu0 %385
        %387 = vrot.lane.b32.xlu0 %v374, 111
        %v388 = vpop.permute.xlu0 %387
        %389 = vrot.lane.b32.xlu0 %v375, 111
        %v390 = vpop.permute.xlu0 %389
        %391 = vrot.lane.b32.xlu0 %v376, 111
        %v392 = vpop.permute.xlu0 %391
        %v393 = vlaneseq
        %v394 = vand.u32 %v393, 127
        %vm395 = vcmp.lt.s32.totalorder %v394, 111
        %v396 = vsel %vm395, %v390, %v392
        %v397 = vsel %vm395, %v388, %v390
        %v398 = vsel %vm395, %v386, %v388
        %v399 = vsel %vm395, %v384, %v386
        %v400 = vsel %vm395, %v382, %v384
        %v401 = vsel %vm395, %v380, %v382
        %v402 = vsel %vm395, %v378, %v380
        %v403 = vsel %vm395, %v392, %v378
        %404 = vst [vmem:[#allocation2] sm:$0xff] %v403
        %405 = vst [vmem:[#allocation2 + $0x8] sm:$0xff] %v402
        %406 = vst [vmem:[#allocation2 + $0x10] sm:$0xff] %v401
        %407 = vst [vmem:[#allocation2 + $0x18] sm:$0xff] %v400
        %408 = vst [vmem:[#allocation2 + $0x20] sm:$0xff] %v399
        %409 = vst [vmem:[#allocation2 + $0x28] sm:$0xff] %v398
        %410 = vst [vmem:[#allocation2 + $0x30] sm:$0xff] %v397
        %411 = vst [vmem:[#allocation2 + $0x38] sm:$0xff] %v396
        %412 = vrot.lane.b32.xlu0 %v369, 110
        %v413 = vpop.permute.xlu0 %412
        %414 = vrot.lane.b32.xlu0 %v370, 110
        %v415 = vpop.permute.xlu0 %414
        %416 = vrot.lane.b32.xlu0 %v371, 110
        %v417 = vpop.permute.xlu0 %416
        %418 = vrot.lane.b32.xlu0 %v372, 110
        %v419 = vpop.permute.xlu0 %418
        %420 = vrot.lane.b32.xlu0 %v373, 110
        %v421 = vpop.permute.xlu0 %420
        %422 = vrot.lane.b32.xlu0 %v374, 110
        %v423 = vpop.permute.xlu0 %422
        %424 = vrot.lane.b32.xlu0 %v375, 110
        %v425 = vpop.permute.xlu0 %424
        %426 = vrot.lane.b32.xlu0 %v376, 110
        %v427 = vpop.permute.xlu0 %426
        %vm428 = vcmp.lt.s32.totalorder %v394, 110
        %v429 = vsel %vm428, %v425, %v427
        %v430 = vsel %vm428, %v423, %v425
        %v431 = vsel %vm428, %v421, %v423
        %v432 = vsel %vm428, %v419, %v421
        %v433 = vsel %vm428, %v417, %v419
        %v434 = vsel %vm428, %v415, %v417
        %v435 = vsel %vm428, %v413, %v415
        %v436 = vsel %vm428, %v427, %v413
        %437 = vst [vmem:[#allocation2 + $0x40] sm:$0xff] %v436
        %438 = vst [vmem:[#allocation2 + $0x48] sm:$0xff] %v435
        %439 = vst [vmem:[#allocation2 + $0x50] sm:$0xff] %v434
        %440 = vst [vmem:[#allocation2 + $0x58] sm:$0xff] %v433
        %441 = vst [vmem:[#allocation2 + $0x60] sm:$0xff] %v432
        %442 = vst [vmem:[#allocation2 + $0x68] sm:$0xff] %v431
        %443 = vst [vmem:[#allocation2 + $0x70] sm:$0xff] %v430
        %444 = vst [vmem:[#allocation2 + $0x78] sm:$0xff] %v429
        %445 = vrot.lane.b32.xlu0 %v369, 109
        %v446 = vpop.permute.xlu0 %445
        %447 = vrot.lane.b32.xlu0 %v370, 109
        %v448 = vpop.permute.xlu0 %447
        %449 = vrot.lane.b32.xlu0 %v371, 109
        %v450 = vpop.permute.xlu0 %449
        %451 = vrot.lane.b32.xlu0 %v372, 109
        %v452 = vpop.permute.xlu0 %451
        %453 = vrot.lane.b32.xlu0 %v373, 109
        %v454 = vpop.permute.xlu0 %453
        %455 = vrot.lane.b32.xlu0 %v374, 109
        %v456 = vpop.permute.xlu0 %455
        %457 = vrot.lane.b32.xlu0 %v375, 109
        %v458 = vpop.permute.xlu0 %457
        %459 = vrot.lane.b32.xlu0 %v376, 109
        %v460 = vpop.permute.xlu0 %459
        %vm461 = vcmp.lt.s32.totalorder %v394, 109
        %v462 = vsel %vm461, %v458, %v460
        %v463 = vsel %vm461, %v456, %v458
        %v464 = vsel %vm461, %v454, %v456
        %v465 = vsel %vm461, %v452, %v454
        %v466 = vsel %vm461, %v450, %v452
        %v467 = vsel %vm461, %v448, %v450
        %v468 = vsel %vm461, %v446, %v448
        %v469 = vsel %vm461, %v460, %v446
        %470 = vst [vmem:[#allocation2 + $0x80] sm:$0xff] %v469
        %471 = vst [vmem:[#allocation2 + $0x88] sm:$0xff] %v468
        %472 = vst [vmem:[#allocation2 + $0x90] sm:$0xff] %v467
        %473 = vst [vmem:[#allocation2 + $0x98] sm:$0xff] %v466
        %474 = vst [vmem:[#allocation2 + $0xa0] sm:$0xff] %v465
        %475 = vst [vmem:[#allocation2 + $0xa8] sm:$0xff] %v464
        %476 = vst [vmem:[#allocation2 + $0xb0] sm:$0xff] %v463
        %477 = vst [vmem:[#allocation2 + $0xb8] sm:$0xff] %v462
        %478 = vrot.lane.b32.xlu0 %v369, 101
        %v479 = vpop.permute.xlu0 %478
        %480 = vrot.lane.b32.xlu0 %v370, 101
        %v481 = vpop.permute.xlu0 %480
        %482 = vrot.lane.b32.xlu0 %v371, 101
        %v483 = vpop.permute.xlu0 %482
        %484 = vrot.lane.b32.xlu0 %v372, 101
        %v485 = vpop.permute.xlu0 %484
        %486 = vrot.lane.b32.xlu0 %v373, 101
        %v487 = vpop.permute.xlu0 %486
        %488 = vrot.lane.b32.xlu0 %v374, 101
        %v489 = vpop.permute.xlu0 %488
        %490 = vrot.lane.b32.xlu0 %v375, 101
        %v491 = vpop.permute.xlu0 %490
        %492 = vrot.lane.b32.xlu0 %v376, 101
        %v493 = vpop.permute.xlu0 %492
        %vm494 = vcmp.lt.s32.totalorder %v394, 101
        %v495 = vsel %vm494, %v491, %v493
        %v496 = vsel %vm494, %v489, %v491
        %v497 = vsel %vm494, %v487, %v489
        %v498 = vsel %vm494, %v485, %v487
        %v499 = vsel %vm494, %v483, %v485
        %v500 = vsel %vm494, %v481, %v483
        %v501 = vsel %vm494, %v479, %v481
        %v502 = vsel %vm494, %v493, %v479
        %503 = vst [vmem:[#allocation2 + $0xc0] sm:$0xff] %v502
        %504 = vst [vmem:[#allocation2 + $0xc8] sm:$0xff] %v501
        %505 = vst [vmem:[#allocation2 + $0xd0] sm:$0xff] %v500
        %506 = vst [vmem:[#allocation2 + $0xd8] sm:$0xff] %v499
        %507 = vst [vmem:[#allocation2 + $0xe0] sm:$0xff] %v498
        %508 = vst [vmem:[#allocation2 + $0xe8] sm:$0xff] %v497
        %509 = vst [vmem:[#allocation2 + $0xf0] sm:$0xff] %v496
        %510 = vst [vmem:[#allocation2 + $0xf8] sm:$0xff] %v495
        %511 = vrot.lane.b32.xlu0 %v369, 100
        %v512 = vpop.permute.xlu0 %511
        %513 = vrot.lane.b32.xlu0 %v370, 100
        %v514 = vpop.permute.xlu0 %513
        %515 = vrot.lane.b32.xlu0 %v371, 100
        %v516 = vpop.permute.xlu0 %515
        %517 = vrot.lane.b32.xlu0 %v372, 100
        %v518 = vpop.permute.xlu0 %517
        %519 = vrot.lane.b32.xlu0 %v373, 100
        %v520 = vpop.permute.xlu0 %519
        %521 = vrot.lane.b32.xlu0 %v374, 100
        %v522 = vpop.permute.xlu0 %521
        %523 = vrot.lane.b32.xlu0 %v375, 100
        %v524 = vpop.permute.xlu0 %523
        %525 = vrot.lane.b32.xlu0 %v376, 100
        %v526 = vpop.permute.xlu0 %525
        %vm527 = vcmp.lt.s32.totalorder %v394, 100
        %v528 = vsel %vm527, %v524, %v526
        %v529 = vsel %vm527, %v522, %v524
        %v530 = vsel %vm527, %v520, %v522
        %v531 = vsel %vm527, %v518, %v520
        %v532 = vsel %vm527, %v516, %v518
        %v533 = vsel %vm527, %v514, %v516
        %v534 = vsel %vm527, %v512, %v514
        %v535 = vsel %vm527, %v526, %v512
        %536 = vst [vmem:[#allocation2 + $0x100] sm:$0xff] %v535
        %537 = vst [vmem:[#allocation2 + $0x108] sm:$0xff] %v534
        %538 = vst [vmem:[#allocation2 + $0x110] sm:$0xff] %v533
        %539 = vst [vmem:[#allocation2 + $0x118] sm:$0xff] %v532
        %540 = vst [vmem:[#allocation2 + $0x120] sm:$0xff] %v531
        %541 = vst [vmem:[#allocation2 + $0x128] sm:$0xff] %v530
        %542 = vst [vmem:[#allocation2 + $0x130] sm:$0xff] %v529
        %543 = vst [vmem:[#allocation2 + $0x138] sm:$0xff] %v528
        %544 = vrot.lane.b32.xlu0 %v369, 99
        %v545 = vpop.permute.xlu0 %544
        %546 = vrot.lane.b32.xlu0 %v370, 99
        %v547 = vpop.permute.xlu0 %546
        %548 = vrot.lane.b32.xlu0 %v371, 99
        %v549 = vpop.permute.xlu0 %548
        %550 = vrot.lane.b32.xlu0 %v372, 99
        %v551 = vpop.permute.xlu0 %550
        %552 = vrot.lane.b32.xlu0 %v373, 99
        %v553 = vpop.permute.xlu0 %552
        %554 = vrot.lane.b32.xlu0 %v374, 99
        %v555 = vpop.permute.xlu0 %554
        %556 = vrot.lane.b32.xlu0 %v375, 99
        %v557 = vpop.permute.xlu0 %556
        %558 = vrot.lane.b32.xlu0 %v376, 99
        %v559 = vpop.permute.xlu0 %558
        %vm560 = vcmp.lt.s32.totalorder %v394, 99
        %v561 = vsel %vm560, %v557, %v559
        %v562 = vsel %vm560, %v555, %v557
        %v563 = vsel %vm560, %v553, %v555
        %v564 = vsel %vm560, %v551, %v553
        %v565 = vsel %vm560, %v549, %v551
        %v566 = vsel %vm560, %v547, %v549
        %v567 = vsel %vm560, %v545, %v547
        %v568 = vsel %vm560, %v559, %v545
        %569 = vst [vmem:[#allocation2 + $0x140] sm:$0xff] %v568
        %570 = vst [vmem:[#allocation2 + $0x148] sm:$0xff] %v567
        %571 = vst [vmem:[#allocation2 + $0x150] sm:$0xff] %v566
        %572 = vst [vmem:[#allocation2 + $0x158] sm:$0xff] %v565
        %573 = vst [vmem:[#allocation2 + $0x160] sm:$0xff] %v564
        %574 = vst [vmem:[#allocation2 + $0x168] sm:$0xff] %v563
        %575 = vst [vmem:[#allocation2 + $0x170] sm:$0xff] %v562
        %576 = vst [vmem:[#allocation2 + $0x178] sm:$0xff] %v561
        %577 = vrot.lane.b32.xlu0 %v369, 91
        %v578 = vpop.permute.xlu0 %577
        %579 = vrot.lane.b32.xlu0 %v370, 91
        %v580 = vpop.permute.xlu0 %579
        %581 = vrot.lane.b32.xlu0 %v371, 91
        %v582 = vpop.permute.xlu0 %581
        %583 = vrot.lane.b32.xlu0 %v372, 91
        %v584 = vpop.permute.xlu0 %583
        %585 = vrot.lane.b32.xlu0 %v373, 91
        %v586 = vpop.permute.xlu0 %585
        %587 = vrot.lane.b32.xlu0 %v374, 91
        %v588 = vpop.permute.xlu0 %587
        %589 = vrot.lane.b32.xlu0 %v375, 91
        %v590 = vpop.permute.xlu0 %589
        %591 = vrot.lane.b32.xlu0 %v376, 91
        %v592 = vpop.permute.xlu0 %591
        %vm593 = vcmp.lt.s32.totalorder %v394, 91
        %v594 = vsel %vm593, %v590, %v592
        %v595 = vsel %vm593, %v588, %v590
        %v596 = vsel %vm593, %v586, %v588
        %v597 = vsel %vm593, %v584, %v586
        %v598 = vsel %vm593, %v582, %v584
        %v599 = vsel %vm593, %v580, %v582
        %v600 = vsel %vm593, %v578, %v580
        %v601 = vsel %vm593, %v592, %v578
        %602 = vst [vmem:[#allocation2 + $0x180] sm:$0xff] %v601
        %603 = vst [vmem:[#allocation2 + $0x188] sm:$0xff] %v600
        %604 = vst [vmem:[#allocation2 + $0x190] sm:$0xff] %v599
        %605 = vst [vmem:[#allocation2 + $0x198] sm:$0xff] %v598
        %606 = vst [vmem:[#allocation2 + $0x1a0] sm:$0xff] %v597
        %607 = vst [vmem:[#allocation2 + $0x1a8] sm:$0xff] %v596
        %608 = vst [vmem:[#allocation2 + $0x1b0] sm:$0xff] %v595
        %609 = vst [vmem:[#allocation2 + $0x1b8] sm:$0xff] %v594
        %610 = vrot.lane.b32.xlu0 %v369, 90
        %v611 = vpop.permute.xlu0 %610
        %612 = vrot.lane.b32.xlu0 %v370, 90
        %v613 = vpop.permute.xlu0 %612
        %614 = vrot.lane.b32.xlu0 %v371, 90
        %v615 = vpop.permute.xlu0 %614
        %616 = vrot.lane.b32.xlu0 %v372, 90
        %v617 = vpop.permute.xlu0 %616
        %618 = vrot.lane.b32.xlu0 %v373, 90
        %v619 = vpop.permute.xlu0 %618
        %620 = vrot.lane.b32.xlu0 %v374, 90
        %v621 = vpop.permute.xlu0 %620
        %622 = vrot.lane.b32.xlu0 %v375, 90
        %v623 = vpop.permute.xlu0 %622
        %624 = vrot.lane.b32.xlu0 %v376, 90
        %v625 = vpop.permute.xlu0 %624
        %vm626 = vcmp.lt.s32.totalorder %v394, 90
        %v627 = vsel %vm626, %v623, %v625
        %v628 = vsel %vm626, %v621, %v623
        %v629 = vsel %vm626, %v619, %v621
        %v630 = vsel %vm626, %v617, %v619
        %v631 = vsel %vm626, %v615, %v617
        %v632 = vsel %vm626, %v613, %v615
        %v633 = vsel %vm626, %v611, %v613
        %v634 = vsel %vm626, %v625, %v611
        %635 = vst [vmem:[#allocation2 + $0x1c0] sm:$0xff] %v634
        %636 = vst [vmem:[#allocation2 + $0x1c8] sm:$0xff] %v633
        %637 = vst [vmem:[#allocation2 + $0x1d0] sm:$0xff] %v632
        %638 = vst [vmem:[#allocation2 + $0x1d8] sm:$0xff] %v631
        %639 = vst [vmem:[#allocation2 + $0x1e0] sm:$0xff] %v630
        %640 = vst [vmem:[#allocation2 + $0x1e8] sm:$0xff] %v629
        %641 = vst [vmem:[#allocation2 + $0x1f0] sm:$0xff] %v628
        %642 = vst [vmem:[#allocation2 + $0x1f8] sm:$0xff] %v627
        %643 = vrot.lane.b32.xlu0 %v369, 89
        %v644 = vpop.permute.xlu0 %643
        %645 = vrot.lane.b32.xlu0 %v370, 89
        %v646 = vpop.permute.xlu0 %645
        %647 = vrot.lane.b32.xlu0 %v371, 89
        %v648 = vpop.permute.xlu0 %647
        %649 = vrot.lane.b32.xlu0 %v372, 89
        %v650 = vpop.permute.xlu0 %649
        %651 = vrot.lane.b32.xlu0 %v373, 89
        %v652 = vpop.permute.xlu0 %651
        %653 = vrot.lane.b32.xlu0 %v374, 89
        %v654 = vpop.permute.xlu0 %653
        %655 = vrot.lane.b32.xlu0 %v375, 89
        %v656 = vpop.permute.xlu0 %655
        %657 = vrot.lane.b32.xlu0 %v376, 89
        %v658 = vpop.permute.xlu0 %657
        %vm659 = vcmp.lt.s32.totalorder %v394, 89
        %v660 = vsel %vm659, %v656, %v658
        %v661 = vsel %vm659, %v654, %v656
        %v662 = vsel %vm659, %v652, %v654
        %v663 = vsel %vm659, %v650, %v652
        %v664 = vsel %vm659, %v648, %v650
        %v665 = vsel %vm659, %v646, %v648
        %v666 = vsel %vm659, %v644, %v646
        %v667 = vsel %vm659, %v658, %v644
        %668 = vst [vmem:[#allocation2 + $0x200] sm:$0xff] %v667
        %669 = vst [vmem:[#allocation2 + $0x208] sm:$0xff] %v666
        %670 = vst [vmem:[#allocation2 + $0x210] sm:$0xff] %v665
        %671 = vst [vmem:[#allocation2 + $0x218] sm:$0xff] %v664
        %672 = vst [vmem:[#allocation2 + $0x220] sm:$0xff] %v663
        %673 = vst [vmem:[#allocation2 + $0x228] sm:$0xff] %v662
        %674 = vst [vmem:[#allocation2 + $0x230] sm:$0xff] %v661
        %675 = vst [vmem:[#allocation2 + $0x238] sm:$0xff] %v660
        %676 = vrot.lane.b32.xlu0 %v369, 11
        %v677 = vpop.permute.xlu0 %676
        %678 = vrot.lane.b32.xlu0 %v370, 11
        %v679 = vpop.permute.xlu0 %678
        %680 = vrot.lane.b32.xlu0 %v371, 11
        %v681 = vpop.permute.xlu0 %680
        %682 = vrot.lane.b32.xlu0 %v372, 11
        %v683 = vpop.permute.xlu0 %682
        %684 = vrot.lane.b32.xlu0 %v373, 11
        %v685 = vpop.permute.xlu0 %684
        %686 = vrot.lane.b32.xlu0 %v374, 11
        %v687 = vpop.permute.xlu0 %686
        %688 = vrot.lane.b32.xlu0 %v375, 11
        %v689 = vpop.permute.xlu0 %688
        %690 = vrot.lane.b32.xlu0 %v376, 11
        %v691 = vpop.permute.xlu0 %690
        %vm692 = vcmp.lt.s32.totalorder %v394, 11
        %v693 = vsel %vm692, %v689, %v691
        %v694 = vsel %vm692, %v687, %v689
        %v695 = vsel %vm692, %v685, %v687
        %v696 = vsel %vm692, %v683, %v685
        %v697 = vsel %vm692, %v681, %v683
        %v698 = vsel %vm692, %v679, %v681
        %v699 = vsel %vm692, %v677, %v679
        %v700 = vsel %vm692, %v691, %v677
        %701 = vst [vmem:[#allocation2 + $0x240] sm:$0xff] %v700
        %702 = vst [vmem:[#allocation2 + $0x248] sm:$0xff] %v699
        %703 = vst [vmem:[#allocation2 + $0x250] sm:$0xff] %v698
        %704 = vst [vmem:[#allocation2 + $0x258] sm:$0xff] %v697
        %705 = vst [vmem:[#allocation2 + $0x260] sm:$0xff] %v696
        %706 = vst [vmem:[#allocation2 + $0x268] sm:$0xff] %v695
        %707 = vst [vmem:[#allocation2 + $0x270] sm:$0xff] %v694
        %708 = vst [vmem:[#allocation2 + $0x278] sm:$0xff] %v693
        %709 = vrot.lane.b32.xlu0 %v369, 10
        %v710 = vpop.permute.xlu0 %709
        %711 = vrot.lane.b32.xlu0 %v370, 10
        %v712 = vpop.permute.xlu0 %711
        %713 = vrot.lane.b32.xlu0 %v371, 10
        %v714 = vpop.permute.xlu0 %713
        %715 = vrot.lane.b32.xlu0 %v372, 10
        %v716 = vpop.permute.xlu0 %715
        %717 = vrot.lane.b32.xlu0 %v373, 10
        %v718 = vpop.permute.xlu0 %717
        %719 = vrot.lane.b32.xlu0 %v374, 10
        %v720 = vpop.permute.xlu0 %719
        %721 = vrot.lane.b32.xlu0 %v375, 10
        %v722 = vpop.permute.xlu0 %721
        %723 = vrot.lane.b32.xlu0 %v376, 10
        %v724 = vpop.permute.xlu0 %723
        %vm725 = vcmp.lt.s32.totalorder %v394, 10
        %v726 = vsel %vm725, %v722, %v724
        %v727 = vsel %vm725, %v720, %v722
        %v728 = vsel %vm725, %v718, %v720
        %v729 = vsel %vm725, %v716, %v718
        %v730 = vsel %vm725, %v714, %v716
        %v731 = vsel %vm725, %v712, %v714
        %v732 = vsel %vm725, %v710, %v712
        %v733 = vsel %vm725, %v724, %v710
        %734 = vst [vmem:[#allocation2 + $0x280] sm:$0xff] %v733
        %735 = vst [vmem:[#allocation2 + $0x288] sm:$0xff] %v732
        %736 = vst [vmem:[#allocation2 + $0x290] sm:$0xff] %v731
        %737 = vst [vmem:[#allocation2 + $0x298] sm:$0xff] %v730
        %738 = vst [vmem:[#allocation2 + $0x2a0] sm:$0xff] %v729
        %739 = vst [vmem:[#allocation2 + $0x2a8] sm:$0xff] %v728
        %740 = vst [vmem:[#allocation2 + $0x2b0] sm:$0xff] %v727
        %741 = vst [vmem:[#allocation2 + $0x2b8] sm:$0xff] %v726
        %742 = vrot.lane.b32.xlu0 %v369, 9
        %v743 = vpop.permute.xlu0 %742
        %744 = vrot.lane.b32.xlu0 %v370, 9
        %v745 = vpop.permute.xlu0 %744
        %746 = vrot.lane.b32.xlu0 %v371, 9
        %v747 = vpop.permute.xlu0 %746
        %748 = vrot.lane.b32.xlu0 %v372, 9
        %v749 = vpop.permute.xlu0 %748
        %750 = vrot.lane.b32.xlu0 %v373, 9
        %v751 = vpop.permute.xlu0 %750
        %752 = vrot.lane.b32.xlu0 %v374, 9
        %v753 = vpop.permute.xlu0 %752
        %754 = vrot.lane.b32.xlu0 %v375, 9
        %v755 = vpop.permute.xlu0 %754
        %756 = vrot.lane.b32.xlu0 %v376, 9
        %v757 = vpop.permute.xlu0 %756
        %vm758 = vcmp.lt.s32.totalorder %v394, 9
        %v759 = vsel %vm758, %v755, %v757
        %v760 = vsel %vm758, %v753, %v755
        %v761 = vsel %vm758, %v751, %v753
        %v762 = vsel %vm758, %v749, %v751
        %v763 = vsel %vm758, %v747, %v749
        %v764 = vsel %vm758, %v745, %v747
        %v765 = vsel %vm758, %v743, %v745
        %v766 = vsel %vm758, %v757, %v743
        %767 = vst [vmem:[#allocation2 + $0x2c0] sm:$0xff] %v766
        %768 = vst [vmem:[#allocation2 + $0x2c8] sm:$0xff] %v765
        %769 = vst [vmem:[#allocation2 + $0x2d0] sm:$0xff] %v764
        %770 = vst [vmem:[#allocation2 + $0x2d8] sm:$0xff] %v763
        %771 = vst [vmem:[#allocation2 + $0x2e0] sm:$0xff] %v762
        %772 = vst [vmem:[#allocation2 + $0x2e8] sm:$0xff] %v761
        %773 = vst [vmem:[#allocation2 + $0x2f0] sm:$0xff] %v760
        %774 = vst [vmem:[#allocation2 + $0x2f8] sm:$0xff] %v759
        %775 = vrot.lane.b32.xlu0 %v369, 1
        %v776 = vpop.permute.xlu0 %775
        %777 = vrot.lane.b32.xlu0 %v370, 1
        %v778 = vpop.permute.xlu0 %777
        %779 = vrot.lane.b32.xlu0 %v371, 1
        %v780 = vpop.permute.xlu0 %779
        %781 = vrot.lane.b32.xlu0 %v372, 1
        %v782 = vpop.permute.xlu0 %781
        %783 = vrot.lane.b32.xlu0 %v373, 1
        %v784 = vpop.permute.xlu0 %783
        %785 = vrot.lane.b32.xlu0 %v374, 1
        %v786 = vpop.permute.xlu0 %785
        %787 = vrot.lane.b32.xlu0 %v375, 1
        %v788 = vpop.permute.xlu0 %787
        %789 = vrot.lane.b32.xlu0 %v376, 1
        %v790 = vpop.permute.xlu0 %789
        %vm791 = vcmp.lt.s32.totalorder %v394, 1
        %v792 = vsel %vm791, %v788, %v790
        %v793 = vsel %vm791, %v786, %v788
        %v794 = vsel %vm791, %v784, %v786
        %v795 = vsel %vm791, %v782, %v784
        %v796 = vsel %vm791, %v780, %v782
        %v797 = vsel %vm791, %v778, %v780
        %v798 = vsel %vm791, %v776, %v778
        %v799 = vsel %vm791, %v790, %v776
        %800 = vst [vmem:[#allocation2 + $0x300] sm:$0xff] %v799
        %801 = vst [vmem:[#allocation2 + $0x308] sm:$0xff] %v798
        %802 = vst [vmem:[#allocation2 + $0x310] sm:$0xff] %v797
        %803 = vst [vmem:[#allocation2 + $0x318] sm:$0xff] %v796
        %804 = vst [vmem:[#allocation2 + $0x320] sm:$0xff] %v795
        %805 = vst [vmem:[#allocation2 + $0x328] sm:$0xff] %v794
        %806 = vst [vmem:[#allocation2 + $0x330] sm:$0xff] %v793
        %807 = vst [vmem:[#allocation2 + $0x338] sm:$0xff] %v792
        %808 = vst [vmem:[#allocation2 + $0x340] sm:$0xff] %v369
        %809 = vst [vmem:[#allocation2 + $0x348] sm:$0xff] %v370
        %810 = vst [vmem:[#allocation2 + $0x350] sm:$0xff] %v371
        %811 = vst [vmem:[#allocation2 + $0x358] sm:$0xff] %v372
        %812 = vst [vmem:[#allocation2 + $0x360] sm:$0xff] %v373
        %813 = vst [vmem:[#allocation2 + $0x368] sm:$0xff] %v374
        %814 = vst [vmem:[#allocation2 + $0x370] sm:$0xff] %v375
        %815 = vst [vmem:[#allocation2 + $0x378] sm:$0xff] %v376
        %816 = vrot.lane.b32.xlu0 %v369, 127
        %v817 = vpop.permute.xlu0 %816
        %818 = vrot.lane.b32.xlu0 %v370, 127
        %v819 = vpop.permute.xlu0 %818
        %820 = vrot.lane.b32.xlu0 %v371, 127
        %v821 = vpop.permute.xlu0 %820
        %822 = vrot.lane.b32.xlu0 %v372, 127
        %v823 = vpop.permute.xlu0 %822
        %824 = vrot.lane.b32.xlu0 %v373, 127
        %v825 = vpop.permute.xlu0 %824
        %826 = vrot.lane.b32.xlu0 %v374, 127
        %v827 = vpop.permute.xlu0 %826
        %828 = vrot.lane.b32.xlu0 %v375, 127
        %v829 = vpop.permute.xlu0 %828
        %830 = vrot.lane.b32.xlu0 %v376, 127
        %v831 = vpop.permute.xlu0 %830
        %vm832 = vcmp.lt.s32.totalorder %v394, 127
        %v833 = vsel %vm832, %v829, %v831
        %v834 = vsel %vm832, %v827, %v829
        %v835 = vsel %vm832, %v825, %v827
        %v836 = vsel %vm832, %v823, %v825
        %v837 = vsel %vm832, %v821, %v823
        %v838 = vsel %vm832, %v819, %v821
        %v839 = vsel %vm832, %v817, %v819
        %v840 = vsel %vm832, %v831, %v817
        %841 = vst [vmem:[#allocation2 + $0x380] sm:$0xff] %v839
        %842 = vst [vmem:[#allocation2 + $0x388] sm:$0xff] %v838
        %843 = vst [vmem:[#allocation2 + $0x390] sm:$0xff] %v837
        %844 = vst [vmem:[#allocation2 + $0x398] sm:$0xff] %v836
        %845 = vst [vmem:[#allocation2 + $0x3a0] sm:$0xff] %v835
        %846 = vst [vmem:[#allocation2 + $0x3a8] sm:$0xff] %v834
        %847 = vst [vmem:[#allocation2 + $0x3b0] sm:$0xff] %v833
        %848 = vst [vmem:[#allocation2 + $0x3b8] sm:$0xff] %v840
        %849 = vrot.lane.b32.xlu0 %v369, 119
        %v850 = vpop.permute.xlu0 %849
        %851 = vrot.lane.b32.xlu0 %v370, 119
        %v852 = vpop.permute.xlu0 %851
        %853 = vrot.lane.b32.xlu0 %v371, 119
        %v854 = vpop.permute.xlu0 %853
        %855 = vrot.lane.b32.xlu0 %v372, 119
        %v856 = vpop.permute.xlu0 %855
        %857 = vrot.lane.b32.xlu0 %v373, 119
        %v858 = vpop.permute.xlu0 %857
        %859 = vrot.lane.b32.xlu0 %v374, 119
        %v860 = vpop.permute.xlu0 %859
        %861 = vrot.lane.b32.xlu0 %v375, 119
        %v862 = vpop.permute.xlu0 %861
        %863 = vrot.lane.b32.xlu0 %v376, 119
        %v864 = vpop.permute.xlu0 %863
        %vm865 = vcmp.lt.s32.totalorder %v394, 119
        %v866 = vsel %vm865, %v862, %v864
        %v867 = vsel %vm865, %v860, %v862
        %v868 = vsel %vm865, %v858, %v860
        %v869 = vsel %vm865, %v856, %v858
        %v870 = vsel %vm865, %v854, %v856
        %v871 = vsel %vm865, %v852, %v854
        %v872 = vsel %vm865, %v850, %v852
        %v873 = vsel %vm865, %v864, %v850
        %874 = vst [vmem:[#allocation2 + $0x3c0] sm:$0xff] %v872
        %875 = vst [vmem:[#allocation2 + $0x3c8] sm:$0xff] %v871
        %876 = vst [vmem:[#allocation2 + $0x3d0] sm:$0xff] %v870
        %877 = vst [vmem:[#allocation2 + $0x3d8] sm:$0xff] %v869
        %878 = vst [vmem:[#allocation2 + $0x3e0] sm:$0xff] %v868
        %879 = vst [vmem:[#allocation2 + $0x3e8] sm:$0xff] %v867
        %880 = vst [vmem:[#allocation2 + $0x3f0] sm:$0xff] %v866
        %881 = vst [vmem:[#allocation2 + $0x3f8] sm:$0xff] %v873
        %882 = vrot.lane.b32.xlu0 %v369, 118
        %v883 = vpop.permute.xlu0 %882
        %884 = vrot.lane.b32.xlu0 %v370, 118
        %v885 = vpop.permute.xlu0 %884
        %886 = vrot.lane.b32.xlu0 %v371, 118
        %v887 = vpop.permute.xlu0 %886
        %888 = vrot.lane.b32.xlu0 %v372, 118
        %v889 = vpop.permute.xlu0 %888
        %890 = vrot.lane.b32.xlu0 %v373, 118
        %v891 = vpop.permute.xlu0 %890
        %892 = vrot.lane.b32.xlu0 %v374, 118
        %v893 = vpop.permute.xlu0 %892
        %894 = vrot.lane.b32.xlu0 %v375, 118
        %v895 = vpop.permute.xlu0 %894
        %896 = vrot.lane.b32.xlu0 %v376, 118
        %v897 = vpop.permute.xlu0 %896
        %vm898 = vcmp.lt.s32.totalorder %v394, 118
        %v899 = vsel %vm898, %v895, %v897
        %v900 = vsel %vm898, %v893, %v895
        %v901 = vsel %vm898, %v891, %v893
        %v902 = vsel %vm898, %v889, %v891
        %v903 = vsel %vm898, %v887, %v889
        %v904 = vsel %vm898, %v885, %v887
        %v905 = vsel %vm898, %v883, %v885
        %v906 = vsel %vm898, %v897, %v883
        %907 = vst [vmem:[#allocation2 + $0x400] sm:$0xff] %v905
        %908 = vst [vmem:[#allocation2 + $0x408] sm:$0xff] %v904
        %909 = vst [vmem:[#allocation2 + $0x410] sm:$0xff] %v903
        %910 = vst [vmem:[#allocation2 + $0x418] sm:$0xff] %v902
        %911 = vst [vmem:[#allocation2 + $0x420] sm:$0xff] %v901
        %912 = vst [vmem:[#allocation2 + $0x428] sm:$0xff] %v900
        %913 = vst [vmem:[#allocation2 + $0x430] sm:$0xff] %v899
        %914 = vst [vmem:[#allocation2 + $0x438] sm:$0xff] %v906
        %915 = vrot.lane.b32.xlu0 %v369, 117
        %v916 = vpop.permute.xlu0 %915
        %917 = vrot.lane.b32.xlu0 %v370, 117
        %v918 = vpop.permute.xlu0 %917
        %919 = vrot.lane.b32.xlu0 %v371, 117
        %v920 = vpop.permute.xlu0 %919
        %921 = vrot.lane.b32.xlu0 %v372, 117
        %v922 = vpop.permute.xlu0 %921
        %923 = vrot.lane.b32.xlu0 %v373, 117
        %v924 = vpop.permute.xlu0 %923
        %925 = vrot.lane.b32.xlu0 %v374, 117
        %v926 = vpop.permute.xlu0 %925
        %927 = vrot.lane.b32.xlu0 %v375, 117
        %v928 = vpop.permute.xlu0 %927
        %929 = vrot.lane.b32.xlu0 %v376, 117
        %v930 = vpop.permute.xlu0 %929
        %vm931 = vcmp.lt.s32.totalorder %v394, 117
        %v932 = vsel %vm931, %v928, %v930
        %v933 = vsel %vm931, %v926, %v928
        %v934 = vsel %vm931, %v924, %v926
        %v935 = vsel %vm931, %v922, %v924
        %v936 = vsel %vm931, %v920, %v922
        %v937 = vsel %vm931, %v918, %v920
        %v938 = vsel %vm931, %v916, %v918
        %v939 = vsel %vm931, %v930, %v916
        %940 = vst [vmem:[#allocation2 + $0x440] sm:$0xff] %v938
        %941 = vst [vmem:[#allocation2 + $0x448] sm:$0xff] %v937
        %942 = vst [vmem:[#allocation2 + $0x450] sm:$0xff] %v936
        %943 = vst [vmem:[#allocation2 + $0x458] sm:$0xff] %v935
        %944 = vst [vmem:[#allocation2 + $0x460] sm:$0xff] %v934
        %945 = vst [vmem:[#allocation2 + $0x468] sm:$0xff] %v933
        %946 = vst [vmem:[#allocation2 + $0x470] sm:$0xff] %v932
        %947 = vst [vmem:[#allocation2 + $0x478] sm:$0xff] %v939
        %948 = vrot.lane.b32.xlu0 %v369, 39
        %v949 = vpop.permute.xlu0 %948
        %950 = vrot.lane.b32.xlu0 %v370, 39
        %v951 = vpop.permute.xlu0 %950
        %952 = vrot.lane.b32.xlu0 %v371, 39
        %v953 = vpop.permute.xlu0 %952
        %954 = vrot.lane.b32.xlu0 %v372, 39
        %v955 = vpop.permute.xlu0 %954
        %956 = vrot.lane.b32.xlu0 %v373, 39
        %v957 = vpop.permute.xlu0 %956
        %958 = vrot.lane.b32.xlu0 %v374, 39
        %v959 = vpop.permute.xlu0 %958
        %960 = vrot.lane.b32.xlu0 %v375, 39
        %v961 = vpop.permute.xlu0 %960
        %962 = vrot.lane.b32.xlu0 %v376, 39
        %v963 = vpop.permute.xlu0 %962
        %vm964 = vcmp.lt.s32.totalorder %v394, 39
        %v965 = vsel %vm964, %v961, %v963
        %v966 = vsel %vm964, %v959, %v961
        %v967 = vsel %vm964, %v957, %v959
        %v968 = vsel %vm964, %v955, %v957
        %v969 = vsel %vm964, %v953, %v955
        %v970 = vsel %vm964, %v951, %v953
        %v971 = vsel %vm964, %v949, %v951
        %v972 = vsel %vm964, %v963, %v949
        %973 = vst [vmem:[#allocation2 + $0x480] sm:$0xff] %v971
        %974 = vst [vmem:[#allocation2 + $0x488] sm:$0xff] %v970
        %975 = vst [vmem:[#allocation2 + $0x490] sm:$0xff] %v969
        %976 = vst [vmem:[#allocation2 + $0x498] sm:$0xff] %v968
        %977 = vst [vmem:[#allocation2 + $0x4a0] sm:$0xff] %v967
        %978 = vst [vmem:[#allocation2 + $0x4a8] sm:$0xff] %v966
        %979 = vst [vmem:[#allocation2 + $0x4b0] sm:$0xff] %v965
        %980 = vst [vmem:[#allocation2 + $0x4b8] sm:$0xff] %v972
        %981 = vrot.lane.b32.xlu0 %v369, 38
        %v982 = vpop.permute.xlu0 %981
        %983 = vrot.lane.b32.xlu0 %v370, 38
        %v984 = vpop.permute.xlu0 %983
        %985 = vrot.lane.b32.xlu0 %v371, 38
        %v986 = vpop.permute.xlu0 %985
        %987 = vrot.lane.b32.xlu0 %v372, 38
        %v988 = vpop.permute.xlu0 %987
        %989 = vrot.lane.b32.xlu0 %v373, 38
        %v990 = vpop.permute.xlu0 %989
        %991 = vrot.lane.b32.xlu0 %v374, 38
        %v992 = vpop.permute.xlu0 %991
        %993 = vrot.lane.b32.xlu0 %v375, 38
        %v994 = vpop.permute.xlu0 %993
        %995 = vrot.lane.b32.xlu0 %v376, 38
        %v996 = vpop.permute.xlu0 %995
        %vm997 = vcmp.lt.s32.totalorder %v394, 38
        %v998 = vsel %vm997, %v994, %v996
        %v999 = vsel %vm997, %v992, %v994
        %v1000 = vsel %vm997, %v990, %v992
        %v1001 = vsel %vm997, %v988, %v990
        %v1002 = vsel %vm997, %v986, %v988
        %v1003 = vsel %vm997, %v984, %v986
        %v1004 = vsel %vm997, %v982, %v984
        %v1005 = vsel %vm997, %v996, %v982
        %1006 = vst [vmem:[#allocation2 + $0x4c0] sm:$0xff] %v1004
        %1007 = vst [vmem:[#allocation2 + $0x4c8] sm:$0xff] %v1003
        %1008 = vst [vmem:[#allocation2 + $0x4d0] sm:$0xff] %v1002
        %1009 = vst [vmem:[#allocation2 + $0x4d8] sm:$0xff] %v1001
        %1010 = vst [vmem:[#allocation2 + $0x4e0] sm:$0xff] %v1000
        %1011 = vst [vmem:[#allocation2 + $0x4e8] sm:$0xff] %v999
        %1012 = vst [vmem:[#allocation2 + $0x4f0] sm:$0xff] %v998
        %1013 = vst [vmem:[#allocation2 + $0x4f8] sm:$0xff] %v1005
        %1014 = vrot.lane.b32.xlu0 %v369, 37
        %v1015 = vpop.permute.xlu0 %1014
        %1016 = vrot.lane.b32.xlu0 %v370, 37
        %v1017 = vpop.permute.xlu0 %1016
        %1018 = vrot.lane.b32.xlu0 %v371, 37
        %v1019 = vpop.permute.xlu0 %1018
        %1020 = vrot.lane.b32.xlu0 %v372, 37
        %v1021 = vpop.permute.xlu0 %1020
        %1022 = vrot.lane.b32.xlu0 %v373, 37
        %v1023 = vpop.permute.xlu0 %1022
        %1024 = vrot.lane.b32.xlu0 %v374, 37
        %v1025 = vpop.permute.xlu0 %1024
        %1026 = vrot.lane.b32.xlu0 %v375, 37
        %v1027 = vpop.permute.xlu0 %1026
        %1028 = vrot.lane.b32.xlu0 %v376, 37
        %v1029 = vpop.permute.xlu0 %1028
        %vm1030 = vcmp.lt.s32.totalorder %v394, 37
        %v1031 = vsel %vm1030, %v1027, %v1029
        %v1032 = vsel %vm1030, %v1025, %v1027
        %v1033 = vsel %vm1030, %v1023, %v1025
        %v1034 = vsel %vm1030, %v1021, %v1023
        %v1035 = vsel %vm1030, %v1019, %v1021
        %v1036 = vsel %vm1030, %v1017, %v1019
        %v1037 = vsel %vm1030, %v1015, %v1017
        %v1038 = vsel %vm1030, %v1029, %v1015
        %1039 = vst [vmem:[#allocation2 + $0x500] sm:$0xff] %v1037
        %1040 = vst [vmem:[#allocation2 + $0x508] sm:$0xff] %v1036
        %1041 = vst [vmem:[#allocation2 + $0x510] sm:$0xff] %v1035
        %1042 = vst [vmem:[#allocation2 + $0x518] sm:$0xff] %v1034
        %1043 = vst [vmem:[#allocation2 + $0x520] sm:$0xff] %v1033
        %1044 = vst [vmem:[#allocation2 + $0x528] sm:$0xff] %v1032
        %1045 = vst [vmem:[#allocation2 + $0x530] sm:$0xff] %v1031
        %1046 = vst [vmem:[#allocation2 + $0x538] sm:$0xff] %v1038
        %1047 = vrot.lane.b32.xlu0 %v369, 29
        %v1048 = vpop.permute.xlu0 %1047
        %1049 = vrot.lane.b32.xlu0 %v370, 29
        %v1050 = vpop.permute.xlu0 %1049
        %1051 = vrot.lane.b32.xlu0 %v371, 29
        %v1052 = vpop.permute.xlu0 %1051
        %1053 = vrot.lane.b32.xlu0 %v372, 29
        %v1054 = vpop.permute.xlu0 %1053
        %1055 = vrot.lane.b32.xlu0 %v373, 29
        %v1056 = vpop.permute.xlu0 %1055
        %1057 = vrot.lane.b32.xlu0 %v374, 29
        %v1058 = vpop.permute.xlu0 %1057
        %1059 = vrot.lane.b32.xlu0 %v375, 29
        %v1060 = vpop.permute.xlu0 %1059
        %1061 = vrot.lane.b32.xlu0 %v376, 29
        %v1062 = vpop.permute.xlu0 %1061
        %vm1063 = vcmp.lt.s32.totalorder %v394, 29
        %v1064 = vsel %vm1063, %v1060, %v1062
        %v1065 = vsel %vm1063, %v1058, %v1060
        %v1066 = vsel %vm1063, %v1056, %v1058
        %v1067 = vsel %vm1063, %v1054, %v1056
        %v1068 = vsel %vm1063, %v1052, %v1054
        %v1069 = vsel %vm1063, %v1050, %v1052
        %v1070 = vsel %vm1063, %v1048, %v1050
        %v1071 = vsel %vm1063, %v1062, %v1048
        %1072 = vst [vmem:[#allocation2 + $0x540] sm:$0xff] %v1070
        %1073 = vst [vmem:[#allocation2 + $0x548] sm:$0xff] %v1069
        %1074 = vst [vmem:[#allocation2 + $0x550] sm:$0xff] %v1068
        %1075 = vst [vmem:[#allocation2 + $0x558] sm:$0xff] %v1067
        %1076 = vst [vmem:[#allocation2 + $0x560] sm:$0xff] %v1066
        %1077 = vst [vmem:[#allocation2 + $0x568] sm:$0xff] %v1065
        %1078 = vst [vmem:[#allocation2 + $0x570] sm:$0xff] %v1064
        %1079 = vst [vmem:[#allocation2 + $0x578] sm:$0xff] %v1071
        %1080 = vrot.lane.b32.xlu0 %v369, 28
        %v1081 = vpop.permute.xlu0 %1080
        %1082 = vrot.lane.b32.xlu0 %v370, 28
        %v1083 = vpop.permute.xlu0 %1082
        %1084 = vrot.lane.b32.xlu0 %v371, 28
        %v1085 = vpop.permute.xlu0 %1084
        %1086 = vrot.lane.b32.xlu0 %v372, 28
        %v1087 = vpop.permute.xlu0 %1086
        %1088 = vrot.lane.b32.xlu0 %v373, 28
        %v1089 = vpop.permute.xlu0 %1088
        %1090 = vrot.lane.b32.xlu0 %v374, 28
        %v1091 = vpop.permute.xlu0 %1090
        %1092 = vrot.lane.b32.xlu0 %v375, 28
        %v1093 = vpop.permute.xlu0 %1092
        %1094 = vrot.lane.b32.xlu0 %v376, 28
        %v1095 = vpop.permute.xlu0 %1094
        %vm1096 = vcmp.lt.s32.totalorder %v394, 28
        %v1097 = vsel %vm1096, %v1093, %v1095
        %v1098 = vsel %vm1096, %v1091, %v1093
        %v1099 = vsel %vm1096, %v1089, %v1091
        %v1100 = vsel %vm1096, %v1087, %v1089
        %v1101 = vsel %vm1096, %v1085, %v1087
        %v1102 = vsel %vm1096, %v1083, %v1085
        %v1103 = vsel %vm1096, %v1081, %v1083
        %v1104 = vsel %vm1096, %v1095, %v1081
        %1105 = vst [vmem:[#allocation2 + $0x580] sm:$0xff] %v1103
        %1106 = vst [vmem:[#allocation2 + $0x588] sm:$0xff] %v1102
        %1107 = vst [vmem:[#allocation2 + $0x590] sm:$0xff] %v1101
        %1108 = vst [vmem:[#allocation2 + $0x598] sm:$0xff] %v1100
        %1109 = vst [vmem:[#allocation2 + $0x5a0] sm:$0xff] %v1099
        %1110 = vst [vmem:[#allocation2 + $0x5a8] sm:$0xff] %v1098
        %1111 = vst [vmem:[#allocation2 + $0x5b0] sm:$0xff] %v1097
        %1112 = vst [vmem:[#allocation2 + $0x5b8] sm:$0xff] %v1104
        %1113 = vrot.lane.b32.xlu0 %v369, 27
        %v1114 = vpop.permute.xlu0 %1113
        %1115 = vrot.lane.b32.xlu0 %v370, 27
        %v1116 = vpop.permute.xlu0 %1115
        %1117 = vrot.lane.b32.xlu0 %v371, 27
        %v1118 = vpop.permute.xlu0 %1117
        %1119 = vrot.lane.b32.xlu0 %v372, 27
        %v1120 = vpop.permute.xlu0 %1119
        %1121 = vrot.lane.b32.xlu0 %v373, 27
        %v1122 = vpop.permute.xlu0 %1121
        %1123 = vrot.lane.b32.xlu0 %v374, 27
        %v1124 = vpop.permute.xlu0 %1123
        %1125 = vrot.lane.b32.xlu0 %v375, 27
        %v1126 = vpop.permute.xlu0 %1125
        %1127 = vrot.lane.b32.xlu0 %v376, 27
        %v1128 = vpop.permute.xlu0 %1127
        %vm1129 = vcmp.lt.s32.totalorder %v394, 27
        %v1130 = vsel %vm1129, %v1126, %v1128
        %v1131 = vsel %vm1129, %v1124, %v1126
        %v1132 = vsel %vm1129, %v1122, %v1124
        %v1133 = vsel %vm1129, %v1120, %v1122
        %v1134 = vsel %vm1129, %v1118, %v1120
        %v1135 = vsel %vm1129, %v1116, %v1118
        %v1136 = vsel %vm1129, %v1114, %v1116
        %v1137 = vsel %vm1129, %v1128, %v1114
        %1138 = vst [vmem:[#allocation2 + $0x5c0] sm:$0xff] %v1136
        %1139 = vst [vmem:[#allocation2 + $0x5c8] sm:$0xff] %v1135
        %1140 = vst [vmem:[#allocation2 + $0x5d0] sm:$0xff] %v1134
        %1141 = vst [vmem:[#allocation2 + $0x5d8] sm:$0xff] %v1133
        %1142 = vst [vmem:[#allocation2 + $0x5e0] sm:$0xff] %v1132
        %1143 = vst [vmem:[#allocation2 + $0x5e8] sm:$0xff] %v1131
        %1144 = vst [vmem:[#allocation2 + $0x5f0] sm:$0xff] %v1130
        %1145 = vst [vmem:[#allocation2 + $0x5f8] sm:$0xff] %v1137
        %1146 = vrot.lane.b32.xlu0 %v369, 19
        %v1147 = vpop.permute.xlu0 %1146
        %1148 = vrot.lane.b32.xlu0 %v370, 19
        %v1149 = vpop.permute.xlu0 %1148
        %1150 = vrot.lane.b32.xlu0 %v371, 19
        %v1151 = vpop.permute.xlu0 %1150
        %1152 = vrot.lane.b32.xlu0 %v372, 19
        %v1153 = vpop.permute.xlu0 %1152
        %1154 = vrot.lane.b32.xlu0 %v373, 19
        %v1155 = vpop.permute.xlu0 %1154
        %1156 = vrot.lane.b32.xlu0 %v374, 19
        %v1157 = vpop.permute.xlu0 %1156
        %1158 = vrot.lane.b32.xlu0 %v375, 19
        %v1159 = vpop.permute.xlu0 %1158
        %1160 = vrot.lane.b32.xlu0 %v376, 19
        %v1161 = vpop.permute.xlu0 %1160
        %vm1162 = vcmp.lt.s32.totalorder %v394, 19
        %v1163 = vsel %vm1162, %v1159, %v1161
        %v1164 = vsel %vm1162, %v1157, %v1159
        %v1165 = vsel %vm1162, %v1155, %v1157
        %v1166 = vsel %vm1162, %v1153, %v1155
        %v1167 = vsel %vm1162, %v1151, %v1153
        %v1168 = vsel %vm1162, %v1149, %v1151
        %v1169 = vsel %vm1162, %v1147, %v1149
        %v1170 = vsel %vm1162, %v1161, %v1147
        %1171 = vst [vmem:[#allocation2 + $0x600] sm:$0xff] %v1169
        %1172 = vst [vmem:[#allocation2 + $0x608] sm:$0xff] %v1168
        %1173 = vst [vmem:[#allocation2 + $0x610] sm:$0xff] %v1167
        %1174 = vst [vmem:[#allocation2 + $0x618] sm:$0xff] %v1166
        %1175 = vst [vmem:[#allocation2 + $0x620] sm:$0xff] %v1165
        %1176 = vst [vmem:[#allocation2 + $0x628] sm:$0xff] %v1164
        %1177 = vst [vmem:[#allocation2 + $0x630] sm:$0xff] %v1163
        %1178 = vst [vmem:[#allocation2 + $0x638] sm:$0xff] %v1170
        %1179 = vrot.lane.b32.xlu0 %v369, 18
        %v1180 = vpop.permute.xlu0 %1179
        %1181 = vrot.lane.b32.xlu0 %v370, 18
        %v1182 = vpop.permute.xlu0 %1181
        %1183 = vrot.lane.b32.xlu0 %v371, 18
        %v1184 = vpop.permute.xlu0 %1183
        %1185 = vrot.lane.b32.xlu0 %v372, 18
        %v1186 = vpop.permute.xlu0 %1185
        %1187 = vrot.lane.b32.xlu0 %v373, 18
        %v1188 = vpop.permute.xlu0 %1187
        %1189 = vrot.lane.b32.xlu0 %v374, 18
        %v1190 = vpop.permute.xlu0 %1189
        %1191 = vrot.lane.b32.xlu0 %v375, 18
        %v1192 = vpop.permute.xlu0 %1191
        %1193 = vrot.lane.b32.xlu0 %v376, 18
        %v1194 = vpop.permute.xlu0 %1193
        %vm1195 = vcmp.lt.s32.totalorder %v394, 18
        %v1196 = vsel %vm1195, %v1192, %v1194
        %v1197 = vsel %vm1195, %v1190, %v1192
        %v1198 = vsel %vm1195, %v1188, %v1190
        %v1199 = vsel %vm1195, %v1186, %v1188
        %v1200 = vsel %vm1195, %v1184, %v1186
        %v1201 = vsel %vm1195, %v1182, %v1184
        %v1202 = vsel %vm1195, %v1180, %v1182
        %v1203 = vsel %vm1195, %v1194, %v1180
        %1204 = vst [vmem:[#allocation2 + $0x640] sm:$0xff] %v1202
        %1205 = vst [vmem:[#allocation2 + $0x648] sm:$0xff] %v1201
        %1206 = vst [vmem:[#allocation2 + $0x650] sm:$0xff] %v1200
        %1207 = vst [vmem:[#allocation2 + $0x658] sm:$0xff] %v1199
        %1208 = vst [vmem:[#allocation2 + $0x660] sm:$0xff] %v1198
        %1209 = vst [vmem:[#allocation2 + $0x668] sm:$0xff] %v1197
        %1210 = vst [vmem:[#allocation2 + $0x670] sm:$0xff] %v1196
        %1211 = vst [vmem:[#allocation2 + $0x678] sm:$0xff] %v1203
        %1212 = vrot.lane.b32.xlu0 %v369, 17
        %v1213 = vpop.permute.xlu0 %1212
        %1214 = vrot.lane.b32.xlu0 %v370, 17
        %v1215 = vpop.permute.xlu0 %1214
        %1216 = vrot.lane.b32.xlu0 %v371, 17
        %v1217 = vpop.permute.xlu0 %1216
        %1218 = vrot.lane.b32.xlu0 %v372, 17
        %v1219 = vpop.permute.xlu0 %1218
        %1220 = vrot.lane.b32.xlu0 %v373, 17
        %v1221 = vpop.permute.xlu0 %1220
        %1222 = vrot.lane.b32.xlu0 %v374, 17
        %v1223 = vpop.permute.xlu0 %1222
        %1224 = vrot.lane.b32.xlu0 %v375, 17
        %v1225 = vpop.permute.xlu0 %1224
        %1226 = vrot.lane.b32.xlu0 %v376, 17
        %v1227 = vpop.permute.xlu0 %1226
        %vm1228 = vcmp.lt.s32.totalorder %v394, 17
        %v1229 = vsel %vm1228, %v1225, %v1227
        %v1230 = vsel %vm1228, %v1223, %v1225
        %v1231 = vsel %vm1228, %v1221, %v1223
        %v1232 = vsel %vm1228, %v1219, %v1221
        %v1233 = vsel %vm1228, %v1217, %v1219
        %v1234 = vsel %vm1228, %v1215, %v1217
        %v1235 = vsel %vm1228, %v1213, %v1215
        %v1236 = vsel %vm1228, %v1227, %v1213
        %1237 = vst [vmem:[#allocation2 + $0x680] sm:$0xff] %v1235
        %1238 = vst [vmem:[#allocation2 + $0x688] sm:$0xff] %v1234
        %1239 = vst [vmem:[#allocation2 + $0x690] sm:$0xff] %v1233
        %1240 = vst [vmem:[#allocation2 + $0x698] sm:$0xff] %v1232
        %1241 = vst [vmem:[#allocation2 + $0x6a0] sm:$0xff] %v1231
        %1242 = vst [vmem:[#allocation2 + $0x6a8] sm:$0xff] %v1230
        %1243 = vst [vmem:[#allocation2 + $0x6b0] sm:$0xff] %v1229
        %1244 = vst [vmem:[#allocation2 + $0x6b8] sm:$0xff] %v1236
        %v1245 = vld [vmem:[#allocation3] sm:$0xff]
        %v1246 = vld [vmem:[#allocation3 + $0x8] sm:$0xff]
        %v1247 = vld [vmem:[#allocation3 + $0x10] sm:$0xff]
        %v1248 = vld [vmem:[#allocation3 + $0x18] sm:$0xff]
        %v1249 = vld [vmem:[#allocation2] sm:$0xff]
        %v1250 = vld [vmem:[#allocation2 + $0x8] sm:$0xff]
        %v1251 = vld [vmem:[#allocation2 + $0x10] sm:$0xff]
        %v1252 = vld [vmem:[#allocation2 + $0x18] sm:$0xff]
        %v1253 = vld [vmem:[#allocation2 + $0x20] sm:$0xff]
        %v1254 = vld [vmem:[#allocation2 + $0x28] sm:$0xff]
        %v1255 = vld [vmem:[#allocation2 + $0x30] sm:$0xff]
        %v1256 = vld [vmem:[#allocation2 + $0x38] sm:$0xff]
        %v1257 = vld [vmem:[#allocation2 + $0x40] sm:$0xff]
        %v1258 = vld [vmem:[#allocation2 + $0x48] sm:$0xff]
        %v1259 = vld [vmem:[#allocation2 + $0x50] sm:$0xff]
        %v1260 = vld [vmem:[#allocation2 + $0x58] sm:$0xff]
        %v1261 = vld [vmem:[#allocation2 + $0x60] sm:$0xff]
        %v1262 = vld [vmem:[#allocation2 + $0x68] sm:$0xff]
        %v1263 = vld [vmem:[#allocation2 + $0x70] sm:$0xff]
        %v1264 = vld [vmem:[#allocation2 + $0x78] sm:$0xff]
        %v1265 = vld [vmem:[#allocation2 + $0x80] sm:$0xff]
        %v1266 = vld [vmem:[#allocation2 + $0x88] sm:$0xff]
        %v1267 = vld [vmem:[#allocation2 + $0x90] sm:$0xff]
        %v1268 = vld [vmem:[#allocation2 + $0x98] sm:$0xff]
        %v1269 = vld [vmem:[#allocation2 + $0xa0] sm:$0xff]
        %v1270 = vld [vmem:[#allocation2 + $0xa8] sm:$0xff]
        %v1271 = vld [vmem:[#allocation2 + $0xb0] sm:$0xff]
        %v1272 = vld [vmem:[#allocation2 + $0xb8] sm:$0xff]
        %v1273 = vld [vmem:[#allocation2 + $0xc0] sm:$0xff]
        %v1274 = vld [vmem:[#allocation2 + $0xc8] sm:$0xff]
        %v1275 = vld [vmem:[#allocation2 + $0xd0] sm:$0xff]
        %v1276 = vld [vmem:[#allocation2 + $0xd8] sm:$0xff]
        %v1277 = vld [vmem:[#allocation2 + $0xe0] sm:$0xff]
        %v1278 = vld [vmem:[#allocation2 + $0xe8] sm:$0xff]
        %v1279 = vld [vmem:[#allocation2 + $0xf0] sm:$0xff]
        %v1280 = vld [vmem:[#allocation2 + $0xf8] sm:$0xff]
        %v1281 = vld [vmem:[#allocation2 + $0x100] sm:$0xff]
        %v1282 = vld [vmem:[#allocation2 + $0x108] sm:$0xff]
        %v1283 = vld [vmem:[#allocation2 + $0x110] sm:$0xff]
        %v1284 = vld [vmem:[#allocation2 + $0x118] sm:$0xff]
        %v1285 = vld [vmem:[#allocation2 + $0x120] sm:$0xff]
        %v1286 = vld [vmem:[#allocation2 + $0x128] sm:$0xff]
        %v1287 = vld [vmem:[#allocation2 + $0x130] sm:$0xff]
        %v1288 = vld [vmem:[#allocation2 + $0x138] sm:$0xff]
        %v1289 = vld [vmem:[#allocation2 + $0x140] sm:$0xff]
        %v1290 = vld [vmem:[#allocation2 + $0x148] sm:$0xff]
        %v1291 = vld [vmem:[#allocation2 + $0x150] sm:$0xff]
        %v1292 = vld [vmem:[#allocation2 + $0x158] sm:$0xff]
        %v1293 = vld [vmem:[#allocation2 + $0x160] sm:$0xff]
        %v1294 = vld [vmem:[#allocation2 + $0x168] sm:$0xff]
        %v1295 = vld [vmem:[#allocation2 + $0x170] sm:$0xff]
        %v1296 = vld [vmem:[#allocation2 + $0x178] sm:$0xff]
        %v1297 = vld [vmem:[#allocation2 + $0x180] sm:$0xff]
        %v1298 = vld [vmem:[#allocation2 + $0x188] sm:$0xff]
        %v1299 = vld [vmem:[#allocation2 + $0x190] sm:$0xff]
        %v1300 = vld [vmem:[#allocation2 + $0x198] sm:$0xff]
        %v1301 = vld [vmem:[#allocation2 + $0x1a0] sm:$0xff]
        %v1302 = vld [vmem:[#allocation2 + $0x1a8] sm:$0xff]
        %v1303 = vld [vmem:[#allocation2 + $0x1b0] sm:$0xff]
        %v1304 = vld [vmem:[#allocation2 + $0x1b8] sm:$0xff]
        %v1305 = vld [vmem:[#allocation2 + $0x1c0] sm:$0xff]
        %v1306 = vld [vmem:[#allocation2 + $0x1c8] sm:$0xff]
        %v1307 = vld [vmem:[#allocation2 + $0x1d0] sm:$0xff]
        %v1308 = vld [vmem:[#allocation2 + $0x1d8] sm:$0xff]
        %v1309 = vld [vmem:[#allocation2 + $0x1e0] sm:$0xff]
        %v1310 = vld [vmem:[#allocation2 + $0x1e8] sm:$0xff]
        %v1311 = vld [vmem:[#allocation2 + $0x1f0] sm:$0xff]
        %v1312 = vld [vmem:[#allocation2 + $0x1f8] sm:$0xff]
        %v1313 = vld [vmem:[#allocation2 + $0x200] sm:$0xff]
        %v1314 = vld [vmem:[#allocation2 + $0x208] sm:$0xff]
        %v1315 = vld [vmem:[#allocation2 + $0x210] sm:$0xff]
        %v1316 = vld [vmem:[#allocation2 + $0x218] sm:$0xff]
        %v1317 = vld [vmem:[#allocation2 + $0x220] sm:$0xff]
        %v1318 = vld [vmem:[#allocation2 + $0x228] sm:$0xff]
        %v1319 = vld [vmem:[#allocation2 + $0x230] sm:$0xff]
        %v1320 = vld [vmem:[#allocation2 + $0x238] sm:$0xff]
        %v1321 = vld [vmem:[#allocation2 + $0x240] sm:$0xff]
        %v1322 = vld [vmem:[#allocation2 + $0x248] sm:$0xff]
        %v1323 = vld [vmem:[#allocation2 + $0x250] sm:$0xff]
        %v1324 = vld [vmem:[#allocation2 + $0x258] sm:$0xff]
        %v1325 = vld [vmem:[#allocation2 + $0x260] sm:$0xff]
        %v1326 = vld [vmem:[#allocation2 + $0x268] sm:$0xff]
        %v1327 = vld [vmem:[#allocation2 + $0x270] sm:$0xff]
        %v1328 = vld [vmem:[#allocation2 + $0x278] sm:$0xff]
        %v1329 = vld [vmem:[#allocation2 + $0x280] sm:$0xff]
        %v1330 = vld [vmem:[#allocation2 + $0x288] sm:$0xff]
        %v1331 = vld [vmem:[#allocation2 + $0x290] sm:$0xff]
        %v1332 = vld [vmem:[#allocation2 + $0x298] sm:$0xff]
        %v1333 = vld [vmem:[#allocation2 + $0x2a0] sm:$0xff]
        %v1334 = vld [vmem:[#allocation2 + $0x2a8] sm:$0xff]
        %v1335 = vld [vmem:[#allocation2 + $0x2b0] sm:$0xff]
        %v1336 = vld [vmem:[#allocation2 + $0x2b8] sm:$0xff]
        %v1337 = vld [vmem:[#allocation2 + $0x2c0] sm:$0xff]
        %v1338 = vld [vmem:[#allocation2 + $0x2c8] sm:$0xff]
        %v1339 = vld [vmem:[#allocation2 + $0x2d0] sm:$0xff]
        %v1340 = vld [vmem:[#allocation2 + $0x2d8] sm:$0xff]
        %v1341 = vld [vmem:[#allocation2 + $0x2e0] sm:$0xff]
        %v1342 = vld [vmem:[#allocation2 + $0x2e8] sm:$0xff]
        %v1343 = vld [vmem:[#allocation2 + $0x2f0] sm:$0xff]
        %v1344 = vld [vmem:[#allocation2 + $0x2f8] sm:$0xff]
        %v1345 = vld [vmem:[#allocation2 + $0x300] sm:$0xff]
        %v1346 = vld [vmem:[#allocation2 + $0x308] sm:$0xff]
        %v1347 = vld [vmem:[#allocation2 + $0x310] sm:$0xff]
        %v1348 = vld [vmem:[#allocation2 + $0x318] sm:$0xff]
        %v1349 = vld [vmem:[#allocation2 + $0x320] sm:$0xff]
        %v1350 = vld [vmem:[#allocation2 + $0x328] sm:$0xff]
        %v1351 = vld [vmem:[#allocation2 + $0x330] sm:$0xff]
        %v1352 = vld [vmem:[#allocation2 + $0x338] sm:$0xff]
        %v1353 = vld [vmem:[#allocation2 + $0x340] sm:$0xff]
        %v1354 = vld [vmem:[#allocation2 + $0x348] sm:$0xff]
        %v1355 = vld [vmem:[#allocation2 + $0x350] sm:$0xff]
        %v1356 = vld [vmem:[#allocation2 + $0x358] sm:$0xff]
        %v1357 = vld [vmem:[#allocation2 + $0x360] sm:$0xff]
        %v1358 = vld [vmem:[#allocation2 + $0x368] sm:$0xff]
        %v1359 = vld [vmem:[#allocation2 + $0x370] sm:$0xff]
        %v1360 = vld [vmem:[#allocation2 + $0x378] sm:$0xff]
        %v1361 = vld [vmem:[#allocation2 + $0x380] sm:$0xff]
        %v1362 = vld [vmem:[#allocation2 + $0x388] sm:$0xff]
        %v1363 = vld [vmem:[#allocation2 + $0x390] sm:$0xff]
        %v1364 = vld [vmem:[#allocation2 + $0x398] sm:$0xff]
        %v1365 = vld [vmem:[#allocation2 + $0x3a0] sm:$0xff]
        %v1366 = vld [vmem:[#allocation2 + $0x3a8] sm:$0xff]
        %v1367 = vld [vmem:[#allocation2 + $0x3b0] sm:$0xff]
        %v1368 = vld [vmem:[#allocation2 + $0x3b8] sm:$0xff]
        %v1369 = vld [vmem:[#allocation2 + $0x3c0] sm:$0xff]
        %v1370 = vld [vmem:[#allocation2 + $0x3c8] sm:$0xff]
        %v1371 = vld [vmem:[#allocation2 + $0x3d0] sm:$0xff]
        %v1372 = vld [vmem:[#allocation2 + $0x3d8] sm:$0xff]
        %v1373 = vld [vmem:[#allocation2 + $0x3e0] sm:$0xff]
        %v1374 = vld [vmem:[#allocation2 + $0x3e8] sm:$0xff]
        %v1375 = vld [vmem:[#allocation2 + $0x3f0] sm:$0xff]
        %v1376 = vld [vmem:[#allocation2 + $0x3f8] sm:$0xff]
        %v1377 = vld [vmem:[#allocation2 + $0x400] sm:$0xff]
        %v1378 = vld [vmem:[#allocation2 + $0x408] sm:$0xff]
        %v1379 = vld [vmem:[#allocation2 + $0x410] sm:$0xff]
        %v1380 = vld [vmem:[#allocation2 + $0x418] sm:$0xff]
        %v1381 = vld [vmem:[#allocation2 + $0x420] sm:$0xff]
        %v1382 = vld [vmem:[#allocation2 + $0x428] sm:$0xff]
        %v1383 = vld [vmem:[#allocation2 + $0x430] sm:$0xff]
        %v1384 = vld [vmem:[#allocation2 + $0x438] sm:$0xff]
        %v1385 = vld [vmem:[#allocation2 + $0x440] sm:$0xff]
        %v1386 = vld [vmem:[#allocation2 + $0x448] sm:$0xff]
        %v1387 = vld [vmem:[#allocation2 + $0x450] sm:$0xff]
        %v1388 = vld [vmem:[#allocation2 + $0x458] sm:$0xff]
        %v1389 = vld [vmem:[#allocation2 + $0x460] sm:$0xff]
        %v1390 = vld [vmem:[#allocation2 + $0x468] sm:$0xff]
        %v1391 = vld [vmem:[#allocation2 + $0x470] sm:$0xff]
        %v1392 = vld [vmem:[#allocation2 + $0x478] sm:$0xff]
        %v1393 = vld [vmem:[#allocation2 + $0x480] sm:$0xff]
        %v1394 = vld [vmem:[#allocation2 + $0x488] sm:$0xff]
        %v1395 = vld [vmem:[#allocation2 + $0x490] sm:$0xff]
        %v1396 = vld [vmem:[#allocation2 + $0x498] sm:$0xff]
        %v1397 = vld [vmem:[#allocation2 + $0x4a0] sm:$0xff]
        %v1398 = vld [vmem:[#allocation2 + $0x4a8] sm:$0xff]
        %v1399 = vld [vmem:[#allocation2 + $0x4b0] sm:$0xff]
        %v1400 = vld [vmem:[#allocation2 + $0x4b8] sm:$0xff]
        %v1401 = vld [vmem:[#allocation2 + $0x4c0] sm:$0xff]
        %v1402 = vld [vmem:[#allocation2 + $0x4c8] sm:$0xff]
        %v1403 = vld [vmem:[#allocation2 + $0x4d0] sm:$0xff]
        %v1404 = vld [vmem:[#allocation2 + $0x4d8] sm:$0xff]
        %v1405 = vld [vmem:[#allocation2 + $0x4e0] sm:$0xff]
        %v1406 = vld [vmem:[#allocation2 + $0x4e8] sm:$0xff]
        %v1407 = vld [vmem:[#allocation2 + $0x4f0] sm:$0xff]
        %v1408 = vld [vmem:[#allocation2 + $0x4f8] sm:$0xff]
        %v1409 = vld [vmem:[#allocation2 + $0x500] sm:$0xff]
        %v1410 = vld [vmem:[#allocation2 + $0x508] sm:$0xff]
        %v1411 = vld [vmem:[#allocation2 + $0x510] sm:$0xff]
        %v1412 = vld [vmem:[#allocation2 + $0x518] sm:$0xff]
        %v1413 = vld [vmem:[#allocation2 + $0x520] sm:$0xff]
        %v1414 = vld [vmem:[#allocation2 + $0x528] sm:$0xff]
        %v1415 = vld [vmem:[#allocation2 + $0x530] sm:$0xff]
        %v1416 = vld [vmem:[#allocation2 + $0x538] sm:$0xff]
        %v1417 = vld [vmem:[#allocation2 + $0x540] sm:$0xff]
        %v1418 = vld [vmem:[#allocation2 + $0x548] sm:$0xff]
        %v1419 = vld [vmem:[#allocation2 + $0x550] sm:$0xff]
        %v1420 = vld [vmem:[#allocation2 + $0x558] sm:$0xff]
        %v1421 = vld [vmem:[#allocation2 + $0x560] sm:$0xff]
        %v1422 = vld [vmem:[#allocation2 + $0x568] sm:$0xff]
        %v1423 = vld [vmem:[#allocation2 + $0x570] sm:$0xff]
        %v1424 = vld [vmem:[#allocation2 + $0x578] sm:$0xff]
        %v1425 = vld [vmem:[#allocation2 + $0x580] sm:$0xff]
        %v1426 = vld [vmem:[#allocation2 + $0x588] sm:$0xff]
        %v1427 = vld [vmem:[#allocation2 + $0x590] sm:$0xff]
        %v1428 = vld [vmem:[#allocation2 + $0x598] sm:$0xff]
        %v1429 = vld [vmem:[#allocation2 + $0x5a0] sm:$0xff]
        %v1430 = vld [vmem:[#allocation2 + $0x5a8] sm:$0xff]
        %v1431 = vld [vmem:[#allocation2 + $0x5b0] sm:$0xff]
        %v1432 = vld [vmem:[#allocation2 + $0x5b8] sm:$0xff]
        %v1433 = vld [vmem:[#allocation2 + $0x5c0] sm:$0xff]
        %v1434 = vld [vmem:[#allocation2 + $0x5c8] sm:$0xff]
        %v1435 = vld [vmem:[#allocation2 + $0x5d0] sm:$0xff]
        %v1436 = vld [vmem:[#allocation2 + $0x5d8] sm:$0xff]
        %v1437 = vld [vmem:[#allocation2 + $0x5e0] sm:$0xff]
        %v1438 = vld [vmem:[#allocation2 + $0x5e8] sm:$0xff]
        %v1439 = vld [vmem:[#allocation2 + $0x5f0] sm:$0xff]
        %v1440 = vld [vmem:[#allocation2 + $0x5f8] sm:$0xff]
        %v1441 = vld [vmem:[#allocation2 + $0x600] sm:$0xff]
        %v1442 = vld [vmem:[#allocation2 + $0x608] sm:$0xff]
        %v1443 = vld [vmem:[#allocation2 + $0x610] sm:$0xff]
        %v1444 = vld [vmem:[#allocation2 + $0x618] sm:$0xff]
        %v1445 = vld [vmem:[#allocation2 + $0x620] sm:$0xff]
        %v1446 = vld [vmem:[#allocation2 + $0x628] sm:$0xff]
        %v1447 = vld [vmem:[#allocation2 + $0x630] sm:$0xff]
        %v1448 = vld [vmem:[#allocation2 + $0x638] sm:$0xff]
        %v1449 = vld [vmem:[#allocation2 + $0x640] sm:$0xff]
        %v1450 = vld [vmem:[#allocation2 + $0x648] sm:$0xff]
        %v1451 = vld [vmem:[#allocation2 + $0x650] sm:$0xff]
        %v1452 = vld [vmem:[#allocation2 + $0x658] sm:$0xff]
        %v1453 = vld [vmem:[#allocation2 + $0x660] sm:$0xff]
        %v1454 = vld [vmem:[#allocation2 + $0x668] sm:$0xff]
        %v1455 = vld [vmem:[#allocation2 + $0x670] sm:$0xff]
        %v1456 = vld [vmem:[#allocation2 + $0x678] sm:$0xff]
        %v1457 = vld [vmem:[#allocation2 + $0x680] sm:$0xff]
        %v1458 = vld [vmem:[#allocation2 + $0x688] sm:$0xff]
        %v1459 = vld [vmem:[#allocation2 + $0x690] sm:$0xff]
        %v1460 = vld [vmem:[#allocation2 + $0x698] sm:$0xff]
        %v1461 = vld [vmem:[#allocation2 + $0x6a0] sm:$0xff]
        %v1462 = vld [vmem:[#allocation2 + $0x6a8] sm:$0xff]
        %v1463 = vld [vmem:[#allocation2 + $0x6b0] sm:$0xff]
        %v1464 = vld [vmem:[#allocation2 + $0x6b8] sm:$0xff]
        %v1465 = vld [vmem:[#allocation2 + $0x6c0] sm:$0xff]
        %v1466 = vld [vmem:[#allocation2 + $0x6c8] sm:$0xff]
        %v1467 = vld [vmem:[#allocation2 + $0x6d0] sm:$0xff]
        %v1468 = vld [vmem:[#allocation2 + $0x6d8] sm:$0xff]
        %v1469 = vld [vmem:[#allocation2 + $0x6e0] sm:$0xff]
        %v1470 = vld [vmem:[#allocation2 + $0x6e8] sm:$0xff]
        %v1471 = vld [vmem:[#allocation2 + $0x6f0] sm:$0xff]
        %v1472 = vld [vmem:[#allocation2 + $0x6f8] sm:$0xff]
        %v1473 = vld [vmem:[#allocation2 + $0x700] sm:$0xff]
        %v1474 = vld [vmem:[#allocation2 + $0x708] sm:$0xff]
        %v1475 = vld [vmem:[#allocation2 + $0x710] sm:$0xff]
        %v1476 = vld [vmem:[#allocation2 + $0x718] sm:$0xff]
        %v1477 = vld [vmem:[#allocation2 + $0x720] sm:$0xff]
        %v1478 = vld [vmem:[#allocation2 + $0x728] sm:$0xff]
        %v1479 = vld [vmem:[#allocation2 + $0x730] sm:$0xff]
        %v1480 = vld [vmem:[#allocation2 + $0x738] sm:$0xff]
        %v1481 = vld [vmem:[#allocation2 + $0x740] sm:$0xff]
        %v1482 = vld [vmem:[#allocation2 + $0x748] sm:$0xff]
        %v1483 = vld [vmem:[#allocation2 + $0x750] sm:$0xff]
        %v1484 = vld [vmem:[#allocation2 + $0x758] sm:$0xff]
        %v1485 = vld [vmem:[#allocation2 + $0x760] sm:$0xff]
        %v1486 = vld [vmem:[#allocation2 + $0x768] sm:$0xff]
        %v1487 = vld [vmem:[#allocation2 + $0x770] sm:$0xff]
        %v1488 = vld [vmem:[#allocation2 + $0x778] sm:$0xff]
        %v1489 = vld [vmem:[#allocation2 + $0x780] sm:$0xff]
        %v1490 = vld [vmem:[#allocation2 + $0x788] sm:$0xff]
        %v1491 = vld [vmem:[#allocation2 + $0x790] sm:$0xff]
        %v1492 = vld [vmem:[#allocation2 + $0x798] sm:$0xff]
        %v1493 = vld [vmem:[#allocation2 + $0x7a0] sm:$0xff]
        %v1494 = vld [vmem:[#allocation2 + $0x7a8] sm:$0xff]
        %v1495 = vld [vmem:[#allocation2 + $0x7b0] sm:$0xff]
        %v1496 = vld [vmem:[#allocation2 + $0x7b8] sm:$0xff]
        %v1497 = vld [vmem:[#allocation2 + $0x7c0] sm:$0xff]
        %v1498 = vld [vmem:[#allocation2 + $0x7c8] sm:$0xff]
        %v1499 = vld [vmem:[#allocation2 + $0x7d0] sm:$0xff]
        %v1500 = vld [vmem:[#allocation2 + $0x7d8] sm:$0xff]
        %v1501 = vld [vmem:[#allocation2 + $0x7e0] sm:$0xff]
        %v1502 = vld [vmem:[#allocation2 + $0x7e8] sm:$0xff]
        %v1503 = vld [vmem:[#allocation2 + $0x7f0] sm:$0xff]
        %v1504 = vld [vmem:[#allocation2 + $0x7f8] sm:$0xff]
        %1505 = vmatpush.msra.mxu0 %v1369
        %1506 = vmatpush.msra.mxu0 %v1361
        %1507 = vmatpush.msra.mxu0 %v1353
        %1508 = vmatpush.msra.mxu0 %v1345
        %1509 = vmatpush.msra.mxu0 %v1337
        %1510 = vmatpush.msra.mxu0 %v1329
        %1511 = vmatpush.msra.mxu0 %v1321
        %1512 = vmatpush.msra.mxu0 %v1313
        %1513 = vmatpush.msra.mxu0 %v1305
        %1514 = vmatpush.msra.mxu0 %v1297
        %1515 = vmatpush.msra.mxu0 %v1289
        %1516 = vmatpush.msra.mxu0 %v1281
        %1517 = vmatpush.msra.mxu0 %v1273
        %1518 = vmatpush.msra.mxu0 %v1265
        %1519 = vmatpush.msra.mxu0 %v1257
        %1520 = vmatpush.msra.mxu0 %v1249
        %1521 = vmatmul.f32.gmra.mxu0 %v1245
        %v1522 = vpop.f32.mrf.mxu0
        %v1523 = vadd.f32 0.0, %v1522
        %1524 = vmatmul.f32.gmra.mxu0 %v1247
        %v1525 = vpop.f32.mrf.mxu0
        %v1526 = vadd.f32 0.0, %v1525
        %1527 = vdwg.mxu0
        %1528 = vmatpush.msra.mxu0 %v1497
        %1529 = vmatpush.msra.mxu0 %v1489
        %1530 = vmatpush.msra.mxu0 %v1481
        %1531 = vmatpush.msra.mxu0 %v1473
        %1532 = vmatpush.msra.mxu0 %v1465
        %1533 = vmatpush.msra.mxu0 %v1457
        %1534 = vmatpush.msra.mxu0 %v1449
        %1535 = vmatpush.msra.mxu0 %v1441
        %1536 = vmatpush.msra.mxu0 %v1433
        %1537 = vmatpush.msra.mxu0 %v1425
        %1538 = vmatpush.msra.mxu0 %v1417
        %1539 = vmatpush.msra.mxu0 %v1409
        %1540 = vmatpush.msra.mxu0 %v1401
        %1541 = vmatpush.msra.mxu0 %v1393
        %1542 = vmatpush.msra.mxu0 %v1385
        %1543 = vmatpush.msra.mxu0 %v1377
        %1544 = vmatmul.f32.gmra.mxu0 %v1246
        %v1545 = vpop.f32.mrf.mxu0
        %v1546 = vadd.f32 %v1523, %v1545
        %1547 = vmatmul.f32.gmra.mxu0 %v1248
        %v1548 = vpop.f32.mrf.mxu0
        %v1549 = vadd.f32 %v1526, %v1548
        %1550 = vdwg.mxu0
        %1551 = vmatpush.msra.mxu0 %v1370
        %1552 = vmatpush.msra.mxu0 %v1362
        %1553 = vmatpush.msra.mxu0 %v1354
        %1554 = vmatpush.msra.mxu0 %v1346
        %1555 = vmatpush.msra.mxu0 %v1338
        %1556 = vmatpush.msra.mxu0 %v1330
        %1557 = vmatpush.msra.mxu0 %v1322
        %1558 = vmatpush.msra.mxu0 %v1314
        %1559 = vmatpush.msra.mxu0 %v1306
        %1560 = vmatpush.msra.mxu0 %v1298
        %1561 = vmatpush.msra.mxu0 %v1290
        %1562 = vmatpush.msra.mxu0 %v1282
        %1563 = vmatpush.msra.mxu0 %v1274
        %1564 = vmatpush.msra.mxu0 %v1266
        %1565 = vmatpush.msra.mxu0 %v1258
        %1566 = vmatpush.msra.mxu0 %v1250
        %1567 = vmatmul.f32.gmra.mxu0 %v1245
        %v1568 = vpop.f32.mrf.mxu0
        %v1569 = vadd.f32 0.0, %v1568
        %1570 = vmatmul.f32.gmra.mxu0 %v1247
        %v1571 = vpop.f32.mrf.mxu0
        %v1572 = vadd.f32 0.0, %v1571
        %1573 = vdwg.mxu0
        %1574 = vmatpush.msra.mxu0 %v1498
        %1575 = vmatpush.msra.mxu0 %v1490
        %1576 = vmatpush.msra.mxu0 %v1482
        %1577 = vmatpush.msra.mxu0 %v1474
        %1578 = vmatpush.msra.mxu0 %v1466
        %1579 = vmatpush.msra.mxu0 %v1458
        %1580 = vmatpush.msra.mxu0 %v1450
        %1581 = vmatpush.msra.mxu0 %v1442
        %1582 = vmatpush.msra.mxu0 %v1434
        %1583 = vmatpush.msra.mxu0 %v1426
        %1584 = vmatpush.msra.mxu0 %v1418
        %1585 = vmatpush.msra.mxu0 %v1410
        %1586 = vmatpush.msra.mxu0 %v1402
        %1587 = vmatpush.msra.mxu0 %v1394
        %1588 = vmatpush.msra.mxu0 %v1386
        %1589 = vmatpush.msra.mxu0 %v1378
        %1590 = vmatmul.f32.gmra.mxu0 %v1246
        %v1591 = vpop.f32.mrf.mxu0
        %v1592 = vadd.f32 %v1569, %v1591
        %1593 = vmatmul.f32.gmra.mxu0 %v1248
        %v1594 = vpop.f32.mrf.mxu0
        %v1595 = vadd.f32 %v1572, %v1594
        %1596 = vdwg.mxu0
        %1597 = vmatpush.msra.mxu0 %v1371
        %1598 = vmatpush.msra.mxu0 %v1363
        %1599 = vmatpush.msra.mxu0 %v1355
        %1600 = vmatpush.msra.mxu0 %v1347
        %1601 = vmatpush.msra.mxu0 %v1339
        %1602 = vmatpush.msra.mxu0 %v1331
        %1603 = vmatpush.msra.mxu0 %v1323
        %1604 = vmatpush.msra.mxu0 %v1315
        %1605 = vmatpush.msra.mxu0 %v1307
        %1606 = vmatpush.msra.mxu0 %v1299
        %1607 = vmatpush.msra.mxu0 %v1291
        %1608 = vmatpush.msra.mxu0 %v1283
        %1609 = vmatpush.msra.mxu0 %v1275
        %1610 = vmatpush.msra.mxu0 %v1267
        %1611 = vmatpush.msra.mxu0 %v1259
        %1612 = vmatpush.msra.mxu0 %v1251
        %1613 = vmatmul.f32.gmra.mxu0 %v1245
        %v1614 = vpop.f32.mrf.mxu0
        %v1615 = vadd.f32 0.0, %v1614
        %1616 = vmatmul.f32.gmra.mxu0 %v1247
        %v1617 = vpop.f32.mrf.mxu0
        %v1618 = vadd.f32 0.0, %v1617
        %1619 = vdwg.mxu0
        %1620 = vmatpush.msra.mxu0 %v1499
        %1621 = vmatpush.msra.mxu0 %v1491
        %1622 = vmatpush.msra.mxu0 %v1483
        %1623 = vmatpush.msra.mxu0 %v1475
        %1624 = vmatpush.msra.mxu0 %v1467
        %1625 = vmatpush.msra.mxu0 %v1459
        %1626 = vmatpush.msra.mxu0 %v1451
        %1627 = vmatpush.msra.mxu0 %v1443
        %1628 = vmatpush.msra.mxu0 %v1435
        %1629 = vmatpush.msra.mxu0 %v1427
        %1630 = vmatpush.msra.mxu0 %v1419
        %1631 = vmatpush.msra.mxu0 %v1411
        %1632 = vmatpush.msra.mxu0 %v1403
        %1633 = vmatpush.msra.mxu0 %v1395
        %1634 = vmatpush.msra.mxu0 %v1387
        %1635 = vmatpush.msra.mxu0 %v1379
        %1636 = vmatmul.f32.gmra.mxu0 %v1246
        %v1637 = vpop.f32.mrf.mxu0
        %v1638 = vadd.f32 %v1615, %v1637
        %1639 = vmatmul.f32.gmra.mxu0 %v1248
        %v1640 = vpop.f32.mrf.mxu0
        %v1641 = vadd.f32 %v1618, %v1640
        %1642 = vdwg.mxu0
        %1643 = vmatpush.msra.mxu0 %v1372
        %1644 = vmatpush.msra.mxu0 %v1364
        %1645 = vmatpush.msra.mxu0 %v1356
        %1646 = vmatpush.msra.mxu0 %v1348
        %1647 = vmatpush.msra.mxu0 %v1340
        %1648 = vmatpush.msra.mxu0 %v1332
        %1649 = vmatpush.msra.mxu0 %v1324
        %1650 = vmatpush.msra.mxu0 %v1316
        %1651 = vmatpush.msra.mxu0 %v1308
        %1652 = vmatpush.msra.mxu0 %v1300
        %1653 = vmatpush.msra.mxu0 %v1292
        %1654 = vmatpush.msra.mxu0 %v1284
        %1655 = vmatpush.msra.mxu0 %v1276
        %1656 = vmatpush.msra.mxu0 %v1268
        %1657 = vmatpush.msra.mxu0 %v1260
        %1658 = vmatpush.msra.mxu0 %v1252
        %1659 = vmatmul.f32.gmra.mxu0 %v1245
        %v1660 = vpop.f32.mrf.mxu0
        %v1661 = vadd.f32 0.0, %v1660
        %1662 = vmatmul.f32.gmra.mxu0 %v1247
        %v1663 = vpop.f32.mrf.mxu0
        %v1664 = vadd.f32 0.0, %v1663
        %1665 = vdwg.mxu0
        %1666 = vmatpush.msra.mxu0 %v1500
        %1667 = vmatpush.msra.mxu0 %v1492
        %1668 = vmatpush.msra.mxu0 %v1484
        %1669 = vmatpush.msra.mxu0 %v1476
        %1670 = vmatpush.msra.mxu0 %v1468
        %1671 = vmatpush.msra.mxu0 %v1460
        %1672 = vmatpush.msra.mxu0 %v1452
        %1673 = vmatpush.msra.mxu0 %v1444
        %1674 = vmatpush.msra.mxu0 %v1436
        %1675 = vmatpush.msra.mxu0 %v1428
        %1676 = vmatpush.msra.mxu0 %v1420
        %1677 = vmatpush.msra.mxu0 %v1412
        %1678 = vmatpush.msra.mxu0 %v1404
        %1679 = vmatpush.msra.mxu0 %v1396
        %1680 = vmatpush.msra.mxu0 %v1388
        %1681 = vmatpush.msra.mxu0 %v1380
        %1682 = vmatmul.f32.gmra.mxu0 %v1246
        %v1683 = vpop.f32.mrf.mxu0
        %v1684 = vadd.f32 %v1661, %v1683
        %1685 = vmatmul.f32.gmra.mxu0 %v1248
        %v1686 = vpop.f32.mrf.mxu0
        %v1687 = vadd.f32 %v1664, %v1686
        %1688 = vdwg.mxu0
        %1689 = vmatpush.msra.mxu0 %v1373
        %1690 = vmatpush.msra.mxu0 %v1365
        %1691 = vmatpush.msra.mxu0 %v1357
        %1692 = vmatpush.msra.mxu0 %v1349
        %1693 = vmatpush.msra.mxu0 %v1341
        %1694 = vmatpush.msra.mxu0 %v1333
        %1695 = vmatpush.msra.mxu0 %v1325
        %1696 = vmatpush.msra.mxu0 %v1317
        %1697 = vmatpush.msra.mxu0 %v1309
        %1698 = vmatpush.msra.mxu0 %v1301
        %1699 = vmatpush.msra.mxu0 %v1293
        %1700 = vmatpush.msra.mxu0 %v1285
        %1701 = vmatpush.msra.mxu0 %v1277
        %1702 = vmatpush.msra.mxu0 %v1269
        %1703 = vmatpush.msra.mxu0 %v1261
        %1704 = vmatpush.msra.mxu0 %v1253
        %1705 = vmatmul.f32.gmra.mxu0 %v1245
        %v1706 = vpop.f32.mrf.mxu0
        %v1707 = vadd.f32 0.0, %v1706
        %1708 = vmatmul.f32.gmra.mxu0 %v1247
        %v1709 = vpop.f32.mrf.mxu0
        %v1710 = vadd.f32 0.0, %v1709
        %1711 = vdwg.mxu0
        %1712 = vmatpush.msra.mxu0 %v1501
        %1713 = vmatpush.msra.mxu0 %v1493
        %1714 = vmatpush.msra.mxu0 %v1485
        %1715 = vmatpush.msra.mxu0 %v1477
        %1716 = vmatpush.msra.mxu0 %v1469
        %1717 = vmatpush.msra.mxu0 %v1461
        %1718 = vmatpush.msra.mxu0 %v1453
        %1719 = vmatpush.msra.mxu0 %v1445
        %1720 = vmatpush.msra.mxu0 %v1437
        %1721 = vmatpush.msra.mxu0 %v1429
        %1722 = vmatpush.msra.mxu0 %v1421
        %1723 = vmatpush.msra.mxu0 %v1413
        %1724 = vmatpush.msra.mxu0 %v1405
        %1725 = vmatpush.msra.mxu0 %v1397
        %1726 = vmatpush.msra.mxu0 %v1389
        %1727 = vmatpush.msra.mxu0 %v1381
        %1728 = vmatmul.f32.gmra.mxu0 %v1246
        %v1729 = vpop.f32.mrf.mxu0
        %v1730 = vadd.f32 %v1707, %v1729
        %1731 = vmatmul.f32.gmra.mxu0 %v1248
        %v1732 = vpop.f32.mrf.mxu0
        %v1733 = vadd.f32 %v1710, %v1732
        %1734 = vdwg.mxu0
        %1735 = vmatpush.msra.mxu0 %v1374
        %1736 = vmatpush.msra.mxu0 %v1366
        %1737 = vmatpush.msra.mxu0 %v1358
        %1738 = vmatpush.msra.mxu0 %v1350
        %1739 = vmatpush.msra.mxu0 %v1342
        %1740 = vmatpush.msra.mxu0 %v1334
        %1741 = vmatpush.msra.mxu0 %v1326
        %1742 = vmatpush.msra.mxu0 %v1318
        %1743 = vmatpush.msra.mxu0 %v1310
        %1744 = vmatpush.msra.mxu0 %v1302
        %1745 = vmatpush.msra.mxu0 %v1294
        %1746 = vmatpush.msra.mxu0 %v1286
        %1747 = vmatpush.msra.mxu0 %v1278
        %1748 = vmatpush.msra.mxu0 %v1270
        %1749 = vmatpush.msra.mxu0 %v1262
        %1750 = vmatpush.msra.mxu0 %v1254
        %1751 = vmatmul.f32.gmra.mxu0 %v1245
        %v1752 = vpop.f32.mrf.mxu0
        %v1753 = vadd.f32 0.0, %v1752
        %1754 = vmatmul.f32.gmra.mxu0 %v1247
        %v1755 = vpop.f32.mrf.mxu0
        %v1756 = vadd.f32 0.0, %v1755
        %1757 = vdwg.mxu0
        %1758 = vmatpush.msra.mxu0 %v1502
        %1759 = vmatpush.msra.mxu0 %v1494
        %1760 = vmatpush.msra.mxu0 %v1486
        %1761 = vmatpush.msra.mxu0 %v1478
        %1762 = vmatpush.msra.mxu0 %v1470
        %1763 = vmatpush.msra.mxu0 %v1462
        %1764 = vmatpush.msra.mxu0 %v1454
        %1765 = vmatpush.msra.mxu0 %v1446
        %1766 = vmatpush.msra.mxu0 %v1438
        %1767 = vmatpush.msra.mxu0 %v1430
        %1768 = vmatpush.msra.mxu0 %v1422
        %1769 = vmatpush.msra.mxu0 %v1414
        %1770 = vmatpush.msra.mxu0 %v1406
        %1771 = vmatpush.msra.mxu0 %v1398
        %1772 = vmatpush.msra.mxu0 %v1390
        %1773 = vmatpush.msra.mxu0 %v1382
        %1774 = vmatmul.f32.gmra.mxu0 %v1246
        %v1775 = vpop.f32.mrf.mxu0
        %v1776 = vadd.f32 %v1753, %v1775
        %1777 = vmatmul.f32.gmra.mxu0 %v1248
        %v1778 = vpop.f32.mrf.mxu0
        %v1779 = vadd.f32 %v1756, %v1778
        %1780 = vdwg.mxu0
        %1781 = vmatpush.msra.mxu0 %v1375
        %1782 = vmatpush.msra.mxu0 %v1367
        %1783 = vmatpush.msra.mxu0 %v1359
        %1784 = vmatpush.msra.mxu0 %v1351
        %1785 = vmatpush.msra.mxu0 %v1343
        %1786 = vmatpush.msra.mxu0 %v1335
        %1787 = vmatpush.msra.mxu0 %v1327
        %1788 = vmatpush.msra.mxu0 %v1319
        %1789 = vmatpush.msra.mxu0 %v1311
        %1790 = vmatpush.msra.mxu0 %v1303
        %1791 = vmatpush.msra.mxu0 %v1295
        %1792 = vmatpush.msra.mxu0 %v1287
        %1793 = vmatpush.msra.mxu0 %v1279
        %1794 = vmatpush.msra.mxu0 %v1271
        %1795 = vmatpush.msra.mxu0 %v1263
        %1796 = vmatpush.msra.mxu0 %v1255
        %1797 = vmatmul.f32.gmra.mxu0 %v1245
        %v1798 = vpop.f32.mrf.mxu0
        %v1799 = vadd.f32 0.0, %v1798
        %1800 = vmatmul.f32.gmra.mxu0 %v1247
        %v1801 = vpop.f32.mrf.mxu0
        %v1802 = vadd.f32 0.0, %v1801
        %1803 = vdwg.mxu0
        %1804 = vmatpush.msra.mxu0 %v1503
        %1805 = vmatpush.msra.mxu0 %v1495
        %1806 = vmatpush.msra.mxu0 %v1487
        %1807 = vmatpush.msra.mxu0 %v1479
        %1808 = vmatpush.msra.mxu0 %v1471
        %1809 = vmatpush.msra.mxu0 %v1463
        %1810 = vmatpush.msra.mxu0 %v1455
        %1811 = vmatpush.msra.mxu0 %v1447
        %1812 = vmatpush.msra.mxu0 %v1439
        %1813 = vmatpush.msra.mxu0 %v1431
        %1814 = vmatpush.msra.mxu0 %v1423
        %1815 = vmatpush.msra.mxu0 %v1415
        %1816 = vmatpush.msra.mxu0 %v1407
        %1817 = vmatpush.msra.mxu0 %v1399
        %1818 = vmatpush.msra.mxu0 %v1391
        %1819 = vmatpush.msra.mxu0 %v1383
        %1820 = vmatmul.f32.gmra.mxu0 %v1246
        %v1821 = vpop.f32.mrf.mxu0
        %v1822 = vadd.f32 %v1799, %v1821
        %1823 = vmatmul.f32.gmra.mxu0 %v1248
        %v1824 = vpop.f32.mrf.mxu0
        %v1825 = vadd.f32 %v1802, %v1824
        %1826 = vdwg.mxu0
        %1827 = vmatpush.msra.mxu0 %v1376
        %1828 = vmatpush.msra.mxu0 %v1368
        %1829 = vmatpush.msra.mxu0 %v1360
        %1830 = vmatpush.msra.mxu0 %v1352
        %1831 = vmatpush.msra.mxu0 %v1344
        %1832 = vmatpush.msra.mxu0 %v1336
        %1833 = vmatpush.msra.mxu0 %v1328
        %1834 = vmatpush.msra.mxu0 %v1320
        %1835 = vmatpush.msra.mxu0 %v1312
        %1836 = vmatpush.msra.mxu0 %v1304
        %1837 = vmatpush.msra.mxu0 %v1296
        %1838 = vmatpush.msra.mxu0 %v1288
        %1839 = vmatpush.msra.mxu0 %v1280
        %1840 = vmatpush.msra.mxu0 %v1272
        %1841 = vmatpush.msra.mxu0 %v1264
        %1842 = vmatpush.msra.mxu0 %v1256
        %1843 = vmatmul.f32.gmra.mxu0 %v1245
        %v1844 = vpop.f32.mrf.mxu0
        %v1845 = vadd.f32 0.0, %v1844
        %1846 = vmatmul.f32.gmra.mxu0 %v1247
        %v1847 = vpop.f32.mrf.mxu0
        %v1848 = vadd.f32 0.0, %v1847
        %1849 = vdwg.mxu0
        %1850 = vmatpush.msra.mxu0 %v1504
        %1851 = vmatpush.msra.mxu0 %v1496
        %1852 = vmatpush.msra.mxu0 %v1488
        %1853 = vmatpush.msra.mxu0 %v1480
        %1854 = vmatpush.msra.mxu0 %v1472
        %1855 = vmatpush.msra.mxu0 %v1464
        %1856 = vmatpush.msra.mxu0 %v1456
        %1857 = vmatpush.msra.mxu0 %v1448
        %1858 = vmatpush.msra.mxu0 %v1440
        %1859 = vmatpush.msra.mxu0 %v1432
        %1860 = vmatpush.msra.mxu0 %v1424
        %1861 = vmatpush.msra.mxu0 %v1416
        %1862 = vmatpush.msra.mxu0 %v1408
        %1863 = vmatpush.msra.mxu0 %v1400
        %1864 = vmatpush.msra.mxu0 %v1392
        %1865 = vmatpush.msra.mxu0 %v1384
        %1866 = vmatmul.f32.gmra.mxu0 %v1246
        %v1867 = vpop.f32.mrf.mxu0
        %v1868 = vadd.f32 %v1845, %v1867
        %1869 = vmatmul.f32.gmra.mxu0 %v1248
        %v1870 = vpop.f32.mrf.mxu0
        %v1871 = vadd.f32 %v1848, %v1870
        %1872 = vdwg.mxu0
        %1874 = vset.pattern.permute.xlu0 0
        %1875 = vperm.xlu0 %1874, %v328
        %v1876 = vpop.permute.xlu0 %1875
        %v1878 = vadd.f32 %v1546, %v1876
        %v1879 = vadd.f32 %v1592, %v1876
        %v1880 = vadd.f32 %v1638, %v1876
        %v1881 = vadd.f32 %v1684, %v1876
        %v1882 = vadd.f32 %v1730, %v1876
        %v1883 = vadd.f32 %v1776, %v1876
        %v1884 = vadd.f32 %v1822, %v1876
        %v1885 = vadd.f32 %v1868, %v1876
        %1887 = vset.pattern.permute.xlu0 1
        %1888 = vperm.xlu0 %1887, %v327
        %v1889 = vpop.permute.xlu0 %1888
        %v1891 = vmul.f32 %v1549, %v1889
        %v1892 = vmul.f32 %v1595, %v1889
        %v1893 = vmul.f32 %v1641, %v1889
        %v1894 = vmul.f32 %v1687, %v1889
        %v1895 = vmul.f32 %v1733, %v1889
        %v1896 = vmul.f32 %v1779, %v1889
        %v1897 = vmul.f32 %v1825, %v1889
        %v1898 = vmul.f32 %v1871, %v1889
        %1899 = vset.pattern.permute.xlu0 1
        %1900 = vperm.xlu0 %1899, %v328
        %v1901 = vpop.permute.xlu0 %1900
        %v1903 = vadd.f32 %v1891, %v1901
        %v1904 = vadd.f32 %v1892, %v1901
        %v1905 = vadd.f32 %v1893, %v1901
        %v1906 = vadd.f32 %v1894, %v1901
        %v1907 = vadd.f32 %v1895, %v1901
        %v1908 = vadd.f32 %v1896, %v1901
        %v1909 = vadd.f32 %v1897, %v1901
        %v1910 = vadd.f32 %v1898, %v1901
        %v1911 = vmax.f32 %v1903, 0.0
        %v1912 = vmax.f32 %v1904, 0.0
        %v1913 = vmax.f32 %v1905, 0.0
        %v1914 = vmax.f32 %v1906, 0.0
        %v1915 = vmax.f32 %v1907, 0.0
        %v1916 = vmax.f32 %v1908, 0.0
        %v1917 = vmax.f32 %v1909, 0.0
        %v1918 = vmax.f32 %v1910, 0.0
        %v1920 = vperm.slane %v326, 0
        %v1921 = vperm.slane %v326, 1
        %v1922 = vperm.slane %v326, 2
        %v1923 = vperm.slane %v326, 3
        %v1924 = vperm.slane %v326, 4
        %v1925 = vperm.slane %v326, 5
        %v1926 = vperm.slane %v326, 6
        %v1927 = vperm.slane %v326, 7
        %v1936 = vmul.f32 %v1911, %v1920
        %v1937 = vmul.f32 %v1912, %v1921
        %v1938 = vmul.f32 %v1913, %v1922
        %v1939 = vmul.f32 %v1914, %v1923
        %v1940 = vmul.f32 %v1915, %v1924
        %v1941 = vmul.f32 %v1916, %v1925
        %v1942 = vmul.f32 %v1917, %v1926
        %v1943 = vmul.f32 %v1918, %v1927
        %1944 = vrot.lane.b32.xlu0 %v1936, 111
        %v1945 = vpop.permute.xlu0 %1944
        %1946 = vrot.lane.b32.xlu0 %v1937, 111
        %v1947 = vpop.permute.xlu0 %1946
        %1948 = vrot.lane.b32.xlu0 %v1938, 111
        %v1949 = vpop.permute.xlu0 %1948
        %1950 = vrot.lane.b32.xlu0 %v1939, 111
        %v1951 = vpop.permute.xlu0 %1950
        %1952 = vrot.lane.b32.xlu0 %v1940, 111
        %v1953 = vpop.permute.xlu0 %1952
        %1954 = vrot.lane.b32.xlu0 %v1941, 111
        %v1955 = vpop.permute.xlu0 %1954
        %1956 = vrot.lane.b32.xlu0 %v1942, 111
        %v1957 = vpop.permute.xlu0 %1956
        %1958 = vrot.lane.b32.xlu0 %v1943, 111
        %v1959 = vpop.permute.xlu0 %1958
        %v1960 = vsel %vm395, %v1957, %v1959
        %v1961 = vsel %vm395, %v1955, %v1957
        %v1962 = vsel %vm395, %v1953, %v1955
        %v1963 = vsel %vm395, %v1951, %v1953
        %v1964 = vsel %vm395, %v1949, %v1951
        %v1965 = vsel %vm395, %v1947, %v1949
        %v1966 = vsel %vm395, %v1945, %v1947
        %v1967 = vsel %vm395, %v1959, %v1945
        %1968 = vst [vmem:[#allocation2] sm:$0xff] %v1967
        %1969 = vst [vmem:[#allocation2 + $0x8] sm:$0xff] %v1966
        %1970 = vst [vmem:[#allocation2 + $0x10] sm:$0xff] %v1965
        %1971 = vst [vmem:[#allocation2 + $0x18] sm:$0xff] %v1964
        %1972 = vst [vmem:[#allocation2 + $0x20] sm:$0xff] %v1963
        %1973 = vst [vmem:[#allocation2 + $0x28] sm:$0xff] %v1962
        %1974 = vst [vmem:[#allocation2 + $0x30] sm:$0xff] %v1961
        %1975 = vst [vmem:[#allocation2 + $0x38] sm:$0xff] %v1960
        %1976 = vrot.lane.b32.xlu0 %v1936, 110
        %v1977 = vpop.permute.xlu0 %1976
        %1978 = vrot.lane.b32.xlu0 %v1937, 110
        %v1979 = vpop.permute.xlu0 %1978
        %1980 = vrot.lane.b32.xlu0 %v1938, 110
        %v1981 = vpop.permute.xlu0 %1980
        %1982 = vrot.lane.b32.xlu0 %v1939, 110
        %v1983 = vpop.permute.xlu0 %1982
        %1984 = vrot.lane.b32.xlu0 %v1940, 110
        %v1985 = vpop.permute.xlu0 %1984
        %1986 = vrot.lane.b32.xlu0 %v1941, 110
        %v1987 = vpop.permute.xlu0 %1986
        %1988 = vrot.lane.b32.xlu0 %v1942, 110
        %v1989 = vpop.permute.xlu0 %1988
        %1990 = vrot.lane.b32.xlu0 %v1943, 110
        %v1991 = vpop.permute.xlu0 %1990
        %v1992 = vsel %vm428, %v1989, %v1991
        %v1993 = vsel %vm428, %v1987, %v1989
        %v1994 = vsel %vm428, %v1985, %v1987
        %v1995 = vsel %vm428, %v1983, %v1985
        %v1996 = vsel %vm428, %v1981, %v1983
        %v1997 = vsel %vm428, %v1979, %v1981
        %v1998 = vsel %vm428, %v1977, %v1979
        %v1999 = vsel %vm428, %v1991, %v1977
        %2000 = vst [vmem:[#allocation2 + $0x40] sm:$0xff] %v1999
        %2001 = vst [vmem:[#allocation2 + $0x48] sm:$0xff] %v1998
        %2002 = vst [vmem:[#allocation2 + $0x50] sm:$0xff] %v1997
        %2003 = vst [vmem:[#allocation2 + $0x58] sm:$0xff] %v1996
        %2004 = vst [vmem:[#allocation2 + $0x60] sm:$0xff] %v1995
        %2005 = vst [vmem:[#allocation2 + $0x68] sm:$0xff] %v1994
        %2006 = vst [vmem:[#allocation2 + $0x70] sm:$0xff] %v1993
        %2007 = vst [vmem:[#allocation2 + $0x78] sm:$0xff] %v1992
        %2008 = vrot.lane.b32.xlu0 %v1936, 109
        %v2009 = vpop.permute.xlu0 %2008
        %2010 = vrot.lane.b32.xlu0 %v1937, 109
        %v2011 = vpop.permute.xlu0 %2010
        %2012 = vrot.lane.b32.xlu0 %v1938, 109
        %v2013 = vpop.permute.xlu0 %2012
        %2014 = vrot.lane.b32.xlu0 %v1939, 109
        %v2015 = vpop.permute.xlu0 %2014
        %2016 = vrot.lane.b32.xlu0 %v1940, 109
        %v2017 = vpop.permute.xlu0 %2016
        %2018 = vrot.lane.b32.xlu0 %v1941, 109
        %v2019 = vpop.permute.xlu0 %2018
        %2020 = vrot.lane.b32.xlu0 %v1942, 109
        %v2021 = vpop.permute.xlu0 %2020
        %2022 = vrot.lane.b32.xlu0 %v1943, 109
        %v2023 = vpop.permute.xlu0 %2022
        %v2024 = vsel %vm461, %v2021, %v2023
        %v2025 = vsel %vm461, %v2019, %v2021
        %v2026 = vsel %vm461, %v2017, %v2019
        %v2027 = vsel %vm461, %v2015, %v2017
        %v2028 = vsel %vm461, %v2013, %v2015
        %v2029 = vsel %vm461, %v2011, %v2013
        %v2030 = vsel %vm461, %v2009, %v2011
        %v2031 = vsel %vm461, %v2023, %v2009
        %2032 = vst [vmem:[#allocation2 + $0x80] sm:$0xff] %v2031
        %2033 = vst [vmem:[#allocation2 + $0x88] sm:$0xff] %v2030
        %2034 = vst [vmem:[#allocation2 + $0x90] sm:$0xff] %v2029
        %2035 = vst [vmem:[#allocation2 + $0x98] sm:$0xff] %v2028
        %2036 = vst [vmem:[#allocation2 + $0xa0] sm:$0xff] %v2027
        %2037 = vst [vmem:[#allocation2 + $0xa8] sm:$0xff] %v2026
        %2038 = vst [vmem:[#allocation2 + $0xb0] sm:$0xff] %v2025
        %2039 = vst [vmem:[#allocation2 + $0xb8] sm:$0xff] %v2024
        %2040 = vrot.lane.b32.xlu0 %v1936, 101
        %v2041 = vpop.permute.xlu0 %2040
        %2042 = vrot.lane.b32.xlu0 %v1937, 101
        %v2043 = vpop.permute.xlu0 %2042
        %2044 = vrot.lane.b32.xlu0 %v1938, 101
        %v2045 = vpop.permute.xlu0 %2044
        %2046 = vrot.lane.b32.xlu0 %v1939, 101
        %v2047 = vpop.permute.xlu0 %2046
        %2048 = vrot.lane.b32.xlu0 %v1940, 101
        %v2049 = vpop.permute.xlu0 %2048
        %2050 = vrot.lane.b32.xlu0 %v1941, 101
        %v2051 = vpop.permute.xlu0 %2050
        %2052 = vrot.lane.b32.xlu0 %v1942, 101
        %v2053 = vpop.permute.xlu0 %2052
        %2054 = vrot.lane.b32.xlu0 %v1943, 101
        %v2055 = vpop.permute.xlu0 %2054
        %v2056 = vsel %vm494, %v2053, %v2055
        %v2057 = vsel %vm494, %v2051, %v2053
        %v2058 = vsel %vm494, %v2049, %v2051
        %v2059 = vsel %vm494, %v2047, %v2049
        %v2060 = vsel %vm494, %v2045, %v2047
        %v2061 = vsel %vm494, %v2043, %v2045
        %v2062 = vsel %vm494, %v2041, %v2043
        %v2063 = vsel %vm494, %v2055, %v2041
        %2064 = vst [vmem:[#allocation2 + $0xc0] sm:$0xff] %v2063
        %2065 = vst [vmem:[#allocation2 + $0xc8] sm:$0xff] %v2062
        %2066 = vst [vmem:[#allocation2 + $0xd0] sm:$0xff] %v2061
        %2067 = vst [vmem:[#allocation2 + $0xd8] sm:$0xff] %v2060
        %2068 = vst [vmem:[#allocation2 + $0xe0] sm:$0xff] %v2059
        %2069 = vst [vmem:[#allocation2 + $0xe8] sm:$0xff] %v2058
        %2070 = vst [vmem:[#allocation2 + $0xf0] sm:$0xff] %v2057
        %2071 = vst [vmem:[#allocation2 + $0xf8] sm:$0xff] %v2056
        %2072 = vrot.lane.b32.xlu0 %v1936, 100
        %v2073 = vpop.permute.xlu0 %2072
        %2074 = vrot.lane.b32.xlu0 %v1937, 100
        %v2075 = vpop.permute.xlu0 %2074
        %2076 = vrot.lane.b32.xlu0 %v1938, 100
        %v2077 = vpop.permute.xlu0 %2076
        %2078 = vrot.lane.b32.xlu0 %v1939, 100
        %v2079 = vpop.permute.xlu0 %2078
        %2080 = vrot.lane.b32.xlu0 %v1940, 100
        %v2081 = vpop.permute.xlu0 %2080
        %2082 = vrot.lane.b32.xlu0 %v1941, 100
        %v2083 = vpop.permute.xlu0 %2082
        %2084 = vrot.lane.b32.xlu0 %v1942, 100
        %v2085 = vpop.permute.xlu0 %2084
        %2086 = vrot.lane.b32.xlu0 %v1943, 100
        %v2087 = vpop.permute.xlu0 %2086
        %v2088 = vsel %vm527, %v2085, %v2087
        %v2089 = vsel %vm527, %v2083, %v2085
        %v2090 = vsel %vm527, %v2081, %v2083
        %v2091 = vsel %vm527, %v2079, %v2081
        %v2092 = vsel %vm527, %v2077, %v2079
        %v2093 = vsel %vm527, %v2075, %v2077
        %v2094 = vsel %vm527, %v2073, %v2075
        %v2095 = vsel %vm527, %v2087, %v2073
        %2096 = vst [vmem:[#allocation2 + $0x100] sm:$0xff] %v2095
        %2097 = vst [vmem:[#allocation2 + $0x108] sm:$0xff] %v2094
        %2098 = vst [vmem:[#allocation2 + $0x110] sm:$0xff] %v2093
        %2099 = vst [vmem:[#allocation2 + $0x118] sm:$0xff] %v2092
        %2100 = vst [vmem:[#allocation2 + $0x120] sm:$0xff] %v2091
        %2101 = vst [vmem:[#allocation2 + $0x128] sm:$0xff] %v2090
        %2102 = vst [vmem:[#allocation2 + $0x130] sm:$0xff] %v2089
        %2103 = vst [vmem:[#allocation2 + $0x138] sm:$0xff] %v2088
        %2104 = vrot.lane.b32.xlu0 %v1936, 99
        %v2105 = vpop.permute.xlu0 %2104
        %2106 = vrot.lane.b32.xlu0 %v1937, 99
        %v2107 = vpop.permute.xlu0 %2106
        %2108 = vrot.lane.b32.xlu0 %v1938, 99
        %v2109 = vpop.permute.xlu0 %2108
        %2110 = vrot.lane.b32.xlu0 %v1939, 99
        %v2111 = vpop.permute.xlu0 %2110
        %2112 = vrot.lane.b32.xlu0 %v1940, 99
        %v2113 = vpop.permute.xlu0 %2112
        %2114 = vrot.lane.b32.xlu0 %v1941, 99
        %v2115 = vpop.permute.xlu0 %2114
        %2116 = vrot.lane.b32.xlu0 %v1942, 99
        %v2117 = vpop.permute.xlu0 %2116
        %2118 = vrot.lane.b32.xlu0 %v1943, 99
        %v2119 = vpop.permute.xlu0 %2118
        %v2120 = vsel %vm560, %v2117, %v2119
        %v2121 = vsel %vm560, %v2115, %v2117
        %v2122 = vsel %vm560, %v2113, %v2115
        %v2123 = vsel %vm560, %v2111, %v2113
        %v2124 = vsel %vm560, %v2109, %v2111
        %v2125 = vsel %vm560, %v2107, %v2109
        %v2126 = vsel %vm560, %v2105, %v2107
        %v2127 = vsel %vm560, %v2119, %v2105
        %2128 = vst [vmem:[#allocation2 + $0x140] sm:$0xff] %v2127
        %2129 = vst [vmem:[#allocation2 + $0x148] sm:$0xff] %v2126
        %2130 = vst [vmem:[#allocation2 + $0x150] sm:$0xff] %v2125
        %2131 = vst [vmem:[#allocation2 + $0x158] sm:$0xff] %v2124
        %2132 = vst [vmem:[#allocation2 + $0x160] sm:$0xff] %v2123
        %2133 = vst [vmem:[#allocation2 + $0x168] sm:$0xff] %v2122
        %2134 = vst [vmem:[#allocation2 + $0x170] sm:$0xff] %v2121
        %2135 = vst [vmem:[#allocation2 + $0x178] sm:$0xff] %v2120
        %2136 = vrot.lane.b32.xlu0 %v1936, 91
        %v2137 = vpop.permute.xlu0 %2136
        %2138 = vrot.lane.b32.xlu0 %v1937, 91
        %v2139 = vpop.permute.xlu0 %2138
        %2140 = vrot.lane.b32.xlu0 %v1938, 91
        %v2141 = vpop.permute.xlu0 %2140
        %2142 = vrot.lane.b32.xlu0 %v1939, 91
        %v2143 = vpop.permute.xlu0 %2142
        %2144 = vrot.lane.b32.xlu0 %v1940, 91
        %v2145 = vpop.permute.xlu0 %2144
        %2146 = vrot.lane.b32.xlu0 %v1941, 91
        %v2147 = vpop.permute.xlu0 %2146
        %2148 = vrot.lane.b32.xlu0 %v1942, 91
        %v2149 = vpop.permute.xlu0 %2148
        %2150 = vrot.lane.b32.xlu0 %v1943, 91
        %v2151 = vpop.permute.xlu0 %2150
        %v2152 = vsel %vm593, %v2149, %v2151
        %v2153 = vsel %vm593, %v2147, %v2149
        %v2154 = vsel %vm593, %v2145, %v2147
        %v2155 = vsel %vm593, %v2143, %v2145
        %v2156 = vsel %vm593, %v2141, %v2143
        %v2157 = vsel %vm593, %v2139, %v2141
        %v2158 = vsel %vm593, %v2137, %v2139
        %v2159 = vsel %vm593, %v2151, %v2137
        %2160 = vst [vmem:[#allocation2 + $0x180] sm:$0xff] %v2159
        %2161 = vst [vmem:[#allocation2 + $0x188] sm:$0xff] %v2158
        %2162 = vst [vmem:[#allocation2 + $0x190] sm:$0xff] %v2157
        %2163 = vst [vmem:[#allocation2 + $0x198] sm:$0xff] %v2156
        %2164 = vst [vmem:[#allocation2 + $0x1a0] sm:$0xff] %v2155
        %2165 = vst [vmem:[#allocation2 + $0x1a8] sm:$0xff] %v2154
        %2166 = vst [vmem:[#allocation2 + $0x1b0] sm:$0xff] %v2153
        %2167 = vst [vmem:[#allocation2 + $0x1b8] sm:$0xff] %v2152
        %2168 = vrot.lane.b32.xlu0 %v1936, 90
        %v2169 = vpop.permute.xlu0 %2168
        %2170 = vrot.lane.b32.xlu0 %v1937, 90
        %v2171 = vpop.permute.xlu0 %2170
        %2172 = vrot.lane.b32.xlu0 %v1938, 90
        %v2173 = vpop.permute.xlu0 %2172
        %2174 = vrot.lane.b32.xlu0 %v1939, 90
        %v2175 = vpop.permute.xlu0 %2174
        %2176 = vrot.lane.b32.xlu0 %v1940, 90
        %v2177 = vpop.permute.xlu0 %2176
        %2178 = vrot.lane.b32.xlu0 %v1941, 90
        %v2179 = vpop.permute.xlu0 %2178
        %2180 = vrot.lane.b32.xlu0 %v1942, 90
        %v2181 = vpop.permute.xlu0 %2180
        %2182 = vrot.lane.b32.xlu0 %v1943, 90
        %v2183 = vpop.permute.xlu0 %2182
        %v2184 = vsel %vm626, %v2181, %v2183
        %v2185 = vsel %vm626, %v2179, %v2181
        %v2186 = vsel %vm626, %v2177, %v2179
        %v2187 = vsel %vm626, %v2175, %v2177
        %v2188 = vsel %vm626, %v2173, %v2175
        %v2189 = vsel %vm626, %v2171, %v2173
        %v2190 = vsel %vm626, %v2169, %v2171
        %v2191 = vsel %vm626, %v2183, %v2169
        %2192 = vst [vmem:[#allocation2 + $0x1c0] sm:$0xff] %v2191
        %2193 = vst [vmem:[#allocation2 + $0x1c8] sm:$0xff] %v2190
        %2194 = vst [vmem:[#allocation2 + $0x1d0] sm:$0xff] %v2189
        %2195 = vst [vmem:[#allocation2 + $0x1d8] sm:$0xff] %v2188
        %2196 = vst [vmem:[#allocation2 + $0x1e0] sm:$0xff] %v2187
        %2197 = vst [vmem:[#allocation2 + $0x1e8] sm:$0xff] %v2186
        %2198 = vst [vmem:[#allocation2 + $0x1f0] sm:$0xff] %v2185
        %2199 = vst [vmem:[#allocation2 + $0x1f8] sm:$0xff] %v2184
        %2200 = vrot.lane.b32.xlu0 %v1936, 89
        %v2201 = vpop.permute.xlu0 %2200
        %2202 = vrot.lane.b32.xlu0 %v1937, 89
        %v2203 = vpop.permute.xlu0 %2202
        %2204 = vrot.lane.b32.xlu0 %v1938, 89
        %v2205 = vpop.permute.xlu0 %2204
        %2206 = vrot.lane.b32.xlu0 %v1939, 89
        %v2207 = vpop.permute.xlu0 %2206
        %2208 = vrot.lane.b32.xlu0 %v1940, 89
        %v2209 = vpop.permute.xlu0 %2208
        %2210 = vrot.lane.b32.xlu0 %v1941, 89
        %v2211 = vpop.permute.xlu0 %2210
        %2212 = vrot.lane.b32.xlu0 %v1942, 89
        %v2213 = vpop.permute.xlu0 %2212
        %2214 = vrot.lane.b32.xlu0 %v1943, 89
        %v2215 = vpop.permute.xlu0 %2214
        %v2216 = vsel %vm659, %v2213, %v2215
        %v2217 = vsel %vm659, %v2211, %v2213
        %v2218 = vsel %vm659, %v2209, %v2211
        %v2219 = vsel %vm659, %v2207, %v2209
        %v2220 = vsel %vm659, %v2205, %v2207
        %v2221 = vsel %vm659, %v2203, %v2205
        %v2222 = vsel %vm659, %v2201, %v2203
        %v2223 = vsel %vm659, %v2215, %v2201
        %2224 = vst [vmem:[#allocation2 + $0x200] sm:$0xff] %v2223
        %2225 = vst [vmem:[#allocation2 + $0x208] sm:$0xff] %v2222
        %2226 = vst [vmem:[#allocation2 + $0x210] sm:$0xff] %v2221
        %2227 = vst [vmem:[#allocation2 + $0x218] sm:$0xff] %v2220
        %2228 = vst [vmem:[#allocation2 + $0x220] sm:$0xff] %v2219
        %2229 = vst [vmem:[#allocation2 + $0x228] sm:$0xff] %v2218
        %2230 = vst [vmem:[#allocation2 + $0x230] sm:$0xff] %v2217
        %2231 = vst [vmem:[#allocation2 + $0x238] sm:$0xff] %v2216
        %2232 = vrot.lane.b32.xlu0 %v1936, 11
        %v2233 = vpop.permute.xlu0 %2232
        %2234 = vrot.lane.b32.xlu0 %v1937, 11
        %v2235 = vpop.permute.xlu0 %2234
        %2236 = vrot.lane.b32.xlu0 %v1938, 11
        %v2237 = vpop.permute.xlu0 %2236
        %2238 = vrot.lane.b32.xlu0 %v1939, 11
        %v2239 = vpop.permute.xlu0 %2238
        %2240 = vrot.lane.b32.xlu0 %v1940, 11
        %v2241 = vpop.permute.xlu0 %2240
        %2242 = vrot.lane.b32.xlu0 %v1941, 11
        %v2243 = vpop.permute.xlu0 %2242
        %2244 = vrot.lane.b32.xlu0 %v1942, 11
        %v2245 = vpop.permute.xlu0 %2244
        %2246 = vrot.lane.b32.xlu0 %v1943, 11
        %v2247 = vpop.permute.xlu0 %2246
        %v2248 = vsel %vm692, %v2245, %v2247
        %v2249 = vsel %vm692, %v2243, %v2245
        %v2250 = vsel %vm692, %v2241, %v2243
        %v2251 = vsel %vm692, %v2239, %v2241
        %v2252 = vsel %vm692, %v2237, %v2239
        %v2253 = vsel %vm692, %v2235, %v2237
        %v2254 = vsel %vm692, %v2233, %v2235
        %v2255 = vsel %vm692, %v2247, %v2233
        %2256 = vst [vmem:[#allocation2 + $0x240] sm:$0xff] %v2255
        %2257 = vst [vmem:[#allocation2 + $0x248] sm:$0xff] %v2254
        %2258 = vst [vmem:[#allocation2 + $0x250] sm:$0xff] %v2253
        %2259 = vst [vmem:[#allocation2 + $0x258] sm:$0xff] %v2252
        %2260 = vst [vmem:[#allocation2 + $0x260] sm:$0xff] %v2251
        %2261 = vst [vmem:[#allocation2 + $0x268] sm:$0xff] %v2250
        %2262 = vst [vmem:[#allocation2 + $0x270] sm:$0xff] %v2249
        %2263 = vst [vmem:[#allocation2 + $0x278] sm:$0xff] %v2248
        %2264 = vrot.lane.b32.xlu0 %v1936, 10
        %v2265 = vpop.permute.xlu0 %2264
        %2266 = vrot.lane.b32.xlu0 %v1937, 10
        %v2267 = vpop.permute.xlu0 %2266
        %2268 = vrot.lane.b32.xlu0 %v1938, 10
        %v2269 = vpop.permute.xlu0 %2268
        %2270 = vrot.lane.b32.xlu0 %v1939, 10
        %v2271 = vpop.permute.xlu0 %2270
        %2272 = vrot.lane.b32.xlu0 %v1940, 10
        %v2273 = vpop.permute.xlu0 %2272
        %2274 = vrot.lane.b32.xlu0 %v1941, 10
        %v2275 = vpop.permute.xlu0 %2274
        %2276 = vrot.lane.b32.xlu0 %v1942, 10
        %v2277 = vpop.permute.xlu0 %2276
        %2278 = vrot.lane.b32.xlu0 %v1943, 10
        %v2279 = vpop.permute.xlu0 %2278
        %v2280 = vsel %vm725, %v2277, %v2279
        %v2281 = vsel %vm725, %v2275, %v2277
        %v2282 = vsel %vm725, %v2273, %v2275
        %v2283 = vsel %vm725, %v2271, %v2273
        %v2284 = vsel %vm725, %v2269, %v2271
        %v2285 = vsel %vm725, %v2267, %v2269
        %v2286 = vsel %vm725, %v2265, %v2267
        %v2287 = vsel %vm725, %v2279, %v2265
        %2288 = vst [vmem:[#allocation2 + $0x280] sm:$0xff] %v2287
        %2289 = vst [vmem:[#allocation2 + $0x288] sm:$0xff] %v2286
        %2290 = vst [vmem:[#allocation2 + $0x290] sm:$0xff] %v2285
        %2291 = vst [vmem:[#allocation2 + $0x298] sm:$0xff] %v2284
        %2292 = vst [vmem:[#allocation2 + $0x2a0] sm:$0xff] %v2283
        %2293 = vst [vmem:[#allocation2 + $0x2a8] sm:$0xff] %v2282
        %2294 = vst [vmem:[#allocation2 + $0x2b0] sm:$0xff] %v2281
        %2295 = vst [vmem:[#allocation2 + $0x2b8] sm:$0xff] %v2280
        %2296 = vrot.lane.b32.xlu0 %v1936, 9
        %v2297 = vpop.permute.xlu0 %2296
        %2298 = vrot.lane.b32.xlu0 %v1937, 9
        %v2299 = vpop.permute.xlu0 %2298
        %2300 = vrot.lane.b32.xlu0 %v1938, 9
        %v2301 = vpop.permute.xlu0 %2300
        %2302 = vrot.lane.b32.xlu0 %v1939, 9
        %v2303 = vpop.permute.xlu0 %2302
        %2304 = vrot.lane.b32.xlu0 %v1940, 9
        %v2305 = vpop.permute.xlu0 %2304
        %2306 = vrot.lane.b32.xlu0 %v1941, 9
        %v2307 = vpop.permute.xlu0 %2306
        %2308 = vrot.lane.b32.xlu0 %v1942, 9
        %v2309 = vpop.permute.xlu0 %2308
        %2310 = vrot.lane.b32.xlu0 %v1943, 9
        %v2311 = vpop.permute.xlu0 %2310
        %v2312 = vsel %vm758, %v2309, %v2311
        %v2313 = vsel %vm758, %v2307, %v2309
        %v2314 = vsel %vm758, %v2305, %v2307
        %v2315 = vsel %vm758, %v2303, %v2305
        %v2316 = vsel %vm758, %v2301, %v2303
        %v2317 = vsel %vm758, %v2299, %v2301
        %v2318 = vsel %vm758, %v2297, %v2299
        %v2319 = vsel %vm758, %v2311, %v2297
        %2320 = vst [vmem:[#allocation2 + $0x2c0] sm:$0xff] %v2319
        %2321 = vst [vmem:[#allocation2 + $0x2c8] sm:$0xff] %v2318
        %2322 = vst [vmem:[#allocation2 + $0x2d0] sm:$0xff] %v2317
        %2323 = vst [vmem:[#allocation2 + $0x2d8] sm:$0xff] %v2316
        %2324 = vst [vmem:[#allocation2 + $0x2e0] sm:$0xff] %v2315
        %2325 = vst [vmem:[#allocation2 + $0x2e8] sm:$0xff] %v2314
        %2326 = vst [vmem:[#allocation2 + $0x2f0] sm:$0xff] %v2313
        %2327 = vst [vmem:[#allocation2 + $0x2f8] sm:$0xff] %v2312
        %2328 = vrot.lane.b32.xlu0 %v1936, 1
        %v2329 = vpop.permute.xlu0 %2328
        %2330 = vrot.lane.b32.xlu0 %v1937, 1
        %v2331 = vpop.permute.xlu0 %2330
        %2332 = vrot.lane.b32.xlu0 %v1938, 1
        %v2333 = vpop.permute.xlu0 %2332
        %2334 = vrot.lane.b32.xlu0 %v1939, 1
        %v2335 = vpop.permute.xlu0 %2334
        %2336 = vrot.lane.b32.xlu0 %v1940, 1
        %v2337 = vpop.permute.xlu0 %2336
        %2338 = vrot.lane.b32.xlu0 %v1941, 1
        %v2339 = vpop.permute.xlu0 %2338
        %2340 = vrot.lane.b32.xlu0 %v1942, 1
        %v2341 = vpop.permute.xlu0 %2340
        %2342 = vrot.lane.b32.xlu0 %v1943, 1
        %v2343 = vpop.permute.xlu0 %2342
        %v2344 = vsel %vm791, %v2341, %v2343
        %v2345 = vsel %vm791, %v2339, %v2341
        %v2346 = vsel %vm791, %v2337, %v2339
        %v2347 = vsel %vm791, %v2335, %v2337
        %v2348 = vsel %vm791, %v2333, %v2335
        %v2349 = vsel %vm791, %v2331, %v2333
        %v2350 = vsel %vm791, %v2329, %v2331
        %v2351 = vsel %vm791, %v2343, %v2329
        %2352 = vst [vmem:[#allocation2 + $0x300] sm:$0xff] %v2351
        %2353 = vst [vmem:[#allocation2 + $0x308] sm:$0xff] %v2350
        %2354 = vst [vmem:[#allocation2 + $0x310] sm:$0xff] %v2349
        %2355 = vst [vmem:[#allocation2 + $0x318] sm:$0xff] %v2348
        %2356 = vst [vmem:[#allocation2 + $0x320] sm:$0xff] %v2347
        %2357 = vst [vmem:[#allocation2 + $0x328] sm:$0xff] %v2346
        %2358 = vst [vmem:[#allocation2 + $0x330] sm:$0xff] %v2345
        %2359 = vst [vmem:[#allocation2 + $0x338] sm:$0xff] %v2344
        %2360 = vst [vmem:[#allocation2 + $0x340] sm:$0xff] %v1936
        %2361 = vst [vmem:[#allocation2 + $0x348] sm:$0xff] %v1937
        %2362 = vst [vmem:[#allocation2 + $0x350] sm:$0xff] %v1938
        %2363 = vst [vmem:[#allocation2 + $0x358] sm:$0xff] %v1939
        %2364 = vst [vmem:[#allocation2 + $0x360] sm:$0xff] %v1940
        %2365 = vst [vmem:[#allocation2 + $0x368] sm:$0xff] %v1941
        %2366 = vst [vmem:[#allocation2 + $0x370] sm:$0xff] %v1942
        %2367 = vst [vmem:[#allocation2 + $0x378] sm:$0xff] %v1943
        %2368 = vrot.lane.b32.xlu0 %v1936, 127
        %v2369 = vpop.permute.xlu0 %2368
        %2370 = vrot.lane.b32.xlu0 %v1937, 127
        %v2371 = vpop.permute.xlu0 %2370
        %2372 = vrot.lane.b32.xlu0 %v1938, 127
        %v2373 = vpop.permute.xlu0 %2372
        %2374 = vrot.lane.b32.xlu0 %v1939, 127
        %v2375 = vpop.permute.xlu0 %2374
        %2376 = vrot.lane.b32.xlu0 %v1940, 127
        %v2377 = vpop.permute.xlu0 %2376
        %2378 = vrot.lane.b32.xlu0 %v1941, 127
        %v2379 = vpop.permute.xlu0 %2378
        %2380 = vrot.lane.b32.xlu0 %v1942, 127
        %v2381 = vpop.permute.xlu0 %2380
        %2382 = vrot.lane.b32.xlu0 %v1943, 127
        %v2383 = vpop.permute.xlu0 %2382
        %v2384 = vsel %vm832, %v2381, %v2383
        %v2385 = vsel %vm832, %v2379, %v2381
        %v2386 = vsel %vm832, %v2377, %v2379
        %v2387 = vsel %vm832, %v2375, %v2377
        %v2388 = vsel %vm832, %v2373, %v2375
        %v2389 = vsel %vm832, %v2371, %v2373
        %v2390 = vsel %vm832, %v2369, %v2371
        %v2391 = vsel %vm832, %v2383, %v2369
        %2392 = vst [vmem:[#allocation2 + $0x380] sm:$0xff] %v2390
        %2393 = vst [vmem:[#allocation2 + $0x388] sm:$0xff] %v2389
        %2394 = vst [vmem:[#allocation2 + $0x390] sm:$0xff] %v2388
        %2395 = vst [vmem:[#allocation2 + $0x398] sm:$0xff] %v2387
        %2396 = vst [vmem:[#allocation2 + $0x3a0] sm:$0xff] %v2386
        %2397 = vst [vmem:[#allocation2 + $0x3a8] sm:$0xff] %v2385
        %2398 = vst [vmem:[#allocation2 + $0x3b0] sm:$0xff] %v2384
        %2399 = vst [vmem:[#allocation2 + $0x3b8] sm:$0xff] %v2391
        %2400 = vrot.lane.b32.xlu0 %v1936, 119
        %v2401 = vpop.permute.xlu0 %2400
        %2402 = vrot.lane.b32.xlu0 %v1937, 119
        %v2403 = vpop.permute.xlu0 %2402
        %2404 = vrot.lane.b32.xlu0 %v1938, 119
        %v2405 = vpop.permute.xlu0 %2404
        %2406 = vrot.lane.b32.xlu0 %v1939, 119
        %v2407 = vpop.permute.xlu0 %2406
        %2408 = vrot.lane.b32.xlu0 %v1940, 119
        %v2409 = vpop.permute.xlu0 %2408
        %2410 = vrot.lane.b32.xlu0 %v1941, 119
        %v2411 = vpop.permute.xlu0 %2410
        %2412 = vrot.lane.b32.xlu0 %v1942, 119
        %v2413 = vpop.permute.xlu0 %2412
        %2414 = vrot.lane.b32.xlu0 %v1943, 119
        %v2415 = vpop.permute.xlu0 %2414
        %v2416 = vsel %vm865, %v2413, %v2415
        %v2417 = vsel %vm865, %v2411, %v2413
        %v2418 = vsel %vm865, %v2409, %v2411
        %v2419 = vsel %vm865, %v2407, %v2409
        %v2420 = vsel %vm865, %v2405, %v2407
        %v2421 = vsel %vm865, %v2403, %v2405
        %v2422 = vsel %vm865, %v2401, %v2403
        %v2423 = vsel %vm865, %v2415, %v2401
        %2424 = vst [vmem:[#allocation2 + $0x3c0] sm:$0xff] %v2422
        %2425 = vst [vmem:[#allocation2 + $0x3c8] sm:$0xff] %v2421
        %2426 = vst [vmem:[#allocation2 + $0x3d0] sm:$0xff] %v2420
        %2427 = vst [vmem:[#allocation2 + $0x3d8] sm:$0xff] %v2419
        %2428 = vst [vmem:[#allocation2 + $0x3e0] sm:$0xff] %v2418
        %2429 = vst [vmem:[#allocation2 + $0x3e8] sm:$0xff] %v2417
        %2430 = vst [vmem:[#allocation2 + $0x3f0] sm:$0xff] %v2416
        %2431 = vst [vmem:[#allocation2 + $0x3f8] sm:$0xff] %v2423
        %2432 = vrot.lane.b32.xlu0 %v1936, 118
        %v2433 = vpop.permute.xlu0 %2432
        %2434 = vrot.lane.b32.xlu0 %v1937, 118
        %v2435 = vpop.permute.xlu0 %2434
        %2436 = vrot.lane.b32.xlu0 %v1938, 118
        %v2437 = vpop.permute.xlu0 %2436
        %2438 = vrot.lane.b32.xlu0 %v1939, 118
        %v2439 = vpop.permute.xlu0 %2438
        %2440 = vrot.lane.b32.xlu0 %v1940, 118
        %v2441 = vpop.permute.xlu0 %2440
        %2442 = vrot.lane.b32.xlu0 %v1941, 118
        %v2443 = vpop.permute.xlu0 %2442
        %2444 = vrot.lane.b32.xlu0 %v1942, 118
        %v2445 = vpop.permute.xlu0 %2444
        %2446 = vrot.lane.b32.xlu0 %v1943, 118
        %v2447 = vpop.permute.xlu0 %2446
        %v2448 = vsel %vm898, %v2445, %v2447
        %v2449 = vsel %vm898, %v2443, %v2445
        %v2450 = vsel %vm898, %v2441, %v2443
        %v2451 = vsel %vm898, %v2439, %v2441
        %v2452 = vsel %vm898, %v2437, %v2439
        %v2453 = vsel %vm898, %v2435, %v2437
        %v2454 = vsel %vm898, %v2433, %v2435
        %v2455 = vsel %vm898, %v2447, %v2433
        %2456 = vst [vmem:[#allocation2 + $0x400] sm:$0xff] %v2454
        %2457 = vst [vmem:[#allocation2 + $0x408] sm:$0xff] %v2453
        %2458 = vst [vmem:[#allocation2 + $0x410] sm:$0xff] %v2452
        %2459 = vst [vmem:[#allocation2 + $0x418] sm:$0xff] %v2451
        %2460 = vst [vmem:[#allocation2 + $0x420] sm:$0xff] %v2450
        %2461 = vst [vmem:[#allocation2 + $0x428] sm:$0xff] %v2449
        %2462 = vst [vmem:[#allocation2 + $0x430] sm:$0xff] %v2448
        %2463 = vst [vmem:[#allocation2 + $0x438] sm:$0xff] %v2455
        %2464 = vrot.lane.b32.xlu0 %v1936, 117
        %v2465 = vpop.permute.xlu0 %2464
        %2466 = vrot.lane.b32.xlu0 %v1937, 117
        %v2467 = vpop.permute.xlu0 %2466
        %2468 = vrot.lane.b32.xlu0 %v1938, 117
        %v2469 = vpop.permute.xlu0 %2468
        %2470 = vrot.lane.b32.xlu0 %v1939, 117
        %v2471 = vpop.permute.xlu0 %2470
        %2472 = vrot.lane.b32.xlu0 %v1940, 117
        %v2473 = vpop.permute.xlu0 %2472
        %2474 = vrot.lane.b32.xlu0 %v1941, 117
        %v2475 = vpop.permute.xlu0 %2474
        %2476 = vrot.lane.b32.xlu0 %v1942, 117
        %v2477 = vpop.permute.xlu0 %2476
        %2478 = vrot.lane.b32.xlu0 %v1943, 117
        %v2479 = vpop.permute.xlu0 %2478
        %v2480 = vsel %vm931, %v2477, %v2479
        %v2481 = vsel %vm931, %v2475, %v2477
        %v2482 = vsel %vm931, %v2473, %v2475
        %v2483 = vsel %vm931, %v2471, %v2473
        %v2484 = vsel %vm931, %v2469, %v2471
        %v2485 = vsel %vm931, %v2467, %v2469
        %v2486 = vsel %vm931, %v2465, %v2467
        %v2487 = vsel %vm931, %v2479, %v2465
        %2488 = vst [vmem:[#allocation2 + $0x440] sm:$0xff] %v2486
        %2489 = vst [vmem:[#allocation2 + $0x448] sm:$0xff] %v2485
        %2490 = vst [vmem:[#allocation2 + $0x450] sm:$0xff] %v2484
        %2491 = vst [vmem:[#allocation2 + $0x458] sm:$0xff] %v2483
        %2492 = vst [vmem:[#allocation2 + $0x460] sm:$0xff] %v2482
        %2493 = vst [vmem:[#allocation2 + $0x468] sm:$0xff] %v2481
        %2494 = vst [vmem:[#allocation2 + $0x470] sm:$0xff] %v2480
        %2495 = vst [vmem:[#allocation2 + $0x478] sm:$0xff] %v2487
        %2496 = vrot.lane.b32.xlu0 %v1936, 39
        %v2497 = vpop.permute.xlu0 %2496
        %2498 = vrot.lane.b32.xlu0 %v1937, 39
        %v2499 = vpop.permute.xlu0 %2498
        %2500 = vrot.lane.b32.xlu0 %v1938, 39
        %v2501 = vpop.permute.xlu0 %2500
        %2502 = vrot.lane.b32.xlu0 %v1939, 39
        %v2503 = vpop.permute.xlu0 %2502
        %2504 = vrot.lane.b32.xlu0 %v1940, 39
        %v2505 = vpop.permute.xlu0 %2504
        %2506 = vrot.lane.b32.xlu0 %v1941, 39
        %v2507 = vpop.permute.xlu0 %2506
        %2508 = vrot.lane.b32.xlu0 %v1942, 39
        %v2509 = vpop.permute.xlu0 %2508
        %2510 = vrot.lane.b32.xlu0 %v1943, 39
        %v2511 = vpop.permute.xlu0 %2510
        %v2512 = vsel %vm964, %v2509, %v2511
        %v2513 = vsel %vm964, %v2507, %v2509
        %v2514 = vsel %vm964, %v2505, %v2507
        %v2515 = vsel %vm964, %v2503, %v2505
        %v2516 = vsel %vm964, %v2501, %v2503
        %v2517 = vsel %vm964, %v2499, %v2501
        %v2518 = vsel %vm964, %v2497, %v2499
        %v2519 = vsel %vm964, %v2511, %v2497
        %2520 = vst [vmem:[#allocation2 + $0x480] sm:$0xff] %v2518
        %2521 = vst [vmem:[#allocation2 + $0x488] sm:$0xff] %v2517
        %2522 = vst [vmem:[#allocation2 + $0x490] sm:$0xff] %v2516
        %2523 = vst [vmem:[#allocation2 + $0x498] sm:$0xff] %v2515
        %2524 = vst [vmem:[#allocation2 + $0x4a0] sm:$0xff] %v2514
        %2525 = vst [vmem:[#allocation2 + $0x4a8] sm:$0xff] %v2513
        %2526 = vst [vmem:[#allocation2 + $0x4b0] sm:$0xff] %v2512
        %2527 = vst [vmem:[#allocation2 + $0x4b8] sm:$0xff] %v2519
        %2528 = vrot.lane.b32.xlu0 %v1936, 38
        %v2529 = vpop.permute.xlu0 %2528
        %2530 = vrot.lane.b32.xlu0 %v1937, 38
        %v2531 = vpop.permute.xlu0 %2530
        %2532 = vrot.lane.b32.xlu0 %v1938, 38
        %v2533 = vpop.permute.xlu0 %2532
        %2534 = vrot.lane.b32.xlu0 %v1939, 38
        %v2535 = vpop.permute.xlu0 %2534
        %2536 = vrot.lane.b32.xlu0 %v1940, 38
        %v2537 = vpop.permute.xlu0 %2536
        %2538 = vrot.lane.b32.xlu0 %v1941, 38
        %v2539 = vpop.permute.xlu0 %2538
        %2540 = vrot.lane.b32.xlu0 %v1942, 38
        %v2541 = vpop.permute.xlu0 %2540
        %2542 = vrot.lane.b32.xlu0 %v1943, 38
        %v2543 = vpop.permute.xlu0 %2542
        %v2544 = vsel %vm997, %v2541, %v2543
        %v2545 = vsel %vm997, %v2539, %v2541
        %v2546 = vsel %vm997, %v2537, %v2539
        %v2547 = vsel %vm997, %v2535, %v2537
        %v2548 = vsel %vm997, %v2533, %v2535
        %v2549 = vsel %vm997, %v2531, %v2533
        %v2550 = vsel %vm997, %v2529, %v2531
        %v2551 = vsel %vm997, %v2543, %v2529
        %2552 = vst [vmem:[#allocation2 + $0x4c0] sm:$0xff] %v2550
        %2553 = vst [vmem:[#allocation2 + $0x4c8] sm:$0xff] %v2549
        %2554 = vst [vmem:[#allocation2 + $0x4d0] sm:$0xff] %v2548
        %2555 = vst [vmem:[#allocation2 + $0x4d8] sm:$0xff] %v2547
        %2556 = vst [vmem:[#allocation2 + $0x4e0] sm:$0xff] %v2546
        %2557 = vst [vmem:[#allocation2 + $0x4e8] sm:$0xff] %v2545
        %2558 = vst [vmem:[#allocation2 + $0x4f0] sm:$0xff] %v2544
        %2559 = vst [vmem:[#allocation2 + $0x4f8] sm:$0xff] %v2551
        %2560 = vrot.lane.b32.xlu0 %v1936, 37
        %v2561 = vpop.permute.xlu0 %2560
        %2562 = vrot.lane.b32.xlu0 %v1937, 37
        %v2563 = vpop.permute.xlu0 %2562
        %2564 = vrot.lane.b32.xlu0 %v1938, 37
        %v2565 = vpop.permute.xlu0 %2564
        %2566 = vrot.lane.b32.xlu0 %v1939, 37
        %v2567 = vpop.permute.xlu0 %2566
        %2568 = vrot.lane.b32.xlu0 %v1940, 37
        %v2569 = vpop.permute.xlu0 %2568
        %2570 = vrot.lane.b32.xlu0 %v1941, 37
        %v2571 = vpop.permute.xlu0 %2570
        %2572 = vrot.lane.b32.xlu0 %v1942, 37
        %v2573 = vpop.permute.xlu0 %2572
        %2574 = vrot.lane.b32.xlu0 %v1943, 37
        %v2575 = vpop.permute.xlu0 %2574
        %v2576 = vsel %vm1030, %v2573, %v2575
        %v2577 = vsel %vm1030, %v2571, %v2573
        %v2578 = vsel %vm1030, %v2569, %v2571
        %v2579 = vsel %vm1030, %v2567, %v2569
        %v2580 = vsel %vm1030, %v2565, %v2567
        %v2581 = vsel %vm1030, %v2563, %v2565
        %v2582 = vsel %vm1030, %v2561, %v2563
        %v2583 = vsel %vm1030, %v2575, %v2561
        %2584 = vst [vmem:[#allocation2 + $0x500] sm:$0xff] %v2582
        %2585 = vst [vmem:[#allocation2 + $0x508] sm:$0xff] %v2581
        %2586 = vst [vmem:[#allocation2 + $0x510] sm:$0xff] %v2580
        %2587 = vst [vmem:[#allocation2 + $0x518] sm:$0xff] %v2579
        %2588 = vst [vmem:[#allocation2 + $0x520] sm:$0xff] %v2578
        %2589 = vst [vmem:[#allocation2 + $0x528] sm:$0xff] %v2577
        %2590 = vst [vmem:[#allocation2 + $0x530] sm:$0xff] %v2576
        %2591 = vst [vmem:[#allocation2 + $0x538] sm:$0xff] %v2583
        %2592 = vrot.lane.b32.xlu0 %v1936, 29
        %v2593 = vpop.permute.xlu0 %2592
        %2594 = vrot.lane.b32.xlu0 %v1937, 29
        %v2595 = vpop.permute.xlu0 %2594
        %2596 = vrot.lane.b32.xlu0 %v1938, 29
        %v2597 = vpop.permute.xlu0 %2596
        %2598 = vrot.lane.b32.xlu0 %v1939, 29
        %v2599 = vpop.permute.xlu0 %2598
        %2600 = vrot.lane.b32.xlu0 %v1940, 29
        %v2601 = vpop.permute.xlu0 %2600
        %2602 = vrot.lane.b32.xlu0 %v1941, 29
        %v2603 = vpop.permute.xlu0 %2602
        %2604 = vrot.lane.b32.xlu0 %v1942, 29
        %v2605 = vpop.permute.xlu0 %2604
        %2606 = vrot.lane.b32.xlu0 %v1943, 29
        %v2607 = vpop.permute.xlu0 %2606
        %v2608 = vsel %vm1063, %v2605, %v2607
        %v2609 = vsel %vm1063, %v2603, %v2605
        %v2610 = vsel %vm1063, %v2601, %v2603
        %v2611 = vsel %vm1063, %v2599, %v2601
        %v2612 = vsel %vm1063, %v2597, %v2599
        %v2613 = vsel %vm1063, %v2595, %v2597
        %v2614 = vsel %vm1063, %v2593, %v2595
        %v2615 = vsel %vm1063, %v2607, %v2593
        %2616 = vst [vmem:[#allocation2 + $0x540] sm:$0xff] %v2614
        %2617 = vst [vmem:[#allocation2 + $0x548] sm:$0xff] %v2613
        %2618 = vst [vmem:[#allocation2 + $0x550] sm:$0xff] %v2612
        %2619 = vst [vmem:[#allocation2 + $0x558] sm:$0xff] %v2611
        %2620 = vst [vmem:[#allocation2 + $0x560] sm:$0xff] %v2610
        %2621 = vst [vmem:[#allocation2 + $0x568] sm:$0xff] %v2609
        %2622 = vst [vmem:[#allocation2 + $0x570] sm:$0xff] %v2608
        %2623 = vst [vmem:[#allocation2 + $0x578] sm:$0xff] %v2615
        %2624 = vrot.lane.b32.xlu0 %v1936, 28
        %v2625 = vpop.permute.xlu0 %2624
        %2626 = vrot.lane.b32.xlu0 %v1937, 28
        %v2627 = vpop.permute.xlu0 %2626
        %2628 = vrot.lane.b32.xlu0 %v1938, 28
        %v2629 = vpop.permute.xlu0 %2628
        %2630 = vrot.lane.b32.xlu0 %v1939, 28
        %v2631 = vpop.permute.xlu0 %2630
        %2632 = vrot.lane.b32.xlu0 %v1940, 28
        %v2633 = vpop.permute.xlu0 %2632
        %2634 = vrot.lane.b32.xlu0 %v1941, 28
        %v2635 = vpop.permute.xlu0 %2634
        %2636 = vrot.lane.b32.xlu0 %v1942, 28
        %v2637 = vpop.permute.xlu0 %2636
        %2638 = vrot.lane.b32.xlu0 %v1943, 28
        %v2639 = vpop.permute.xlu0 %2638
        %v2640 = vsel %vm1096, %v2637, %v2639
        %v2641 = vsel %vm1096, %v2635, %v2637
        %v2642 = vsel %vm1096, %v2633, %v2635
        %v2643 = vsel %vm1096, %v2631, %v2633
        %v2644 = vsel %vm1096, %v2629, %v2631
        %v2645 = vsel %vm1096, %v2627, %v2629
        %v2646 = vsel %vm1096, %v2625, %v2627
        %v2647 = vsel %vm1096, %v2639, %v2625
        %2648 = vst [vmem:[#allocation2 + $0x580] sm:$0xff] %v2646
        %2649 = vst [vmem:[#allocation2 + $0x588] sm:$0xff] %v2645
        %2650 = vst [vmem:[#allocation2 + $0x590] sm:$0xff] %v2644
        %2651 = vst [vmem:[#allocation2 + $0x598] sm:$0xff] %v2643
        %2652 = vst [vmem:[#allocation2 + $0x5a0] sm:$0xff] %v2642
        %2653 = vst [vmem:[#allocation2 + $0x5a8] sm:$0xff] %v2641
        %2654 = vst [vmem:[#allocation2 + $0x5b0] sm:$0xff] %v2640
        %2655 = vst [vmem:[#allocation2 + $0x5b8] sm:$0xff] %v2647
        %2656 = vrot.lane.b32.xlu0 %v1936, 27
        %v2657 = vpop.permute.xlu0 %2656
        %2658 = vrot.lane.b32.xlu0 %v1937, 27
        %v2659 = vpop.permute.xlu0 %2658
        %2660 = vrot.lane.b32.xlu0 %v1938, 27
        %v2661 = vpop.permute.xlu0 %2660
        %2662 = vrot.lane.b32.xlu0 %v1939, 27
        %v2663 = vpop.permute.xlu0 %2662
        %2664 = vrot.lane.b32.xlu0 %v1940, 27
        %v2665 = vpop.permute.xlu0 %2664
        %2666 = vrot.lane.b32.xlu0 %v1941, 27
        %v2667 = vpop.permute.xlu0 %2666
        %2668 = vrot.lane.b32.xlu0 %v1942, 27
        %v2669 = vpop.permute.xlu0 %2668
        %2670 = vrot.lane.b32.xlu0 %v1943, 27
        %v2671 = vpop.permute.xlu0 %2670
        %v2672 = vsel %vm1129, %v2669, %v2671
        %v2673 = vsel %vm1129, %v2667, %v2669
        %v2674 = vsel %vm1129, %v2665, %v2667
        %v2675 = vsel %vm1129, %v2663, %v2665
        %v2676 = vsel %vm1129, %v2661, %v2663
        %v2677 = vsel %vm1129, %v2659, %v2661
        %v2678 = vsel %vm1129, %v2657, %v2659
        %v2679 = vsel %vm1129, %v2671, %v2657
        %2680 = vst [vmem:[#allocation2 + $0x5c0] sm:$0xff] %v2678
        %2681 = vst [vmem:[#allocation2 + $0x5c8] sm:$0xff] %v2677
        %2682 = vst [vmem:[#allocation2 + $0x5d0] sm:$0xff] %v2676
        %2683 = vst [vmem:[#allocation2 + $0x5d8] sm:$0xff] %v2675
        %2684 = vst [vmem:[#allocation2 + $0x5e0] sm:$0xff] %v2674
        %2685 = vst [vmem:[#allocation2 + $0x5e8] sm:$0xff] %v2673
        %2686 = vst [vmem:[#allocation2 + $0x5f0] sm:$0xff] %v2672
        %2687 = vst [vmem:[#allocation2 + $0x5f8] sm:$0xff] %v2679
        %2688 = vrot.lane.b32.xlu0 %v1936, 19
        %v2689 = vpop.permute.xlu0 %2688
        %2690 = vrot.lane.b32.xlu0 %v1937, 19
        %v2691 = vpop.permute.xlu0 %2690
        %2692 = vrot.lane.b32.xlu0 %v1938, 19
        %v2693 = vpop.permute.xlu0 %2692
        %2694 = vrot.lane.b32.xlu0 %v1939, 19
        %v2695 = vpop.permute.xlu0 %2694
        %2696 = vrot.lane.b32.xlu0 %v1940, 19
        %v2697 = vpop.permute.xlu0 %2696
        %2698 = vrot.lane.b32.xlu0 %v1941, 19
        %v2699 = vpop.permute.xlu0 %2698
        %2700 = vrot.lane.b32.xlu0 %v1942, 19
        %v2701 = vpop.permute.xlu0 %2700
        %2702 = vrot.lane.b32.xlu0 %v1943, 19
        %v2703 = vpop.permute.xlu0 %2702
        %v2704 = vsel %vm1162, %v2701, %v2703
        %v2705 = vsel %vm1162, %v2699, %v2701
        %v2706 = vsel %vm1162, %v2697, %v2699
        %v2707 = vsel %vm1162, %v2695, %v2697
        %v2708 = vsel %vm1162, %v2693, %v2695
        %v2709 = vsel %vm1162, %v2691, %v2693
        %v2710 = vsel %vm1162, %v2689, %v2691
        %v2711 = vsel %vm1162, %v2703, %v2689
        %2712 = vst [vmem:[#allocation2 + $0x600] sm:$0xff] %v2710
        %2713 = vst [vmem:[#allocation2 + $0x608] sm:$0xff] %v2709
        %2714 = vst [vmem:[#allocation2 + $0x610] sm:$0xff] %v2708
        %2715 = vst [vmem:[#allocation2 + $0x618] sm:$0xff] %v2707
        %2716 = vst [vmem:[#allocation2 + $0x620] sm:$0xff] %v2706
        %2717 = vst [vmem:[#allocation2 + $0x628] sm:$0xff] %v2705
        %2718 = vst [vmem:[#allocation2 + $0x630] sm:$0xff] %v2704
        %2719 = vst [vmem:[#allocation2 + $0x638] sm:$0xff] %v2711
        %2720 = vrot.lane.b32.xlu0 %v1936, 18
        %v2721 = vpop.permute.xlu0 %2720
        %2722 = vrot.lane.b32.xlu0 %v1937, 18
        %v2723 = vpop.permute.xlu0 %2722
        %2724 = vrot.lane.b32.xlu0 %v1938, 18
        %v2725 = vpop.permute.xlu0 %2724
        %2726 = vrot.lane.b32.xlu0 %v1939, 18
        %v2727 = vpop.permute.xlu0 %2726
        %2728 = vrot.lane.b32.xlu0 %v1940, 18
        %v2729 = vpop.permute.xlu0 %2728
        %2730 = vrot.lane.b32.xlu0 %v1941, 18
        %v2731 = vpop.permute.xlu0 %2730
        %2732 = vrot.lane.b32.xlu0 %v1942, 18
        %v2733 = vpop.permute.xlu0 %2732
        %2734 = vrot.lane.b32.xlu0 %v1943, 18
        %v2735 = vpop.permute.xlu0 %2734
        %v2736 = vsel %vm1195, %v2733, %v2735
        %v2737 = vsel %vm1195, %v2731, %v2733
        %v2738 = vsel %vm1195, %v2729, %v2731
        %v2739 = vsel %vm1195, %v2727, %v2729
        %v2740 = vsel %vm1195, %v2725, %v2727
        %v2741 = vsel %vm1195, %v2723, %v2725
        %v2742 = vsel %vm1195, %v2721, %v2723
        %v2743 = vsel %vm1195, %v2735, %v2721
        %2744 = vst [vmem:[#allocation2 + $0x640] sm:$0xff] %v2742
        %2745 = vst [vmem:[#allocation2 + $0x648] sm:$0xff] %v2741
        %2746 = vst [vmem:[#allocation2 + $0x650] sm:$0xff] %v2740
        %2747 = vst [vmem:[#allocation2 + $0x658] sm:$0xff] %v2739
        %2748 = vst [vmem:[#allocation2 + $0x660] sm:$0xff] %v2738
        %2749 = vst [vmem:[#allocation2 + $0x668] sm:$0xff] %v2737
        %2750 = vst [vmem:[#allocation2 + $0x670] sm:$0xff] %v2736
        %2751 = vst [vmem:[#allocation2 + $0x678] sm:$0xff] %v2743
        %2752 = vrot.lane.b32.xlu0 %v1936, 17
        %v2753 = vpop.permute.xlu0 %2752
        %2754 = vrot.lane.b32.xlu0 %v1937, 17
        %v2755 = vpop.permute.xlu0 %2754
        %2756 = vrot.lane.b32.xlu0 %v1938, 17
        %v2757 = vpop.permute.xlu0 %2756
        %2758 = vrot.lane.b32.xlu0 %v1939, 17
        %v2759 = vpop.permute.xlu0 %2758
        %2760 = vrot.lane.b32.xlu0 %v1940, 17
        %v2761 = vpop.permute.xlu0 %2760
        %2762 = vrot.lane.b32.xlu0 %v1941, 17
        %v2763 = vpop.permute.xlu0 %2762
        %2764 = vrot.lane.b32.xlu0 %v1942, 17
        %v2765 = vpop.permute.xlu0 %2764
        %2766 = vrot.lane.b32.xlu0 %v1943, 17
        %v2767 = vpop.permute.xlu0 %2766
        %v2768 = vsel %vm1228, %v2765, %v2767
        %v2769 = vsel %vm1228, %v2763, %v2765
        %v2770 = vsel %vm1228, %v2761, %v2763
        %v2771 = vsel %vm1228, %v2759, %v2761
        %v2772 = vsel %vm1228, %v2757, %v2759
        %v2773 = vsel %vm1228, %v2755, %v2757
        %v2774 = vsel %vm1228, %v2753, %v2755
        %v2775 = vsel %vm1228, %v2767, %v2753
        %2776 = vst [vmem:[#allocation2 + $0x680] sm:$0xff] %v2774
        %2777 = vst [vmem:[#allocation2 + $0x688] sm:$0xff] %v2773
        %2778 = vst [vmem:[#allocation2 + $0x690] sm:$0xff] %v2772
        %2779 = vst [vmem:[#allocation2 + $0x698] sm:$0xff] %v2771
        %2780 = vst [vmem:[#allocation2 + $0x6a0] sm:$0xff] %v2770
        %2781 = vst [vmem:[#allocation2 + $0x6a8] sm:$0xff] %v2769
        %2782 = vst [vmem:[#allocation2 + $0x6b0] sm:$0xff] %v2768
        %2783 = vst [vmem:[#allocation2 + $0x6b8] sm:$0xff] %v2775
        %v2784 = vld [vmem:[%s4] sm:$0xff]
        %v2785 = vld [vmem:[%s4 + $0x8] sm:$0xff]
        %v2786 = vld [vmem:[#allocation2] sm:$0xff]
        %v2787 = vld [vmem:[#allocation2 + $0x8] sm:$0xff]
        %v2788 = vld [vmem:[#allocation2 + $0x10] sm:$0xff]
        %v2789 = vld [vmem:[#allocation2 + $0x18] sm:$0xff]
        %v2790 = vld [vmem:[#allocation2 + $0x20] sm:$0xff]
        %v2791 = vld [vmem:[#allocation2 + $0x28] sm:$0xff]
        %v2792 = vld [vmem:[#allocation2 + $0x30] sm:$0xff]
        %v2793 = vld [vmem:[#allocation2 + $0x38] sm:$0xff]
        %v2794 = vld [vmem:[#allocation2 + $0x40] sm:$0xff]
        %v2795 = vld [vmem:[#allocation2 + $0x48] sm:$0xff]
        %v2796 = vld [vmem:[#allocation2 + $0x50] sm:$0xff]
        %v2797 = vld [vmem:[#allocation2 + $0x58] sm:$0xff]
        %v2798 = vld [vmem:[#allocation2 + $0x60] sm:$0xff]
        %v2799 = vld [vmem:[#allocation2 + $0x68] sm:$0xff]
        %v2800 = vld [vmem:[#allocation2 + $0x70] sm:$0xff]
        %v2801 = vld [vmem:[#allocation2 + $0x78] sm:$0xff]
        %v2802 = vld [vmem:[#allocation2 + $0x80] sm:$0xff]
        %v2803 = vld [vmem:[#allocation2 + $0x88] sm:$0xff]
        %v2804 = vld [vmem:[#allocation2 + $0x90] sm:$0xff]
        %v2805 = vld [vmem:[#allocation2 + $0x98] sm:$0xff]
        %v2806 = vld [vmem:[#allocation2 + $0xa0] sm:$0xff]
        %v2807 = vld [vmem:[#allocation2 + $0xa8] sm:$0xff]
        %v2808 = vld [vmem:[#allocation2 + $0xb0] sm:$0xff]
        %v2809 = vld [vmem:[#allocation2 + $0xb8] sm:$0xff]
        %v2810 = vld [vmem:[#allocation2 + $0xc0] sm:$0xff]
        %v2811 = vld [vmem:[#allocation2 + $0xc8] sm:$0xff]
        %v2812 = vld [vmem:[#allocation2 + $0xd0] sm:$0xff]
        %v2813 = vld [vmem:[#allocation2 + $0xd8] sm:$0xff]
        %v2814 = vld [vmem:[#allocation2 + $0xe0] sm:$0xff]
        %v2815 = vld [vmem:[#allocation2 + $0xe8] sm:$0xff]
        %v2816 = vld [vmem:[#allocation2 + $0xf0] sm:$0xff]
        %v2817 = vld [vmem:[#allocation2 + $0xf8] sm:$0xff]
        %v2818 = vld [vmem:[#allocation2 + $0x100] sm:$0xff]
        %v2819 = vld [vmem:[#allocation2 + $0x108] sm:$0xff]
        %v2820 = vld [vmem:[#allocation2 + $0x110] sm:$0xff]
        %v2821 = vld [vmem:[#allocation2 + $0x118] sm:$0xff]
        %v2822 = vld [vmem:[#allocation2 + $0x120] sm:$0xff]
        %v2823 = vld [vmem:[#allocation2 + $0x128] sm:$0xff]
        %v2824 = vld [vmem:[#allocation2 + $0x130] sm:$0xff]
        %v2825 = vld [vmem:[#allocation2 + $0x138] sm:$0xff]
        %v2826 = vld [vmem:[#allocation2 + $0x140] sm:$0xff]
        %v2827 = vld [vmem:[#allocation2 + $0x148] sm:$0xff]
        %v2828 = vld [vmem:[#allocation2 + $0x150] sm:$0xff]
        %v2829 = vld [vmem:[#allocation2 + $0x158] sm:$0xff]
        %v2830 = vld [vmem:[#allocation2 + $0x160] sm:$0xff]
        %v2831 = vld [vmem:[#allocation2 + $0x168] sm:$0xff]
        %v2832 = vld [vmem:[#allocation2 + $0x170] sm:$0xff]
        %v2833 = vld [vmem:[#allocation2 + $0x178] sm:$0xff]
        %v2834 = vld [vmem:[#allocation2 + $0x180] sm:$0xff]
        %v2835 = vld [vmem:[#allocation2 + $0x188] sm:$0xff]
        %v2836 = vld [vmem:[#allocation2 + $0x190] sm:$0xff]
        %v2837 = vld [vmem:[#allocation2 + $0x198] sm:$0xff]
        %v2838 = vld [vmem:[#allocation2 + $0x1a0] sm:$0xff]
        %v2839 = vld [vmem:[#allocation2 + $0x1a8] sm:$0xff]
        %v2840 = vld [vmem:[#allocation2 + $0x1b0] sm:$0xff]
        %v2841 = vld [vmem:[#allocation2 + $0x1b8] sm:$0xff]
        %v2842 = vld [vmem:[#allocation2 + $0x1c0] sm:$0xff]
        %v2843 = vld [vmem:[#allocation2 + $0x1c8] sm:$0xff]
        %v2844 = vld [vmem:[#allocation2 + $0x1d0] sm:$0xff]
        %v2845 = vld [vmem:[#allocation2 + $0x1d8] sm:$0xff]
        %v2846 = vld [vmem:[#allocation2 + $0x1e0] sm:$0xff]
        %v2847 = vld [vmem:[#allocation2 + $0x1e8] sm:$0xff]
        %v2848 = vld [vmem:[#allocation2 + $0x1f0] sm:$0xff]
        %v2849 = vld [vmem:[#allocation2 + $0x1f8] sm:$0xff]
        %v2850 = vld [vmem:[#allocation2 + $0x200] sm:$0xff]
        %v2851 = vld [vmem:[#allocation2 + $0x208] sm:$0xff]
        %v2852 = vld [vmem:[#allocation2 + $0x210] sm:$0xff]
        %v2853 = vld [vmem:[#allocation2 + $0x218] sm:$0xff]
        %v2854 = vld [vmem:[#allocation2 + $0x220] sm:$0xff]
        %v2855 = vld [vmem:[#allocation2 + $0x228] sm:$0xff]
        %v2856 = vld [vmem:[#allocation2 + $0x230] sm:$0xff]
        %v2857 = vld [vmem:[#allocation2 + $0x238] sm:$0xff]
        %v2858 = vld [vmem:[#allocation2 + $0x240] sm:$0xff]
        %v2859 = vld [vmem:[#allocation2 + $0x248] sm:$0xff]
        %v2860 = vld [vmem:[#allocation2 + $0x250] sm:$0xff]
        %v2861 = vld [vmem:[#allocation2 + $0x258] sm:$0xff]
        %v2862 = vld [vmem:[#allocation2 + $0x260] sm:$0xff]
        %v2863 = vld [vmem:[#allocation2 + $0x268] sm:$0xff]
        %v2864 = vld [vmem:[#allocation2 + $0x270] sm:$0xff]
        %v2865 = vld [vmem:[#allocation2 + $0x278] sm:$0xff]
        %v2866 = vld [vmem:[#allocation2 + $0x280] sm:$0xff]
        %v2867 = vld [vmem:[#allocation2 + $0x288] sm:$0xff]
        %v2868 = vld [vmem:[#allocation2 + $0x290] sm:$0xff]
        %v2869 = vld [vmem:[#allocation2 + $0x298] sm:$0xff]
        %v2870 = vld [vmem:[#allocation2 + $0x2a0] sm:$0xff]
        %v2871 = vld [vmem:[#allocation2 + $0x2a8] sm:$0xff]
        %v2872 = vld [vmem:[#allocation2 + $0x2b0] sm:$0xff]
        %v2873 = vld [vmem:[#allocation2 + $0x2b8] sm:$0xff]
        %v2874 = vld [vmem:[#allocation2 + $0x2c0] sm:$0xff]
        %v2875 = vld [vmem:[#allocation2 + $0x2c8] sm:$0xff]
        %v2876 = vld [vmem:[#allocation2 + $0x2d0] sm:$0xff]
        %v2877 = vld [vmem:[#allocation2 + $0x2d8] sm:$0xff]
        %v2878 = vld [vmem:[#allocation2 + $0x2e0] sm:$0xff]
        %v2879 = vld [vmem:[#allocation2 + $0x2e8] sm:$0xff]
        %v2880 = vld [vmem:[#allocation2 + $0x2f0] sm:$0xff]
        %v2881 = vld [vmem:[#allocation2 + $0x2f8] sm:$0xff]
        %v2882 = vld [vmem:[#allocation2 + $0x300] sm:$0xff]
        %v2883 = vld [vmem:[#allocation2 + $0x308] sm:$0xff]
        %v2884 = vld [vmem:[#allocation2 + $0x310] sm:$0xff]
        %v2885 = vld [vmem:[#allocation2 + $0x318] sm:$0xff]
        %v2886 = vld [vmem:[#allocation2 + $0x320] sm:$0xff]
        %v2887 = vld [vmem:[#allocation2 + $0x328] sm:$0xff]
        %v2888 = vld [vmem:[#allocation2 + $0x330] sm:$0xff]
        %v2889 = vld [vmem:[#allocation2 + $0x338] sm:$0xff]
        %v2890 = vld [vmem:[#allocation2 + $0x340] sm:$0xff]
        %v2891 = vld [vmem:[#allocation2 + $0x348] sm:$0xff]
        %v2892 = vld [vmem:[#allocation2 + $0x350] sm:$0xff]
        %v2893 = vld [vmem:[#allocation2 + $0x358] sm:$0xff]
        %v2894 = vld [vmem:[#allocation2 + $0x360] sm:$0xff]
        %v2895 = vld [vmem:[#allocation2 + $0x368] sm:$0xff]
        %v2896 = vld [vmem:[#allocation2 + $0x370] sm:$0xff]
        %v2897 = vld [vmem:[#allocation2 + $0x378] sm:$0xff]
        %v2898 = vld [vmem:[#allocation2 + $0x380] sm:$0xff]
        %v2899 = vld [vmem:[#allocation2 + $0x388] sm:$0xff]
        %v2900 = vld [vmem:[#allocation2 + $0x390] sm:$0xff]
        %v2901 = vld [vmem:[#allocation2 + $0x398] sm:$0xff]
        %v2902 = vld [vmem:[#allocation2 + $0x3a0] sm:$0xff]
        %v2903 = vld [vmem:[#allocation2 + $0x3a8] sm:$0xff]
        %v2904 = vld [vmem:[#allocation2 + $0x3b0] sm:$0xff]
        %v2905 = vld [vmem:[#allocation2 + $0x3b8] sm:$0xff]
        %v2906 = vld [vmem:[#allocation2 + $0x3c0] sm:$0xff]
        %v2907 = vld [vmem:[#allocation2 + $0x3c8] sm:$0xff]
        %v2908 = vld [vmem:[#allocation2 + $0x3d0] sm:$0xff]
        %v2909 = vld [vmem:[#allocation2 + $0x3d8] sm:$0xff]
        %v2910 = vld [vmem:[#allocation2 + $0x3e0] sm:$0xff]
        %v2911 = vld [vmem:[#allocation2 + $0x3e8] sm:$0xff]
        %v2912 = vld [vmem:[#allocation2 + $0x3f0] sm:$0xff]
        %v2913 = vld [vmem:[#allocation2 + $0x3f8] sm:$0xff]
        %v2914 = vld [vmem:[#allocation2 + $0x400] sm:$0xff]
        %v2915 = vld [vmem:[#allocation2 + $0x408] sm:$0xff]
        %v2916 = vld [vmem:[#allocation2 + $0x410] sm:$0xff]
        %v2917 = vld [vmem:[#allocation2 + $0x418] sm:$0xff]
        %v2918 = vld [vmem:[#allocation2 + $0x420] sm:$0xff]
        %v2919 = vld [vmem:[#allocation2 + $0x428] sm:$0xff]
        %v2920 = vld [vmem:[#allocation2 + $0x430] sm:$0xff]
        %v2921 = vld [vmem:[#allocation2 + $0x438] sm:$0xff]
        %v2922 = vld [vmem:[#allocation2 + $0x440] sm:$0xff]
        %v2923 = vld [vmem:[#allocation2 + $0x448] sm:$0xff]
        %v2924 = vld [vmem:[#allocation2 + $0x450] sm:$0xff]
        %v2925 = vld [vmem:[#allocation2 + $0x458] sm:$0xff]
        %v2926 = vld [vmem:[#allocation2 + $0x460] sm:$0xff]
        %v2927 = vld [vmem:[#allocation2 + $0x468] sm:$0xff]
        %v2928 = vld [vmem:[#allocation2 + $0x470] sm:$0xff]
        %v2929 = vld [vmem:[#allocation2 + $0x478] sm:$0xff]
        %v2930 = vld [vmem:[#allocation2 + $0x480] sm:$0xff]
        %v2931 = vld [vmem:[#allocation2 + $0x488] sm:$0xff]
        %v2932 = vld [vmem:[#allocation2 + $0x490] sm:$0xff]
        %v2933 = vld [vmem:[#allocation2 + $0x498] sm:$0xff]
        %v2934 = vld [vmem:[#allocation2 + $0x4a0] sm:$0xff]
        %v2935 = vld [vmem:[#allocation2 + $0x4a8] sm:$0xff]
        %v2936 = vld [vmem:[#allocation2 + $0x4b0] sm:$0xff]
        %v2937 = vld [vmem:[#allocation2 + $0x4b8] sm:$0xff]
        %v2938 = vld [vmem:[#allocation2 + $0x4c0] sm:$0xff]
        %v2939 = vld [vmem:[#allocation2 + $0x4c8] sm:$0xff]
        %v2940 = vld [vmem:[#allocation2 + $0x4d0] sm:$0xff]
        %v2941 = vld [vmem:[#allocation2 + $0x4d8] sm:$0xff]
        %v2942 = vld [vmem:[#allocation2 + $0x4e0] sm:$0xff]
        %v2943 = vld [vmem:[#allocation2 + $0x4e8] sm:$0xff]
        %v2944 = vld [vmem:[#allocation2 + $0x4f0] sm:$0xff]
        %v2945 = vld [vmem:[#allocation2 + $0x4f8] sm:$0xff]
        %v2946 = vld [vmem:[#allocation2 + $0x500] sm:$0xff]
        %v2947 = vld [vmem:[#allocation2 + $0x508] sm:$0xff]
        %v2948 = vld [vmem:[#allocation2 + $0x510] sm:$0xff]
        %v2949 = vld [vmem:[#allocation2 + $0x518] sm:$0xff]
        %v2950 = vld [vmem:[#allocation2 + $0x520] sm:$0xff]
        %v2951 = vld [vmem:[#allocation2 + $0x528] sm:$0xff]
        %v2952 = vld [vmem:[#allocation2 + $0x530] sm:$0xff]
        %v2953 = vld [vmem:[#allocation2 + $0x538] sm:$0xff]
        %v2954 = vld [vmem:[#allocation2 + $0x540] sm:$0xff]
        %v2955 = vld [vmem:[#allocation2 + $0x548] sm:$0xff]
        %v2956 = vld [vmem:[#allocation2 + $0x550] sm:$0xff]
        %v2957 = vld [vmem:[#allocation2 + $0x558] sm:$0xff]
        %v2958 = vld [vmem:[#allocation2 + $0x560] sm:$0xff]
        %v2959 = vld [vmem:[#allocation2 + $0x568] sm:$0xff]
        %v2960 = vld [vmem:[#allocation2 + $0x570] sm:$0xff]
        %v2961 = vld [vmem:[#allocation2 + $0x578] sm:$0xff]
        %v2962 = vld [vmem:[#allocation2 + $0x580] sm:$0xff]
        %v2963 = vld [vmem:[#allocation2 + $0x588] sm:$0xff]
        %v2964 = vld [vmem:[#allocation2 + $0x590] sm:$0xff]
        %v2965 = vld [vmem:[#allocation2 + $0x598] sm:$0xff]
        %v2966 = vld [vmem:[#allocation2 + $0x5a0] sm:$0xff]
        %v2967 = vld [vmem:[#allocation2 + $0x5a8] sm:$0xff]
        %v2968 = vld [vmem:[#allocation2 + $0x5b0] sm:$0xff]
        %v2969 = vld [vmem:[#allocation2 + $0x5b8] sm:$0xff]
        %v2970 = vld [vmem:[#allocation2 + $0x5c0] sm:$0xff]
        %v2971 = vld [vmem:[#allocation2 + $0x5c8] sm:$0xff]
        %v2972 = vld [vmem:[#allocation2 + $0x5d0] sm:$0xff]
        %v2973 = vld [vmem:[#allocation2 + $0x5d8] sm:$0xff]
        %v2974 = vld [vmem:[#allocation2 + $0x5e0] sm:$0xff]
        %v2975 = vld [vmem:[#allocation2 + $0x5e8] sm:$0xff]
        %v2976 = vld [vmem:[#allocation2 + $0x5f0] sm:$0xff]
        %v2977 = vld [vmem:[#allocation2 + $0x5f8] sm:$0xff]
        %v2978 = vld [vmem:[#allocation2 + $0x600] sm:$0xff]
        %v2979 = vld [vmem:[#allocation2 + $0x608] sm:$0xff]
        %v2980 = vld [vmem:[#allocation2 + $0x610] sm:$0xff]
        %v2981 = vld [vmem:[#allocation2 + $0x618] sm:$0xff]
        %v2982 = vld [vmem:[#allocation2 + $0x620] sm:$0xff]
        %v2983 = vld [vmem:[#allocation2 + $0x628] sm:$0xff]
        %v2984 = vld [vmem:[#allocation2 + $0x630] sm:$0xff]
        %v2985 = vld [vmem:[#allocation2 + $0x638] sm:$0xff]
        %v2986 = vld [vmem:[#allocation2 + $0x640] sm:$0xff]
        %v2987 = vld [vmem:[#allocation2 + $0x648] sm:$0xff]
        %v2988 = vld [vmem:[#allocation2 + $0x650] sm:$0xff]
        %v2989 = vld [vmem:[#allocation2 + $0x658] sm:$0xff]
        %v2990 = vld [vmem:[#allocation2 + $0x660] sm:$0xff]
        %v2991 = vld [vmem:[#allocation2 + $0x668] sm:$0xff]
        %v2992 = vld [vmem:[#allocation2 + $0x670] sm:$0xff]
        %v2993 = vld [vmem:[#allocation2 + $0x678] sm:$0xff]
        %v2994 = vld [vmem:[#allocation2 + $0x680] sm:$0xff]
        %v2995 = vld [vmem:[#allocation2 + $0x688] sm:$0xff]
        %v2996 = vld [vmem:[#allocation2 + $0x690] sm:$0xff]
        %v2997 = vld [vmem:[#allocation2 + $0x698] sm:$0xff]
        %v2998 = vld [vmem:[#allocation2 + $0x6a0] sm:$0xff]
        %v2999 = vld [vmem:[#allocation2 + $0x6a8] sm:$0xff]
        %v3000 = vld [vmem:[#allocation2 + $0x6b0] sm:$0xff]
        %v3001 = vld [vmem:[#allocation2 + $0x6b8] sm:$0xff]
        %v3002 = vld [vmem:[#allocation2 + $0x6c0] sm:$0xff]
        %v3003 = vld [vmem:[#allocation2 + $0x6c8] sm:$0xff]
        %v3004 = vld [vmem:[#allocation2 + $0x6d0] sm:$0xff]
        %v3005 = vld [vmem:[#allocation2 + $0x6d8] sm:$0xff]
        %v3006 = vld [vmem:[#allocation2 + $0x6e0] sm:$0xff]
        %v3007 = vld [vmem:[#allocation2 + $0x6e8] sm:$0xff]
        %v3008 = vld [vmem:[#allocation2 + $0x6f0] sm:$0xff]
        %v3009 = vld [vmem:[#allocation2 + $0x6f8] sm:$0xff]
        %v3010 = vld [vmem:[#allocation2 + $0x700] sm:$0xff]
        %v3011 = vld [vmem:[#allocation2 + $0x708] sm:$0xff]
        %v3012 = vld [vmem:[#allocation2 + $0x710] sm:$0xff]
        %v3013 = vld [vmem:[#allocation2 + $0x718] sm:$0xff]
        %v3014 = vld [vmem:[#allocation2 + $0x720] sm:$0xff]
        %v3015 = vld [vmem:[#allocation2 + $0x728] sm:$0xff]
        %v3016 = vld [vmem:[#allocation2 + $0x730] sm:$0xff]
        %v3017 = vld [vmem:[#allocation2 + $0x738] sm:$0xff]
        %v3018 = vld [vmem:[#allocation2 + $0x740] sm:$0xff]
        %v3019 = vld [vmem:[#allocation2 + $0x748] sm:$0xff]
        %v3020 = vld [vmem:[#allocation2 + $0x750] sm:$0xff]
        %v3021 = vld [vmem:[#allocation2 + $0x758] sm:$0xff]
        %v3022 = vld [vmem:[#allocation2 + $0x760] sm:$0xff]
        %v3023 = vld [vmem:[#allocation2 + $0x768] sm:$0xff]
        %v3024 = vld [vmem:[#allocation2 + $0x770] sm:$0xff]
        %v3025 = vld [vmem:[#allocation2 + $0x778] sm:$0xff]
        %v3026 = vld [vmem:[#allocation2 + $0x780] sm:$0xff]
        %v3027 = vld [vmem:[#allocation2 + $0x788] sm:$0xff]
        %v3028 = vld [vmem:[#allocation2 + $0x790] sm:$0xff]
        %v3029 = vld [vmem:[#allocation2 + $0x798] sm:$0xff]
        %v3030 = vld [vmem:[#allocation2 + $0x7a0] sm:$0xff]
        %v3031 = vld [vmem:[#allocation2 + $0x7a8] sm:$0xff]
        %v3032 = vld [vmem:[#allocation2 + $0x7b0] sm:$0xff]
        %v3033 = vld [vmem:[#allocation2 + $0x7b8] sm:$0xff]
        %v3034 = vld [vmem:[#allocation2 + $0x7c0] sm:$0xff]
        %v3035 = vld [vmem:[#allocation2 + $0x7c8] sm:$0xff]
        %v3036 = vld [vmem:[#allocation2 + $0x7d0] sm:$0xff]
        %v3037 = vld [vmem:[#allocation2 + $0x7d8] sm:$0xff]
        %v3038 = vld [vmem:[#allocation2 + $0x7e0] sm:$0xff]
        %v3039 = vld [vmem:[#allocation2 + $0x7e8] sm:$0xff]
        %v3040 = vld [vmem:[#allocation2 + $0x7f0] sm:$0xff]
        %v3041 = vld [vmem:[#allocation2 + $0x7f8] sm:$0xff]
        %3042 = vmatpush.msra.mxu0 %v2906
        %3043 = vmatpush.msra.mxu0 %v2898
        %3044 = vmatpush.msra.mxu0 %v2890
        %3045 = vmatpush.msra.mxu0 %v2882
        %3046 = vmatpush.msra.mxu0 %v2874
        %3047 = vmatpush.msra.mxu0 %v2866
        %3048 = vmatpush.msra.mxu0 %v2858
        %3049 = vmatpush.msra.mxu0 %v2850
        %3050 = vmatpush.msra.mxu0 %v2842
        %3051 = vmatpush.msra.mxu0 %v2834
        %3052 = vmatpush.msra.mxu0 %v2826
        %3053 = vmatpush.msra.mxu0 %v2818
        %3054 = vmatpush.msra.mxu0 %v2810
        %3055 = vmatpush.msra.mxu0 %v2802
        %3056 = vmatpush.msra.mxu0 %v2794
        %3057 = vmatpush.msra.mxu0 %v2786
        %3058 = vmatmul.f32.gmra.mxu0 %v2784
        %v3059 = vpop.f32.mrf.mxu0
        %v3060 = vadd.f32 0.0, %v3059
        %3061 = vdwg.mxu0
        %3062 = vmatpush.msra.mxu0 %v3034
        %3063 = vmatpush.msra.mxu0 %v3026
        %3064 = vmatpush.msra.mxu0 %v3018
        %3065 = vmatpush.msra.mxu0 %v3010
        %3066 = vmatpush.msra.mxu0 %v3002
        %3067 = vmatpush.msra.mxu0 %v2994
        %3068 = vmatpush.msra.mxu0 %v2986
        %3069 = vmatpush.msra.mxu0 %v2978
        %3070 = vmatpush.msra.mxu0 %v2970
        %3071 = vmatpush.msra.mxu0 %v2962
        %3072 = vmatpush.msra.mxu0 %v2954
        %3073 = vmatpush.msra.mxu0 %v2946
        %3074 = vmatpush.msra.mxu0 %v2938
        %3075 = vmatpush.msra.mxu0 %v2930
        %3076 = vmatpush.msra.mxu0 %v2922
        %3077 = vmatpush.msra.mxu0 %v2914
        %3078 = vmatmul.f32.gmra.mxu0 %v2785
        %v3079 = vpop.f32.mrf.mxu0
        %v3080 = vadd.f32 %v3060, %v3079
        %3081 = vdwg.mxu0
        %3082 = vmatpush.msra.mxu0 %v2907
        %3083 = vmatpush.msra.mxu0 %v2899
        %3084 = vmatpush.msra.mxu0 %v2891
        %3085 = vmatpush.msra.mxu0 %v2883
        %3086 = vmatpush.msra.mxu0 %v2875
        %3087 = vmatpush.msra.mxu0 %v2867
        %3088 = vmatpush.msra.mxu0 %v2859
        %3089 = vmatpush.msra.mxu0 %v2851
        %3090 = vmatpush.msra.mxu0 %v2843
        %3091 = vmatpush.msra.mxu0 %v2835
        %3092 = vmatpush.msra.mxu0 %v2827
        %3093 = vmatpush.msra.mxu0 %v2819
        %3094 = vmatpush.msra.mxu0 %v2811
        %3095 = vmatpush.msra.mxu0 %v2803
        %3096 = vmatpush.msra.mxu0 %v2795
        %3097 = vmatpush.msra.mxu0 %v2787
        %3098 = vmatmul.f32.gmra.mxu0 %v2784
        %v3099 = vpop.f32.mrf.mxu0
        %v3100 = vadd.f32 0.0, %v3099
        %3101 = vdwg.mxu0
        %3102 = vmatpush.msra.mxu0 %v3035
        %3103 = vmatpush.msra.mxu0 %v3027
        %3104 = vmatpush.msra.mxu0 %v3019
        %3105 = vmatpush.msra.mxu0 %v3011
        %3106 = vmatpush.msra.mxu0 %v3003
        %3107 = vmatpush.msra.mxu0 %v2995
        %3108 = vmatpush.msra.mxu0 %v2987
        %3109 = vmatpush.msra.mxu0 %v2979
        %3110 = vmatpush.msra.mxu0 %v2971
        %3111 = vmatpush.msra.mxu0 %v2963
        %3112 = vmatpush.msra.mxu0 %v2955
        %3113 = vmatpush.msra.mxu0 %v2947
        %3114 = vmatpush.msra.mxu0 %v2939
        %3115 = vmatpush.msra.mxu0 %v2931
        %3116 = vmatpush.msra.mxu0 %v2923
        %3117 = vmatpush.msra.mxu0 %v2915
        %3118 = vmatmul.f32.gmra.mxu0 %v2785
        %v3119 = vpop.f32.mrf.mxu0
        %v3120 = vadd.f32 %v3100, %v3119
        %3121 = vdwg.mxu0
        %3122 = vmatpush.msra.mxu0 %v2908
        %3123 = vmatpush.msra.mxu0 %v2900
        %3124 = vmatpush.msra.mxu0 %v2892
        %3125 = vmatpush.msra.mxu0 %v2884
        %3126 = vmatpush.msra.mxu0 %v2876
        %3127 = vmatpush.msra.mxu0 %v2868
        %3128 = vmatpush.msra.mxu0 %v2860
        %3129 = vmatpush.msra.mxu0 %v2852
        %3130 = vmatpush.msra.mxu0 %v2844
        %3131 = vmatpush.msra.mxu0 %v2836
        %3132 = vmatpush.msra.mxu0 %v2828
        %3133 = vmatpush.msra.mxu0 %v2820
        %3134 = vmatpush.msra.mxu0 %v2812
        %3135 = vmatpush.msra.mxu0 %v2804
        %3136 = vmatpush.msra.mxu0 %v2796
        %3137 = vmatpush.msra.mxu0 %v2788
        %3138 = vmatmul.f32.gmra.mxu0 %v2784
        %v3139 = vpop.f32.mrf.mxu0
        %v3140 = vadd.f32 0.0, %v3139
        %3141 = vdwg.mxu0
        %3142 = vmatpush.msra.mxu0 %v3036
        %3143 = vmatpush.msra.mxu0 %v3028
        %3144 = vmatpush.msra.mxu0 %v3020
        %3145 = vmatpush.msra.mxu0 %v3012
        %3146 = vmatpush.msra.mxu0 %v3004
        %3147 = vmatpush.msra.mxu0 %v2996
        %3148 = vmatpush.msra.mxu0 %v2988
        %3149 = vmatpush.msra.mxu0 %v2980
        %3150 = vmatpush.msra.mxu0 %v2972
        %3151 = vmatpush.msra.mxu0 %v2964
        %3152 = vmatpush.msra.mxu0 %v2956
        %3153 = vmatpush.msra.mxu0 %v2948
        %3154 = vmatpush.msra.mxu0 %v2940
        %3155 = vmatpush.msra.mxu0 %v2932
        %3156 = vmatpush.msra.mxu0 %v2924
        %3157 = vmatpush.msra.mxu0 %v2916
        %3158 = vmatmul.f32.gmra.mxu0 %v2785
        %v3159 = vpop.f32.mrf.mxu0
        %v3160 = vadd.f32 %v3140, %v3159
        %3161 = vdwg.mxu0
        %3162 = vmatpush.msra.mxu0 %v2909
        %3163 = vmatpush.msra.mxu0 %v2901
        %3164 = vmatpush.msra.mxu0 %v2893
        %3165 = vmatpush.msra.mxu0 %v2885
        %3166 = vmatpush.msra.mxu0 %v2877
        %3167 = vmatpush.msra.mxu0 %v2869
        %3168 = vmatpush.msra.mxu0 %v2861
        %3169 = vmatpush.msra.mxu0 %v2853
        %3170 = vmatpush.msra.mxu0 %v2845
        %3171 = vmatpush.msra.mxu0 %v2837
        %3172 = vmatpush.msra.mxu0 %v2829
        %3173 = vmatpush.msra.mxu0 %v2821
        %3174 = vmatpush.msra.mxu0 %v2813
        %3175 = vmatpush.msra.mxu0 %v2805
        %3176 = vmatpush.msra.mxu0 %v2797
        %3177 = vmatpush.msra.mxu0 %v2789
        %3178 = vmatmul.f32.gmra.mxu0 %v2784
        %v3179 = vpop.f32.mrf.mxu0
        %v3180 = vadd.f32 0.0, %v3179
        %3181 = vdwg.mxu0
        %3182 = vmatpush.msra.mxu0 %v3037
        %3183 = vmatpush.msra.mxu0 %v3029
        %3184 = vmatpush.msra.mxu0 %v3021
        %3185 = vmatpush.msra.mxu0 %v3013
        %3186 = vmatpush.msra.mxu0 %v3005
        %3187 = vmatpush.msra.mxu0 %v2997
        %3188 = vmatpush.msra.mxu0 %v2989
        %3189 = vmatpush.msra.mxu0 %v2981
        %3190 = vmatpush.msra.mxu0 %v2973
        %3191 = vmatpush.msra.mxu0 %v2965
        %3192 = vmatpush.msra.mxu0 %v2957
        %3193 = vmatpush.msra.mxu0 %v2949
        %3194 = vmatpush.msra.mxu0 %v2941
        %3195 = vmatpush.msra.mxu0 %v2933
        %3196 = vmatpush.msra.mxu0 %v2925
        %3197 = vmatpush.msra.mxu0 %v2917
        %3198 = vmatmul.f32.gmra.mxu0 %v2785
        %v3199 = vpop.f32.mrf.mxu0
        %v3200 = vadd.f32 %v3180, %v3199
        %3201 = vdwg.mxu0
        %3202 = vmatpush.msra.mxu0 %v2910
        %3203 = vmatpush.msra.mxu0 %v2902
        %3204 = vmatpush.msra.mxu0 %v2894
        %3205 = vmatpush.msra.mxu0 %v2886
        %3206 = vmatpush.msra.mxu0 %v2878
        %3207 = vmatpush.msra.mxu0 %v2870
        %3208 = vmatpush.msra.mxu0 %v2862
        %3209 = vmatpush.msra.mxu0 %v2854
        %3210 = vmatpush.msra.mxu0 %v2846
        %3211 = vmatpush.msra.mxu0 %v2838
        %3212 = vmatpush.msra.mxu0 %v2830
        %3213 = vmatpush.msra.mxu0 %v2822
        %3214 = vmatpush.msra.mxu0 %v2814
        %3215 = vmatpush.msra.mxu0 %v2806
        %3216 = vmatpush.msra.mxu0 %v2798
        %3217 = vmatpush.msra.mxu0 %v2790
        %3218 = vmatmul.f32.gmra.mxu0 %v2784
        %v3219 = vpop.f32.mrf.mxu0
        %v3220 = vadd.f32 0.0, %v3219
        %3221 = vdwg.mxu0
        %3222 = vmatpush.msra.mxu0 %v3038
        %3223 = vmatpush.msra.mxu0 %v3030
        %3224 = vmatpush.msra.mxu0 %v3022
        %3225 = vmatpush.msra.mxu0 %v3014
        %3226 = vmatpush.msra.mxu0 %v3006
        %3227 = vmatpush.msra.mxu0 %v2998
        %3228 = vmatpush.msra.mxu0 %v2990
        %3229 = vmatpush.msra.mxu0 %v2982
        %3230 = vmatpush.msra.mxu0 %v2974
        %3231 = vmatpush.msra.mxu0 %v2966
        %3232 = vmatpush.msra.mxu0 %v2958
        %3233 = vmatpush.msra.mxu0 %v2950
        %3234 = vmatpush.msra.mxu0 %v2942
        %3235 = vmatpush.msra.mxu0 %v2934
        %3236 = vmatpush.msra.mxu0 %v2926
        %3237 = vmatpush.msra.mxu0 %v2918
        %3238 = vmatmul.f32.gmra.mxu0 %v2785
        %v3239 = vpop.f32.mrf.mxu0
        %v3240 = vadd.f32 %v3220, %v3239
        %3241 = vdwg.mxu0
        %3242 = vmatpush.msra.mxu0 %v2911
        %3243 = vmatpush.msra.mxu0 %v2903
        %3244 = vmatpush.msra.mxu0 %v2895
        %3245 = vmatpush.msra.mxu0 %v2887
        %3246 = vmatpush.msra.mxu0 %v2879
        %3247 = vmatpush.msra.mxu0 %v2871
        %3248 = vmatpush.msra.mxu0 %v2863
        %3249 = vmatpush.msra.mxu0 %v2855
        %3250 = vmatpush.msra.mxu0 %v2847
        %3251 = vmatpush.msra.mxu0 %v2839
        %3252 = vmatpush.msra.mxu0 %v2831
        %3253 = vmatpush.msra.mxu0 %v2823
        %3254 = vmatpush.msra.mxu0 %v2815
        %3255 = vmatpush.msra.mxu0 %v2807
        %3256 = vmatpush.msra.mxu0 %v2799
        %3257 = vmatpush.msra.mxu0 %v2791
        %3258 = vmatmul.f32.gmra.mxu0 %v2784
        %v3259 = vpop.f32.mrf.mxu0
        %v3260 = vadd.f32 0.0, %v3259
        %3261 = vdwg.mxu0
        %3262 = vmatpush.msra.mxu0 %v3039
        %3263 = vmatpush.msra.mxu0 %v3031
        %3264 = vmatpush.msra.mxu0 %v3023
        %3265 = vmatpush.msra.mxu0 %v3015
        %3266 = vmatpush.msra.mxu0 %v3007
        %3267 = vmatpush.msra.mxu0 %v2999
        %3268 = vmatpush.msra.mxu0 %v2991
        %3269 = vmatpush.msra.mxu0 %v2983
        %3270 = vmatpush.msra.mxu0 %v2975
        %3271 = vmatpush.msra.mxu0 %v2967
        %3272 = vmatpush.msra.mxu0 %v2959
        %3273 = vmatpush.msra.mxu0 %v2951
        %3274 = vmatpush.msra.mxu0 %v2943
        %3275 = vmatpush.msra.mxu0 %v2935
        %3276 = vmatpush.msra.mxu0 %v2927
        %3277 = vmatpush.msra.mxu0 %v2919
        %3278 = vmatmul.f32.gmra.mxu0 %v2785
        %v3279 = vpop.f32.mrf.mxu0
        %v3280 = vadd.f32 %v3260, %v3279
        %3281 = vdwg.mxu0
        %3282 = vmatpush.msra.mxu0 %v2912
        %3283 = vmatpush.msra.mxu0 %v2904
        %3284 = vmatpush.msra.mxu0 %v2896
        %3285 = vmatpush.msra.mxu0 %v2888
        %3286 = vmatpush.msra.mxu0 %v2880
        %3287 = vmatpush.msra.mxu0 %v2872
        %3288 = vmatpush.msra.mxu0 %v2864
        %3289 = vmatpush.msra.mxu0 %v2856
        %3290 = vmatpush.msra.mxu0 %v2848
        %3291 = vmatpush.msra.mxu0 %v2840
        %3292 = vmatpush.msra.mxu0 %v2832
        %3293 = vmatpush.msra.mxu0 %v2824
        %3294 = vmatpush.msra.mxu0 %v2816
        %3295 = vmatpush.msra.mxu0 %v2808
        %3296 = vmatpush.msra.mxu0 %v2800
        %3297 = vmatpush.msra.mxu0 %v2792
        %3298 = vmatmul.f32.gmra.mxu0 %v2784
        %v3299 = vpop.f32.mrf.mxu0
        %v3300 = vadd.f32 0.0, %v3299
        %3301 = vdwg.mxu0
        %3302 = vmatpush.msra.mxu0 %v3040
        %3303 = vmatpush.msra.mxu0 %v3032
        %3304 = vmatpush.msra.mxu0 %v3024
        %3305 = vmatpush.msra.mxu0 %v3016
        %3306 = vmatpush.msra.mxu0 %v3008
        %3307 = vmatpush.msra.mxu0 %v3000
        %3308 = vmatpush.msra.mxu0 %v2992
        %3309 = vmatpush.msra.mxu0 %v2984
        %3310 = vmatpush.msra.mxu0 %v2976
        %3311 = vmatpush.msra.mxu0 %v2968
        %3312 = vmatpush.msra.mxu0 %v2960
        %3313 = vmatpush.msra.mxu0 %v2952
        %3314 = vmatpush.msra.mxu0 %v2944
        %3315 = vmatpush.msra.mxu0 %v2936
        %3316 = vmatpush.msra.mxu0 %v2928
        %3317 = vmatpush.msra.mxu0 %v2920
        %3318 = vmatmul.f32.gmra.mxu0 %v2785
        %v3319 = vpop.f32.mrf.mxu0
        %v3320 = vadd.f32 %v3300, %v3319
        %3321 = vdwg.mxu0
        %3322 = vmatpush.msra.mxu0 %v2913
        %3323 = vmatpush.msra.mxu0 %v2905
        %3324 = vmatpush.msra.mxu0 %v2897
        %3325 = vmatpush.msra.mxu0 %v2889
        %3326 = vmatpush.msra.mxu0 %v2881
        %3327 = vmatpush.msra.mxu0 %v2873
        %3328 = vmatpush.msra.mxu0 %v2865
        %3329 = vmatpush.msra.mxu0 %v2857
        %3330 = vmatpush.msra.mxu0 %v2849
        %3331 = vmatpush.msra.mxu0 %v2841
        %3332 = vmatpush.msra.mxu0 %v2833
        %3333 = vmatpush.msra.mxu0 %v2825
        %3334 = vmatpush.msra.mxu0 %v2817
        %3335 = vmatpush.msra.mxu0 %v2809
        %3336 = vmatpush.msra.mxu0 %v2801
        %3337 = vmatpush.msra.mxu0 %v2793
        %3338 = vmatmul.f32.gmra.mxu0 %v2784
        %v3339 = vpop.f32.mrf.mxu0
        %v3340 = vadd.f32 0.0, %v3339
        %3341 = vdwg.mxu0
        %3342 = vmatpush.msra.mxu0 %v3041
        %3343 = vmatpush.msra.mxu0 %v3033
        %3344 = vmatpush.msra.mxu0 %v3025
        %3345 = vmatpush.msra.mxu0 %v3017
        %3346 = vmatpush.msra.mxu0 %v3009
        %3347 = vmatpush.msra.mxu0 %v3001
        %3348 = vmatpush.msra.mxu0 %v2993
        %3349 = vmatpush.msra.mxu0 %v2985
        %3350 = vmatpush.msra.mxu0 %v2977
        %3351 = vmatpush.msra.mxu0 %v2969
        %3352 = vmatpush.msra.mxu0 %v2961
        %3353 = vmatpush.msra.mxu0 %v2953
        %3354 = vmatpush.msra.mxu0 %v2945
        %3355 = vmatpush.msra.mxu0 %v2937
        %3356 = vmatpush.msra.mxu0 %v2929
        %3357 = vmatpush.msra.mxu0 %v2921
        %3358 = vmatmul.f32.gmra.mxu0 %v2785
        %v3359 = vpop.f32.mrf.mxu0
        %v3360 = vadd.f32 %v3340, %v3359
        %3361 = vdwg.mxu0
        %3362 = vset.pattern.permute.xlu0 2
        %3363 = vperm.xlu0 %3362, %v327
        %v3364 = vpop.permute.xlu0 %3363
        %v3366 = vmul.f32 %v3080, %v3364
        %v3367 = vmul.f32 %v3120, %v3364
        %v3368 = vmul.f32 %v3160, %v3364
        %v3369 = vmul.f32 %v3200, %v3364
        %v3370 = vmul.f32 %v3240, %v3364
        %v3371 = vmul.f32 %v3280, %v3364
        %v3372 = vmul.f32 %v3320, %v3364
        %v3373 = vmul.f32 %v3360, %v3364
        %3374 = vset.pattern.permute.xlu0 2
        %3375 = vperm.xlu0 %3374, %v328
        %v3376 = vpop.permute.xlu0 %3375
        %v3378 = vadd.f32 %v3366, %v3376
        %v3379 = vadd.f32 %v3367, %v3376
        %v3380 = vadd.f32 %v3368, %v3376
        %v3381 = vadd.f32 %v3369, %v3376
        %v3382 = vadd.f32 %v3370, %v3376
        %v3383 = vadd.f32 %v3371, %v3376
        %v3384 = vadd.f32 %v3372, %v3376
        %v3385 = vadd.f32 %v3373, %v3376
        %v3386 = vmax.f32 %v3378, 0.0
        %v3387 = vmax.f32 %v3379, 0.0
        %v3388 = vmax.f32 %v3380, 0.0
        %v3389 = vmax.f32 %v3381, 0.0
        %v3390 = vmax.f32 %v3382, 0.0
        %v3391 = vmax.f32 %v3383, 0.0
        %v3392 = vmax.f32 %v3384, 0.0
        %v3393 = vmax.f32 %v3385, 0.0
        %v3394 = vmul.f32 %v3386, %v1920
        %v3395 = vmul.f32 %v3387, %v1921
        %v3396 = vmul.f32 %v3388, %v1922
        %v3397 = vmul.f32 %v3389, %v1923
        %v3398 = vmul.f32 %v3390, %v1924
        %v3399 = vmul.f32 %v3391, %v1925
        %v3400 = vmul.f32 %v3392, %v1926
        %v3401 = vmul.f32 %v3393, %v1927
        %3402 = vrot.lane.b32.xlu0 %v3394, 111
        %v3403 = vpop.permute.xlu0 %3402
        %3404 = vrot.lane.b32.xlu0 %v3395, 111
        %v3405 = vpop.permute.xlu0 %3404
        %3406 = vrot.lane.b32.xlu0 %v3396, 111
        %v3407 = vpop.permute.xlu0 %3406
        %3408 = vrot.lane.b32.xlu0 %v3397, 111
        %v3409 = vpop.permute.xlu0 %3408
        %3410 = vrot.lane.b32.xlu0 %v3398, 111
        %v3411 = vpop.permute.xlu0 %3410
        %3412 = vrot.lane.b32.xlu0 %v3399, 111
        %v3413 = vpop.permute.xlu0 %3412
        %3414 = vrot.lane.b32.xlu0 %v3400, 111
        %v3415 = vpop.permute.xlu0 %3414
        %3416 = vrot.lane.b32.xlu0 %v3401, 111
        %v3417 = vpop.permute.xlu0 %3416
        %v3418 = vsel %vm395, %v3415, %v3417
        %v3419 = vsel %vm395, %v3413, %v3415
        %v3420 = vsel %vm395, %v3411, %v3413
        %v3421 = vsel %vm395, %v3409, %v3411
        %v3422 = vsel %vm395, %v3407, %v3409
        %v3423 = vsel %vm395, %v3405, %v3407
        %v3424 = vsel %vm395, %v3403, %v3405
        %v3425 = vsel %vm395, %v3417, %v3403
        %3426 = vst [vmem:[#allocation2] sm:$0xff] %v3425
        %3427 = vst [vmem:[#allocation2 + $0x8] sm:$0xff] %v3424
        %3428 = vst [vmem:[#allocation2 + $0x10] sm:$0xff] %v3423
        %3429 = vst [vmem:[#allocation2 + $0x18] sm:$0xff] %v3422
        %3430 = vst [vmem:[#allocation2 + $0x20] sm:$0xff] %v3421
        %3431 = vst [vmem:[#allocation2 + $0x28] sm:$0xff] %v3420
        %3432 = vst [vmem:[#allocation2 + $0x30] sm:$0xff] %v3419
        %3433 = vst [vmem:[#allocation2 + $0x38] sm:$0xff] %v3418
        %3434 = vrot.lane.b32.xlu0 %v3394, 110
        %v3435 = vpop.permute.xlu0 %3434
        %3436 = vrot.lane.b32.xlu0 %v3395, 110
        %v3437 = vpop.permute.xlu0 %3436
        %3438 = vrot.lane.b32.xlu0 %v3396, 110
        %v3439 = vpop.permute.xlu0 %3438
        %3440 = vrot.lane.b32.xlu0 %v3397, 110
        %v3441 = vpop.permute.xlu0 %3440
        %3442 = vrot.lane.b32.xlu0 %v3398, 110
        %v3443 = vpop.permute.xlu0 %3442
        %3444 = vrot.lane.b32.xlu0 %v3399, 110
        %v3445 = vpop.permute.xlu0 %3444
        %3446 = vrot.lane.b32.xlu0 %v3400, 110
        %v3447 = vpop.permute.xlu0 %3446
        %3448 = vrot.lane.b32.xlu0 %v3401, 110
        %v3449 = vpop.permute.xlu0 %3448
        %v3450 = vsel %vm428, %v3447, %v3449
        %v3451 = vsel %vm428, %v3445, %v3447
        %v3452 = vsel %vm428, %v3443, %v3445
        %v3453 = vsel %vm428, %v3441, %v3443
        %v3454 = vsel %vm428, %v3439, %v3441
        %v3455 = vsel %vm428, %v3437, %v3439
        %v3456 = vsel %vm428, %v3435, %v3437
        %v3457 = vsel %vm428, %v3449, %v3435
        %3458 = vst [vmem:[#allocation2 + $0x40] sm:$0xff] %v3457
        %3459 = vst [vmem:[#allocation2 + $0x48] sm:$0xff] %v3456
        %3460 = vst [vmem:[#allocation2 + $0x50] sm:$0xff] %v3455
        %3461 = vst [vmem:[#allocation2 + $0x58] sm:$0xff] %v3454
        %3462 = vst [vmem:[#allocation2 + $0x60] sm:$0xff] %v3453
        %3463 = vst [vmem:[#allocation2 + $0x68] sm:$0xff] %v3452
        %3464 = vst [vmem:[#allocation2 + $0x70] sm:$0xff] %v3451
        %3465 = vst [vmem:[#allocation2 + $0x78] sm:$0xff] %v3450
        %3466 = vrot.lane.b32.xlu0 %v3394, 109
        %v3467 = vpop.permute.xlu0 %3466
        %3468 = vrot.lane.b32.xlu0 %v3395, 109
        %v3469 = vpop.permute.xlu0 %3468
        %3470 = vrot.lane.b32.xlu0 %v3396, 109
        %v3471 = vpop.permute.xlu0 %3470
        %3472 = vrot.lane.b32.xlu0 %v3397, 109
        %v3473 = vpop.permute.xlu0 %3472
        %3474 = vrot.lane.b32.xlu0 %v3398, 109
        %v3475 = vpop.permute.xlu0 %3474
        %3476 = vrot.lane.b32.xlu0 %v3399, 109
        %v3477 = vpop.permute.xlu0 %3476
        %3478 = vrot.lane.b32.xlu0 %v3400, 109
        %v3479 = vpop.permute.xlu0 %3478
        %3480 = vrot.lane.b32.xlu0 %v3401, 109
        %v3481 = vpop.permute.xlu0 %3480
        %v3482 = vsel %vm461, %v3479, %v3481
        %v3483 = vsel %vm461, %v3477, %v3479
        %v3484 = vsel %vm461, %v3475, %v3477
        %v3485 = vsel %vm461, %v3473, %v3475
        %v3486 = vsel %vm461, %v3471, %v3473
        %v3487 = vsel %vm461, %v3469, %v3471
        %v3488 = vsel %vm461, %v3467, %v3469
        %v3489 = vsel %vm461, %v3481, %v3467
        %3490 = vst [vmem:[#allocation2 + $0x80] sm:$0xff] %v3489
        %3491 = vst [vmem:[#allocation2 + $0x88] sm:$0xff] %v3488
        %3492 = vst [vmem:[#allocation2 + $0x90] sm:$0xff] %v3487
        %3493 = vst [vmem:[#allocation2 + $0x98] sm:$0xff] %v3486
        %3494 = vst [vmem:[#allocation2 + $0xa0] sm:$0xff] %v3485
        %3495 = vst [vmem:[#allocation2 + $0xa8] sm:$0xff] %v3484
        %3496 = vst [vmem:[#allocation2 + $0xb0] sm:$0xff] %v3483
        %3497 = vst [vmem:[#allocation2 + $0xb8] sm:$0xff] %v3482
        %3498 = vrot.lane.b32.xlu0 %v3394, 101
        %v3499 = vpop.permute.xlu0 %3498
        %3500 = vrot.lane.b32.xlu0 %v3395, 101
        %v3501 = vpop.permute.xlu0 %3500
        %3502 = vrot.lane.b32.xlu0 %v3396, 101
        %v3503 = vpop.permute.xlu0 %3502
        %3504 = vrot.lane.b32.xlu0 %v3397, 101
        %v3505 = vpop.permute.xlu0 %3504
        %3506 = vrot.lane.b32.xlu0 %v3398, 101
        %v3507 = vpop.permute.xlu0 %3506
        %3508 = vrot.lane.b32.xlu0 %v3399, 101
        %v3509 = vpop.permute.xlu0 %3508
        %3510 = vrot.lane.b32.xlu0 %v3400, 101
        %v3511 = vpop.permute.xlu0 %3510
        %3512 = vrot.lane.b32.xlu0 %v3401, 101
        %v3513 = vpop.permute.xlu0 %3512
        %v3514 = vsel %vm494, %v3511, %v3513
        %v3515 = vsel %vm494, %v3509, %v3511
        %v3516 = vsel %vm494, %v3507, %v3509
        %v3517 = vsel %vm494, %v3505, %v3507
        %v3518 = vsel %vm494, %v3503, %v3505
        %v3519 = vsel %vm494, %v3501, %v3503
        %v3520 = vsel %vm494, %v3499, %v3501
        %v3521 = vsel %vm494, %v3513, %v3499
        %3522 = vst [vmem:[#allocation2 + $0xc0] sm:$0xff] %v3521
        %3523 = vst [vmem:[#allocation2 + $0xc8] sm:$0xff] %v3520
        %3524 = vst [vmem:[#allocation2 + $0xd0] sm:$0xff] %v3519
        %3525 = vst [vmem:[#allocation2 + $0xd8] sm:$0xff] %v3518
        %3526 = vst [vmem:[#allocation2 + $0xe0] sm:$0xff] %v3517
        %3527 = vst [vmem:[#allocation2 + $0xe8] sm:$0xff] %v3516
        %3528 = vst [vmem:[#allocation2 + $0xf0] sm:$0xff] %v3515
        %3529 = vst [vmem:[#allocation2 + $0xf8] sm:$0xff] %v3514
        %3530 = vrot.lane.b32.xlu0 %v3394, 100
        %v3531 = vpop.permute.xlu0 %3530
        %3532 = vrot.lane.b32.xlu0 %v3395, 100
        %v3533 = vpop.permute.xlu0 %3532
        %3534 = vrot.lane.b32.xlu0 %v3396, 100
        %v3535 = vpop.permute.xlu0 %3534
        %3536 = vrot.lane.b32.xlu0 %v3397, 100
        %v3537 = vpop.permute.xlu0 %3536
        %3538 = vrot.lane.b32.xlu0 %v3398, 100
        %v3539 = vpop.permute.xlu0 %3538
        %3540 = vrot.lane.b32.xlu0 %v3399, 100
        %v3541 = vpop.permute.xlu0 %3540
        %3542 = vrot.lane.b32.xlu0 %v3400, 100
        %v3543 = vpop.permute.xlu0 %3542
        %3544 = vrot.lane.b32.xlu0 %v3401, 100
        %v3545 = vpop.permute.xlu0 %3544
        %v3546 = vsel %vm527, %v3543, %v3545
        %v3547 = vsel %vm527, %v3541, %v3543
        %v3548 = vsel %vm527, %v3539, %v3541
        %v3549 = vsel %vm527, %v3537, %v3539
        %v3550 = vsel %vm527, %v3535, %v3537
        %v3551 = vsel %vm527, %v3533, %v3535
        %v3552 = vsel %vm527, %v3531, %v3533
        %v3553 = vsel %vm527, %v3545, %v3531
        %3554 = vst [vmem:[#allocation2 + $0x100] sm:$0xff] %v3553
        %3555 = vst [vmem:[#allocation2 + $0x108] sm:$0xff] %v3552
        %3556 = vst [vmem:[#allocation2 + $0x110] sm:$0xff] %v3551
        %3557 = vst [vmem:[#allocation2 + $0x118] sm:$0xff] %v3550
        %3558 = vst [vmem:[#allocation2 + $0x120] sm:$0xff] %v3549
        %3559 = vst [vmem:[#allocation2 + $0x128] sm:$0xff] %v3548
        %3560 = vst [vmem:[#allocation2 + $0x130] sm:$0xff] %v3547
        %3561 = vst [vmem:[#allocation2 + $0x138] sm:$0xff] %v3546
        %3562 = vrot.lane.b32.xlu0 %v3394, 99
        %v3563 = vpop.permute.xlu0 %3562
        %3564 = vrot.lane.b32.xlu0 %v3395, 99
        %v3565 = vpop.permute.xlu0 %3564
        %3566 = vrot.lane.b32.xlu0 %v3396, 99
        %v3567 = vpop.permute.xlu0 %3566
        %3568 = vrot.lane.b32.xlu0 %v3397, 99
        %v3569 = vpop.permute.xlu0 %3568
        %3570 = vrot.lane.b32.xlu0 %v3398, 99
        %v3571 = vpop.permute.xlu0 %3570
        %3572 = vrot.lane.b32.xlu0 %v3399, 99
        %v3573 = vpop.permute.xlu0 %3572
        %3574 = vrot.lane.b32.xlu0 %v3400, 99
        %v3575 = vpop.permute.xlu0 %3574
        %3576 = vrot.lane.b32.xlu0 %v3401, 99
        %v3577 = vpop.permute.xlu0 %3576
        %v3578 = vsel %vm560, %v3575, %v3577
        %v3579 = vsel %vm560, %v3573, %v3575
        %v3580 = vsel %vm560, %v3571, %v3573
        %v3581 = vsel %vm560, %v3569, %v3571
        %v3582 = vsel %vm560, %v3567, %v3569
        %v3583 = vsel %vm560, %v3565, %v3567
        %v3584 = vsel %vm560, %v3563, %v3565
        %v3585 = vsel %vm560, %v3577, %v3563
        %3586 = vst [vmem:[#allocation2 + $0x140] sm:$0xff] %v3585
        %3587 = vst [vmem:[#allocation2 + $0x148] sm:$0xff] %v3584
        %3588 = vst [vmem:[#allocation2 + $0x150] sm:$0xff] %v3583
        %3589 = vst [vmem:[#allocation2 + $0x158] sm:$0xff] %v3582
        %3590 = vst [vmem:[#allocation2 + $0x160] sm:$0xff] %v3581
        %3591 = vst [vmem:[#allocation2 + $0x168] sm:$0xff] %v3580
        %3592 = vst [vmem:[#allocation2 + $0x170] sm:$0xff] %v3579
        %3593 = vst [vmem:[#allocation2 + $0x178] sm:$0xff] %v3578
        %3594 = vrot.lane.b32.xlu0 %v3394, 91
        %v3595 = vpop.permute.xlu0 %3594
        %3596 = vrot.lane.b32.xlu0 %v3395, 91
        %v3597 = vpop.permute.xlu0 %3596
        %3598 = vrot.lane.b32.xlu0 %v3396, 91
        %v3599 = vpop.permute.xlu0 %3598
        %3600 = vrot.lane.b32.xlu0 %v3397, 91
        %v3601 = vpop.permute.xlu0 %3600
        %3602 = vrot.lane.b32.xlu0 %v3398, 91
        %v3603 = vpop.permute.xlu0 %3602
        %3604 = vrot.lane.b32.xlu0 %v3399, 91
        %v3605 = vpop.permute.xlu0 %3604
        %3606 = vrot.lane.b32.xlu0 %v3400, 91
        %v3607 = vpop.permute.xlu0 %3606
        %3608 = vrot.lane.b32.xlu0 %v3401, 91
        %v3609 = vpop.permute.xlu0 %3608
        %v3610 = vsel %vm593, %v3607, %v3609
        %v3611 = vsel %vm593, %v3605, %v3607
        %v3612 = vsel %vm593, %v3603, %v3605
        %v3613 = vsel %vm593, %v3601, %v3603
        %v3614 = vsel %vm593, %v3599, %v3601
        %v3615 = vsel %vm593, %v3597, %v3599
        %v3616 = vsel %vm593, %v3595, %v3597
        %v3617 = vsel %vm593, %v3609, %v3595
        %3618 = vst [vmem:[#allocation2 + $0x180] sm:$0xff] %v3617
        %3619 = vst [vmem:[#allocation2 + $0x188] sm:$0xff] %v3616
        %3620 = vst [vmem:[#allocation2 + $0x190] sm:$0xff] %v3615
        %3621 = vst [vmem:[#allocation2 + $0x198] sm:$0xff] %v3614
        %3622 = vst [vmem:[#allocation2 + $0x1a0] sm:$0xff] %v3613
        %3623 = vst [vmem:[#allocation2 + $0x1a8] sm:$0xff] %v3612
        %3624 = vst [vmem:[#allocation2 + $0x1b0] sm:$0xff] %v3611
        %3625 = vst [vmem:[#allocation2 + $0x1b8] sm:$0xff] %v3610
        %3626 = vrot.lane.b32.xlu0 %v3394, 90
        %v3627 = vpop.permute.xlu0 %3626
        %3628 = vrot.lane.b32.xlu0 %v3395, 90
        %v3629 = vpop.permute.xlu0 %3628
        %3630 = vrot.lane.b32.xlu0 %v3396, 90
        %v3631 = vpop.permute.xlu0 %3630
        %3632 = vrot.lane.b32.xlu0 %v3397, 90
        %v3633 = vpop.permute.xlu0 %3632
        %3634 = vrot.lane.b32.xlu0 %v3398, 90
        %v3635 = vpop.permute.xlu0 %3634
        %3636 = vrot.lane.b32.xlu0 %v3399, 90
        %v3637 = vpop.permute.xlu0 %3636
        %3638 = vrot.lane.b32.xlu0 %v3400, 90
        %v3639 = vpop.permute.xlu0 %3638
        %3640 = vrot.lane.b32.xlu0 %v3401, 90
        %v3641 = vpop.permute.xlu0 %3640
        %v3642 = vsel %vm626, %v3639, %v3641
        %v3643 = vsel %vm626, %v3637, %v3639
        %v3644 = vsel %vm626, %v3635, %v3637
        %v3645 = vsel %vm626, %v3633, %v3635
        %v3646 = vsel %vm626, %v3631, %v3633
        %v3647 = vsel %vm626, %v3629, %v3631
        %v3648 = vsel %vm626, %v3627, %v3629
        %v3649 = vsel %vm626, %v3641, %v3627
        %3650 = vst [vmem:[#allocation2 + $0x1c0] sm:$0xff] %v3649
        %3651 = vst [vmem:[#allocation2 + $0x1c8] sm:$0xff] %v3648
        %3652 = vst [vmem:[#allocation2 + $0x1d0] sm:$0xff] %v3647
        %3653 = vst [vmem:[#allocation2 + $0x1d8] sm:$0xff] %v3646
        %3654 = vst [vmem:[#allocation2 + $0x1e0] sm:$0xff] %v3645
        %3655 = vst [vmem:[#allocation2 + $0x1e8] sm:$0xff] %v3644
        %3656 = vst [vmem:[#allocation2 + $0x1f0] sm:$0xff] %v3643
        %3657 = vst [vmem:[#allocation2 + $0x1f8] sm:$0xff] %v3642
        %3658 = vrot.lane.b32.xlu0 %v3394, 89
        %v3659 = vpop.permute.xlu0 %3658
        %3660 = vrot.lane.b32.xlu0 %v3395, 89
        %v3661 = vpop.permute.xlu0 %3660
        %3662 = vrot.lane.b32.xlu0 %v3396, 89
        %v3663 = vpop.permute.xlu0 %3662
        %3664 = vrot.lane.b32.xlu0 %v3397, 89
        %v3665 = vpop.permute.xlu0 %3664
        %3666 = vrot.lane.b32.xlu0 %v3398, 89
        %v3667 = vpop.permute.xlu0 %3666
        %3668 = vrot.lane.b32.xlu0 %v3399, 89
        %v3669 = vpop.permute.xlu0 %3668
        %3670 = vrot.lane.b32.xlu0 %v3400, 89
        %v3671 = vpop.permute.xlu0 %3670
        %3672 = vrot.lane.b32.xlu0 %v3401, 89
        %v3673 = vpop.permute.xlu0 %3672
        %v3674 = vsel %vm659, %v3671, %v3673
        %v3675 = vsel %vm659, %v3669, %v3671
        %v3676 = vsel %vm659, %v3667, %v3669
        %v3677 = vsel %vm659, %v3665, %v3667
        %v3678 = vsel %vm659, %v3663, %v3665
        %v3679 = vsel %vm659, %v3661, %v3663
        %v3680 = vsel %vm659, %v3659, %v3661
        %v3681 = vsel %vm659, %v3673, %v3659
        %3682 = vst [vmem:[#allocation2 + $0x200] sm:$0xff] %v3681
        %3683 = vst [vmem:[#allocation2 + $0x208] sm:$0xff] %v3680
        %3684 = vst [vmem:[#allocation2 + $0x210] sm:$0xff] %v3679
        %3685 = vst [vmem:[#allocation2 + $0x218] sm:$0xff] %v3678
        %3686 = vst [vmem:[#allocation2 + $0x220] sm:$0xff] %v3677
        %3687 = vst [vmem:[#allocation2 + $0x228] sm:$0xff] %v3676
        %3688 = vst [vmem:[#allocation2 + $0x230] sm:$0xff] %v3675
        %3689 = vst [vmem:[#allocation2 + $0x238] sm:$0xff] %v3674
        %3690 = vrot.lane.b32.xlu0 %v3394, 11
        %v3691 = vpop.permute.xlu0 %3690
        %3692 = vrot.lane.b32.xlu0 %v3395, 11
        %v3693 = vpop.permute.xlu0 %3692
        %3694 = vrot.lane.b32.xlu0 %v3396, 11
        %v3695 = vpop.permute.xlu0 %3694
        %3696 = vrot.lane.b32.xlu0 %v3397, 11
        %v3697 = vpop.permute.xlu0 %3696
        %3698 = vrot.lane.b32.xlu0 %v3398, 11
        %v3699 = vpop.permute.xlu0 %3698
        %3700 = vrot.lane.b32.xlu0 %v3399, 11
        %v3701 = vpop.permute.xlu0 %3700
        %3702 = vrot.lane.b32.xlu0 %v3400, 11
        %v3703 = vpop.permute.xlu0 %3702
        %3704 = vrot.lane.b32.xlu0 %v3401, 11
        %v3705 = vpop.permute.xlu0 %3704
        %v3706 = vsel %vm692, %v3703, %v3705
        %v3707 = vsel %vm692, %v3701, %v3703
        %v3708 = vsel %vm692, %v3699, %v3701
        %v3709 = vsel %vm692, %v3697, %v3699
        %v3710 = vsel %vm692, %v3695, %v3697
        %v3711 = vsel %vm692, %v3693, %v3695
        %v3712 = vsel %vm692, %v3691, %v3693
        %v3713 = vsel %vm692, %v3705, %v3691
        %3714 = vst [vmem:[#allocation2 + $0x240] sm:$0xff] %v3713
        %3715 = vst [vmem:[#allocation2 + $0x248] sm:$0xff] %v3712
        %3716 = vst [vmem:[#allocation2 + $0x250] sm:$0xff] %v3711
        %3717 = vst [vmem:[#allocation2 + $0x258] sm:$0xff] %v3710
        %3718 = vst [vmem:[#allocation2 + $0x260] sm:$0xff] %v3709
        %3719 = vst [vmem:[#allocation2 + $0x268] sm:$0xff] %v3708
        %3720 = vst [vmem:[#allocation2 + $0x270] sm:$0xff] %v3707
        %3721 = vst [vmem:[#allocation2 + $0x278] sm:$0xff] %v3706
        %3722 = vrot.lane.b32.xlu0 %v3394, 10
        %v3723 = vpop.permute.xlu0 %3722
        %3724 = vrot.lane.b32.xlu0 %v3395, 10
        %v3725 = vpop.permute.xlu0 %3724
        %3726 = vrot.lane.b32.xlu0 %v3396, 10
        %v3727 = vpop.permute.xlu0 %3726
        %3728 = vrot.lane.b32.xlu0 %v3397, 10
        %v3729 = vpop.permute.xlu0 %3728
        %3730 = vrot.lane.b32.xlu0 %v3398, 10
        %v3731 = vpop.permute.xlu0 %3730
        %3732 = vrot.lane.b32.xlu0 %v3399, 10
        %v3733 = vpop.permute.xlu0 %3732
        %3734 = vrot.lane.b32.xlu0 %v3400, 10
        %v3735 = vpop.permute.xlu0 %3734
        %3736 = vrot.lane.b32.xlu0 %v3401, 10
        %v3737 = vpop.permute.xlu0 %3736
        %v3738 = vsel %vm725, %v3735, %v3737
        %v3739 = vsel %vm725, %v3733, %v3735
        %v3740 = vsel %vm725, %v3731, %v3733
        %v3741 = vsel %vm725, %v3729, %v3731
        %v3742 = vsel %vm725, %v3727, %v3729
        %v3743 = vsel %vm725, %v3725, %v3727
        %v3744 = vsel %vm725, %v3723, %v3725
        %v3745 = vsel %vm725, %v3737, %v3723
        %3746 = vst [vmem:[#allocation2 + $0x280] sm:$0xff] %v3745
        %3747 = vst [vmem:[#allocation2 + $0x288] sm:$0xff] %v3744
        %3748 = vst [vmem:[#allocation2 + $0x290] sm:$0xff] %v3743
        %3749 = vst [vmem:[#allocation2 + $0x298] sm:$0xff] %v3742
        %3750 = vst [vmem:[#allocation2 + $0x2a0] sm:$0xff] %v3741
        %3751 = vst [vmem:[#allocation2 + $0x2a8] sm:$0xff] %v3740
        %3752 = vst [vmem:[#allocation2 + $0x2b0] sm:$0xff] %v3739
        %3753 = vst [vmem:[#allocation2 + $0x2b8] sm:$0xff] %v3738
        %3754 = vrot.lane.b32.xlu0 %v3394, 9
        %v3755 = vpop.permute.xlu0 %3754
        %3756 = vrot.lane.b32.xlu0 %v3395, 9
        %v3757 = vpop.permute.xlu0 %3756
        %3758 = vrot.lane.b32.xlu0 %v3396, 9
        %v3759 = vpop.permute.xlu0 %3758
        %3760 = vrot.lane.b32.xlu0 %v3397, 9
        %v3761 = vpop.permute.xlu0 %3760
        %3762 = vrot.lane.b32.xlu0 %v3398, 9
        %v3763 = vpop.permute.xlu0 %3762
        %3764 = vrot.lane.b32.xlu0 %v3399, 9
        %v3765 = vpop.permute.xlu0 %3764
        %3766 = vrot.lane.b32.xlu0 %v3400, 9
        %v3767 = vpop.permute.xlu0 %3766
        %3768 = vrot.lane.b32.xlu0 %v3401, 9
        %v3769 = vpop.permute.xlu0 %3768
        %v3770 = vsel %vm758, %v3767, %v3769
        %v3771 = vsel %vm758, %v3765, %v3767
        %v3772 = vsel %vm758, %v3763, %v3765
        %v3773 = vsel %vm758, %v3761, %v3763
        %v3774 = vsel %vm758, %v3759, %v3761
        %v3775 = vsel %vm758, %v3757, %v3759
        %v3776 = vsel %vm758, %v3755, %v3757
        %v3777 = vsel %vm758, %v3769, %v3755
        %3778 = vst [vmem:[#allocation2 + $0x2c0] sm:$0xff] %v3777
        %3779 = vst [vmem:[#allocation2 + $0x2c8] sm:$0xff] %v3776
        %3780 = vst [vmem:[#allocation2 + $0x2d0] sm:$0xff] %v3775
        %3781 = vst [vmem:[#allocation2 + $0x2d8] sm:$0xff] %v3774
        %3782 = vst [vmem:[#allocation2 + $0x2e0] sm:$0xff] %v3773
        %3783 = vst [vmem:[#allocation2 + $0x2e8] sm:$0xff] %v3772
        %3784 = vst [vmem:[#allocation2 + $0x2f0] sm:$0xff] %v3771
        %3785 = vst [vmem:[#allocation2 + $0x2f8] sm:$0xff] %v3770
        %3786 = vrot.lane.b32.xlu0 %v3394, 1
        %v3787 = vpop.permute.xlu0 %3786
        %3788 = vrot.lane.b32.xlu0 %v3395, 1
        %v3789 = vpop.permute.xlu0 %3788
        %3790 = vrot.lane.b32.xlu0 %v3396, 1
        %v3791 = vpop.permute.xlu0 %3790
        %3792 = vrot.lane.b32.xlu0 %v3397, 1
        %v3793 = vpop.permute.xlu0 %3792
        %3794 = vrot.lane.b32.xlu0 %v3398, 1
        %v3795 = vpop.permute.xlu0 %3794
        %3796 = vrot.lane.b32.xlu0 %v3399, 1
        %v3797 = vpop.permute.xlu0 %3796
        %3798 = vrot.lane.b32.xlu0 %v3400, 1
        %v3799 = vpop.permute.xlu0 %3798
        %3800 = vrot.lane.b32.xlu0 %v3401, 1
        %v3801 = vpop.permute.xlu0 %3800
        %v3802 = vsel %vm791, %v3799, %v3801
        %v3803 = vsel %vm791, %v3797, %v3799
        %v3804 = vsel %vm791, %v3795, %v3797
        %v3805 = vsel %vm791, %v3793, %v3795
        %v3806 = vsel %vm791, %v3791, %v3793
        %v3807 = vsel %vm791, %v3789, %v3791
        %v3808 = vsel %vm791, %v3787, %v3789
        %v3809 = vsel %vm791, %v3801, %v3787
        %3810 = vst [vmem:[#allocation2 + $0x300] sm:$0xff] %v3809
        %3811 = vst [vmem:[#allocation2 + $0x308] sm:$0xff] %v3808
        %3812 = vst [vmem:[#allocation2 + $0x310] sm:$0xff] %v3807
        %3813 = vst [vmem:[#allocation2 + $0x318] sm:$0xff] %v3806
        %3814 = vst [vmem:[#allocation2 + $0x320] sm:$0xff] %v3805
        %3815 = vst [vmem:[#allocation2 + $0x328] sm:$0xff] %v3804
        %3816 = vst [vmem:[#allocation2 + $0x330] sm:$0xff] %v3803
        %3817 = vst [vmem:[#allocation2 + $0x338] sm:$0xff] %v3802
        %3818 = vst [vmem:[#allocation2 + $0x340] sm:$0xff] %v3394
        %3819 = vst [vmem:[#allocation2 + $0x348] sm:$0xff] %v3395
        %3820 = vst [vmem:[#allocation2 + $0x350] sm:$0xff] %v3396
        %3821 = vst [vmem:[#allocation2 + $0x358] sm:$0xff] %v3397
        %3822 = vst [vmem:[#allocation2 + $0x360] sm:$0xff] %v3398
        %3823 = vst [vmem:[#allocation2 + $0x368] sm:$0xff] %v3399
        %3824 = vst [vmem:[#allocation2 + $0x370] sm:$0xff] %v3400
        %3825 = vst [vmem:[#allocation2 + $0x378] sm:$0xff] %v3401
        %3826 = vrot.lane.b32.xlu0 %v3394, 127
        %v3827 = vpop.permute.xlu0 %3826
        %3828 = vrot.lane.b32.xlu0 %v3395, 127
        %v3829 = vpop.permute.xlu0 %3828
        %3830 = vrot.lane.b32.xlu0 %v3396, 127
        %v3831 = vpop.permute.xlu0 %3830
        %3832 = vrot.lane.b32.xlu0 %v3397, 127
        %v3833 = vpop.permute.xlu0 %3832
        %3834 = vrot.lane.b32.xlu0 %v3398, 127
        %v3835 = vpop.permute.xlu0 %3834
        %3836 = vrot.lane.b32.xlu0 %v3399, 127
        %v3837 = vpop.permute.xlu0 %3836
        %3838 = vrot.lane.b32.xlu0 %v3400, 127
        %v3839 = vpop.permute.xlu0 %3838
        %3840 = vrot.lane.b32.xlu0 %v3401, 127
        %v3841 = vpop.permute.xlu0 %3840
        %v3842 = vsel %vm832, %v3839, %v3841
        %v3843 = vsel %vm832, %v3837, %v3839
        %v3844 = vsel %vm832, %v3835, %v3837
        %v3845 = vsel %vm832, %v3833, %v3835
        %v3846 = vsel %vm832, %v3831, %v3833
        %v3847 = vsel %vm832, %v3829, %v3831
        %v3848 = vsel %vm832, %v3827, %v3829
        %v3849 = vsel %vm832, %v3841, %v3827
        %3850 = vst [vmem:[#allocation2 + $0x380] sm:$0xff] %v3848
        %3851 = vst [vmem:[#allocation2 + $0x388] sm:$0xff] %v3847
        %3852 = vst [vmem:[#allocation2 + $0x390] sm:$0xff] %v3846
        %3853 = vst [vmem:[#allocation2 + $0x398] sm:$0xff] %v3845
        %3854 = vst [vmem:[#allocation2 + $0x3a0] sm:$0xff] %v3844
        %3855 = vst [vmem:[#allocation2 + $0x3a8] sm:$0xff] %v3843
        %3856 = vst [vmem:[#allocation2 + $0x3b0] sm:$0xff] %v3842
        %3857 = vst [vmem:[#allocation2 + $0x3b8] sm:$0xff] %v3849
        %3858 = vrot.lane.b32.xlu0 %v3394, 119
        %v3859 = vpop.permute.xlu0 %3858
        %3860 = vrot.lane.b32.xlu0 %v3395, 119
        %v3861 = vpop.permute.xlu0 %3860
        %3862 = vrot.lane.b32.xlu0 %v3396, 119
        %v3863 = vpop.permute.xlu0 %3862
        %3864 = vrot.lane.b32.xlu0 %v3397, 119
        %v3865 = vpop.permute.xlu0 %3864
        %3866 = vrot.lane.b32.xlu0 %v3398, 119
        %v3867 = vpop.permute.xlu0 %3866
        %3868 = vrot.lane.b32.xlu0 %v3399, 119
        %v3869 = vpop.permute.xlu0 %3868
        %3870 = vrot.lane.b32.xlu0 %v3400, 119
        %v3871 = vpop.permute.xlu0 %3870
        %3872 = vrot.lane.b32.xlu0 %v3401, 119
        %v3873 = vpop.permute.xlu0 %3872
        %v3874 = vsel %vm865, %v3871, %v3873
        %v3875 = vsel %vm865, %v3869, %v3871
        %v3876 = vsel %vm865, %v3867, %v3869
        %v3877 = vsel %vm865, %v3865, %v3867
        %v3878 = vsel %vm865, %v3863, %v3865
        %v3879 = vsel %vm865, %v3861, %v3863
        %v3880 = vsel %vm865, %v3859, %v3861
        %v3881 = vsel %vm865, %v3873, %v3859
        %3882 = vst [vmem:[#allocation2 + $0x3c0] sm:$0xff] %v3880
        %3883 = vst [vmem:[#allocation2 + $0x3c8] sm:$0xff] %v3879
        %3884 = vst [vmem:[#allocation2 + $0x3d0] sm:$0xff] %v3878
        %3885 = vst [vmem:[#allocation2 + $0x3d8] sm:$0xff] %v3877
        %3886 = vst [vmem:[#allocation2 + $0x3e0] sm:$0xff] %v3876
        %3887 = vst [vmem:[#allocation2 + $0x3e8] sm:$0xff] %v3875
        %3888 = vst [vmem:[#allocation2 + $0x3f0] sm:$0xff] %v3874
        %3889 = vst [vmem:[#allocation2 + $0x3f8] sm:$0xff] %v3881
        %3890 = vrot.lane.b32.xlu0 %v3394, 118
        %v3891 = vpop.permute.xlu0 %3890
        %3892 = vrot.lane.b32.xlu0 %v3395, 118
        %v3893 = vpop.permute.xlu0 %3892
        %3894 = vrot.lane.b32.xlu0 %v3396, 118
        %v3895 = vpop.permute.xlu0 %3894
        %3896 = vrot.lane.b32.xlu0 %v3397, 118
        %v3897 = vpop.permute.xlu0 %3896
        %3898 = vrot.lane.b32.xlu0 %v3398, 118
        %v3899 = vpop.permute.xlu0 %3898
        %3900 = vrot.lane.b32.xlu0 %v3399, 118
        %v3901 = vpop.permute.xlu0 %3900
        %3902 = vrot.lane.b32.xlu0 %v3400, 118
        %v3903 = vpop.permute.xlu0 %3902
        %3904 = vrot.lane.b32.xlu0 %v3401, 118
        %v3905 = vpop.permute.xlu0 %3904
        %v3906 = vsel %vm898, %v3903, %v3905
        %v3907 = vsel %vm898, %v3901, %v3903
        %v3908 = vsel %vm898, %v3899, %v3901
        %v3909 = vsel %vm898, %v3897, %v3899
        %v3910 = vsel %vm898, %v3895, %v3897
        %v3911 = vsel %vm898, %v3893, %v3895
        %v3912 = vsel %vm898, %v3891, %v3893
        %v3913 = vsel %vm898, %v3905, %v3891
        %3914 = vst [vmem:[#allocation2 + $0x400] sm:$0xff] %v3912
        %3915 = vst [vmem:[#allocation2 + $0x408] sm:$0xff] %v3911
        %3916 = vst [vmem:[#allocation2 + $0x410] sm:$0xff] %v3910
        %3917 = vst [vmem:[#allocation2 + $0x418] sm:$0xff] %v3909
        %3918 = vst [vmem:[#allocation2 + $0x420] sm:$0xff] %v3908
        %3919 = vst [vmem:[#allocation2 + $0x428] sm:$0xff] %v3907
        %3920 = vst [vmem:[#allocation2 + $0x430] sm:$0xff] %v3906
        %3921 = vst [vmem:[#allocation2 + $0x438] sm:$0xff] %v3913
        %3922 = vrot.lane.b32.xlu0 %v3394, 117
        %v3923 = vpop.permute.xlu0 %3922
        %3924 = vrot.lane.b32.xlu0 %v3395, 117
        %v3925 = vpop.permute.xlu0 %3924
        %3926 = vrot.lane.b32.xlu0 %v3396, 117
        %v3927 = vpop.permute.xlu0 %3926
        %3928 = vrot.lane.b32.xlu0 %v3397, 117
        %v3929 = vpop.permute.xlu0 %3928
        %3930 = vrot.lane.b32.xlu0 %v3398, 117
        %v3931 = vpop.permute.xlu0 %3930
        %3932 = vrot.lane.b32.xlu0 %v3399, 117
        %v3933 = vpop.permute.xlu0 %3932
        %3934 = vrot.lane.b32.xlu0 %v3400, 117
        %v3935 = vpop.permute.xlu0 %3934
        %3936 = vrot.lane.b32.xlu0 %v3401, 117
        %v3937 = vpop.permute.xlu0 %3936
        %v3938 = vsel %vm931, %v3935, %v3937
        %v3939 = vsel %vm931, %v3933, %v3935
        %v3940 = vsel %vm931, %v3931, %v3933
        %v3941 = vsel %vm931, %v3929, %v3931
        %v3942 = vsel %vm931, %v3927, %v3929
        %v3943 = vsel %vm931, %v3925, %v3927
        %v3944 = vsel %vm931, %v3923, %v3925
        %v3945 = vsel %vm931, %v3937, %v3923
        %3946 = vst [vmem:[#allocation2 + $0x440] sm:$0xff] %v3944
        %3947 = vst [vmem:[#allocation2 + $0x448] sm:$0xff] %v3943
        %3948 = vst [vmem:[#allocation2 + $0x450] sm:$0xff] %v3942
        %3949 = vst [vmem:[#allocation2 + $0x458] sm:$0xff] %v3941
        %3950 = vst [vmem:[#allocation2 + $0x460] sm:$0xff] %v3940
        %3951 = vst [vmem:[#allocation2 + $0x468] sm:$0xff] %v3939
        %3952 = vst [vmem:[#allocation2 + $0x470] sm:$0xff] %v3938
        %3953 = vst [vmem:[#allocation2 + $0x478] sm:$0xff] %v3945
        %3954 = vrot.lane.b32.xlu0 %v3394, 39
        %v3955 = vpop.permute.xlu0 %3954
        %3956 = vrot.lane.b32.xlu0 %v3395, 39
        %v3957 = vpop.permute.xlu0 %3956
        %3958 = vrot.lane.b32.xlu0 %v3396, 39
        %v3959 = vpop.permute.xlu0 %3958
        %3960 = vrot.lane.b32.xlu0 %v3397, 39
        %v3961 = vpop.permute.xlu0 %3960
        %3962 = vrot.lane.b32.xlu0 %v3398, 39
        %v3963 = vpop.permute.xlu0 %3962
        %3964 = vrot.lane.b32.xlu0 %v3399, 39
        %v3965 = vpop.permute.xlu0 %3964
        %3966 = vrot.lane.b32.xlu0 %v3400, 39
        %v3967 = vpop.permute.xlu0 %3966
        %3968 = vrot.lane.b32.xlu0 %v3401, 39
        %v3969 = vpop.permute.xlu0 %3968
        %v3970 = vsel %vm964, %v3967, %v3969
        %v3971 = vsel %vm964, %v3965, %v3967
        %v3972 = vsel %vm964, %v3963, %v3965
        %v3973 = vsel %vm964, %v3961, %v3963
        %v3974 = vsel %vm964, %v3959, %v3961
        %v3975 = vsel %vm964, %v3957, %v3959
        %v3976 = vsel %vm964, %v3955, %v3957
        %v3977 = vsel %vm964, %v3969, %v3955
        %3978 = vst [vmem:[#allocation2 + $0x480] sm:$0xff] %v3976
        %3979 = vst [vmem:[#allocation2 + $0x488] sm:$0xff] %v3975
        %3980 = vst [vmem:[#allocation2 + $0x490] sm:$0xff] %v3974
        %3981 = vst [vmem:[#allocation2 + $0x498] sm:$0xff] %v3973
        %3982 = vst [vmem:[#allocation2 + $0x4a0] sm:$0xff] %v3972
        %3983 = vst [vmem:[#allocation2 + $0x4a8] sm:$0xff] %v3971
        %3984 = vst [vmem:[#allocation2 + $0x4b0] sm:$0xff] %v3970
        %3985 = vst [vmem:[#allocation2 + $0x4b8] sm:$0xff] %v3977
        %3986 = vrot.lane.b32.xlu0 %v3394, 38
        %v3987 = vpop.permute.xlu0 %3986
        %3988 = vrot.lane.b32.xlu0 %v3395, 38
        %v3989 = vpop.permute.xlu0 %3988
        %3990 = vrot.lane.b32.xlu0 %v3396, 38
        %v3991 = vpop.permute.xlu0 %3990
        %3992 = vrot.lane.b32.xlu0 %v3397, 38
        %v3993 = vpop.permute.xlu0 %3992
        %3994 = vrot.lane.b32.xlu0 %v3398, 38
        %v3995 = vpop.permute.xlu0 %3994
        %3996 = vrot.lane.b32.xlu0 %v3399, 38
        %v3997 = vpop.permute.xlu0 %3996
        %3998 = vrot.lane.b32.xlu0 %v3400, 38
        %v3999 = vpop.permute.xlu0 %3998
        %4000 = vrot.lane.b32.xlu0 %v3401, 38
        %v4001 = vpop.permute.xlu0 %4000
        %v4002 = vsel %vm997, %v3999, %v4001
        %v4003 = vsel %vm997, %v3997, %v3999
        %v4004 = vsel %vm997, %v3995, %v3997
        %v4005 = vsel %vm997, %v3993, %v3995
        %v4006 = vsel %vm997, %v3991, %v3993
        %v4007 = vsel %vm997, %v3989, %v3991
        %v4008 = vsel %vm997, %v3987, %v3989
        %v4009 = vsel %vm997, %v4001, %v3987
        %4010 = vst [vmem:[#allocation2 + $0x4c0] sm:$0xff] %v4008
        %4011 = vst [vmem:[#allocation2 + $0x4c8] sm:$0xff] %v4007
        %4012 = vst [vmem:[#allocation2 + $0x4d0] sm:$0xff] %v4006
        %4013 = vst [vmem:[#allocation2 + $0x4d8] sm:$0xff] %v4005
        %4014 = vst [vmem:[#allocation2 + $0x4e0] sm:$0xff] %v4004
        %4015 = vst [vmem:[#allocation2 + $0x4e8] sm:$0xff] %v4003
        %4016 = vst [vmem:[#allocation2 + $0x4f0] sm:$0xff] %v4002
        %4017 = vst [vmem:[#allocation2 + $0x4f8] sm:$0xff] %v4009
        %4018 = vrot.lane.b32.xlu0 %v3394, 37
        %v4019 = vpop.permute.xlu0 %4018
        %4020 = vrot.lane.b32.xlu0 %v3395, 37
        %v4021 = vpop.permute.xlu0 %4020
        %4022 = vrot.lane.b32.xlu0 %v3396, 37
        %v4023 = vpop.permute.xlu0 %4022
        %4024 = vrot.lane.b32.xlu0 %v3397, 37
        %v4025 = vpop.permute.xlu0 %4024
        %4026 = vrot.lane.b32.xlu0 %v3398, 37
        %v4027 = vpop.permute.xlu0 %4026
        %4028 = vrot.lane.b32.xlu0 %v3399, 37
        %v4029 = vpop.permute.xlu0 %4028
        %4030 = vrot.lane.b32.xlu0 %v3400, 37
        %v4031 = vpop.permute.xlu0 %4030
        %4032 = vrot.lane.b32.xlu0 %v3401, 37
        %v4033 = vpop.permute.xlu0 %4032
        %v4034 = vsel %vm1030, %v4031, %v4033
        %v4035 = vsel %vm1030, %v4029, %v4031
        %v4036 = vsel %vm1030, %v4027, %v4029
        %v4037 = vsel %vm1030, %v4025, %v4027
        %v4038 = vsel %vm1030, %v4023, %v4025
        %v4039 = vsel %vm1030, %v4021, %v4023
        %v4040 = vsel %vm1030, %v4019, %v4021
        %v4041 = vsel %vm1030, %v4033, %v4019
        %4042 = vst [vmem:[#allocation2 + $0x500] sm:$0xff] %v4040
        %4043 = vst [vmem:[#allocation2 + $0x508] sm:$0xff] %v4039
        %4044 = vst [vmem:[#allocation2 + $0x510] sm:$0xff] %v4038
        %4045 = vst [vmem:[#allocation2 + $0x518] sm:$0xff] %v4037
        %4046 = vst [vmem:[#allocation2 + $0x520] sm:$0xff] %v4036
        %4047 = vst [vmem:[#allocation2 + $0x528] sm:$0xff] %v4035
        %4048 = vst [vmem:[#allocation2 + $0x530] sm:$0xff] %v4034
        %4049 = vst [vmem:[#allocation2 + $0x538] sm:$0xff] %v4041
        %4050 = vrot.lane.b32.xlu0 %v3394, 29
        %v4051 = vpop.permute.xlu0 %4050
        %4052 = vrot.lane.b32.xlu0 %v3395, 29
        %v4053 = vpop.permute.xlu0 %4052
        %4054 = vrot.lane.b32.xlu0 %v3396, 29
        %v4055 = vpop.permute.xlu0 %4054
        %4056 = vrot.lane.b32.xlu0 %v3397, 29
        %v4057 = vpop.permute.xlu0 %4056
        %4058 = vrot.lane.b32.xlu0 %v3398, 29
        %v4059 = vpop.permute.xlu0 %4058
        %4060 = vrot.lane.b32.xlu0 %v3399, 29
        %v4061 = vpop.permute.xlu0 %4060
        %4062 = vrot.lane.b32.xlu0 %v3400, 29
        %v4063 = vpop.permute.xlu0 %4062
        %4064 = vrot.lane.b32.xlu0 %v3401, 29
        %v4065 = vpop.permute.xlu0 %4064
        %v4066 = vsel %vm1063, %v4063, %v4065
        %v4067 = vsel %vm1063, %v4061, %v4063
        %v4068 = vsel %vm1063, %v4059, %v4061
        %v4069 = vsel %vm1063, %v4057, %v4059
        %v4070 = vsel %vm1063, %v4055, %v4057
        %v4071 = vsel %vm1063, %v4053, %v4055
        %v4072 = vsel %vm1063, %v4051, %v4053
        %v4073 = vsel %vm1063, %v4065, %v4051
        %4074 = vst [vmem:[#allocation2 + $0x540] sm:$0xff] %v4072
        %4075 = vst [vmem:[#allocation2 + $0x548] sm:$0xff] %v4071
        %4076 = vst [vmem:[#allocation2 + $0x550] sm:$0xff] %v4070
        %4077 = vst [vmem:[#allocation2 + $0x558] sm:$0xff] %v4069
        %4078 = vst [vmem:[#allocation2 + $0x560] sm:$0xff] %v4068
        %4079 = vst [vmem:[#allocation2 + $0x568] sm:$0xff] %v4067
        %4080 = vst [vmem:[#allocation2 + $0x570] sm:$0xff] %v4066
        %4081 = vst [vmem:[#allocation2 + $0x578] sm:$0xff] %v4073
        %4082 = vrot.lane.b32.xlu0 %v3394, 28
        %v4083 = vpop.permute.xlu0 %4082
        %4084 = vrot.lane.b32.xlu0 %v3395, 28
        %v4085 = vpop.permute.xlu0 %4084
        %4086 = vrot.lane.b32.xlu0 %v3396, 28
        %v4087 = vpop.permute.xlu0 %4086
        %4088 = vrot.lane.b32.xlu0 %v3397, 28
        %v4089 = vpop.permute.xlu0 %4088
        %4090 = vrot.lane.b32.xlu0 %v3398, 28
        %v4091 = vpop.permute.xlu0 %4090
        %4092 = vrot.lane.b32.xlu0 %v3399, 28
        %v4093 = vpop.permute.xlu0 %4092
        %4094 = vrot.lane.b32.xlu0 %v3400, 28
        %v4095 = vpop.permute.xlu0 %4094
        %4096 = vrot.lane.b32.xlu0 %v3401, 28
        %v4097 = vpop.permute.xlu0 %4096
        %v4098 = vsel %vm1096, %v4095, %v4097
        %v4099 = vsel %vm1096, %v4093, %v4095
        %v4100 = vsel %vm1096, %v4091, %v4093
        %v4101 = vsel %vm1096, %v4089, %v4091
        %v4102 = vsel %vm1096, %v4087, %v4089
        %v4103 = vsel %vm1096, %v4085, %v4087
        %v4104 = vsel %vm1096, %v4083, %v4085
        %v4105 = vsel %vm1096, %v4097, %v4083
        %4106 = vst [vmem:[#allocation2 + $0x580] sm:$0xff] %v4104
        %4107 = vst [vmem:[#allocation2 + $0x588] sm:$0xff] %v4103
        %4108 = vst [vmem:[#allocation2 + $0x590] sm:$0xff] %v4102
        %4109 = vst [vmem:[#allocation2 + $0x598] sm:$0xff] %v4101
        %4110 = vst [vmem:[#allocation2 + $0x5a0] sm:$0xff] %v4100
        %4111 = vst [vmem:[#allocation2 + $0x5a8] sm:$0xff] %v4099
        %4112 = vst [vmem:[#allocation2 + $0x5b0] sm:$0xff] %v4098
        %4113 = vst [vmem:[#allocation2 + $0x5b8] sm:$0xff] %v4105
        %4114 = vrot.lane.b32.xlu0 %v3394, 27
        %v4115 = vpop.permute.xlu0 %4114
        %4116 = vrot.lane.b32.xlu0 %v3395, 27
        %v4117 = vpop.permute.xlu0 %4116
        %4118 = vrot.lane.b32.xlu0 %v3396, 27
        %v4119 = vpop.permute.xlu0 %4118
        %4120 = vrot.lane.b32.xlu0 %v3397, 27
        %v4121 = vpop.permute.xlu0 %4120
        %4122 = vrot.lane.b32.xlu0 %v3398, 27
        %v4123 = vpop.permute.xlu0 %4122
        %4124 = vrot.lane.b32.xlu0 %v3399, 27
        %v4125 = vpop.permute.xlu0 %4124
        %4126 = vrot.lane.b32.xlu0 %v3400, 27
        %v4127 = vpop.permute.xlu0 %4126
        %4128 = vrot.lane.b32.xlu0 %v3401, 27
        %v4129 = vpop.permute.xlu0 %4128
        %v4130 = vsel %vm1129, %v4127, %v4129
        %v4131 = vsel %vm1129, %v4125, %v4127
        %v4132 = vsel %vm1129, %v4123, %v4125
        %v4133 = vsel %vm1129, %v4121, %v4123
        %v4134 = vsel %vm1129, %v4119, %v4121
        %v4135 = vsel %vm1129, %v4117, %v4119
        %v4136 = vsel %vm1129, %v4115, %v4117
        %v4137 = vsel %vm1129, %v4129, %v4115
        %4138 = vst [vmem:[#allocation2 + $0x5c0] sm:$0xff] %v4136
        %4139 = vst [vmem:[#allocation2 + $0x5c8] sm:$0xff] %v4135
        %4140 = vst [vmem:[#allocation2 + $0x5d0] sm:$0xff] %v4134
        %4141 = vst [vmem:[#allocation2 + $0x5d8] sm:$0xff] %v4133
        %4142 = vst [vmem:[#allocation2 + $0x5e0] sm:$0xff] %v4132
        %4143 = vst [vmem:[#allocation2 + $0x5e8] sm:$0xff] %v4131
        %4144 = vst [vmem:[#allocation2 + $0x5f0] sm:$0xff] %v4130
        %4145 = vst [vmem:[#allocation2 + $0x5f8] sm:$0xff] %v4137
        %4146 = vrot.lane.b32.xlu0 %v3394, 19
        %v4147 = vpop.permute.xlu0 %4146
        %4148 = vrot.lane.b32.xlu0 %v3395, 19
        %v4149 = vpop.permute.xlu0 %4148
        %4150 = vrot.lane.b32.xlu0 %v3396, 19
        %v4151 = vpop.permute.xlu0 %4150
        %4152 = vrot.lane.b32.xlu0 %v3397, 19
        %v4153 = vpop.permute.xlu0 %4152
        %4154 = vrot.lane.b32.xlu0 %v3398, 19
        %v4155 = vpop.permute.xlu0 %4154
        %4156 = vrot.lane.b32.xlu0 %v3399, 19
        %v4157 = vpop.permute.xlu0 %4156
        %4158 = vrot.lane.b32.xlu0 %v3400, 19
        %v4159 = vpop.permute.xlu0 %4158
        %4160 = vrot.lane.b32.xlu0 %v3401, 19
        %v4161 = vpop.permute.xlu0 %4160
        %v4162 = vsel %vm1162, %v4159, %v4161
        %v4163 = vsel %vm1162, %v4157, %v4159
        %v4164 = vsel %vm1162, %v4155, %v4157
        %v4165 = vsel %vm1162, %v4153, %v4155
        %v4166 = vsel %vm1162, %v4151, %v4153
        %v4167 = vsel %vm1162, %v4149, %v4151
        %v4168 = vsel %vm1162, %v4147, %v4149
        %v4169 = vsel %vm1162, %v4161, %v4147
        %4170 = vst [vmem:[#allocation2 + $0x600] sm:$0xff] %v4168
        %4171 = vst [vmem:[#allocation2 + $0x608] sm:$0xff] %v4167
        %4172 = vst [vmem:[#allocation2 + $0x610] sm:$0xff] %v4166
        %4173 = vst [vmem:[#allocation2 + $0x618] sm:$0xff] %v4165
        %4174 = vst [vmem:[#allocation2 + $0x620] sm:$0xff] %v4164
        %4175 = vst [vmem:[#allocation2 + $0x628] sm:$0xff] %v4163
        %4176 = vst [vmem:[#allocation2 + $0x630] sm:$0xff] %v4162
        %4177 = vst [vmem:[#allocation2 + $0x638] sm:$0xff] %v4169
        %4178 = vrot.lane.b32.xlu0 %v3394, 18
        %v4179 = vpop.permute.xlu0 %4178
        %4180 = vrot.lane.b32.xlu0 %v3395, 18
        %v4181 = vpop.permute.xlu0 %4180
        %4182 = vrot.lane.b32.xlu0 %v3396, 18
        %v4183 = vpop.permute.xlu0 %4182
        %4184 = vrot.lane.b32.xlu0 %v3397, 18
        %v4185 = vpop.permute.xlu0 %4184
        %4186 = vrot.lane.b32.xlu0 %v3398, 18
        %v4187 = vpop.permute.xlu0 %4186
        %4188 = vrot.lane.b32.xlu0 %v3399, 18
        %v4189 = vpop.permute.xlu0 %4188
        %4190 = vrot.lane.b32.xlu0 %v3400, 18
        %v4191 = vpop.permute.xlu0 %4190
        %4192 = vrot.lane.b32.xlu0 %v3401, 18
        %v4193 = vpop.permute.xlu0 %4192
        %v4194 = vsel %vm1195, %v4191, %v4193
        %v4195 = vsel %vm1195, %v4189, %v4191
        %v4196 = vsel %vm1195, %v4187, %v4189
        %v4197 = vsel %vm1195, %v4185, %v4187
        %v4198 = vsel %vm1195, %v4183, %v4185
        %v4199 = vsel %vm1195, %v4181, %v4183
        %v4200 = vsel %vm1195, %v4179, %v4181
        %v4201 = vsel %vm1195, %v4193, %v4179
        %4202 = vst [vmem:[#allocation2 + $0x640] sm:$0xff] %v4200
        %4203 = vst [vmem:[#allocation2 + $0x648] sm:$0xff] %v4199
        %4204 = vst [vmem:[#allocation2 + $0x650] sm:$0xff] %v4198
        %4205 = vst [vmem:[#allocation2 + $0x658] sm:$0xff] %v4197
        %4206 = vst [vmem:[#allocation2 + $0x660] sm:$0xff] %v4196
        %4207 = vst [vmem:[#allocation2 + $0x668] sm:$0xff] %v4195
        %4208 = vst [vmem:[#allocation2 + $0x670] sm:$0xff] %v4194
        %4209 = vst [vmem:[#allocation2 + $0x678] sm:$0xff] %v4201
        %4210 = vrot.lane.b32.xlu0 %v3394, 17
        %v4211 = vpop.permute.xlu0 %4210
        %4212 = vrot.lane.b32.xlu0 %v3395, 17
        %v4213 = vpop.permute.xlu0 %4212
        %4214 = vrot.lane.b32.xlu0 %v3396, 17
        %v4215 = vpop.permute.xlu0 %4214
        %4216 = vrot.lane.b32.xlu0 %v3397, 17
        %v4217 = vpop.permute.xlu0 %4216
        %4218 = vrot.lane.b32.xlu0 %v3398, 17
        %v4219 = vpop.permute.xlu0 %4218
        %4220 = vrot.lane.b32.xlu0 %v3399, 17
        %v4221 = vpop.permute.xlu0 %4220
        %4222 = vrot.lane.b32.xlu0 %v3400, 17
        %v4223 = vpop.permute.xlu0 %4222
        %4224 = vrot.lane.b32.xlu0 %v3401, 17
        %v4225 = vpop.permute.xlu0 %4224
        %v4226 = vsel %vm1228, %v4223, %v4225
        %v4227 = vsel %vm1228, %v4221, %v4223
        %v4228 = vsel %vm1228, %v4219, %v4221
        %v4229 = vsel %vm1228, %v4217, %v4219
        %v4230 = vsel %vm1228, %v4215, %v4217
        %v4231 = vsel %vm1228, %v4213, %v4215
        %v4232 = vsel %vm1228, %v4211, %v4213
        %v4233 = vsel %vm1228, %v4225, %v4211
        %4234 = vst [vmem:[#allocation2 + $0x680] sm:$0xff] %v4232
        %4235 = vst [vmem:[#allocation2 + $0x688] sm:$0xff] %v4231
        %4236 = vst [vmem:[#allocation2 + $0x690] sm:$0xff] %v4230
        %4237 = vst [vmem:[#allocation2 + $0x698] sm:$0xff] %v4229
        %4238 = vst [vmem:[#allocation2 + $0x6a0] sm:$0xff] %v4228
        %4239 = vst [vmem:[#allocation2 + $0x6a8] sm:$0xff] %v4227
        %4240 = vst [vmem:[#allocation2 + $0x6b0] sm:$0xff] %v4226
        %4241 = vst [vmem:[#allocation2 + $0x6b8] sm:$0xff] %v4233
        %v4242 = vld [vmem:[#allocation6] sm:$0xff]
        %v4243 = vld [vmem:[#allocation6 + $0x8] sm:$0xff]
        %v4244 = vld [vmem:[#allocation2] sm:$0xff]
        %v4245 = vld [vmem:[#allocation2 + $0x8] sm:$0xff]
        %v4246 = vld [vmem:[#allocation2 + $0x10] sm:$0xff]
        %v4247 = vld [vmem:[#allocation2 + $0x18] sm:$0xff]
        %v4248 = vld [vmem:[#allocation2 + $0x20] sm:$0xff]
        %v4249 = vld [vmem:[#allocation2 + $0x28] sm:$0xff]
        %v4250 = vld [vmem:[#allocation2 + $0x30] sm:$0xff]
        %v4251 = vld [vmem:[#allocation2 + $0x38] sm:$0xff]
        %v4252 = vld [vmem:[#allocation2 + $0x40] sm:$0xff]
        %v4253 = vld [vmem:[#allocation2 + $0x48] sm:$0xff]
        %v4254 = vld [vmem:[#allocation2 + $0x50] sm:$0xff]
        %v4255 = vld [vmem:[#allocation2 + $0x58] sm:$0xff]
        %v4256 = vld [vmem:[#allocation2 + $0x60] sm:$0xff]
        %v4257 = vld [vmem:[#allocation2 + $0x68] sm:$0xff]
        %v4258 = vld [vmem:[#allocation2 + $0x70] sm:$0xff]
        %v4259 = vld [vmem:[#allocation2 + $0x78] sm:$0xff]
        %v4260 = vld [vmem:[#allocation2 + $0x80] sm:$0xff]
        %v4261 = vld [vmem:[#allocation2 + $0x88] sm:$0xff]
        %v4262 = vld [vmem:[#allocation2 + $0x90] sm:$0xff]
        %v4263 = vld [vmem:[#allocation2 + $0x98] sm:$0xff]
        %v4264 = vld [vmem:[#allocation2 + $0xa0] sm:$0xff]
        %v4265 = vld [vmem:[#allocation2 + $0xa8] sm:$0xff]
        %v4266 = vld [vmem:[#allocation2 + $0xb0] sm:$0xff]
        %v4267 = vld [vmem:[#allocation2 + $0xb8] sm:$0xff]
        %v4268 = vld [vmem:[#allocation2 + $0xc0] sm:$0xff]
        %v4269 = vld [vmem:[#allocation2 + $0xc8] sm:$0xff]
        %v4270 = vld [vmem:[#allocation2 + $0xd0] sm:$0xff]
        %v4271 = vld [vmem:[#allocation2 + $0xd8] sm:$0xff]
        %v4272 = vld [vmem:[#allocation2 + $0xe0] sm:$0xff]
        %v4273 = vld [vmem:[#allocation2 + $0xe8] sm:$0xff]
        %v4274 = vld [vmem:[#allocation2 + $0xf0] sm:$0xff]
        %v4275 = vld [vmem:[#allocation2 + $0xf8] sm:$0xff]
        %v4276 = vld [vmem:[#allocation2 + $0x100] sm:$0xff]
        %v4277 = vld [vmem:[#allocation2 + $0x108] sm:$0xff]
        %v4278 = vld [vmem:[#allocation2 + $0x110] sm:$0xff]
        %v4279 = vld [vmem:[#allocation2 + $0x118] sm:$0xff]
        %v4280 = vld [vmem:[#allocation2 + $0x120] sm:$0xff]
        %v4281 = vld [vmem:[#allocation2 + $0x128] sm:$0xff]
        %v4282 = vld [vmem:[#allocation2 + $0x130] sm:$0xff]
        %v4283 = vld [vmem:[#allocation2 + $0x138] sm:$0xff]
        %v4284 = vld [vmem:[#allocation2 + $0x140] sm:$0xff]
        %v4285 = vld [vmem:[#allocation2 + $0x148] sm:$0xff]
        %v4286 = vld [vmem:[#allocation2 + $0x150] sm:$0xff]
        %v4287 = vld [vmem:[#allocation2 + $0x158] sm:$0xff]
        %v4288 = vld [vmem:[#allocation2 + $0x160] sm:$0xff]
        %v4289 = vld [vmem:[#allocation2 + $0x168] sm:$0xff]
        %v4290 = vld [vmem:[#allocation2 + $0x170] sm:$0xff]
        %v4291 = vld [vmem:[#allocation2 + $0x178] sm:$0xff]
        %v4292 = vld [vmem:[#allocation2 + $0x180] sm:$0xff]
        %v4293 = vld [vmem:[#allocation2 + $0x188] sm:$0xff]
        %v4294 = vld [vmem:[#allocation2 + $0x190] sm:$0xff]
        %v4295 = vld [vmem:[#allocation2 + $0x198] sm:$0xff]
        %v4296 = vld [vmem:[#allocation2 + $0x1a0] sm:$0xff]
        %v4297 = vld [vmem:[#allocation2 + $0x1a8] sm:$0xff]
        %v4298 = vld [vmem:[#allocation2 + $0x1b0] sm:$0xff]
        %v4299 = vld [vmem:[#allocation2 + $0x1b8] sm:$0xff]
        %v4300 = vld [vmem:[#allocation2 + $0x1c0] sm:$0xff]
        %v4301 = vld [vmem:[#allocation2 + $0x1c8] sm:$0xff]
        %v4302 = vld [vmem:[#allocation2 + $0x1d0] sm:$0xff]
        %v4303 = vld [vmem:[#allocation2 + $0x1d8] sm:$0xff]
        %v4304 = vld [vmem:[#allocation2 + $0x1e0] sm:$0xff]
        %v4305 = vld [vmem:[#allocation2 + $0x1e8] sm:$0xff]
        %v4306 = vld [vmem:[#allocation2 + $0x1f0] sm:$0xff]
        %v4307 = vld [vmem:[#allocation2 + $0x1f8] sm:$0xff]
        %v4308 = vld [vmem:[#allocation2 + $0x200] sm:$0xff]
        %v4309 = vld [vmem:[#allocation2 + $0x208] sm:$0xff]
        %v4310 = vld [vmem:[#allocation2 + $0x210] sm:$0xff]
        %v4311 = vld [vmem:[#allocation2 + $0x218] sm:$0xff]
        %v4312 = vld [vmem:[#allocation2 + $0x220] sm:$0xff]
        %v4313 = vld [vmem:[#allocation2 + $0x228] sm:$0xff]
        %v4314 = vld [vmem:[#allocation2 + $0x230] sm:$0xff]
        %v4315 = vld [vmem:[#allocation2 + $0x238] sm:$0xff]
        %v4316 = vld [vmem:[#allocation2 + $0x240] sm:$0xff]
        %v4317 = vld [vmem:[#allocation2 + $0x248] sm:$0xff]
        %v4318 = vld [vmem:[#allocation2 + $0x250] sm:$0xff]
        %v4319 = vld [vmem:[#allocation2 + $0x258] sm:$0xff]
        %v4320 = vld [vmem:[#allocation2 + $0x260] sm:$0xff]
        %v4321 = vld [vmem:[#allocation2 + $0x268] sm:$0xff]
        %v4322 = vld [vmem:[#allocation2 + $0x270] sm:$0xff]
        %v4323 = vld [vmem:[#allocation2 + $0x278] sm:$0xff]
        %v4324 = vld [vmem:[#allocation2 + $0x280] sm:$0xff]
        %v4325 = vld [vmem:[#allocation2 + $0x288] sm:$0xff]
        %v4326 = vld [vmem:[#allocation2 + $0x290] sm:$0xff]
        %v4327 = vld [vmem:[#allocation2 + $0x298] sm:$0xff]
        %v4328 = vld [vmem:[#allocation2 + $0x2a0] sm:$0xff]
        %v4329 = vld [vmem:[#allocation2 + $0x2a8] sm:$0xff]
        %v4330 = vld [vmem:[#allocation2 + $0x2b0] sm:$0xff]
        %v4331 = vld [vmem:[#allocation2 + $0x2b8] sm:$0xff]
        %v4332 = vld [vmem:[#allocation2 + $0x2c0] sm:$0xff]
        %v4333 = vld [vmem:[#allocation2 + $0x2c8] sm:$0xff]
        %v4334 = vld [vmem:[#allocation2 + $0x2d0] sm:$0xff]
        %v4335 = vld [vmem:[#allocation2 + $0x2d8] sm:$0xff]
        %v4336 = vld [vmem:[#allocation2 + $0x2e0] sm:$0xff]
        %v4337 = vld [vmem:[#allocation2 + $0x2e8] sm:$0xff]
        %v4338 = vld [vmem:[#allocation2 + $0x2f0] sm:$0xff]
        %v4339 = vld [vmem:[#allocation2 + $0x2f8] sm:$0xff]
        %v4340 = vld [vmem:[#allocation2 + $0x300] sm:$0xff]
        %v4341 = vld [vmem:[#allocation2 + $0x308] sm:$0xff]
        %v4342 = vld [vmem:[#allocation2 + $0x310] sm:$0xff]
        %v4343 = vld [vmem:[#allocation2 + $0x318] sm:$0xff]
        %v4344 = vld [vmem:[#allocation2 + $0x320] sm:$0xff]
        %v4345 = vld [vmem:[#allocation2 + $0x328] sm:$0xff]
        %v4346 = vld [vmem:[#allocation2 + $0x330] sm:$0xff]
        %v4347 = vld [vmem:[#allocation2 + $0x338] sm:$0xff]
        %v4348 = vld [vmem:[#allocation2 + $0x340] sm:$0xff]
        %v4349 = vld [vmem:[#allocation2 + $0x348] sm:$0xff]
        %v4350 = vld [vmem:[#allocation2 + $0x350] sm:$0xff]
        %v4351 = vld [vmem:[#allocation2 + $0x358] sm:$0xff]
        %v4352 = vld [vmem:[#allocation2 + $0x360] sm:$0xff]
        %v4353 = vld [vmem:[#allocation2 + $0x368] sm:$0xff]
        %v4354 = vld [vmem:[#allocation2 + $0x370] sm:$0xff]
        %v4355 = vld [vmem:[#allocation2 + $0x378] sm:$0xff]
        %v4356 = vld [vmem:[#allocation2 + $0x380] sm:$0xff]
        %v4357 = vld [vmem:[#allocation2 + $0x388] sm:$0xff]
        %v4358 = vld [vmem:[#allocation2 + $0x390] sm:$0xff]
        %v4359 = vld [vmem:[#allocation2 + $0x398] sm:$0xff]
        %v4360 = vld [vmem:[#allocation2 + $0x3a0] sm:$0xff]
        %v4361 = vld [vmem:[#allocation2 + $0x3a8] sm:$0xff]
        %v4362 = vld [vmem:[#allocation2 + $0x3b0] sm:$0xff]
        %v4363 = vld [vmem:[#allocation2 + $0x3b8] sm:$0xff]
        %v4364 = vld [vmem:[#allocation2 + $0x3c0] sm:$0xff]
        %v4365 = vld [vmem:[#allocation2 + $0x3c8] sm:$0xff]
        %v4366 = vld [vmem:[#allocation2 + $0x3d0] sm:$0xff]
        %v4367 = vld [vmem:[#allocation2 + $0x3d8] sm:$0xff]
        %v4368 = vld [vmem:[#allocation2 + $0x3e0] sm:$0xff]
        %v4369 = vld [vmem:[#allocation2 + $0x3e8] sm:$0xff]
        %v4370 = vld [vmem:[#allocation2 + $0x3f0] sm:$0xff]
        %v4371 = vld [vmem:[#allocation2 + $0x3f8] sm:$0xff]
        %v4372 = vld [vmem:[#allocation2 + $0x400] sm:$0xff]
        %v4373 = vld [vmem:[#allocation2 + $0x408] sm:$0xff]
        %v4374 = vld [vmem:[#allocation2 + $0x410] sm:$0xff]
        %v4375 = vld [vmem:[#allocation2 + $0x418] sm:$0xff]
        %v4376 = vld [vmem:[#allocation2 + $0x420] sm:$0xff]
        %v4377 = vld [vmem:[#allocation2 + $0x428] sm:$0xff]
        %v4378 = vld [vmem:[#allocation2 + $0x430] sm:$0xff]
        %v4379 = vld [vmem:[#allocation2 + $0x438] sm:$0xff]
        %v4380 = vld [vmem:[#allocation2 + $0x440] sm:$0xff]
        %v4381 = vld [vmem:[#allocation2 + $0x448] sm:$0xff]
        %v4382 = vld [vmem:[#allocation2 + $0x450] sm:$0xff]
        %v4383 = vld [vmem:[#allocation2 + $0x458] sm:$0xff]
        %v4384 = vld [vmem:[#allocation2 + $0x460] sm:$0xff]
        %v4385 = vld [vmem:[#allocation2 + $0x468] sm:$0xff]
        %v4386 = vld [vmem:[#allocation2 + $0x470] sm:$0xff]
        %v4387 = vld [vmem:[#allocation2 + $0x478] sm:$0xff]
        %v4388 = vld [vmem:[#allocation2 + $0x480] sm:$0xff]
        %v4389 = vld [vmem:[#allocation2 + $0x488] sm:$0xff]
        %v4390 = vld [vmem:[#allocation2 + $0x490] sm:$0xff]
        %v4391 = vld [vmem:[#allocation2 + $0x498] sm:$0xff]
        %v4392 = vld [vmem:[#allocation2 + $0x4a0] sm:$0xff]
        %v4393 = vld [vmem:[#allocation2 + $0x4a8] sm:$0xff]
        %v4394 = vld [vmem:[#allocation2 + $0x4b0] sm:$0xff]
        %v4395 = vld [vmem:[#allocation2 + $0x4b8] sm:$0xff]
        %v4396 = vld [vmem:[#allocation2 + $0x4c0] sm:$0xff]
        %v4397 = vld [vmem:[#allocation2 + $0x4c8] sm:$0xff]
        %v4398 = vld [vmem:[#allocation2 + $0x4d0] sm:$0xff]
        %v4399 = vld [vmem:[#allocation2 + $0x4d8] sm:$0xff]
        %v4400 = vld [vmem:[#allocation2 + $0x4e0] sm:$0xff]
        %v4401 = vld [vmem:[#allocation2 + $0x4e8] sm:$0xff]
        %v4402 = vld [vmem:[#allocation2 + $0x4f0] sm:$0xff]
        %v4403 = vld [vmem:[#allocation2 + $0x4f8] sm:$0xff]
        %v4404 = vld [vmem:[#allocation2 + $0x500] sm:$0xff]
        %v4405 = vld [vmem:[#allocation2 + $0x508] sm:$0xff]
        %v4406 = vld [vmem:[#allocation2 + $0x510] sm:$0xff]
        %v4407 = vld [vmem:[#allocation2 + $0x518] sm:$0xff]
        %v4408 = vld [vmem:[#allocation2 + $0x520] sm:$0xff]
        %v4409 = vld [vmem:[#allocation2 + $0x528] sm:$0xff]
        %v4410 = vld [vmem:[#allocation2 + $0x530] sm:$0xff]
        %v4411 = vld [vmem:[#allocation2 + $0x538] sm:$0xff]
        %v4412 = vld [vmem:[#allocation2 + $0x540] sm:$0xff]
        %v4413 = vld [vmem:[#allocation2 + $0x548] sm:$0xff]
        %v4414 = vld [vmem:[#allocation2 + $0x550] sm:$0xff]
        %v4415 = vld [vmem:[#allocation2 + $0x558] sm:$0xff]
        %v4416 = vld [vmem:[#allocation2 + $0x560] sm:$0xff]
        %v4417 = vld [vmem:[#allocation2 + $0x568] sm:$0xff]
        %v4418 = vld [vmem:[#allocation2 + $0x570] sm:$0xff]
        %v4419 = vld [vmem:[#allocation2 + $0x578] sm:$0xff]
        %v4420 = vld [vmem:[#allocation2 + $0x580] sm:$0xff]
        %v4421 = vld [vmem:[#allocation2 + $0x588] sm:$0xff]
        %v4422 = vld [vmem:[#allocation2 + $0x590] sm:$0xff]
        %v4423 = vld [vmem:[#allocation2 + $0x598] sm:$0xff]
        %v4424 = vld [vmem:[#allocation2 + $0x5a0] sm:$0xff]
        %v4425 = vld [vmem:[#allocation2 + $0x5a8] sm:$0xff]
        %v4426 = vld [vmem:[#allocation2 + $0x5b0] sm:$0xff]
        %v4427 = vld [vmem:[#allocation2 + $0x5b8] sm:$0xff]
        %v4428 = vld [vmem:[#allocation2 + $0x5c0] sm:$0xff]
        %v4429 = vld [vmem:[#allocation2 + $0x5c8] sm:$0xff]
        %v4430 = vld [vmem:[#allocation2 + $0x5d0] sm:$0xff]
        %v4431 = vld [vmem:[#allocation2 + $0x5d8] sm:$0xff]
        %v4432 = vld [vmem:[#allocation2 + $0x5e0] sm:$0xff]
        %v4433 = vld [vmem:[#allocation2 + $0x5e8] sm:$0xff]
        %v4434 = vld [vmem:[#allocation2 + $0x5f0] sm:$0xff]
        %v4435 = vld [vmem:[#allocation2 + $0x5f8] sm:$0xff]
        %v4436 = vld [vmem:[#allocation2 + $0x600] sm:$0xff]
        %v4437 = vld [vmem:[#allocation2 + $0x608] sm:$0xff]
        %v4438 = vld [vmem:[#allocation2 + $0x610] sm:$0xff]
        %v4439 = vld [vmem:[#allocation2 + $0x618] sm:$0xff]
        %v4440 = vld [vmem:[#allocation2 + $0x620] sm:$0xff]
        %v4441 = vld [vmem:[#allocation2 + $0x628] sm:$0xff]
        %v4442 = vld [vmem:[#allocation2 + $0x630] sm:$0xff]
        %v4443 = vld [vmem:[#allocation2 + $0x638] sm:$0xff]
        %v4444 = vld [vmem:[#allocation2 + $0x640] sm:$0xff]
        %v4445 = vld [vmem:[#allocation2 + $0x648] sm:$0xff]
        %v4446 = vld [vmem:[#allocation2 + $0x650] sm:$0xff]
        %v4447 = vld [vmem:[#allocation2 + $0x658] sm:$0xff]
        %v4448 = vld [vmem:[#allocation2 + $0x660] sm:$0xff]
        %v4449 = vld [vmem:[#allocation2 + $0x668] sm:$0xff]
        %v4450 = vld [vmem:[#allocation2 + $0x670] sm:$0xff]
        %v4451 = vld [vmem:[#allocation2 + $0x678] sm:$0xff]
        %v4452 = vld [vmem:[#allocation2 + $0x680] sm:$0xff]
        %v4453 = vld [vmem:[#allocation2 + $0x688] sm:$0xff]
        %v4454 = vld [vmem:[#allocation2 + $0x690] sm:$0xff]
        %v4455 = vld [vmem:[#allocation2 + $0x698] sm:$0xff]
        %v4456 = vld [vmem:[#allocation2 + $0x6a0] sm:$0xff]
        %v4457 = vld [vmem:[#allocation2 + $0x6a8] sm:$0xff]
        %v4458 = vld [vmem:[#allocation2 + $0x6b0] sm:$0xff]
        %v4459 = vld [vmem:[#allocation2 + $0x6b8] sm:$0xff]
        %v4460 = vld [vmem:[#allocation2 + $0x6c0] sm:$0xff]
        %v4461 = vld [vmem:[#allocation2 + $0x6c8] sm:$0xff]
        %v4462 = vld [vmem:[#allocation2 + $0x6d0] sm:$0xff]
        %v4463 = vld [vmem:[#allocation2 + $0x6d8] sm:$0xff]
        %v4464 = vld [vmem:[#allocation2 + $0x6e0] sm:$0xff]
        %v4465 = vld [vmem:[#allocation2 + $0x6e8] sm:$0xff]
        %v4466 = vld [vmem:[#allocation2 + $0x6f0] sm:$0xff]
        %v4467 = vld [vmem:[#allocation2 + $0x6f8] sm:$0xff]
        %v4468 = vld [vmem:[#allocation2 + $0x700] sm:$0xff]
        %v4469 = vld [vmem:[#allocation2 + $0x708] sm:$0xff]
        %v4470 = vld [vmem:[#allocation2 + $0x710] sm:$0xff]
        %v4471 = vld [vmem:[#allocation2 + $0x718] sm:$0xff]
        %v4472 = vld [vmem:[#allocation2 + $0x720] sm:$0xff]
        %v4473 = vld [vmem:[#allocation2 + $0x728] sm:$0xff]
        %v4474 = vld [vmem:[#allocation2 + $0x730] sm:$0xff]
        %v4475 = vld [vmem:[#allocation2 + $0x738] sm:$0xff]
        %v4476 = vld [vmem:[#allocation2 + $0x740] sm:$0xff]
        %v4477 = vld [vmem:[#allocation2 + $0x748] sm:$0xff]
        %v4478 = vld [vmem:[#allocation2 + $0x750] sm:$0xff]
        %v4479 = vld [vmem:[#allocation2 + $0x758] sm:$0xff]
        %v4480 = vld [vmem:[#allocation2 + $0x760] sm:$0xff]
        %v4481 = vld [vmem:[#allocation2 + $0x768] sm:$0xff]
        %v4482 = vld [vmem:[#allocation2 + $0x770] sm:$0xff]
        %v4483 = vld [vmem:[#allocation2 + $0x778] sm:$0xff]
        %v4484 = vld [vmem:[#allocation2 + $0x780] sm:$0xff]
        %v4485 = vld [vmem:[#allocation2 + $0x788] sm:$0xff]
        %v4486 = vld [vmem:[#allocation2 + $0x790] sm:$0xff]
        %v4487 = vld [vmem:[#allocation2 + $0x798] sm:$0xff]
        %v4488 = vld [vmem:[#allocation2 + $0x7a0] sm:$0xff]
        %v4489 = vld [vmem:[#allocation2 + $0x7a8] sm:$0xff]
        %v4490 = vld [vmem:[#allocation2 + $0x7b0] sm:$0xff]
        %v4491 = vld [vmem:[#allocation2 + $0x7b8] sm:$0xff]
        %v4492 = vld [vmem:[#allocation2 + $0x7c0] sm:$0xff]
        %v4493 = vld [vmem:[#allocation2 + $0x7c8] sm:$0xff]
        %v4494 = vld [vmem:[#allocation2 + $0x7d0] sm:$0xff]
        %v4495 = vld [vmem:[#allocation2 + $0x7d8] sm:$0xff]
        %v4496 = vld [vmem:[#allocation2 + $0x7e0] sm:$0xff]
        %v4497 = vld [vmem:[#allocation2 + $0x7e8] sm:$0xff]
        %v4498 = vld [vmem:[#allocation2 + $0x7f0] sm:$0xff]
        %v4499 = vld [vmem:[#allocation2 + $0x7f8] sm:$0xff]
        %4500 = vmatpush.msra.mxu0 %v4364
        %4501 = vmatpush.msra.mxu0 %v4356
        %4502 = vmatpush.msra.mxu0 %v4348
        %4503 = vmatpush.msra.mxu0 %v4340
        %4504 = vmatpush.msra.mxu0 %v4332
        %4505 = vmatpush.msra.mxu0 %v4324
        %4506 = vmatpush.msra.mxu0 %v4316
        %4507 = vmatpush.msra.mxu0 %v4308
        %4508 = vmatpush.msra.mxu0 %v4300
        %4509 = vmatpush.msra.mxu0 %v4292
        %4510 = vmatpush.msra.mxu0 %v4284
        %4511 = vmatpush.msra.mxu0 %v4276
        %4512 = vmatpush.msra.mxu0 %v4268
        %4513 = vmatpush.msra.mxu0 %v4260
        %4514 = vmatpush.msra.mxu0 %v4252
        %4515 = vmatpush.msra.mxu0 %v4244
        %4516 = vmatmul.f32.gmra.mxu0 %v4242
        %v4517 = vpop.f32.mrf.mxu0
        %v4518 = vadd.f32 0.0, %v4517
        %4519 = vdwg.mxu0
        %4520 = vmatpush.msra.mxu0 %v4492
        %4521 = vmatpush.msra.mxu0 %v4484
        %4522 = vmatpush.msra.mxu0 %v4476
        %4523 = vmatpush.msra.mxu0 %v4468
        %4524 = vmatpush.msra.mxu0 %v4460
        %4525 = vmatpush.msra.mxu0 %v4452
        %4526 = vmatpush.msra.mxu0 %v4444
        %4527 = vmatpush.msra.mxu0 %v4436
        %4528 = vmatpush.msra.mxu0 %v4428
        %4529 = vmatpush.msra.mxu0 %v4420
        %4530 = vmatpush.msra.mxu0 %v4412
        %4531 = vmatpush.msra.mxu0 %v4404
        %4532 = vmatpush.msra.mxu0 %v4396
        %4533 = vmatpush.msra.mxu0 %v4388
        %4534 = vmatpush.msra.mxu0 %v4380
        %4535 = vmatpush.msra.mxu0 %v4372
        %4536 = vmatmul.f32.gmra.mxu0 %v4243
        %v4537 = vpop.f32.mrf.mxu0
        %v4538 = vadd.f32 %v4518, %v4537
        %4539 = vdwg.mxu0
        %4540 = vmatpush.msra.mxu0 %v4365
        %4541 = vmatpush.msra.mxu0 %v4357
        %4542 = vmatpush.msra.mxu0 %v4349
        %4543 = vmatpush.msra.mxu0 %v4341
        %4544 = vmatpush.msra.mxu0 %v4333
        %4545 = vmatpush.msra.mxu0 %v4325
        %4546 = vmatpush.msra.mxu0 %v4317
        %4547 = vmatpush.msra.mxu0 %v4309
        %4548 = vmatpush.msra.mxu0 %v4301
        %4549 = vmatpush.msra.mxu0 %v4293
        %4550 = vmatpush.msra.mxu0 %v4285
        %4551 = vmatpush.msra.mxu0 %v4277
        %4552 = vmatpush.msra.mxu0 %v4269
        %4553 = vmatpush.msra.mxu0 %v4261
        %4554 = vmatpush.msra.mxu0 %v4253
        %4555 = vmatpush.msra.mxu0 %v4245
        %4556 = vmatmul.f32.gmra.mxu0 %v4242
        %v4557 = vpop.f32.mrf.mxu0
        %v4558 = vadd.f32 0.0, %v4557
        %4559 = vdwg.mxu0
        %4560 = vmatpush.msra.mxu0 %v4493
        %4561 = vmatpush.msra.mxu0 %v4485
        %4562 = vmatpush.msra.mxu0 %v4477
        %4563 = vmatpush.msra.mxu0 %v4469
        %4564 = vmatpush.msra.mxu0 %v4461
        %4565 = vmatpush.msra.mxu0 %v4453
        %4566 = vmatpush.msra.mxu0 %v4445
        %4567 = vmatpush.msra.mxu0 %v4437
        %4568 = vmatpush.msra.mxu0 %v4429
        %4569 = vmatpush.msra.mxu0 %v4421
        %4570 = vmatpush.msra.mxu0 %v4413
        %4571 = vmatpush.msra.mxu0 %v4405
        %4572 = vmatpush.msra.mxu0 %v4397
        %4573 = vmatpush.msra.mxu0 %v4389
        %4574 = vmatpush.msra.mxu0 %v4381
        %4575 = vmatpush.msra.mxu0 %v4373
        %4576 = vmatmul.f32.gmra.mxu0 %v4243
        %v4577 = vpop.f32.mrf.mxu0
        %v4578 = vadd.f32 %v4558, %v4577
        %4579 = vdwg.mxu0
        %4580 = vmatpush.msra.mxu0 %v4366
        %4581 = vmatpush.msra.mxu0 %v4358
        %4582 = vmatpush.msra.mxu0 %v4350
        %4583 = vmatpush.msra.mxu0 %v4342
        %4584 = vmatpush.msra.mxu0 %v4334
        %4585 = vmatpush.msra.mxu0 %v4326
        %4586 = vmatpush.msra.mxu0 %v4318
        %4587 = vmatpush.msra.mxu0 %v4310
        %4588 = vmatpush.msra.mxu0 %v4302
        %4589 = vmatpush.msra.mxu0 %v4294
        %4590 = vmatpush.msra.mxu0 %v4286
        %4591 = vmatpush.msra.mxu0 %v4278
        %4592 = vmatpush.msra.mxu0 %v4270
        %4593 = vmatpush.msra.mxu0 %v4262
        %4594 = vmatpush.msra.mxu0 %v4254
        %4595 = vmatpush.msra.mxu0 %v4246
        %4596 = vmatmul.f32.gmra.mxu0 %v4242
        %v4597 = vpop.f32.mrf.mxu0
        %v4598 = vadd.f32 0.0, %v4597
        %4599 = vdwg.mxu0
        %4600 = vmatpush.msra.mxu0 %v4494
        %4601 = vmatpush.msra.mxu0 %v4486
        %4602 = vmatpush.msra.mxu0 %v4478
        %4603 = vmatpush.msra.mxu0 %v4470
        %4604 = vmatpush.msra.mxu0 %v4462
        %4605 = vmatpush.msra.mxu0 %v4454
        %4606 = vmatpush.msra.mxu0 %v4446
        %4607 = vmatpush.msra.mxu0 %v4438
        %4608 = vmatpush.msra.mxu0 %v4430
        %4609 = vmatpush.msra.mxu0 %v4422
        %4610 = vmatpush.msra.mxu0 %v4414
        %4611 = vmatpush.msra.mxu0 %v4406
        %4612 = vmatpush.msra.mxu0 %v4398
        %4613 = vmatpush.msra.mxu0 %v4390
        %4614 = vmatpush.msra.mxu0 %v4382
        %4615 = vmatpush.msra.mxu0 %v4374
        %4616 = vmatmul.f32.gmra.mxu0 %v4243
        %v4617 = vpop.f32.mrf.mxu0
        %v4618 = vadd.f32 %v4598, %v4617
        %4619 = vdwg.mxu0
        %4620 = vmatpush.msra.mxu0 %v4367
        %4621 = vmatpush.msra.mxu0 %v4359
        %4622 = vmatpush.msra.mxu0 %v4351
        %4623 = vmatpush.msra.mxu0 %v4343
        %4624 = vmatpush.msra.mxu0 %v4335
        %4625 = vmatpush.msra.mxu0 %v4327
        %4626 = vmatpush.msra.mxu0 %v4319
        %4627 = vmatpush.msra.mxu0 %v4311
        %4628 = vmatpush.msra.mxu0 %v4303
        %4629 = vmatpush.msra.mxu0 %v4295
        %4630 = vmatpush.msra.mxu0 %v4287
        %4631 = vmatpush.msra.mxu0 %v4279
        %4632 = vmatpush.msra.mxu0 %v4271
        %4633 = vmatpush.msra.mxu0 %v4263
        %4634 = vmatpush.msra.mxu0 %v4255
        %4635 = vmatpush.msra.mxu0 %v4247
        %4636 = vmatmul.f32.gmra.mxu0 %v4242
        %v4637 = vpop.f32.mrf.mxu0
        %v4638 = vadd.f32 0.0, %v4637
        %4639 = vdwg.mxu0
        %4640 = vmatpush.msra.mxu0 %v4495
        %4641 = vmatpush.msra.mxu0 %v4487
        %4642 = vmatpush.msra.mxu0 %v4479
        %4643 = vmatpush.msra.mxu0 %v4471
        %4644 = vmatpush.msra.mxu0 %v4463
        %4645 = vmatpush.msra.mxu0 %v4455
        %4646 = vmatpush.msra.mxu0 %v4447
        %4647 = vmatpush.msra.mxu0 %v4439
        %4648 = vmatpush.msra.mxu0 %v4431
        %4649 = vmatpush.msra.mxu0 %v4423
        %4650 = vmatpush.msra.mxu0 %v4415
        %4651 = vmatpush.msra.mxu0 %v4407
        %4652 = vmatpush.msra.mxu0 %v4399
        %4653 = vmatpush.msra.mxu0 %v4391
        %4654 = vmatpush.msra.mxu0 %v4383
        %4655 = vmatpush.msra.mxu0 %v4375
        %4656 = vmatmul.f32.gmra.mxu0 %v4243
        %v4657 = vpop.f32.mrf.mxu0
        %v4658 = vadd.f32 %v4638, %v4657
        %4659 = vdwg.mxu0
        %4660 = vmatpush.msra.mxu0 %v4368
        %4661 = vmatpush.msra.mxu0 %v4360
        %4662 = vmatpush.msra.mxu0 %v4352
        %4663 = vmatpush.msra.mxu0 %v4344
        %4664 = vmatpush.msra.mxu0 %v4336
        %4665 = vmatpush.msra.mxu0 %v4328
        %4666 = vmatpush.msra.mxu0 %v4320
        %4667 = vmatpush.msra.mxu0 %v4312
        %4668 = vmatpush.msra.mxu0 %v4304
        %4669 = vmatpush.msra.mxu0 %v4296
        %4670 = vmatpush.msra.mxu0 %v4288
        %4671 = vmatpush.msra.mxu0 %v4280
        %4672 = vmatpush.msra.mxu0 %v4272
        %4673 = vmatpush.msra.mxu0 %v4264
        %4674 = vmatpush.msra.mxu0 %v4256
        %4675 = vmatpush.msra.mxu0 %v4248
        %4676 = vmatmul.f32.gmra.mxu0 %v4242
        %v4677 = vpop.f32.mrf.mxu0
        %v4678 = vadd.f32 0.0, %v4677
        %4679 = vdwg.mxu0
        %4680 = vmatpush.msra.mxu0 %v4496
        %4681 = vmatpush.msra.mxu0 %v4488
        %4682 = vmatpush.msra.mxu0 %v4480
        %4683 = vmatpush.msra.mxu0 %v4472
        %4684 = vmatpush.msra.mxu0 %v4464
        %4685 = vmatpush.msra.mxu0 %v4456
        %4686 = vmatpush.msra.mxu0 %v4448
        %4687 = vmatpush.msra.mxu0 %v4440
        %4688 = vmatpush.msra.mxu0 %v4432
        %4689 = vmatpush.msra.mxu0 %v4424
        %4690 = vmatpush.msra.mxu0 %v4416
        %4691 = vmatpush.msra.mxu0 %v4408
        %4692 = vmatpush.msra.mxu0 %v4400
        %4693 = vmatpush.msra.mxu0 %v4392
        %4694 = vmatpush.msra.mxu0 %v4384
        %4695 = vmatpush.msra.mxu0 %v4376
        %4696 = vmatmul.f32.gmra.mxu0 %v4243
        %v4697 = vpop.f32.mrf.mxu0
        %v4698 = vadd.f32 %v4678, %v4697
        %4699 = vdwg.mxu0
        %4700 = vmatpush.msra.mxu0 %v4369
        %4701 = vmatpush.msra.mxu0 %v4361
        %4702 = vmatpush.msra.mxu0 %v4353
        %4703 = vmatpush.msra.mxu0 %v4345
        %4704 = vmatpush.msra.mxu0 %v4337
        %4705 = vmatpush.msra.mxu0 %v4329
        %4706 = vmatpush.msra.mxu0 %v4321
        %4707 = vmatpush.msra.mxu0 %v4313
        %4708 = vmatpush.msra.mxu0 %v4305
        %4709 = vmatpush.msra.mxu0 %v4297
        %4710 = vmatpush.msra.mxu0 %v4289
        %4711 = vmatpush.msra.mxu0 %v4281
        %4712 = vmatpush.msra.mxu0 %v4273
        %4713 = vmatpush.msra.mxu0 %v4265
        %4714 = vmatpush.msra.mxu0 %v4257
        %4715 = vmatpush.msra.mxu0 %v4249
        %4716 = vmatmul.f32.gmra.mxu0 %v4242
        %v4717 = vpop.f32.mrf.mxu0
        %v4718 = vadd.f32 0.0, %v4717
        %4719 = vdwg.mxu0
        %4720 = vmatpush.msra.mxu0 %v4497
        %4721 = vmatpush.msra.mxu0 %v4489
        %4722 = vmatpush.msra.mxu0 %v4481
        %4723 = vmatpush.msra.mxu0 %v4473
        %4724 = vmatpush.msra.mxu0 %v4465
        %4725 = vmatpush.msra.mxu0 %v4457
        %4726 = vmatpush.msra.mxu0 %v4449
        %4727 = vmatpush.msra.mxu0 %v4441
        %4728 = vmatpush.msra.mxu0 %v4433
        %4729 = vmatpush.msra.mxu0 %v4425
        %4730 = vmatpush.msra.mxu0 %v4417
        %4731 = vmatpush.msra.mxu0 %v4409
        %4732 = vmatpush.msra.mxu0 %v4401
        %4733 = vmatpush.msra.mxu0 %v4393
        %4734 = vmatpush.msra.mxu0 %v4385
        %4735 = vmatpush.msra.mxu0 %v4377
        %4736 = vmatmul.f32.gmra.mxu0 %v4243
        %v4737 = vpop.f32.mrf.mxu0
        %v4738 = vadd.f32 %v4718, %v4737
        %4739 = vdwg.mxu0
        %4740 = vmatpush.msra.mxu0 %v4370
        %4741 = vmatpush.msra.mxu0 %v4362
        %4742 = vmatpush.msra.mxu0 %v4354
        %4743 = vmatpush.msra.mxu0 %v4346
        %4744 = vmatpush.msra.mxu0 %v4338
        %4745 = vmatpush.msra.mxu0 %v4330
        %4746 = vmatpush.msra.mxu0 %v4322
        %4747 = vmatpush.msra.mxu0 %v4314
        %4748 = vmatpush.msra.mxu0 %v4306
        %4749 = vmatpush.msra.mxu0 %v4298
        %4750 = vmatpush.msra.mxu0 %v4290
        %4751 = vmatpush.msra.mxu0 %v4282
        %4752 = vmatpush.msra.mxu0 %v4274
        %4753 = vmatpush.msra.mxu0 %v4266
        %4754 = vmatpush.msra.mxu0 %v4258
        %4755 = vmatpush.msra.mxu0 %v4250
        %4756 = vmatmul.f32.gmra.mxu0 %v4242
        %v4757 = vpop.f32.mrf.mxu0
        %v4758 = vadd.f32 0.0, %v4757
        %4759 = vdwg.mxu0
        %4760 = vmatpush.msra.mxu0 %v4498
        %4761 = vmatpush.msra.mxu0 %v4490
        %4762 = vmatpush.msra.mxu0 %v4482
        %4763 = vmatpush.msra.mxu0 %v4474
        %4764 = vmatpush.msra.mxu0 %v4466
        %4765 = vmatpush.msra.mxu0 %v4458
        %4766 = vmatpush.msra.mxu0 %v4450
        %4767 = vmatpush.msra.mxu0 %v4442
        %4768 = vmatpush.msra.mxu0 %v4434
        %4769 = vmatpush.msra.mxu0 %v4426
        %4770 = vmatpush.msra.mxu0 %v4418
        %4771 = vmatpush.msra.mxu0 %v4410
        %4772 = vmatpush.msra.mxu0 %v4402
        %4773 = vmatpush.msra.mxu0 %v4394
        %4774 = vmatpush.msra.mxu0 %v4386
        %4775 = vmatpush.msra.mxu0 %v4378
        %4776 = vmatmul.f32.gmra.mxu0 %v4243
        %v4777 = vpop.f32.mrf.mxu0
        %v4778 = vadd.f32 %v4758, %v4777
        %4779 = vdwg.mxu0
        %4780 = vmatpush.msra.mxu0 %v4371
        %4781 = vmatpush.msra.mxu0 %v4363
        %4782 = vmatpush.msra.mxu0 %v4355
        %4783 = vmatpush.msra.mxu0 %v4347
        %4784 = vmatpush.msra.mxu0 %v4339
        %4785 = vmatpush.msra.mxu0 %v4331
        %4786 = vmatpush.msra.mxu0 %v4323
        %4787 = vmatpush.msra.mxu0 %v4315
        %4788 = vmatpush.msra.mxu0 %v4307
        %4789 = vmatpush.msra.mxu0 %v4299
        %4790 = vmatpush.msra.mxu0 %v4291
        %4791 = vmatpush.msra.mxu0 %v4283
        %4792 = vmatpush.msra.mxu0 %v4275
        %4793 = vmatpush.msra.mxu0 %v4267
        %4794 = vmatpush.msra.mxu0 %v4259
        %4795 = vmatpush.msra.mxu0 %v4251
        %4796 = vmatmul.f32.gmra.mxu0 %v4242
        %v4797 = vpop.f32.mrf.mxu0
        %v4798 = vadd.f32 0.0, %v4797
        %4799 = vdwg.mxu0
        %4800 = vmatpush.msra.mxu0 %v4499
        %4801 = vmatpush.msra.mxu0 %v4491
        %4802 = vmatpush.msra.mxu0 %v4483
        %4803 = vmatpush.msra.mxu0 %v4475
        %4804 = vmatpush.msra.mxu0 %v4467
        %4805 = vmatpush.msra.mxu0 %v4459
        %4806 = vmatpush.msra.mxu0 %v4451
        %4807 = vmatpush.msra.mxu0 %v4443
        %4808 = vmatpush.msra.mxu0 %v4435
        %4809 = vmatpush.msra.mxu0 %v4427
        %4810 = vmatpush.msra.mxu0 %v4419
        %4811 = vmatpush.msra.mxu0 %v4411
        %4812 = vmatpush.msra.mxu0 %v4403
        %4813 = vmatpush.msra.mxu0 %v4395
        %4814 = vmatpush.msra.mxu0 %v4387
        %4815 = vmatpush.msra.mxu0 %v4379
        %4816 = vmatmul.f32.gmra.mxu0 %v4243
        %v4817 = vpop.f32.mrf.mxu0
        %v4818 = vadd.f32 %v4798, %v4817
        %4819 = vdwg.mxu0
        %4820 = vset.pattern.permute.xlu0 3
        %4821 = vperm.xlu0 %4820, %v327
        %v4822 = vpop.permute.xlu0 %4821
        %v4824 = vmul.f32 %v4538, %v4822
        %v4825 = vmul.f32 %v4578, %v4822
        %v4826 = vmul.f32 %v4618, %v4822
        %v4827 = vmul.f32 %v4658, %v4822
        %v4828 = vmul.f32 %v4698, %v4822
        %v4829 = vmul.f32 %v4738, %v4822
        %v4830 = vmul.f32 %v4778, %v4822
        %v4831 = vmul.f32 %v4818, %v4822
        %4832 = vset.pattern.permute.xlu0 3
        %4833 = vperm.xlu0 %4832, %v328
        %v4834 = vpop.permute.xlu0 %4833
        %v4836 = vadd.f32 %v4824, %v4834
        %v4837 = vadd.f32 %v4825, %v4834
        %v4838 = vadd.f32 %v4826, %v4834
        %v4839 = vadd.f32 %v4827, %v4834
        %v4840 = vadd.f32 %v4828, %v4834
        %v4841 = vadd.f32 %v4829, %v4834
        %v4842 = vadd.f32 %v4830, %v4834
        %v4843 = vadd.f32 %v4831, %v4834
        %v4844 = vadd.f32 %v4836, %v1878
        %v4845 = vadd.f32 %v4837, %v1879
        %v4846 = vadd.f32 %v4838, %v1880
        %v4847 = vadd.f32 %v4839, %v1881
        %v4848 = vadd.f32 %v4840, %v1882
        %v4849 = vadd.f32 %v4841, %v1883
        %v4850 = vadd.f32 %v4842, %v1884
        %v4851 = vadd.f32 %v4843, %v1885
        %4852 = vst [vmem:[%s325] sm:$0xff] %v4844
        %4853 = vst [vmem:[%s325 + $0x8] sm:$0xff] %v4845
        %4854 = vst [vmem:[%s325 + $0x10] sm:$0xff] %v4846
        %4855 = vst [vmem:[%s325 + $0x18] sm:$0xff] %v4847
        %4856 = vst [vmem:[%s325 + $0x20] sm:$0xff] %v4848
        %4857 = vst [vmem:[%s325 + $0x28] sm:$0xff] %v4849
        %4858 = vst [vmem:[%s325 + $0x30] sm:$0xff] %v4850
        %4859 = vst [vmem:[%s325 + $0x38] sm:$0xff] %v4851
        %s4860 = sand.u32 %s183, 1
        %s4861 = scalar_lea.sflag [#allocation5], %s4860
        %s4862 = sand.u32 %s183, 1
        %s4863 = smul.addr %s4862, 64
        %s4864 = scalar_lea.vmem [#allocation9], %s4863
        // Predicated region
        $region61: #{tpu_custom_call.1} parent=47 // pred_check
          %p4865 = pneg %p193
        $region62: #{tpu_custom_call.1} parent=47 // pred_check_branch
          %4867 = sbr.rel (%p4865) target = $region64
        $region63: #{tpu_custom_call.1} parent=47 // pred_region
          %4869 = vsyncadd %s4861, 0
          %s4870 = smul.addr %s23, 8
          %s4871 = smul.addr %s4870, 8
          %s4872 = scalar_lea.hbm %s7, %s4871
          %s4874 = sshll.u32 %s4864, 4
          %s4875 = int_to_ptr.vmem [resolvable:$true] %s4874
          %s4876 = sshll.u32 %s4872, 4
          %s4877 = int_to_ptr.hbm [resolvable:$true] %s4876
          %4879 = dma.vmem_to_hbm [thread:$0]  %s4875, 1024, %s4877, %s4861
        $region64: #{tpu_custom_call.1} parent=47 // pred_fallthru
          _
      $region48: #{tpu_custom_call.1} parent=5 // pred_fallthru
        _
      %p4880 = scmp.le.s32.totalorder 2, %s18
      // Predicated region
      $region65: #{tpu_custom_call.1} parent=5 // pred_check
        %p4881 = pneg %p4880
      $region66: #{tpu_custom_call.1} parent=5 // pred_check_branch
        %4883 = sbr.rel (%p4881) target = $region68
      $region67: #{tpu_custom_call.1} parent=5 // pred_region
        %s4884 = ssub.s32 %s18, 2
        // Predicated region
        $region69: #{tpu_custom_call.1} parent=67 // pred_check
          %p4885 = pneg %p199
        $region70: #{tpu_custom_call.1} parent=67 // pred_check_branch
          %4887 = sbr.rel (%p4885) target = $region72
        $region71: #{tpu_custom_call.1} parent=67 // pred_region
          %s4888 = sand.u32 %s184, 1
          %s4889 = scalar_lea.sflag [#allocation5], %s4888
          %s4890 = sand.u32 %s184, 1
          %s4891 = smul.addr %s4890, 64
          %s4892 = scalar_lea.vmem [#allocation9], %s4891
          %4894 = dma.done %s4889, 1024
        $region72: #{tpu_custom_call.1} parent=67 // pred_fallthru
          _
      $region68: #{tpu_custom_call.1} parent=5 // pred_fallthru
        _
    $region6: #{tpu_custom_call.1} parent=1 // loop_footer
      %s22 = sadd.s32 1, %s18
    $region7: #{tpu_custom_call.1} parent=1 // loop_footer_branch
      %17 = sbr.rel target = $region3
    $region8: #{tpu_custom_call.1} parent=1 // loop_exit
      _
    %4895 = vsyncpa [#allocation4], 1
    %s4896 = scalar_lea.sflag [#allocation4], 1
    %4897 = vsyncpa %s4896, 1
    %4898 = vsyncpa [#allocation7], 1
    %4899 = vsyncpa [#allocation5], 1
    %s4900 = scalar_lea.sflag [#allocation5], 1
    %4901 = vsyncpa %s4900, 1

</llo_original>
